<compile_context>
chip_gen: v7x
topology: tpu7x:2x2x1
jax: 0.10.0
libtpu: 0.0.40
codegen_flags: <defaults>
</compile_context>

<pallas_src>
import functools

import jax
import jax.numpy as jnp
from jax import lax
from jax.experimental import pallas as pl
from jax.experimental.pallas import tpu as pltpu


# ----------------------------- Pallas kernel --------------------------------
def _fused_hyponet_kernel(lat_ref, crd_ref, *refs, n_layer):
    """Fused modulated-MLP over one token tile.

    lat_ref : (TT, C_lat) token-major latent tile (streamed from HBM).
    crd_ref : (TT, C_crd) token-major coord tile (streamed from HBM).
    refs    : (w0_lat, w0_crd, b0, w1, b1, ..., w_{L-1}, b_{L-1}, o_ref)
              w0_lat (C_lat, H0) / w0_crd (C_crd, H0) : layer-0 weight split by
              input group, input-major (pre-normalized, siren w0 folded in).
              w_i (fan_out, fan_in), b_i (fan_out, 1) : feature-major layers.
              o_ref (out_dim, TT): lane-dense feature-major output tile.
    """
    o_ref = refs[-1]
    prec = lax.Precision.HIGHEST

    w0_lat = refs[0][...]
    w0_crd = refs[1][...]
    b0 = refs[2][...]

    # Layer 0 in token-major orientation (matches the incoming tile layout);
    # the concat([latent, coord]) of the reference becomes the sum of two dots.
    a0 = jnp.dot(lat_ref[...], w0_lat,
                 preferred_element_type=jnp.float32, precision=prec)
    a0 = a0 + jnp.dot(crd_ref[...], w0_crd,
                      preferred_element_type=jnp.float32, precision=prec)

    # Single well-shaped (TT, H0) -> (H0, TT) transpose (XLU slot) puts tokens
    # on the lane axis; everything downstream, including the narrow out_dim=4
    # store, stays lane-dense.
    h = jnp.transpose(a0) + b0                     # (H0, TT)
    if n_layer > 1:
        h = jnp.sin(h)                             # siren (w0 folded on host)

    for i in range(1, n_layer):                    # unrolled at trace time
        w = refs[3 + 2 * (i - 1)][...]             # (fan_out, fan_in)
        b = refs[4 + 2 * (i - 1)][...]             # (fan_out, 1)
        h = jnp.dot(w, h, preferred_element_type=jnp.float32, precision=prec) + b
        if i < n_layer - 1:
            h = jnp.sin(h)

    o_ref[...] = h.astype(o_ref.dtype)


# --------------------------- tiling heuristics -------------------------------
def _num_tensorcores():
    """Best-effort TensorCore count of device 0 (v7x megacore awareness)."""
    try:
        d = jax.devices()[0]
        for attr in ("num_cores", "core_count"):
            v = getattr(d, attr, None)
            if isinstance(v, int) and v > 0:
                return v
    except Exception:
        pass
    return 1


def _pick_token_tile(n_tokens, max_tile=4096, num_cores=1):
    """Token tile policy.

    * n_tokens > max_tile: stream multiple-of-128 tiles of size max_tile
      (lane-dense output stores; grid >= 2 so megacore sharding applies).
    * otherwise: one block per TensorCore when that divides evenly (v7x),
      else a single full block (minimizes the ~0.35 us per-step overhead;
      full-dim blocks are always layout-legal).
    max_tile is a sweepable cap: at 4096 the double-buffered working set is
    ~10-16 MiB; on 128 MiB-VMEM chips (v5e/v6e) it can be raised to 8192-16384
    together with vmem_limit_bytes.
    """
    if n_tokens > max_tile:
        return max(128, (max_tile // 128) * 128)
    if num_cores > 1 and n_tokens >= 2 * 128:
        per_core = -(-n_tokens // num_cores)       # ceil
        per_core = -(-per_core // 128) * 128       # round up to 128
        if per_core >= 128 and n_tokens % per_core == 0:
            return per_core
    return n_tokens


# ------------------------------ pallas wrapper --------------------------------
def fused_hyponet_mlp(lat, crd, flat_wb, *, token_tile=None, max_token_tile=4096,
                      vmem_limit_bytes=32 * 1024 * 1024):
    """lat: (N, C_lat), crd: (N, C_crd) token-major f32 inputs.
    flat_wb: flat weight list from prepare_layer_params.
    Returns (out_dim, N) feature-major f32."""
    n_tokens, c_lat = lat.shape
    c_crd = crd.shape[1]
    n_layer = (len(flat_wb) - 3) // 2 + 1
    out_dim = flat_wb[-1].shape[0]                 # last bias is (out_dim, 1)

    if token_tile is None:
        token_tile = _pick_token_tile(n_tokens, max_token_tile, _num_tensorcores())
    grid = (pl.cdiv(n_tokens, token_tile),)

    in_specs = [
        pl.BlockSpec((token_tile, c_lat), lambda i: (i, 0)),   # streamed tiles
        pl.BlockSpec((token_tile, c_crd), lambda i: (i, 0)),
    ]
    for arr in flat_wb:
        # Few-KiB constants: full-array block, constant index_map -> fetched
        # once and resident in VMEM for the whole grid (no per-step re-DMA).
        in_specs.append(pl.BlockSpec(arr.shape, lambda i: (0, 0)))

    # Advisory cost so XLA overlaps the surrounding resize/reshape fusions.
    flops_tok = 2 * (c_lat + c_crd) * flat_wb[0].shape[1]
    trans_tok = flat_wb[2].shape[0] if n_layer > 1 else 0
    for i in range(1, n_layer):
        w = flat_wb[3 + 2 * (i - 1)]
        flops_tok += 2 * w.shape[0] * w.shape[1]
        if i < n_layer - 1:
            trans_tok += w.shape[0]
    cost = pl.CostEstimate(
        flops=flops_tok * n_tokens,
        transcendentals=trans_tok * n_tokens,
        bytes_accessed=4 * n_tokens * (c_lat + c_crd + out_dim)
        + sum(4 * int(a.size) for a in flat_wb),
    )

    kernel = functools.partial(_fused_hyponet_kernel, n_layer=n_layer)
    return pl.pallas_call(
        kernel,
        out_shape=jax.ShapeDtypeStruct((out_dim, n_tokens), jnp.float32),
        grid=grid,
        in_specs=in_specs,
        out_specs=pl.BlockSpec((out_dim, token_tile), lambda i: (0, i)),
        compiler_params=pltpu.CompilerParams(
            dimension_semantics=("parallel",),
            vmem_limit_bytes=vmem_limit_bytes,
        ),
        cost_estimate=cost,
    )(lat, crd, *flat_wb)


# ------------------------------ host-side prep --------------------------------
def prepare_layer_params(params, *, siren_w0, output_bias, latent_dim):
    """Fold the reference-module weight math into a flat kernel weight list:
      [w0_lat (C_lat,H0), w0_crd (C_crd,H0), b0 (H0,1),
       w1 (H1,H0), b1 (H1,1), ..., w_{L-1}, b_{L-1}].
    Per layer: L2-normalize weight columns over fan_in (F.normalize, eps 1e-12;
    the bias row is NOT normalized), fold siren_w0 into non-last layers
    (sin(w0*(xW+b)) == sin(x(w0 W)+w0 b)) and output_bias into the last bias.
    Weights are a few KiB; XLA fuses this prep, the kernel never recomputes it."""
    n_layer = len(params)
    flat = []
    for idx in range(n_layer):
        w, b = params[f"linear_wb{idx}"]            # (fan_in_w, fan_out), (1, fan_out)
        norm = jnp.sqrt(jnp.sum(w * w, axis=0, keepdims=True))
        w_n = (w / jnp.maximum(norm, 1e-12)).astype(jnp.float32)
        b_t = jnp.transpose(b).astype(jnp.float32)  # (fan_out, 1)
        if idx < n_layer - 1:
            w_n = w_n * siren_w0
            b_t = b_t * siren_w0
        else:
            b_t = b_t + output_bias
        if idx == 0:
            # Split layer-0 fan_in into the latent and coord input groups so the
            # kernel needs no in-kernel concat of odd channel counts.
            flat += [w_n[:latent_dim, :], w_n[latent_dim:, :], b_t]
        else:
            flat += [jnp.transpose(w_n), b_t]       # (fan_out, fan_in) feature-major
    return flat


def bilinear_resize_nhwc(x, out_h, out_w):
    """Matches torch F.interpolate(mode='bilinear', align_corners=False), NHWC."""
    _, in_h, in_w, _ = x.shape

    def src_index(out_size, in_size):
        scale = in_size / out_size
        i = jnp.arange(out_size, dtype=jnp.float32)
        src = jnp.maximum((i + 0.5) * scale - 0.5, 0.0)
        i0 = jnp.minimum(jnp.floor(src).astype(jnp.int32), in_size - 1)
        i1 = jnp.minimum(i0 + 1, in_size - 1)
        w1 = src - i0.astype(jnp.float32)
        return i0, i1, 1.0 - w1, w1

    y0, y1, wy0, wy1 = src_index(out_h, in_h)
    x0, x1, wx0, wx1 = src_index(out_w, in_w)
    rows = (x[:, y0, :, :] * wy0[None, :, None, None]
            + x[:, y1, :, :] * wy1[None, :, None, None])
    out = (rows[:, :, x0, :] * wx0[None, None, :, None]
           + rows[:, :, x1, :] * wx1[None, None, :, None])
    return out


def compute_params_shape(input_dim, add_coord_dim, n_layer, hidden_dim, output_dim,
                         use_bias=True):
    shapes = {}
    fan_in = input_dim + add_coord_dim
    fan_in = fan_in + 1 if use_bias else fan_in
    for i in range(n_layer - 1):
        shapes[f"linear_wb{i}"] = (fan_in, hidden_dim)
        fan_in = hidden_dim + 1 if use_bias else hidden_dim
    shapes[f"linear_wb{n_layer - 1}"] = (fan_in, output_dim)
    return shapes


def build_params(key, shapes, siren_w0):
    """Deterministic siren-style init, split into (W, b) since use_bias=True
    concatenates them as one (fan_in+1, fan_out) parameter in the PyTorch module."""
    params = {}
    for idx, (name, shape) in enumerate(shapes.items()):
        fan_in = shape[0] - 1  # exclude bias row
        key, kw, kb = jax.random.split(key, 3)
        bound = (1.0 / fan_in) if idx == 0 else (jnp.sqrt(6.0 / fan_in) / siren_w0)
        w = jax.random.uniform(kw, (fan_in, shape[1]), jnp.float32, -bound, bound)
        b_bound = jnp.sqrt(1.0 / fan_in)
        b = jax.random.uniform(kb, (1, shape[1]), jnp.float32, -b_bound, b_bound)
        params[name] = (w, b)
    return params


# ------------------------------ forward --------------------------------------
def hyponet_forward(coord, pixel_latent, params, *, siren_w0, output_bias,
                    token_tile=None, max_token_tile=4096):
    # coord: (B, T, H, W, input_dim); pixel_latent: (B, Hl, Wl, add_coord_dim) NHWC
    batch_size = coord.shape[0]
    coord_shape = coord.shape[1:-1]
    input_dim = coord.shape[-1]
    h_out, w_out = coord_shape[1], coord_shape[2]

    latent = bilinear_resize_nhwc(pixel_latent, h_out, w_out)      # (B, H, W, C_lat)
    latent_dim = latent.shape[-1]

    # Token-major flats are pure reshapes (no extra HBM round trips: no host-side
    # concat / transpose / pad any more).  Matches torch.cat([pixel_latent, coord]),
    # which requires the flattened token counts to agree (i.e. T == 1 in practice).
    lat_flat = latent.reshape(-1, latent_dim).astype(jnp.float32)   # (N, C_lat)
    crd_flat = coord.reshape(-1, input_dim).astype(jnp.float32)     # (N, C_crd)
    if lat_flat.shape[0] != crd_flat.shape[0]:
        raise ValueError("flattened latent/coord token counts differ (T != 1?)")
    # TODO(synk): subsample_coords (sub_idx gather) path not exercised (sub_idx=None).
    # TODO(synk): bilinear upsample still runs as a host-side XLA op; fusing it into
    # the kernel (small latent grid resident in VMEM + in-kernel gather by
    # precomputed y0/y1/x0/x1 tables) would cut per-token input HBM traffic further.

    flat_wb = prepare_layer_params(params, siren_w0=siren_w0,
                                   output_bias=output_bias, latent_dim=latent_dim)
    out_fm = fused_hyponet_mlp(lat_flat, crd_flat, flat_wb,
                               token_tile=token_tile,
                               max_token_tile=max_token_tile)        # (out_dim, N)
    out_dim = out_fm.shape[0]
    # Lane-dense (out_dim, N) kernel output; the cheap 4-channel transpose stays outside.
    return jnp.transpose(out_fm).reshape(batch_size, *coord_shape, out_dim)


def hyponet_reference(coord, pixel_latent, params, *, siren_w0, output_bias):
    """Pure-JAX reference mirroring the PyTorch forward (modulation=None)."""
    batch_size = coord.shape[0]
    coord_shape = coord.shape[1:-1]
    input_dim = coord.shape[-1]
    latent = bilinear_resize_nhwc(pixel_latent, coord_shape[1], coord_shape[2])
    hidden = jnp.concatenate(
        [latent.reshape(batch_size, -1, latent.shape[-1]),
         coord.reshape(batch_size, -1, input_dim)], axis=-1).astype(jnp.float32)
    n_layer = len(params)
    for idx in range(n_layer):
        w, b = params[f"linear_wb{idx}"]
        norm = jnp.sqrt(jnp.sum(w * w, axis=0, keepdims=True))
        w_n = w / jnp.maximum(norm, 1e-12)
        hidden = jnp.dot(hidden, w_n, precision=lax.Precision.HIGHEST) + b
        if idx < n_layer - 1:
            hidden = jnp.sin(siren_w0 * hidden)
    out = hidden + output_bias
    return out.reshape(batch_size, *coord_shape, out.shape[-1])


# -------------------------------- main ---------------------------------------
if __name__ == "__main__":
    key = jax.random.PRNGKey(0)

    # Small config consistent with HypoNet: n_layer=3, hidden_dim=[32],
    # input_dim=3 coords, add_coord_dim=32 pixel-latent channels, output_dim=4.
    B, T, H, W = 2, 1, 16, 16
    input_dim, add_coord_dim = 3, 32
    n_layer, hidden_dim, output_dim = 3, 32, 4
    siren_w0, output_bias = 30.0, 0.0

    shapes = compute_params_shape(input_dim, add_coord_dim, n_layer, hidden_dim,
                                  output_dim, use_bias=True)
    kc, kl, kp = jax.random.split(key, 3)
    coord = jax.random.uniform(kc, (B, T, H, W, input_dim), jnp.float32, -1.0, 1.0)
    pixel_latent = jax.random.normal(kl, (B, 8, 8, add_coord_dim), jnp.float32)
    params = build_params(kp, shapes, siren_w0)

    ref = hyponet_reference(coord, pixel_latent, params,
                            siren_w0=siren_w0, output_bias=output_bias)

    # Default tiling (single block for this size).
    fwd = jax.jit(functools.partial(hyponet_forward, siren_w0=siren_w0,
                                    output_bias=output_bias))
    out = fwd(coord, pixel_latent, params)
    jax.block_until_ready(out)
    assert out.shape == (B, T, H, W, output_dim), out.shape
    assert out.dtype == jnp.float32
    max_err = float(jnp.max(jnp.abs(out - ref)))
    # siren with w0=30 on random inputs amplifies ulp-level differences, so allow
    # slack; genuine semantic bugs produce O(1) differences.
    assert max_err < 5e-2, f"max |pallas - ref| = {max_err}"

    # Also exercise the multi-step (grid > 1) streaming path explicitly.
    fwd_tiled = jax.jit(functools.partial(hyponet_forward, siren_w0=siren_w0,
                                          output_bias=output_bias, token_tile=128))
    out_tiled = fwd_tiled(coord, pixel_latent, params)
    jax.block_until_ready(out_tiled)
    max_err_tiled = float(jnp.max(jnp.abs(out_tiled - ref)))
    assert max_err_tiled < 5e-2, f"max |pallas(tiled) - ref| = {max_err_tiled}"

    print("KERNEL_OK")
</pallas_src>

<mosaic_0001>
module attributes {stable_mosaic.version = 11 : i64} {
  func.func @_fused_hyponet_kernel(%arg0: i32, %arg1: memref<512x32xf32, #tpu.memory_space<vmem>>, %arg2: memref<512x3xf32, #tpu.memory_space<vmem>>, %arg3: memref<32x32xf32, #tpu.memory_space<vmem>>, %arg4: memref<3x32xf32, #tpu.memory_space<vmem>>, %arg5: memref<32x1xf32, #tpu.memory_space<vmem>>, %arg6: memref<32x32xf32, #tpu.memory_space<vmem>>, %arg7: memref<32x1xf32, #tpu.memory_space<vmem>>, %arg8: memref<4x32xf32, #tpu.memory_space<vmem>>, %arg9: memref<4x1xf32, #tpu.memory_space<vmem>>, %arg10: memref<4x512xf32, #tpu.memory_space<vmem>>) attributes {dimension_semantics = [#tpu.dimension_semantics<parallel>], iteration_bounds = array<i64: 1>, scalar_prefetch = 0 : i64, scratch_operands = 0 : i64, tpu.core_type = #tpu.core_type<tc>, window_params = [{transform_indices = @transform_0, window_bounds = array<i64: 512, 32>}, {transform_indices = @transform_1, window_bounds = array<i64: 512, 3>}, {pipeline_mode = #tpu.pipeline_mode<synchronous>, transform_indices = @transform_2, window_bounds = array<i64: 32, 32>}, {pipeline_mode = #tpu.pipeline_mode<synchronous>, transform_indices = @transform_3, window_bounds = array<i64: 3, 32>}, {pipeline_mode = #tpu.pipeline_mode<synchronous>, transform_indices = @transform_4, window_bounds = array<i64: 32, 1>}, {pipeline_mode = #tpu.pipeline_mode<synchronous>, transform_indices = @transform_5, window_bounds = array<i64: 32, 32>}, {pipeline_mode = #tpu.pipeline_mode<synchronous>, transform_indices = @transform_6, window_bounds = array<i64: 32, 1>}, {pipeline_mode = #tpu.pipeline_mode<synchronous>, transform_indices = @transform_7, window_bounds = array<i64: 4, 32>}, {pipeline_mode = #tpu.pipeline_mode<synchronous>, transform_indices = @transform_8, window_bounds = array<i64: 4, 1>}, {transform_indices = @transform_9, window_bounds = array<i64: 4, 512>}]} {
    %c0 = arith.constant 0 : index
    %c0_0 = arith.constant 0 : index
    %0 = vector.load %arg3[%c0, %c0_0] : memref<32x32xf32, #tpu.memory_space<vmem>>, vector<32x32xf32>
    %c0_1 = arith.constant 0 : index
    %c0_2 = arith.constant 0 : index
    %1 = vector.load %arg4[%c0_1, %c0_2] : memref<3x32xf32, #tpu.memory_space<vmem>>, vector<3x32xf32>
    %c0_3 = arith.constant 0 : index
    %c0_4 = arith.constant 0 : index
    %2 = vector.load %arg5[%c0_3, %c0_4] : memref<32x1xf32, #tpu.memory_space<vmem>>, vector<32x1xf32>
    %c0_5 = arith.constant 0 : index
    %c0_6 = arith.constant 0 : index
    %3 = vector.load %arg1[%c0_5, %c0_6] : memref<512x32xf32, #tpu.memory_space<vmem>>, vector<512x32xf32>
    %cst = arith.constant dense<0.000000e+00> : vector<512x32xf32>
    %4 = tpu.matmul %3, %0, %cst {dimension_numbers = #tpu.dot_dimension_numbers<[1], [0], [0], [1], [0, 0, 1, 1], [], []>, precision = #tpu.contract_precision<fp32>} : vector<512x32xf32>, vector<32x32xf32>, vector<512x32xf32> -> vector<512x32xf32>
    %c0_7 = arith.constant 0 : index
    %c0_8 = arith.constant 0 : index
    %5 = vector.load %arg2[%c0_7, %c0_8] : memref<512x3xf32, #tpu.memory_space<vmem>>, vector<512x3xf32>
    %cst_9 = arith.constant dense<0.000000e+00> : vector<512x32xf32>
    %6 = tpu.matmul %5, %1, %cst_9 {dimension_numbers = #tpu.dot_dimension_numbers<[1], [0], [0], [1], [0, 0, 1, 1], [], []>, precision = #tpu.contract_precision<fp32>} : vector<512x3xf32>, vector<3x32xf32>, vector<512x32xf32> -> vector<512x32xf32>
    %7 = arith.addf %4, %6 : vector<512x32xf32>
    %8 = tpu.transpose %7, [1, 0] : vector<512x32xf32> -> vector<32x512xf32>
    %9 = vector.broadcast %2 : vector<32x1xf32> to vector<32x512xf32>
    %10 = arith.addf %8, %9 : vector<32x512xf32>
    %11 = math.sin %10 : vector<32x512xf32>
    %c0_10 = arith.constant 0 : index
    %c0_11 = arith.constant 0 : index
    %12 = vector.load %arg6[%c0_10, %c0_11] : memref<32x32xf32, #tpu.memory_space<vmem>>, vector<32x32xf32>
    %c0_12 = arith.constant 0 : index
    %c0_13 = arith.constant 0 : index
    %13 = vector.load %arg7[%c0_12, %c0_13] : memref<32x1xf32, #tpu.memory_space<vmem>>, vector<32x1xf32>
    %cst_14 = arith.constant dense<0.000000e+00> : vector<32x512xf32>
    %14 = tpu.matmul %12, %11, %cst_14 {dimension_numbers = #tpu.dot_dimension_numbers<[1], [0], [0], [1], [0, 0, 1, 1], [], []>, precision = #tpu.contract_precision<fp32>} : vector<32x32xf32>, vector<32x512xf32>, vector<32x512xf32> -> vector<32x512xf32>
    %15 = vector.broadcast %13 : vector<32x1xf32> to vector<32x512xf32>
    %16 = arith.addf %14, %15 : vector<32x512xf32>
    %17 = math.sin %16 : vector<32x512xf32>
    %c0_15 = arith.constant 0 : index
    %c0_16 = arith.constant 0 : index
    %18 = vector.load %arg8[%c0_15, %c0_16] : memref<4x32xf32, #tpu.memory_space<vmem>>, vector<4x32xf32>
    %c0_17 = arith.constant 0 : index
    %c0_18 = arith.constant 0 : index
    %19 = vector.load %arg9[%c0_17, %c0_18] : memref<4x1xf32, #tpu.memory_space<vmem>>, vector<4x1xf32>
    %cst_19 = arith.constant dense<0.000000e+00> : vector<4x512xf32>
    %20 = tpu.matmul %18, %17, %cst_19 {dimension_numbers = #tpu.dot_dimension_numbers<[1], [0], [0], [1], [0, 0, 1, 1], [], []>, precision = #tpu.contract_precision<fp32>} : vector<4x32xf32>, vector<32x512xf32>, vector<4x512xf32> -> vector<4x512xf32>
    %21 = vector.broadcast %19 : vector<4x1xf32> to vector<4x512xf32>
    %22 = arith.addf %20, %21 : vector<4x512xf32>
    %c0_20 = arith.constant 0 : index
    %c0_21 = arith.constant 0 : index
    %23 = vector.load %arg10[%c0_20, %c0_21] : memref<4x512xf32, #tpu.memory_space<vmem>>, vector<4x512xf32>
    tpu.vector_store %arg10[%c0_20, %c0_21], %22 {strides = array<i32>} : memref<4x512xf32, #tpu.memory_space<vmem>>, vector<4x512xf32>,
    return
  }
  func.func @transform_0(%arg0: i32) -> (i32, i32) {
    %c0_i32 = arith.constant 0 : i32
    %c0_i32_0 = arith.constant 0 : i32
    return %arg0, %c0_i32 : i32, i32
  }
  func.func @transform_1(%arg0: i32) -> (i32, i32) {
    %c0_i32 = arith.constant 0 : i32
    %c0_i32_0 = arith.constant 0 : i32
    return %arg0, %c0_i32 : i32, i32
  }
  func.func @transform_2(%arg0: i32) -> (i32, i32) {
    %c0_i32 = arith.constant 0 : i32
    %c0_i32_0 = arith.constant 0 : i32
    %c0_i32_1 = arith.constant 0 : i32
    return %c0_i32, %c0_i32_0 : i32, i32
  }
  func.func @transform_3(%arg0: i32) -> (i32, i32) {
    %c0_i32 = arith.constant 0 : i32
    %c0_i32_0 = arith.constant 0 : i32
    %c0_i32_1 = arith.constant 0 : i32
    return %c0_i32, %c0_i32_0 : i32, i32
  }
  func.func @transform_4(%arg0: i32) -> (i32, i32) {
    %c0_i32 = arith.constant 0 : i32
    %c0_i32_0 = arith.constant 0 : i32
    %c0_i32_1 = arith.constant 0 : i32
    return %c0_i32, %c0_i32_0 : i32, i32
  }
  func.func @transform_5(%arg0: i32) -> (i32, i32) {
    %c0_i32 = arith.constant 0 : i32
    %c0_i32_0 = arith.constant 0 : i32
    %c0_i32_1 = arith.constant 0 : i32
    return %c0_i32, %c0_i32_0 : i32, i32
  }
  func.func @transform_6(%arg0: i32) -> (i32, i32) {
    %c0_i32 = arith.constant 0 : i32
    %c0_i32_0 = arith.constant 0 : i32
    %c0_i32_1 = arith.constant 0 : i32
    return %c0_i32, %c0_i32_0 : i32, i32
  }
  func.func @transform_7(%arg0: i32) -> (i32, i32) {
    %c0_i32 = arith.constant 0 : i32
    %c0_i32_0 = arith.constant 0 : i32
    %c0_i32_1 = arith.constant 0 : i32
    return %c0_i32, %c0_i32_0 : i32, i32
  }
  func.func @transform_8(%arg0: i32) -> (i32, i32) {
    %c0_i32 = arith.constant 0 : i32
    %c0_i32_0 = arith.constant 0 : i32
    %c0_i32_1 = arith.constant 0 : i32
    return %c0_i32, %c0_i32_0 : i32, i32
  }
  func.func @transform_9(%arg0: i32) -> (i32, i32) {
    %c0_i32 = arith.constant 0 : i32
    %c0_i32_0 = arith.constant 0 : i32
    return %c0_i32, %arg0 : i32, i32
  }
}

</mosaic_0001>

<llo_original>
// kernel: hyponet_forward.1
$region0: #{hyponet_forward.1}
  #allocation0 [shape = 'u32[]', space=smem, size = 0x4, offset = 0x4, fixed_abs, tag = 'smem constant byte address 0x4 - core index']
  #allocation1 [shape = 'u32[144,128]{1,0:T(1,128)}', space=vmem, size = 0x12000, scoped, tag = 'internal scratch']
  %s0 = inlined_call_operand.vmem [shape: f32[512,32], index: 0, kind: input, shape index: {}]
  %s1 = inlined_call_operand.vmem [shape: f32[512,3], index: 1, kind: input, shape index: {}]
  %s2 = inlined_call_operand.vmem [shape: f32[32,32], index: 2, kind: input, shape index: {}]
  %s3 = inlined_call_operand.vmem [shape: f32[3,32], index: 3, kind: input, shape index: {}]
  %s4 = inlined_call_operand.vmem [shape: f32[32,1], index: 4, kind: input, shape index: {}]
  %s5 = inlined_call_operand.vmem [shape: f32[32,32], index: 5, kind: input, shape index: {}]
  %s6 = inlined_call_operand.vmem [shape: f32[32,1], index: 6, kind: input, shape index: {}]
  %s7 = inlined_call_operand.vmem [shape: f32[4,32], index: 7, kind: input, shape index: {}]
  %s8 = inlined_call_operand.vmem [shape: f32[4,1], index: 8, kind: input, shape index: {}]
  %s9 = inlined_call_operand.vmem [shape: f32[4,512], index: 9, kind: output, shape index: {}]
  %s10 = sld [smem:[#allocation0]]
  $region46: #{hyponet_forward.1} parent=0
    _
  %s12 = ssub.s32 1, %s10
  %s13 = scalar_select 0, %s12, %s10
  // Predicated region
  $region2: #{hyponet_forward.1} parent=0 // pred_check
    _
  $region3: #{hyponet_forward.1} parent=0 // pred_check_branch
    %15 = sbr.rel (0) target = $region5
  $region4: #{hyponet_forward.1} parent=0 // pred_region
    _
  $region5: #{hyponet_forward.1} parent=0 // pred_fallthru
    _
  // Predicated region
  $region6: #{hyponet_forward.1} parent=0 // pred_check
    _
  $region7: #{hyponet_forward.1} parent=0 // pred_check_branch
    %17 = sbr.rel (0) target = $region9
  $region8: #{hyponet_forward.1} parent=0 // pred_region
    _
  $region9: #{hyponet_forward.1} parent=0 // pred_fallthru
    _
  // Predicated region
  $region10: #{hyponet_forward.1} parent=0 // pred_check
    _
  $region11: #{hyponet_forward.1} parent=0 // pred_check_branch
    %19 = sbr.rel (0) target = $region13
  $region12: #{hyponet_forward.1} parent=0 // pred_region
    _
  $region13: #{hyponet_forward.1} parent=0 // pred_fallthru
    _
  // Predicated region
  $region14: #{hyponet_forward.1} parent=0 // pred_check
    _
  $region15: #{hyponet_forward.1} parent=0 // pred_check_branch
    %21 = sbr.rel (0) target = $region17
  $region16: #{hyponet_forward.1} parent=0 // pred_region
    _
  $region17: #{hyponet_forward.1} parent=0 // pred_fallthru
    _
  // Predicated region
  $region18: #{hyponet_forward.1} parent=0 // pred_check
    _
  $region19: #{hyponet_forward.1} parent=0 // pred_check_branch
    %23 = sbr.rel (0) target = $region21
  $region20: #{hyponet_forward.1} parent=0 // pred_region
    _
  $region21: #{hyponet_forward.1} parent=0 // pred_fallthru
    _
  // Predicated region
  $region22: #{hyponet_forward.1} parent=0 // pred_check
    _
  $region23: #{hyponet_forward.1} parent=0 // pred_check_branch
    %25 = sbr.rel (0) target = $region25
  $region24: #{hyponet_forward.1} parent=0 // pred_region
    _
  $region25: #{hyponet_forward.1} parent=0 // pred_fallthru
    _
  // Predicated region
  $region26: #{hyponet_forward.1} parent=0 // pred_check
    _
  $region27: #{hyponet_forward.1} parent=0 // pred_check_branch
    %27 = sbr.rel (0) target = $region29
  $region28: #{hyponet_forward.1} parent=0 // pred_region
    _
  $region29: #{hyponet_forward.1} parent=0 // pred_fallthru
    _
  // Predicated region
  $region30: #{hyponet_forward.1} parent=0 // pred_check
    _
  $region31: #{hyponet_forward.1} parent=0 // pred_check_branch
    %29 = sbr.rel (0) target = $region33
  $region32: #{hyponet_forward.1} parent=0 // pred_region
    _
  $region33: #{hyponet_forward.1} parent=0 // pred_fallthru
    _
  // Predicated region
  $region34: #{hyponet_forward.1} parent=0 // pred_check
    _
  $region35: #{hyponet_forward.1} parent=0 // pred_check_branch
    %31 = sbr.rel (0) target = $region37
  $region36: #{hyponet_forward.1} parent=0 // pred_region
    _
  $region37: #{hyponet_forward.1} parent=0 // pred_fallthru
    _
  %v32 = vld [vmem:[%s2] sm:$0xff]
  %v33 = vld [vmem:[%s2 + $0x8] sm:$0xff]
  %v34 = vld [vmem:[%s2 + $0x10] sm:$0xff]
  %v35 = vld [vmem:[%s2 + $0x18] sm:$0xff]
  %v36 = vld [vmem:[%s3] sm:$0x7]
  %v37 = vld [vmem:[%s4] sm:$0xff]
  %v38 = vld [vmem:[%s4 + $0x8] sm:$0xff]
  %v39 = vld [vmem:[%s4 + $0x10] sm:$0xff]
  %v40 = vld [vmem:[%s4 + $0x18] sm:$0xff]
  %v41 = vld [vmem:[%s0] sm:$0xff]
  %v42 = vld [vmem:[%s0 + $0x8] sm:$0xff]
  %v43 = vld [vmem:[%s0 + $0x10] sm:$0xff]
  %v44 = vld [vmem:[%s0 + $0x18] sm:$0xff]
  %v45 = vld [vmem:[%s0 + $0x20] sm:$0xff]
  %v46 = vld [vmem:[%s0 + $0x28] sm:$0xff]
  %v47 = vld [vmem:[%s0 + $0x30] sm:$0xff]
  %v48 = vld [vmem:[%s0 + $0x38] sm:$0xff]
  %v49 = vld [vmem:[%s0 + $0x40] sm:$0xff]
  %v50 = vld [vmem:[%s0 + $0x48] sm:$0xff]
  %v51 = vld [vmem:[%s0 + $0x50] sm:$0xff]
  %v52 = vld [vmem:[%s0 + $0x58] sm:$0xff]
  %v53 = vld [vmem:[%s0 + $0x60] sm:$0xff]
  %v54 = vld [vmem:[%s0 + $0x68] sm:$0xff]
  %v55 = vld [vmem:[%s0 + $0x70] sm:$0xff]
  %v56 = vld [vmem:[%s0 + $0x78] sm:$0xff]
  %v57 = vld [vmem:[%s0 + $0x80] sm:$0xff]
  %v58 = vld [vmem:[%s0 + $0x88] sm:$0xff]
  %v59 = vld [vmem:[%s0 + $0x90] sm:$0xff]
  %v60 = vld [vmem:[%s0 + $0x98] sm:$0xff]
  %v61 = vld [vmem:[%s0 + $0xa0] sm:$0xff]
  %v62 = vld [vmem:[%s0 + $0xa8] sm:$0xff]
  %v63 = vld [vmem:[%s0 + $0xb0] sm:$0xff]
  %v64 = vld [vmem:[%s0 + $0xb8] sm:$0xff]
  %v65 = vld [vmem:[%s0 + $0xc0] sm:$0xff]
  %v66 = vld [vmem:[%s0 + $0xc8] sm:$0xff]
  %v67 = vld [vmem:[%s0 + $0xd0] sm:$0xff]
  %v68 = vld [vmem:[%s0 + $0xd8] sm:$0xff]
  %v69 = vld [vmem:[%s0 + $0xe0] sm:$0xff]
  %v70 = vld [vmem:[%s0 + $0xe8] sm:$0xff]
  %v71 = vld [vmem:[%s0 + $0xf0] sm:$0xff]
  %v72 = vld [vmem:[%s0 + $0xf8] sm:$0xff]
  %v73 = vld [vmem:[%s0 + $0x100] sm:$0xff]
  %v74 = vld [vmem:[%s0 + $0x108] sm:$0xff]
  %v75 = vld [vmem:[%s0 + $0x110] sm:$0xff]
  %v76 = vld [vmem:[%s0 + $0x118] sm:$0xff]
  %v77 = vld [vmem:[%s0 + $0x120] sm:$0xff]
  %v78 = vld [vmem:[%s0 + $0x128] sm:$0xff]
  %v79 = vld [vmem:[%s0 + $0x130] sm:$0xff]
  %v80 = vld [vmem:[%s0 + $0x138] sm:$0xff]
  %v81 = vld [vmem:[%s0 + $0x140] sm:$0xff]
  %v82 = vld [vmem:[%s0 + $0x148] sm:$0xff]
  %v83 = vld [vmem:[%s0 + $0x150] sm:$0xff]
  %v84 = vld [vmem:[%s0 + $0x158] sm:$0xff]
  %v85 = vld [vmem:[%s0 + $0x160] sm:$0xff]
  %v86 = vld [vmem:[%s0 + $0x168] sm:$0xff]
  %v87 = vld [vmem:[%s0 + $0x170] sm:$0xff]
  %v88 = vld [vmem:[%s0 + $0x178] sm:$0xff]
  %v89 = vld [vmem:[%s0 + $0x180] sm:$0xff]
  %v90 = vld [vmem:[%s0 + $0x188] sm:$0xff]
  %v91 = vld [vmem:[%s0 + $0x190] sm:$0xff]
  %v92 = vld [vmem:[%s0 + $0x198] sm:$0xff]
  %v93 = vld [vmem:[%s0 + $0x1a0] sm:$0xff]
  %v94 = vld [vmem:[%s0 + $0x1a8] sm:$0xff]
  %v95 = vld [vmem:[%s0 + $0x1b0] sm:$0xff]
  %v96 = vld [vmem:[%s0 + $0x1b8] sm:$0xff]
  %v97 = vld [vmem:[%s0 + $0x1c0] sm:$0xff]
  %v98 = vld [vmem:[%s0 + $0x1c8] sm:$0xff]
  %v99 = vld [vmem:[%s0 + $0x1d0] sm:$0xff]
  %v100 = vld [vmem:[%s0 + $0x1d8] sm:$0xff]
  %v101 = vld [vmem:[%s0 + $0x1e0] sm:$0xff]
  %v102 = vld [vmem:[%s0 + $0x1e8] sm:$0xff]
  %v103 = vld [vmem:[%s0 + $0x1f0] sm:$0xff]
  %v104 = vld [vmem:[%s0 + $0x1f8] sm:$0xff]
  %v105 = vld [vmem:[%s1] sm:$0xff]
  %v106 = vld [vmem:[%s1 + $0x8] sm:$0xff]
  %v107 = vld [vmem:[%s1 + $0x10] sm:$0xff]
  %v108 = vld [vmem:[%s1 + $0x18] sm:$0xff]
  %v109 = vld [vmem:[%s1 + $0x20] sm:$0xff]
  %v110 = vld [vmem:[%s1 + $0x28] sm:$0xff]
  %v111 = vld [vmem:[%s1 + $0x30] sm:$0xff]
  %v112 = vld [vmem:[%s1 + $0x38] sm:$0xff]
  %v113 = vld [vmem:[%s1 + $0x40] sm:$0xff]
  %v114 = vld [vmem:[%s1 + $0x48] sm:$0xff]
  %v115 = vld [vmem:[%s1 + $0x50] sm:$0xff]
  %v116 = vld [vmem:[%s1 + $0x58] sm:$0xff]
  %v117 = vld [vmem:[%s1 + $0x60] sm:$0xff]
  %v118 = vld [vmem:[%s1 + $0x68] sm:$0xff]
  %v119 = vld [vmem:[%s1 + $0x70] sm:$0xff]
  %v120 = vld [vmem:[%s1 + $0x78] sm:$0xff]
  %v121 = vld [vmem:[%s1 + $0x80] sm:$0xff]
  %v122 = vld [vmem:[%s1 + $0x88] sm:$0xff]
  %v123 = vld [vmem:[%s1 + $0x90] sm:$0xff]
  %v124 = vld [vmem:[%s1 + $0x98] sm:$0xff]
  %v125 = vld [vmem:[%s1 + $0xa0] sm:$0xff]
  %v126 = vld [vmem:[%s1 + $0xa8] sm:$0xff]
  %v127 = vld [vmem:[%s1 + $0xb0] sm:$0xff]
  %v128 = vld [vmem:[%s1 + $0xb8] sm:$0xff]
  %v129 = vld [vmem:[%s1 + $0xc0] sm:$0xff]
  %v130 = vld [vmem:[%s1 + $0xc8] sm:$0xff]
  %v131 = vld [vmem:[%s1 + $0xd0] sm:$0xff]
  %v132 = vld [vmem:[%s1 + $0xd8] sm:$0xff]
  %v133 = vld [vmem:[%s1 + $0xe0] sm:$0xff]
  %v134 = vld [vmem:[%s1 + $0xe8] sm:$0xff]
  %v135 = vld [vmem:[%s1 + $0xf0] sm:$0xff]
  %v136 = vld [vmem:[%s1 + $0xf8] sm:$0xff]
  %v137 = vld [vmem:[%s1 + $0x100] sm:$0xff]
  %v138 = vld [vmem:[%s1 + $0x108] sm:$0xff]
  %v139 = vld [vmem:[%s1 + $0x110] sm:$0xff]
  %v140 = vld [vmem:[%s1 + $0x118] sm:$0xff]
  %v141 = vld [vmem:[%s1 + $0x120] sm:$0xff]
  %v142 = vld [vmem:[%s1 + $0x128] sm:$0xff]
  %v143 = vld [vmem:[%s1 + $0x130] sm:$0xff]
  %v144 = vld [vmem:[%s1 + $0x138] sm:$0xff]
  %v145 = vld [vmem:[%s1 + $0x140] sm:$0xff]
  %v146 = vld [vmem:[%s1 + $0x148] sm:$0xff]
  %v147 = vld [vmem:[%s1 + $0x150] sm:$0xff]
  %v148 = vld [vmem:[%s1 + $0x158] sm:$0xff]
  %v149 = vld [vmem:[%s1 + $0x160] sm:$0xff]
  %v150 = vld [vmem:[%s1 + $0x168] sm:$0xff]
  %v151 = vld [vmem:[%s1 + $0x170] sm:$0xff]
  %v152 = vld [vmem:[%s1 + $0x178] sm:$0xff]
  %v153 = vld [vmem:[%s1 + $0x180] sm:$0xff]
  %v154 = vld [vmem:[%s1 + $0x188] sm:$0xff]
  %v155 = vld [vmem:[%s1 + $0x190] sm:$0xff]
  %v156 = vld [vmem:[%s1 + $0x198] sm:$0xff]
  %v157 = vld [vmem:[%s1 + $0x1a0] sm:$0xff]
  %v158 = vld [vmem:[%s1 + $0x1a8] sm:$0xff]
  %v159 = vld [vmem:[%s1 + $0x1b0] sm:$0xff]
  %v160 = vld [vmem:[%s1 + $0x1b8] sm:$0xff]
  %v161 = vld [vmem:[%s1 + $0x1c0] sm:$0xff]
  %v162 = vld [vmem:[%s1 + $0x1c8] sm:$0xff]
  %v163 = vld [vmem:[%s1 + $0x1d0] sm:$0xff]
  %v164 = vld [vmem:[%s1 + $0x1d8] sm:$0xff]
  %v165 = vld [vmem:[%s1 + $0x1e0] sm:$0xff]
  %v166 = vld [vmem:[%s1 + $0x1e8] sm:$0xff]
  %v167 = vld [vmem:[%s1 + $0x1f0] sm:$0xff]
  %v168 = vld [vmem:[%s1 + $0x1f8] sm:$0xff]
  %vm169 = vcmask 23552
  %v171 = vsel %vm169, %v105, 0
  %v174 = vsel %vm169, %v106, 0
  %v177 = vsel %vm169, %v107, 0
  %v180 = vsel %vm169, %v108, 0
  %v183 = vsel %vm169, %v109, 0
  %v186 = vsel %vm169, %v110, 0
  %v189 = vsel %vm169, %v111, 0
  %v192 = vsel %vm169, %v112, 0
  %v195 = vsel %vm169, %v113, 0
  %v198 = vsel %vm169, %v114, 0
  %v201 = vsel %vm169, %v115, 0
  %v204 = vsel %vm169, %v116, 0
  %v207 = vsel %vm169, %v117, 0
  %v210 = vsel %vm169, %v118, 0
  %v213 = vsel %vm169, %v119, 0
  %v216 = vsel %vm169, %v120, 0
  %v219 = vsel %vm169, %v121, 0
  %v222 = vsel %vm169, %v122, 0
  %v225 = vsel %vm169, %v123, 0
  %v228 = vsel %vm169, %v124, 0
  %v231 = vsel %vm169, %v125, 0
  %v234 = vsel %vm169, %v126, 0
  %v237 = vsel %vm169, %v127, 0
  %v240 = vsel %vm169, %v128, 0
  %v243 = vsel %vm169, %v129, 0
  %v246 = vsel %vm169, %v130, 0
  %v249 = vsel %vm169, %v131, 0
  %v252 = vsel %vm169, %v132, 0
  %v255 = vsel %vm169, %v133, 0
  %v258 = vsel %vm169, %v134, 0
  %v261 = vsel %vm169, %v135, 0
  %v264 = vsel %vm169, %v136, 0
  %v267 = vsel %vm169, %v137, 0
  %v270 = vsel %vm169, %v138, 0
  %v273 = vsel %vm169, %v139, 0
  %v276 = vsel %vm169, %v140, 0
  %v279 = vsel %vm169, %v141, 0
  %v282 = vsel %vm169, %v142, 0
  %v285 = vsel %vm169, %v143, 0
  %v288 = vsel %vm169, %v144, 0
  %v291 = vsel %vm169, %v145, 0
  %v294 = vsel %vm169, %v146, 0
  %v297 = vsel %vm169, %v147, 0
  %v300 = vsel %vm169, %v148, 0
  %v303 = vsel %vm169, %v149, 0
  %v306 = vsel %vm169, %v150, 0
  %v309 = vsel %vm169, %v151, 0
  %v312 = vsel %vm169, %v152, 0
  %v315 = vsel %vm169, %v153, 0
  %v318 = vsel %vm169, %v154, 0
  %v321 = vsel %vm169, %v155, 0
  %v324 = vsel %vm169, %v156, 0
  %v327 = vsel %vm169, %v157, 0
  %v330 = vsel %vm169, %v158, 0
  %v333 = vsel %vm169, %v159, 0
  %v336 = vsel %vm169, %v160, 0
  %v339 = vsel %vm169, %v161, 0
  %v342 = vsel %vm169, %v162, 0
  %v345 = vsel %vm169, %v163, 0
  %v348 = vsel %vm169, %v164, 0
  %v351 = vsel %vm169, %v165, 0
  %v354 = vsel %vm169, %v166, 0
  %v357 = vsel %vm169, %v167, 0
  %v360 = vsel %vm169, %v168, 0
  %vm362 = vcmask 1042432
  %v364 = vsel %vm362, %v36, 0
  %366 = vmatprep.subr.mxu0 0.0
  %v367 = vand.u32 %v364, 4294901760
  %368 = vmatpush1.msra.mxu0 %v367
  %369 = vmatprep.subr.mxu0 0.0
  %370 = vmatpush1.msra.mxu0 0.0
  %371 = vmatprep.subr.mxu0 0.0
  %372 = vmatpush1.msra.mxu0 0.0
  %373 = vmatprep.subr.mxu0 0.0
  %374 = vmatpush1.msra.mxu0 0.0
  %375 = vmatprep.subr.mxu0 0.0
  %376 = vmatpush1.msra.mxu0 0.0
  %377 = vmatprep.subr.mxu0 0.0
  %378 = vmatpush1.msra.mxu0 0.0
  %379 = vmatprep.subr.mxu0 0.0
  %380 = vmatpush1.msra.mxu0 0.0
  %381 = vmatprep.subr.mxu0 0.0
  %382 = vmatpush1.msra.mxu0 0.0
  %383 = vmatprep.subr.mxu0 0.0
  %384 = vmatpush1.msra.mxu0 0.0
  %385 = vmatprep.subr.mxu0 0.0
  %386 = vmatpush1.msra.mxu0 0.0
  %387 = vmatprep.subr.mxu0 0.0
  %388 = vmatpush1.msra.mxu0 0.0
  %389 = vmatprep.subr.mxu0 0.0
  %390 = vmatpush1.msra.mxu0 0.0
  %391 = vmatprep.subr.mxu0 0.0
  %392 = vmatpush1.msra.mxu0 0.0
  %393 = vmatprep.subr.mxu0 0.0
  %394 = vmatpush1.msra.mxu0 0.0
  %395 = vmatprep.subr.mxu0 0.0
  %396 = vmatpush1.msra.mxu0 0.0
  %397 = vmatprep.subr.mxu0 0.0
  %398 = vmatpush1.msra.mxu0 0.0
  %399 = vmatprep.subr.mxu0 0.0
  %400 = vmatpush1.msra.mxu0 0.0
  %401 = vmatprep.subr.mxu0 0.0
  %402 = vmatpush1.msra.mxu0 0.0
  %403 = vmatprep.subr.mxu0 0.0
  %404 = vmatpush1.msra.mxu0 0.0
  %405 = vmatprep.subr.mxu0 0.0
  %406 = vmatpush1.msra.mxu0 0.0
  %407 = vmatprep.subr.mxu0 0.0
  %408 = vmatpush1.msra.mxu0 0.0
  %409 = vmatprep.subr.mxu0 0.0
  %410 = vmatpush1.msra.mxu0 0.0
  %411 = vmatprep.subr.mxu0 0.0
  %412 = vmatpush1.msra.mxu0 0.0
  %413 = vmatprep.subr.mxu0 0.0
  %414 = vmatpush1.msra.mxu0 0.0
  %415 = vmatprep.subr.mxu0 0.0
  %416 = vmatpush1.msra.mxu0 0.0
  %417 = vmatprep.subr.mxu0 0.0
  %418 = vmatpush1.msra.mxu0 0.0
  %419 = vmatprep.subr.mxu0 0.0
  %420 = vmatpush1.msra.mxu0 0.0
  %421 = vmatprep.subr.mxu0 0.0
  %422 = vmatpush1.msra.mxu0 0.0
  %423 = vmatprep.subr.mxu0 0.0
  %424 = vmatpush1.msra.mxu0 0.0
  %425 = vmatprep.subr.mxu0 0.0
  %426 = vmatpush1.msra.mxu0 0.0
  %427 = vmatprep.subr.mxu0 0.0
  %428 = vmatpush1.msra.mxu0 0.0
  %429 = vmatprep.subr.mxu0 0.0
  %430 = vmatpush1.msra.mxu0 0.0
  %431 = vmatprep.mubr.f32.mxu0 0.0
  %v432 = vand.u32 %v171, 4294901760
  %v433 = vsub.f32 %v171, %v432
  %v434 = vand.u32 %v433, 4294901760
  %v435 = vsub.f32 %v433, %v434
  %v436 = vand.u32 %v435, 4294901760
  %437 = vmatmul.mubr.f32.gmra.mrb[0].mxu0 %v436
  %v438 = vpop.f32.mrb[0].mxu0
  %v439 = vadd.f32 0.0, %v438
  %v440 = vpop.f32.mrb[0].mxu0
  %441 = vmatprep.mubr.f32.mxu0 0.0
  %v442 = vand.u32 %v174, 4294901760
  %v443 = vsub.f32 %v174, %v442
  %v444 = vand.u32 %v443, 4294901760
  %v445 = vsub.f32 %v443, %v444
  %v446 = vand.u32 %v445, 4294901760
  %447 = vmatmul.mubr.f32.gmra.mrb[0].mxu0 %v446
  %v448 = vpop.f32.mrb[0].mxu0
  %v449 = vadd.f32 0.0, %v448
  %v450 = vpop.f32.mrb[0].mxu0
  %451 = vmatprep.mubr.f32.mxu0 0.0
  %v452 = vand.u32 %v177, 4294901760
  %v453 = vsub.f32 %v177, %v452
  %v454 = vand.u32 %v453, 4294901760
  %v455 = vsub.f32 %v453, %v454
  %v456 = vand.u32 %v455, 4294901760
  %457 = vmatmul.mubr.f32.gmra.mrb[0].mxu0 %v456
  %v458 = vpop.f32.mrb[0].mxu0
  %v459 = vadd.f32 0.0, %v458
  %v460 = vpop.f32.mrb[0].mxu0
  %461 = vmatprep.mubr.f32.mxu0 0.0
  %v462 = vand.u32 %v180, 4294901760
  %v463 = vsub.f32 %v180, %v462
  %v464 = vand.u32 %v463, 4294901760
  %v465 = vsub.f32 %v463, %v464
  %v466 = vand.u32 %v465, 4294901760
  %467 = vmatmul.mubr.f32.gmra.mrb[0].mxu0 %v466
  %v468 = vpop.f32.mrb[0].mxu0
  %v469 = vadd.f32 0.0, %v468
  %v470 = vpop.f32.mrb[0].mxu0
  %471 = vmatprep.mubr.f32.mxu0 0.0
  %v472 = vand.u32 %v183, 4294901760
  %v473 = vsub.f32 %v183, %v472
  %v474 = vand.u32 %v473, 4294901760
  %v475 = vsub.f32 %v473, %v474
  %v476 = vand.u32 %v475, 4294901760
  %477 = vmatmul.mubr.f32.gmra.mrb[0].mxu0 %v476
  %v478 = vpop.f32.mrb[0].mxu0
  %v479 = vadd.f32 0.0, %v478
  %v480 = vpop.f32.mrb[0].mxu0
  %481 = vmatprep.mubr.f32.mxu0 0.0
  %v482 = vand.u32 %v186, 4294901760
  %v483 = vsub.f32 %v186, %v482
  %v484 = vand.u32 %v483, 4294901760
  %v485 = vsub.f32 %v483, %v484
  %v486 = vand.u32 %v485, 4294901760
  %487 = vmatmul.mubr.f32.gmra.mrb[0].mxu0 %v486
  %v488 = vpop.f32.mrb[0].mxu0
  %v489 = vadd.f32 0.0, %v488
  %v490 = vpop.f32.mrb[0].mxu0
  %491 = vmatprep.mubr.f32.mxu0 0.0
  %v492 = vand.u32 %v189, 4294901760
  %v493 = vsub.f32 %v189, %v492
  %v494 = vand.u32 %v493, 4294901760
  %v495 = vsub.f32 %v493, %v494
  %v496 = vand.u32 %v495, 4294901760
  %497 = vmatmul.mubr.f32.gmra.mrb[0].mxu0 %v496
  %v498 = vpop.f32.mrb[0].mxu0
  %v499 = vadd.f32 0.0, %v498
  %v500 = vpop.f32.mrb[0].mxu0
  %501 = vmatprep.mubr.f32.mxu0 0.0
  %v502 = vand.u32 %v192, 4294901760
  %v503 = vsub.f32 %v192, %v502
  %v504 = vand.u32 %v503, 4294901760
  %v505 = vsub.f32 %v503, %v504
  %v506 = vand.u32 %v505, 4294901760
  %507 = vmatmul.mubr.f32.gmra.mrb[0].mxu0 %v506
  %v508 = vpop.f32.mrb[0].mxu0
  %v509 = vadd.f32 0.0, %v508
  %v510 = vpop.f32.mrb[0].mxu0
  %511 = vmatprep.mubr.f32.mxu0 0.0
  %v512 = vand.u32 %v195, 4294901760
  %v513 = vsub.f32 %v195, %v512
  %v514 = vand.u32 %v513, 4294901760
  %v515 = vsub.f32 %v513, %v514
  %v516 = vand.u32 %v515, 4294901760
  %517 = vmatmul.mubr.f32.gmra.mrb[0].mxu0 %v516
  %v518 = vpop.f32.mrb[0].mxu0
  %v519 = vadd.f32 0.0, %v518
  %v520 = vpop.f32.mrb[0].mxu0
  %521 = vmatprep.mubr.f32.mxu0 0.0
  %v522 = vand.u32 %v198, 4294901760
  %v523 = vsub.f32 %v198, %v522
  %v524 = vand.u32 %v523, 4294901760
  %v525 = vsub.f32 %v523, %v524
  %v526 = vand.u32 %v525, 4294901760
  %527 = vmatmul.mubr.f32.gmra.mrb[0].mxu0 %v526
  %v528 = vpop.f32.mrb[0].mxu0
  %v529 = vadd.f32 0.0, %v528
  %v530 = vpop.f32.mrb[0].mxu0
  %531 = vmatprep.mubr.f32.mxu0 0.0
  %v532 = vand.u32 %v201, 4294901760
  %v533 = vsub.f32 %v201, %v532
  %v534 = vand.u32 %v533, 4294901760
  %v535 = vsub.f32 %v533, %v534
  %v536 = vand.u32 %v535, 4294901760
  %537 = vmatmul.mubr.f32.gmra.mrb[0].mxu0 %v536
  %v538 = vpop.f32.mrb[0].mxu0
  %v539 = vadd.f32 0.0, %v538
  %v540 = vpop.f32.mrb[0].mxu0
  %541 = vmatprep.mubr.f32.mxu0 0.0
  %v542 = vand.u32 %v204, 4294901760
  %v543 = vsub.f32 %v204, %v542
  %v544 = vand.u32 %v543, 4294901760
  %v545 = vsub.f32 %v543, %v544
  %v546 = vand.u32 %v545, 4294901760
  %547 = vmatmul.mubr.f32.gmra.mrb[0].mxu0 %v546
  %v548 = vpop.f32.mrb[0].mxu0
  %v549 = vadd.f32 0.0, %v548
  %v550 = vpop.f32.mrb[0].mxu0
  %551 = vmatprep.mubr.f32.mxu0 0.0
  %v552 = vand.u32 %v207, 4294901760
  %v553 = vsub.f32 %v207, %v552
  %v554 = vand.u32 %v553, 4294901760
  %v555 = vsub.f32 %v553, %v554
  %v556 = vand.u32 %v555, 4294901760
  %557 = vmatmul.mubr.f32.gmra.mrb[0].mxu0 %v556
  %v558 = vpop.f32.mrb[0].mxu0
  %v559 = vadd.f32 0.0, %v558
  %v560 = vpop.f32.mrb[0].mxu0
  %561 = vmatprep.mubr.f32.mxu0 0.0
  %v562 = vand.u32 %v210, 4294901760
  %v563 = vsub.f32 %v210, %v562
  %v564 = vand.u32 %v563, 4294901760
  %v565 = vsub.f32 %v563, %v564
  %v566 = vand.u32 %v565, 4294901760
  %567 = vmatmul.mubr.f32.gmra.mrb[0].mxu0 %v566
  %v568 = vpop.f32.mrb[0].mxu0
  %v569 = vadd.f32 0.0, %v568
  %v570 = vpop.f32.mrb[0].mxu0
  %571 = vmatprep.mubr.f32.mxu0 0.0
  %v572 = vand.u32 %v213, 4294901760
  %v573 = vsub.f32 %v213, %v572
  %v574 = vand.u32 %v573, 4294901760
  %v575 = vsub.f32 %v573, %v574
  %v576 = vand.u32 %v575, 4294901760
  %577 = vmatmul.mubr.f32.gmra.mrb[0].mxu0 %v576
  %v578 = vpop.f32.mrb[0].mxu0
  %v579 = vadd.f32 0.0, %v578
  %v580 = vpop.f32.mrb[0].mxu0
  %581 = vmatprep.mubr.f32.mxu0 0.0
  %v582 = vand.u32 %v216, 4294901760
  %v583 = vsub.f32 %v216, %v582
  %v584 = vand.u32 %v583, 4294901760
  %v585 = vsub.f32 %v583, %v584
  %v586 = vand.u32 %v585, 4294901760
  %587 = vmatmul.mubr.f32.gmra.mrb[0].mxu0 %v586
  %v588 = vpop.f32.mrb[0].mxu0
  %v589 = vadd.f32 0.0, %v588
  %v590 = vpop.f32.mrb[0].mxu0
  %591 = vmatprep.mubr.f32.mxu0 0.0
  %v592 = vand.u32 %v219, 4294901760
  %v593 = vsub.f32 %v219, %v592
  %v594 = vand.u32 %v593, 4294901760
  %v595 = vsub.f32 %v593, %v594
  %v596 = vand.u32 %v595, 4294901760
  %597 = vmatmul.mubr.f32.gmra.mrb[0].mxu0 %v596
  %v598 = vpop.f32.mrb[0].mxu0
  %v599 = vadd.f32 0.0, %v598
  %v600 = vpop.f32.mrb[0].mxu0
  %601 = vmatprep.mubr.f32.mxu0 0.0
  %v602 = vand.u32 %v222, 4294901760
  %v603 = vsub.f32 %v222, %v602
  %v604 = vand.u32 %v603, 4294901760
  %v605 = vsub.f32 %v603, %v604
  %v606 = vand.u32 %v605, 4294901760
  %607 = vmatmul.mubr.f32.gmra.mrb[0].mxu0 %v606
  %v608 = vpop.f32.mrb[0].mxu0
  %v609 = vadd.f32 0.0, %v608
  %v610 = vpop.f32.mrb[0].mxu0
  %611 = vmatprep.mubr.f32.mxu0 0.0
  %v612 = vand.u32 %v225, 4294901760
  %v613 = vsub.f32 %v225, %v612
  %v614 = vand.u32 %v613, 4294901760
  %v615 = vsub.f32 %v613, %v614
  %v616 = vand.u32 %v615, 4294901760
  %617 = vmatmul.mubr.f32.gmra.mrb[0].mxu0 %v616
  %v618 = vpop.f32.mrb[0].mxu0
  %v619 = vadd.f32 0.0, %v618
  %v620 = vpop.f32.mrb[0].mxu0
  %621 = vmatprep.mubr.f32.mxu0 0.0
  %v622 = vand.u32 %v228, 4294901760
  %v623 = vsub.f32 %v228, %v622
  %v624 = vand.u32 %v623, 4294901760
  %v625 = vsub.f32 %v623, %v624
  %v626 = vand.u32 %v625, 4294901760
  %627 = vmatmul.mubr.f32.gmra.mrb[0].mxu0 %v626
  %v628 = vpop.f32.mrb[0].mxu0
  %v629 = vadd.f32 0.0, %v628
  %v630 = vpop.f32.mrb[0].mxu0
  %631 = vmatprep.mubr.f32.mxu0 0.0
  %v632 = vand.u32 %v231, 4294901760
  %v633 = vsub.f32 %v231, %v632
  %v634 = vand.u32 %v633, 4294901760
  %v635 = vsub.f32 %v633, %v634
  %v636 = vand.u32 %v635, 4294901760
  %637 = vmatmul.mubr.f32.gmra.mrb[0].mxu0 %v636
  %v638 = vpop.f32.mrb[0].mxu0
  %v639 = vadd.f32 0.0, %v638
  %v640 = vpop.f32.mrb[0].mxu0
  %641 = vmatprep.mubr.f32.mxu0 0.0
  %v642 = vand.u32 %v234, 4294901760
  %v643 = vsub.f32 %v234, %v642
  %v644 = vand.u32 %v643, 4294901760
  %v645 = vsub.f32 %v643, %v644
  %v646 = vand.u32 %v645, 4294901760
  %647 = vmatmul.mubr.f32.gmra.mrb[0].mxu0 %v646
  %v648 = vpop.f32.mrb[0].mxu0
  %v649 = vadd.f32 0.0, %v648
  %v650 = vpop.f32.mrb[0].mxu0
  %651 = vmatprep.mubr.f32.mxu0 0.0
  %v652 = vand.u32 %v237, 4294901760
  %v653 = vsub.f32 %v237, %v652
  %v654 = vand.u32 %v653, 4294901760
  %v655 = vsub.f32 %v653, %v654
  %v656 = vand.u32 %v655, 4294901760
  %657 = vmatmul.mubr.f32.gmra.mrb[0].mxu0 %v656
  %v658 = vpop.f32.mrb[0].mxu0
  %v659 = vadd.f32 0.0, %v658
  %v660 = vpop.f32.mrb[0].mxu0
  %661 = vmatprep.mubr.f32.mxu0 0.0
  %v662 = vand.u32 %v240, 4294901760
  %v663 = vsub.f32 %v240, %v662
  %v664 = vand.u32 %v663, 4294901760
  %v665 = vsub.f32 %v663, %v664
  %v666 = vand.u32 %v665, 4294901760
  %667 = vmatmul.mubr.f32.gmra.mrb[0].mxu0 %v666
  %v668 = vpop.f32.mrb[0].mxu0
  %v669 = vadd.f32 0.0, %v668
  %v670 = vpop.f32.mrb[0].mxu0
  %671 = vmatprep.mubr.f32.mxu0 0.0
  %v672 = vand.u32 %v243, 4294901760
  %v673 = vsub.f32 %v243, %v672
  %v674 = vand.u32 %v673, 4294901760
  %v675 = vsub.f32 %v673, %v674
  %v676 = vand.u32 %v675, 4294901760
  %677 = vmatmul.mubr.f32.gmra.mrb[0].mxu0 %v676
  %v678 = vpop.f32.mrb[0].mxu0
  %v679 = vadd.f32 0.0, %v678
  %v680 = vpop.f32.mrb[0].mxu0
  %681 = vmatprep.mubr.f32.mxu0 0.0
  %v682 = vand.u32 %v246, 4294901760
  %v683 = vsub.f32 %v246, %v682
  %v684 = vand.u32 %v683, 4294901760
  %v685 = vsub.f32 %v683, %v684
  %v686 = vand.u32 %v685, 4294901760
  %687 = vmatmul.mubr.f32.gmra.mrb[0].mxu0 %v686
  %v688 = vpop.f32.mrb[0].mxu0
  %v689 = vadd.f32 0.0, %v688
  %v690 = vpop.f32.mrb[0].mxu0
  %691 = vmatprep.mubr.f32.mxu0 0.0
  %v692 = vand.u32 %v249, 4294901760
  %v693 = vsub.f32 %v249, %v692
  %v694 = vand.u32 %v693, 4294901760
  %v695 = vsub.f32 %v693, %v694
  %v696 = vand.u32 %v695, 4294901760
  %697 = vmatmul.mubr.f32.gmra.mrb[0].mxu0 %v696
  %v698 = vpop.f32.mrb[0].mxu0
  %v699 = vadd.f32 0.0, %v698
  %v700 = vpop.f32.mrb[0].mxu0
  %701 = vmatprep.mubr.f32.mxu0 0.0
  %v702 = vand.u32 %v252, 4294901760
  %v703 = vsub.f32 %v252, %v702
  %v704 = vand.u32 %v703, 4294901760
  %v705 = vsub.f32 %v703, %v704
  %v706 = vand.u32 %v705, 4294901760
  %707 = vmatmul.mubr.f32.gmra.mrb[0].mxu0 %v706
  %v708 = vpop.f32.mrb[0].mxu0
  %v709 = vadd.f32 0.0, %v708
  %v710 = vpop.f32.mrb[0].mxu0
  %711 = vmatprep.mubr.f32.mxu0 0.0
  %v712 = vand.u32 %v255, 4294901760
  %v713 = vsub.f32 %v255, %v712
  %v714 = vand.u32 %v713, 4294901760
  %v715 = vsub.f32 %v713, %v714
  %v716 = vand.u32 %v715, 4294901760
  %717 = vmatmul.mubr.f32.gmra.mrb[0].mxu0 %v716
  %v718 = vpop.f32.mrb[0].mxu0
  %v719 = vadd.f32 0.0, %v718
  %v720 = vpop.f32.mrb[0].mxu0
  %721 = vmatprep.mubr.f32.mxu0 0.0
  %v722 = vand.u32 %v258, 4294901760
  %v723 = vsub.f32 %v258, %v722
  %v724 = vand.u32 %v723, 4294901760
  %v725 = vsub.f32 %v723, %v724
  %v726 = vand.u32 %v725, 4294901760
  %727 = vmatmul.mubr.f32.gmra.mrb[0].mxu0 %v726
  %v728 = vpop.f32.mrb[0].mxu0
  %v729 = vadd.f32 0.0, %v728
  %v730 = vpop.f32.mrb[0].mxu0
  %731 = vmatprep.mubr.f32.mxu0 0.0
  %v732 = vand.u32 %v261, 4294901760
  %v733 = vsub.f32 %v261, %v732
  %v734 = vand.u32 %v733, 4294901760
  %v735 = vsub.f32 %v733, %v734
  %v736 = vand.u32 %v735, 4294901760
  %737 = vmatmul.mubr.f32.gmra.mrb[0].mxu0 %v736
  %v738 = vpop.f32.mrb[0].mxu0
  %v739 = vadd.f32 0.0, %v738
  %v740 = vpop.f32.mrb[0].mxu0
  %741 = vmatprep.mubr.f32.mxu0 0.0
  %v742 = vand.u32 %v264, 4294901760
  %v743 = vsub.f32 %v264, %v742
  %v744 = vand.u32 %v743, 4294901760
  %v745 = vsub.f32 %v743, %v744
  %v746 = vand.u32 %v745, 4294901760
  %747 = vmatmul.mubr.f32.gmra.mrb[0].mxu0 %v746
  %v748 = vpop.f32.mrb[0].mxu0
  %v749 = vadd.f32 0.0, %v748
  %v750 = vpop.f32.mrb[0].mxu0
  %751 = vmatprep.mubr.f32.mxu0 0.0
  %v752 = vand.u32 %v267, 4294901760
  %v753 = vsub.f32 %v267, %v752
  %v754 = vand.u32 %v753, 4294901760
  %v755 = vsub.f32 %v753, %v754
  %v756 = vand.u32 %v755, 4294901760
  %757 = vmatmul.mubr.f32.gmra.mrb[0].mxu0 %v756
  %v758 = vpop.f32.mrb[0].mxu0
  %v759 = vadd.f32 0.0, %v758
  %v760 = vpop.f32.mrb[0].mxu0
  %761 = vmatprep.mubr.f32.mxu0 0.0
  %v762 = vand.u32 %v270, 4294901760
  %v763 = vsub.f32 %v270, %v762
  %v764 = vand.u32 %v763, 4294901760
  %v765 = vsub.f32 %v763, %v764
  %v766 = vand.u32 %v765, 4294901760
  %767 = vmatmul.mubr.f32.gmra.mrb[0].mxu0 %v766
  %v768 = vpop.f32.mrb[0].mxu0
  %v769 = vadd.f32 0.0, %v768
  %v770 = vpop.f32.mrb[0].mxu0
  %771 = vmatprep.mubr.f32.mxu0 0.0
  %v772 = vand.u32 %v273, 4294901760
  %v773 = vsub.f32 %v273, %v772
  %v774 = vand.u32 %v773, 4294901760
  %v775 = vsub.f32 %v773, %v774
  %v776 = vand.u32 %v775, 4294901760
  %777 = vmatmul.mubr.f32.gmra.mrb[0].mxu0 %v776
  %v778 = vpop.f32.mrb[0].mxu0
  %v779 = vadd.f32 0.0, %v778
  %v780 = vpop.f32.mrb[0].mxu0
  %781 = vmatprep.mubr.f32.mxu0 0.0
  %v782 = vand.u32 %v276, 4294901760
  %v783 = vsub.f32 %v276, %v782
  %v784 = vand.u32 %v783, 4294901760
  %v785 = vsub.f32 %v783, %v784
  %v786 = vand.u32 %v785, 4294901760
  %787 = vmatmul.mubr.f32.gmra.mrb[0].mxu0 %v786
  %v788 = vpop.f32.mrb[0].mxu0
  %v789 = vadd.f32 0.0, %v788
  %v790 = vpop.f32.mrb[0].mxu0
  %791 = vmatprep.mubr.f32.mxu0 0.0
  %v792 = vand.u32 %v279, 4294901760
  %v793 = vsub.f32 %v279, %v792
  %v794 = vand.u32 %v793, 4294901760
  %v795 = vsub.f32 %v793, %v794
  %v796 = vand.u32 %v795, 4294901760
  %797 = vmatmul.mubr.f32.gmra.mrb[0].mxu0 %v796
  %v798 = vpop.f32.mrb[0].mxu0
  %v799 = vadd.f32 0.0, %v798
  %v800 = vpop.f32.mrb[0].mxu0
  %801 = vmatprep.mubr.f32.mxu0 0.0
  %v802 = vand.u32 %v282, 4294901760
  %v803 = vsub.f32 %v282, %v802
  %v804 = vand.u32 %v803, 4294901760
  %v805 = vsub.f32 %v803, %v804
  %v806 = vand.u32 %v805, 4294901760
  %807 = vmatmul.mubr.f32.gmra.mrb[0].mxu0 %v806
  %v808 = vpop.f32.mrb[0].mxu0
  %v809 = vadd.f32 0.0, %v808
  %v810 = vpop.f32.mrb[0].mxu0
  %811 = vmatprep.mubr.f32.mxu0 0.0
  %v812 = vand.u32 %v285, 4294901760
  %v813 = vsub.f32 %v285, %v812
  %v814 = vand.u32 %v813, 4294901760
  %v815 = vsub.f32 %v813, %v814
  %v816 = vand.u32 %v815, 4294901760
  %817 = vmatmul.mubr.f32.gmra.mrb[0].mxu0 %v816
  %v818 = vpop.f32.mrb[0].mxu0
  %v819 = vadd.f32 0.0, %v818
  %v820 = vpop.f32.mrb[0].mxu0
  %821 = vmatprep.mubr.f32.mxu0 0.0
  %v822 = vand.u32 %v288, 4294901760
  %v823 = vsub.f32 %v288, %v822
  %v824 = vand.u32 %v823, 4294901760
  %v825 = vsub.f32 %v823, %v824
  %v826 = vand.u32 %v825, 4294901760
  %827 = vmatmul.mubr.f32.gmra.mrb[0].mxu0 %v826
  %v828 = vpop.f32.mrb[0].mxu0
  %v829 = vadd.f32 0.0, %v828
  %v830 = vpop.f32.mrb[0].mxu0
  %831 = vmatprep.mubr.f32.mxu0 0.0
  %v832 = vand.u32 %v291, 4294901760
  %v833 = vsub.f32 %v291, %v832
  %v834 = vand.u32 %v833, 4294901760
  %v835 = vsub.f32 %v833, %v834
  %v836 = vand.u32 %v835, 4294901760
  %837 = vmatmul.mubr.f32.gmra.mrb[0].mxu0 %v836
  %v838 = vpop.f32.mrb[0].mxu0
  %v839 = vadd.f32 0.0, %v838
  %v840 = vpop.f32.mrb[0].mxu0
  %841 = vmatprep.mubr.f32.mxu0 0.0
  %v842 = vand.u32 %v294, 4294901760
  %v843 = vsub.f32 %v294, %v842
  %v844 = vand.u32 %v843, 4294901760
  %v845 = vsub.f32 %v843, %v844
  %v846 = vand.u32 %v845, 4294901760
  %847 = vmatmul.mubr.f32.gmra.mrb[0].mxu0 %v846
  %v848 = vpop.f32.mrb[0].mxu0
  %v849 = vadd.f32 0.0, %v848
  %v850 = vpop.f32.mrb[0].mxu0
  %851 = vmatprep.mubr.f32.mxu0 0.0
  %v852 = vand.u32 %v297, 4294901760
  %v853 = vsub.f32 %v297, %v852
  %v854 = vand.u32 %v853, 4294901760
  %v855 = vsub.f32 %v853, %v854
  %v856 = vand.u32 %v855, 4294901760
  %857 = vmatmul.mubr.f32.gmra.mrb[0].mxu0 %v856
  %v858 = vpop.f32.mrb[0].mxu0
  %v859 = vadd.f32 0.0, %v858
  %v860 = vpop.f32.mrb[0].mxu0
  %861 = vmatprep.mubr.f32.mxu0 0.0
  %v862 = vand.u32 %v300, 4294901760
  %v863 = vsub.f32 %v300, %v862
  %v864 = vand.u32 %v863, 4294901760
  %v865 = vsub.f32 %v863, %v864
  %v866 = vand.u32 %v865, 4294901760
  %867 = vmatmul.mubr.f32.gmra.mrb[0].mxu0 %v866
  %v868 = vpop.f32.mrb[0].mxu0
  %v869 = vadd.f32 0.0, %v868
  %v870 = vpop.f32.mrb[0].mxu0
  %871 = vmatprep.mubr.f32.mxu0 0.0
  %v872 = vand.u32 %v303, 4294901760
  %v873 = vsub.f32 %v303, %v872
  %v874 = vand.u32 %v873, 4294901760
  %v875 = vsub.f32 %v873, %v874
  %v876 = vand.u32 %v875, 4294901760
  %877 = vmatmul.mubr.f32.gmra.mrb[0].mxu0 %v876
  %v878 = vpop.f32.mrb[0].mxu0
  %v879 = vadd.f32 0.0, %v878
  %v880 = vpop.f32.mrb[0].mxu0
  %881 = vmatprep.mubr.f32.mxu0 0.0
  %v882 = vand.u32 %v306, 4294901760
  %v883 = vsub.f32 %v306, %v882
  %v884 = vand.u32 %v883, 4294901760
  %v885 = vsub.f32 %v883, %v884
  %v886 = vand.u32 %v885, 4294901760
  %887 = vmatmul.mubr.f32.gmra.mrb[0].mxu0 %v886
  %v888 = vpop.f32.mrb[0].mxu0
  %v889 = vadd.f32 0.0, %v888
  %v890 = vpop.f32.mrb[0].mxu0
  %891 = vmatprep.mubr.f32.mxu0 0.0
  %v892 = vand.u32 %v309, 4294901760
  %v893 = vsub.f32 %v309, %v892
  %v894 = vand.u32 %v893, 4294901760
  %v895 = vsub.f32 %v893, %v894
  %v896 = vand.u32 %v895, 4294901760
  %897 = vmatmul.mubr.f32.gmra.mrb[0].mxu0 %v896
  %v898 = vpop.f32.mrb[0].mxu0
  %v899 = vadd.f32 0.0, %v898
  %v900 = vpop.f32.mrb[0].mxu0
  %901 = vmatprep.mubr.f32.mxu0 0.0
  %v902 = vand.u32 %v312, 4294901760
  %v903 = vsub.f32 %v312, %v902
  %v904 = vand.u32 %v903, 4294901760
  %v905 = vsub.f32 %v903, %v904
  %v906 = vand.u32 %v905, 4294901760
  %907 = vmatmul.mubr.f32.gmra.mrb[0].mxu0 %v906
  %v908 = vpop.f32.mrb[0].mxu0
  %v909 = vadd.f32 0.0, %v908
  %v910 = vpop.f32.mrb[0].mxu0
  %911 = vmatprep.mubr.f32.mxu0 0.0
  %v912 = vand.u32 %v315, 4294901760
  %v913 = vsub.f32 %v315, %v912
  %v914 = vand.u32 %v913, 4294901760
  %v915 = vsub.f32 %v913, %v914
  %v916 = vand.u32 %v915, 4294901760
  %917 = vmatmul.mubr.f32.gmra.mrb[0].mxu0 %v916
  %v918 = vpop.f32.mrb[0].mxu0
  %v919 = vadd.f32 0.0, %v918
  %v920 = vpop.f32.mrb[0].mxu0
  %921 = vmatprep.mubr.f32.mxu0 0.0
  %v922 = vand.u32 %v318, 4294901760
  %v923 = vsub.f32 %v318, %v922
  %v924 = vand.u32 %v923, 4294901760
  %v925 = vsub.f32 %v923, %v924
  %v926 = vand.u32 %v925, 4294901760
  %927 = vmatmul.mubr.f32.gmra.mrb[0].mxu0 %v926
  %v928 = vpop.f32.mrb[0].mxu0
  %v929 = vadd.f32 0.0, %v928
  %v930 = vpop.f32.mrb[0].mxu0
  %931 = vmatprep.mubr.f32.mxu0 0.0
  %v932 = vand.u32 %v321, 4294901760
  %v933 = vsub.f32 %v321, %v932
  %v934 = vand.u32 %v933, 4294901760
  %v935 = vsub.f32 %v933, %v934
  %v936 = vand.u32 %v935, 4294901760
  %937 = vmatmul.mubr.f32.gmra.mrb[0].mxu0 %v936
  %v938 = vpop.f32.mrb[0].mxu0
  %v939 = vadd.f32 0.0, %v938
  %v940 = vpop.f32.mrb[0].mxu0
  %941 = vmatprep.mubr.f32.mxu0 0.0
  %v942 = vand.u32 %v324, 4294901760
  %v943 = vsub.f32 %v324, %v942
  %v944 = vand.u32 %v943, 4294901760
  %v945 = vsub.f32 %v943, %v944
  %v946 = vand.u32 %v945, 4294901760
  %947 = vmatmul.mubr.f32.gmra.mrb[0].mxu0 %v946
  %v948 = vpop.f32.mrb[0].mxu0
  %v949 = vadd.f32 0.0, %v948
  %v950 = vpop.f32.mrb[0].mxu0
  %951 = vmatprep.mubr.f32.mxu0 0.0
  %v952 = vand.u32 %v327, 4294901760
  %v953 = vsub.f32 %v327, %v952
  %v954 = vand.u32 %v953, 4294901760
  %v955 = vsub.f32 %v953, %v954
  %v956 = vand.u32 %v955, 4294901760
  %957 = vmatmul.mubr.f32.gmra.mrb[0].mxu0 %v956
  %v958 = vpop.f32.mrb[0].mxu0
  %v959 = vadd.f32 0.0, %v958
  %v960 = vpop.f32.mrb[0].mxu0
  %961 = vmatprep.mubr.f32.mxu0 0.0
  %v962 = vand.u32 %v330, 4294901760
  %v963 = vsub.f32 %v330, %v962
  %v964 = vand.u32 %v963, 4294901760
  %v965 = vsub.f32 %v963, %v964
  %v966 = vand.u32 %v965, 4294901760
  %967 = vmatmul.mubr.f32.gmra.mrb[0].mxu0 %v966
  %v968 = vpop.f32.mrb[0].mxu0
  %v969 = vadd.f32 0.0, %v968
  %v970 = vpop.f32.mrb[0].mxu0
  %971 = vmatprep.mubr.f32.mxu0 0.0
  %v972 = vand.u32 %v333, 4294901760
  %v973 = vsub.f32 %v333, %v972
  %v974 = vand.u32 %v973, 4294901760
  %v975 = vsub.f32 %v973, %v974
  %v976 = vand.u32 %v975, 4294901760
  %977 = vmatmul.mubr.f32.gmra.mrb[0].mxu0 %v976
  %v978 = vpop.f32.mrb[0].mxu0
  %v979 = vadd.f32 0.0, %v978
  %v980 = vpop.f32.mrb[0].mxu0
  %981 = vmatprep.mubr.f32.mxu0 0.0
  %v982 = vand.u32 %v336, 4294901760
  %v983 = vsub.f32 %v336, %v982
  %v984 = vand.u32 %v983, 4294901760
  %v985 = vsub.f32 %v983, %v984
  %v986 = vand.u32 %v985, 4294901760
  %987 = vmatmul.mubr.f32.gmra.mrb[0].mxu0 %v986
  %v988 = vpop.f32.mrb[0].mxu0
  %v989 = vadd.f32 0.0, %v988
  %v990 = vpop.f32.mrb[0].mxu0
  %991 = vmatprep.mubr.f32.mxu0 0.0
  %v992 = vand.u32 %v339, 4294901760
  %v993 = vsub.f32 %v339, %v992
  %v994 = vand.u32 %v993, 4294901760
  %v995 = vsub.f32 %v993, %v994
  %v996 = vand.u32 %v995, 4294901760
  %997 = vmatmul.mubr.f32.gmra.mrb[0].mxu0 %v996
  %v998 = vpop.f32.mrb[0].mxu0
  %v999 = vadd.f32 0.0, %v998
  %v1000 = vpop.f32.mrb[0].mxu0
  %1001 = vmatprep.mubr.f32.mxu0 0.0
  %v1002 = vand.u32 %v342, 4294901760
  %v1003 = vsub.f32 %v342, %v1002
  %v1004 = vand.u32 %v1003, 4294901760
  %v1005 = vsub.f32 %v1003, %v1004
  %v1006 = vand.u32 %v1005, 4294901760
  %1007 = vmatmul.mubr.f32.gmra.mrb[0].mxu0 %v1006
  %v1008 = vpop.f32.mrb[0].mxu0
  %v1009 = vadd.f32 0.0, %v1008
  %v1010 = vpop.f32.mrb[0].mxu0
  %1011 = vmatprep.mubr.f32.mxu0 0.0
  %v1012 = vand.u32 %v345, 4294901760
  %v1013 = vsub.f32 %v345, %v1012
  %v1014 = vand.u32 %v1013, 4294901760
  %v1015 = vsub.f32 %v1013, %v1014
  %v1016 = vand.u32 %v1015, 4294901760
  %1017 = vmatmul.mubr.f32.gmra.mrb[0].mxu0 %v1016
  %v1018 = vpop.f32.mrb[0].mxu0
  %v1019 = vadd.f32 0.0, %v1018
  %v1020 = vpop.f32.mrb[0].mxu0
  %1021 = vmatprep.mubr.f32.mxu0 0.0
  %v1022 = vand.u32 %v348, 4294901760
  %v1023 = vsub.f32 %v348, %v1022
  %v1024 = vand.u32 %v1023, 4294901760
  %v1025 = vsub.f32 %v1023, %v1024
  %v1026 = vand.u32 %v1025, 4294901760
  %1027 = vmatmul.mubr.f32.gmra.mrb[0].mxu0 %v1026
  %v1028 = vpop.f32.mrb[0].mxu0
  %v1029 = vadd.f32 0.0, %v1028
  %v1030 = vpop.f32.mrb[0].mxu0
  %1031 = vmatprep.mubr.f32.mxu0 0.0
  %v1032 = vand.u32 %v351, 4294901760
  %v1033 = vsub.f32 %v351, %v1032
  %v1034 = vand.u32 %v1033, 4294901760
  %v1035 = vsub.f32 %v1033, %v1034
  %v1036 = vand.u32 %v1035, 4294901760
  %1037 = vmatmul.mubr.f32.gmra.mrb[0].mxu0 %v1036
  %v1038 = vpop.f32.mrb[0].mxu0
  %v1039 = vadd.f32 0.0, %v1038
  %v1040 = vpop.f32.mrb[0].mxu0
  %1041 = vmatprep.mubr.f32.mxu0 0.0
  %v1042 = vand.u32 %v354, 4294901760
  %v1043 = vsub.f32 %v354, %v1042
  %v1044 = vand.u32 %v1043, 4294901760
  %v1045 = vsub.f32 %v1043, %v1044
  %v1046 = vand.u32 %v1045, 4294901760
  %1047 = vmatmul.mubr.f32.gmra.mrb[0].mxu0 %v1046
  %v1048 = vpop.f32.mrb[0].mxu0
  %v1049 = vadd.f32 0.0, %v1048
  %v1050 = vpop.f32.mrb[0].mxu0
  %1051 = vmatprep.mubr.f32.mxu0 0.0
  %v1052 = vand.u32 %v357, 4294901760
  %v1053 = vsub.f32 %v357, %v1052
  %v1054 = vand.u32 %v1053, 4294901760
  %v1055 = vsub.f32 %v1053, %v1054
  %v1056 = vand.u32 %v1055, 4294901760
  %1057 = vmatmul.mubr.f32.gmra.mrb[0].mxu0 %v1056
  %v1058 = vpop.f32.mrb[0].mxu0
  %v1059 = vadd.f32 0.0, %v1058
  %v1060 = vpop.f32.mrb[0].mxu0
  %1061 = vmatprep.mubr.f32.mxu0 0.0
  %v1062 = vand.u32 %v360, 4294901760
  %v1063 = vsub.f32 %v360, %v1062
  %v1064 = vand.u32 %v1063, 4294901760
  %v1065 = vsub.f32 %v1063, %v1064
  %v1066 = vand.u32 %v1065, 4294901760
  %1067 = vmatmul.mubr.f32.gmra.mrb[0].mxu0 %v1066
  %v1068 = vpop.f32.mrb[0].mxu0
  %v1069 = vadd.f32 0.0, %v1068
  %v1070 = vpop.f32.mrb[0].mxu0
  %1071 = vdwg.mxu0
  %1072 = vmatprep.subr.mxu0 0.0
  %v1073 = vand.u32 %v364, 4294901760
  %v1074 = vsub.f32 %v364, %v1073
  %v1075 = vand.u32 %v1074, 4294901760
  %v1076 = vsub.f32 %v1074, %v1075
  %v1077 = vand.u32 %v1076, 4294901760
  %1078 = vmatpush1.msra.mxu0 %v1077
  %1079 = vmatprep.subr.mxu0 0.0
  %1080 = vmatpush1.msra.mxu0 0.0
  %1081 = vmatprep.subr.mxu0 0.0
  %1082 = vmatpush1.msra.mxu0 0.0
  %1083 = vmatprep.subr.mxu0 0.0
  %1084 = vmatpush1.msra.mxu0 0.0
  %1085 = vmatprep.subr.mxu0 0.0
  %1086 = vmatpush1.msra.mxu0 0.0
  %1087 = vmatprep.subr.mxu0 0.0
  %1088 = vmatpush1.msra.mxu0 0.0
  %1089 = vmatprep.subr.mxu0 0.0
  %1090 = vmatpush1.msra.mxu0 0.0
  %1091 = vmatprep.subr.mxu0 0.0
  %1092 = vmatpush1.msra.mxu0 0.0
  %1093 = vmatprep.subr.mxu0 0.0
  %1094 = vmatpush1.msra.mxu0 0.0
  %1095 = vmatprep.subr.mxu0 0.0
  %1096 = vmatpush1.msra.mxu0 0.0
  %1097 = vmatprep.subr.mxu0 0.0
  %1098 = vmatpush1.msra.mxu0 0.0
  %1099 = vmatprep.subr.mxu0 0.0
  %1100 = vmatpush1.msra.mxu0 0.0
  %1101 = vmatprep.subr.mxu0 0.0
  %1102 = vmatpush1.msra.mxu0 0.0
  %1103 = vmatprep.subr.mxu0 0.0
  %1104 = vmatpush1.msra.mxu0 0.0
  %1105 = vmatprep.subr.mxu0 0.0
  %1106 = vmatpush1.msra.mxu0 0.0
  %1107 = vmatprep.subr.mxu0 0.0
  %1108 = vmatpush1.msra.mxu0 0.0
  %1109 = vmatprep.subr.mxu0 0.0
  %1110 = vmatpush1.msra.mxu0 0.0
  %1111 = vmatprep.subr.mxu0 0.0
  %1112 = vmatpush1.msra.mxu0 0.0
  %1113 = vmatprep.subr.mxu0 0.0
  %1114 = vmatpush1.msra.mxu0 0.0
  %1115 = vmatprep.subr.mxu0 0.0
  %1116 = vmatpush1.msra.mxu0 0.0
  %1117 = vmatprep.subr.mxu0 0.0
  %1118 = vmatpush1.msra.mxu0 0.0
  %1119 = vmatprep.subr.mxu0 0.0
  %1120 = vmatpush1.msra.mxu0 0.0
  %1121 = vmatprep.subr.mxu0 0.0
  %1122 = vmatpush1.msra.mxu0 0.0
  %1123 = vmatprep.subr.mxu0 0.0
  %1124 = vmatpush1.msra.mxu0 0.0
  %1125 = vmatprep.subr.mxu0 0.0
  %1126 = vmatpush1.msra.mxu0 0.0
  %1127 = vmatprep.subr.mxu0 0.0
  %1128 = vmatpush1.msra.mxu0 0.0
  %1129 = vmatprep.subr.mxu0 0.0
  %1130 = vmatpush1.msra.mxu0 0.0
  %1131 = vmatprep.subr.mxu0 0.0
  %1132 = vmatpush1.msra.mxu0 0.0
  %1133 = vmatprep.subr.mxu0 0.0
  %1134 = vmatpush1.msra.mxu0 0.0
  %1135 = vmatprep.subr.mxu0 0.0
  %1136 = vmatpush1.msra.mxu0 0.0
  %1137 = vmatprep.subr.mxu0 0.0
  %1138 = vmatpush1.msra.mxu0 0.0
  %1139 = vmatprep.subr.mxu0 0.0
  %1140 = vmatpush1.msra.mxu0 0.0
  %1141 = vmatprep.mubr.f32.mxu0 0.0
  %v1142 = vand.u32 %v171, 4294901760
  %1143 = vmatmul.mubr.f32.gmra.mrb[0].mxu0 %v1142
  %v1144 = vpop.f32.mrb[0].mxu0
  %v1145 = vadd.f32 %v439, %v1144
  %v1146 = vpop.f32.mrb[0].mxu0
  %1147 = vmatprep.mubr.f32.mxu0 0.0
  %v1148 = vand.u32 %v174, 4294901760
  %1149 = vmatmul.mubr.f32.gmra.mrb[0].mxu0 %v1148
  %v1150 = vpop.f32.mrb[0].mxu0
  %v1151 = vadd.f32 %v449, %v1150
  %v1152 = vpop.f32.mrb[0].mxu0
  %1153 = vmatprep.mubr.f32.mxu0 0.0
  %v1154 = vand.u32 %v177, 4294901760
  %1155 = vmatmul.mubr.f32.gmra.mrb[0].mxu0 %v1154
  %v1156 = vpop.f32.mrb[0].mxu0
  %v1157 = vadd.f32 %v459, %v1156
  %v1158 = vpop.f32.mrb[0].mxu0
  %1159 = vmatprep.mubr.f32.mxu0 0.0
  %v1160 = vand.u32 %v180, 4294901760
  %1161 = vmatmul.mubr.f32.gmra.mrb[0].mxu0 %v1160
  %v1162 = vpop.f32.mrb[0].mxu0
  %v1163 = vadd.f32 %v469, %v1162
  %v1164 = vpop.f32.mrb[0].mxu0
  %1165 = vmatprep.mubr.f32.mxu0 0.0
  %v1166 = vand.u32 %v183, 4294901760
  %1167 = vmatmul.mubr.f32.gmra.mrb[0].mxu0 %v1166
  %v1168 = vpop.f32.mrb[0].mxu0
  %v1169 = vadd.f32 %v479, %v1168
  %v1170 = vpop.f32.mrb[0].mxu0
  %1171 = vmatprep.mubr.f32.mxu0 0.0
  %v1172 = vand.u32 %v186, 4294901760
  %1173 = vmatmul.mubr.f32.gmra.mrb[0].mxu0 %v1172
  %v1174 = vpop.f32.mrb[0].mxu0
  %v1175 = vadd.f32 %v489, %v1174
  %v1176 = vpop.f32.mrb[0].mxu0
  %1177 = vmatprep.mubr.f32.mxu0 0.0
  %v1178 = vand.u32 %v189, 4294901760
  %1179 = vmatmul.mubr.f32.gmra.mrb[0].mxu0 %v1178
  %v1180 = vpop.f32.mrb[0].mxu0
  %v1181 = vadd.f32 %v499, %v1180
  %v1182 = vpop.f32.mrb[0].mxu0
  %1183 = vmatprep.mubr.f32.mxu0 0.0
  %v1184 = vand.u32 %v192, 4294901760
  %1185 = vmatmul.mubr.f32.gmra.mrb[0].mxu0 %v1184
  %v1186 = vpop.f32.mrb[0].mxu0
  %v1187 = vadd.f32 %v509, %v1186
  %v1188 = vpop.f32.mrb[0].mxu0
  %1189 = vmatprep.mubr.f32.mxu0 0.0
  %v1190 = vand.u32 %v195, 4294901760
  %1191 = vmatmul.mubr.f32.gmra.mrb[0].mxu0 %v1190
  %v1192 = vpop.f32.mrb[0].mxu0
  %v1193 = vadd.f32 %v519, %v1192
  %v1194 = vpop.f32.mrb[0].mxu0
  %1195 = vmatprep.mubr.f32.mxu0 0.0
  %v1196 = vand.u32 %v198, 4294901760
  %1197 = vmatmul.mubr.f32.gmra.mrb[0].mxu0 %v1196
  %v1198 = vpop.f32.mrb[0].mxu0
  %v1199 = vadd.f32 %v529, %v1198
  %v1200 = vpop.f32.mrb[0].mxu0
  %1201 = vmatprep.mubr.f32.mxu0 0.0
  %v1202 = vand.u32 %v201, 4294901760
  %1203 = vmatmul.mubr.f32.gmra.mrb[0].mxu0 %v1202
  %v1204 = vpop.f32.mrb[0].mxu0
  %v1205 = vadd.f32 %v539, %v1204
  %v1206 = vpop.f32.mrb[0].mxu0
  %1207 = vmatprep.mubr.f32.mxu0 0.0
  %v1208 = vand.u32 %v204, 4294901760
  %1209 = vmatmul.mubr.f32.gmra.mrb[0].mxu0 %v1208
  %v1210 = vpop.f32.mrb[0].mxu0
  %v1211 = vadd.f32 %v549, %v1210
  %v1212 = vpop.f32.mrb[0].mxu0
  %1213 = vmatprep.mubr.f32.mxu0 0.0
  %v1214 = vand.u32 %v207, 4294901760
  %1215 = vmatmul.mubr.f32.gmra.mrb[0].mxu0 %v1214
  %v1216 = vpop.f32.mrb[0].mxu0
  %v1217 = vadd.f32 %v559, %v1216
  %v1218 = vpop.f32.mrb[0].mxu0
  %1219 = vmatprep.mubr.f32.mxu0 0.0
  %v1220 = vand.u32 %v210, 4294901760
  %1221 = vmatmul.mubr.f32.gmra.mrb[0].mxu0 %v1220
  %v1222 = vpop.f32.mrb[0].mxu0
  %v1223 = vadd.f32 %v569, %v1222
  %v1224 = vpop.f32.mrb[0].mxu0
  %1225 = vmatprep.mubr.f32.mxu0 0.0
  %v1226 = vand.u32 %v213, 4294901760
  %1227 = vmatmul.mubr.f32.gmra.mrb[0].mxu0 %v1226
  %v1228 = vpop.f32.mrb[0].mxu0
  %v1229 = vadd.f32 %v579, %v1228
  %v1230 = vpop.f32.mrb[0].mxu0
  %1231 = vmatprep.mubr.f32.mxu0 0.0
  %v1232 = vand.u32 %v216, 4294901760
  %1233 = vmatmul.mubr.f32.gmra.mrb[0].mxu0 %v1232
  %v1234 = vpop.f32.mrb[0].mxu0
  %v1235 = vadd.f32 %v589, %v1234
  %v1236 = vpop.f32.mrb[0].mxu0
  %1237 = vmatprep.mubr.f32.mxu0 0.0
  %v1238 = vand.u32 %v219, 4294901760
  %1239 = vmatmul.mubr.f32.gmra.mrb[0].mxu0 %v1238
  %v1240 = vpop.f32.mrb[0].mxu0
  %v1241 = vadd.f32 %v599, %v1240
  %v1242 = vpop.f32.mrb[0].mxu0
  %1243 = vmatprep.mubr.f32.mxu0 0.0
  %v1244 = vand.u32 %v222, 4294901760
  %1245 = vmatmul.mubr.f32.gmra.mrb[0].mxu0 %v1244
  %v1246 = vpop.f32.mrb[0].mxu0
  %v1247 = vadd.f32 %v609, %v1246
  %v1248 = vpop.f32.mrb[0].mxu0
  %1249 = vmatprep.mubr.f32.mxu0 0.0
  %v1250 = vand.u32 %v225, 4294901760
  %1251 = vmatmul.mubr.f32.gmra.mrb[0].mxu0 %v1250
  %v1252 = vpop.f32.mrb[0].mxu0
  %v1253 = vadd.f32 %v619, %v1252
  %v1254 = vpop.f32.mrb[0].mxu0
  %1255 = vmatprep.mubr.f32.mxu0 0.0
  %v1256 = vand.u32 %v228, 4294901760
  %1257 = vmatmul.mubr.f32.gmra.mrb[0].mxu0 %v1256
  %v1258 = vpop.f32.mrb[0].mxu0
  %v1259 = vadd.f32 %v629, %v1258
  %v1260 = vpop.f32.mrb[0].mxu0
  %1261 = vmatprep.mubr.f32.mxu0 0.0
  %v1262 = vand.u32 %v231, 4294901760
  %1263 = vmatmul.mubr.f32.gmra.mrb[0].mxu0 %v1262
  %v1264 = vpop.f32.mrb[0].mxu0
  %v1265 = vadd.f32 %v639, %v1264
  %v1266 = vpop.f32.mrb[0].mxu0
  %1267 = vmatprep.mubr.f32.mxu0 0.0
  %v1268 = vand.u32 %v234, 4294901760
  %1269 = vmatmul.mubr.f32.gmra.mrb[0].mxu0 %v1268
  %v1270 = vpop.f32.mrb[0].mxu0
  %v1271 = vadd.f32 %v649, %v1270
  %v1272 = vpop.f32.mrb[0].mxu0
  %1273 = vmatprep.mubr.f32.mxu0 0.0
  %v1274 = vand.u32 %v237, 4294901760
  %1275 = vmatmul.mubr.f32.gmra.mrb[0].mxu0 %v1274
  %v1276 = vpop.f32.mrb[0].mxu0
  %v1277 = vadd.f32 %v659, %v1276
  %v1278 = vpop.f32.mrb[0].mxu0
  %1279 = vmatprep.mubr.f32.mxu0 0.0
  %v1280 = vand.u32 %v240, 4294901760
  %1281 = vmatmul.mubr.f32.gmra.mrb[0].mxu0 %v1280
  %v1282 = vpop.f32.mrb[0].mxu0
  %v1283 = vadd.f32 %v669, %v1282
  %v1284 = vpop.f32.mrb[0].mxu0
  %1285 = vmatprep.mubr.f32.mxu0 0.0
  %v1286 = vand.u32 %v243, 4294901760
  %1287 = vmatmul.mubr.f32.gmra.mrb[0].mxu0 %v1286
  %v1288 = vpop.f32.mrb[0].mxu0
  %v1289 = vadd.f32 %v679, %v1288
  %v1290 = vpop.f32.mrb[0].mxu0
  %1291 = vmatprep.mubr.f32.mxu0 0.0
  %v1292 = vand.u32 %v246, 4294901760
  %1293 = vmatmul.mubr.f32.gmra.mrb[0].mxu0 %v1292
  %v1294 = vpop.f32.mrb[0].mxu0
  %v1295 = vadd.f32 %v689, %v1294
  %v1296 = vpop.f32.mrb[0].mxu0
  %1297 = vmatprep.mubr.f32.mxu0 0.0
  %v1298 = vand.u32 %v249, 4294901760
  %1299 = vmatmul.mubr.f32.gmra.mrb[0].mxu0 %v1298
  %v1300 = vpop.f32.mrb[0].mxu0
  %v1301 = vadd.f32 %v699, %v1300
  %v1302 = vpop.f32.mrb[0].mxu0
  %1303 = vmatprep.mubr.f32.mxu0 0.0
  %v1304 = vand.u32 %v252, 4294901760
  %1305 = vmatmul.mubr.f32.gmra.mrb[0].mxu0 %v1304
  %v1306 = vpop.f32.mrb[0].mxu0
  %v1307 = vadd.f32 %v709, %v1306
  %v1308 = vpop.f32.mrb[0].mxu0
  %1309 = vmatprep.mubr.f32.mxu0 0.0
  %v1310 = vand.u32 %v255, 4294901760
  %1311 = vmatmul.mubr.f32.gmra.mrb[0].mxu0 %v1310
  %v1312 = vpop.f32.mrb[0].mxu0
  %v1313 = vadd.f32 %v719, %v1312
  %v1314 = vpop.f32.mrb[0].mxu0
  %1315 = vmatprep.mubr.f32.mxu0 0.0
  %v1316 = vand.u32 %v258, 4294901760
  %1317 = vmatmul.mubr.f32.gmra.mrb[0].mxu0 %v1316
  %v1318 = vpop.f32.mrb[0].mxu0
  %v1319 = vadd.f32 %v729, %v1318
  %v1320 = vpop.f32.mrb[0].mxu0
  %1321 = vmatprep.mubr.f32.mxu0 0.0
  %v1322 = vand.u32 %v261, 4294901760
  %1323 = vmatmul.mubr.f32.gmra.mrb[0].mxu0 %v1322
  %v1324 = vpop.f32.mrb[0].mxu0
  %v1325 = vadd.f32 %v739, %v1324
  %v1326 = vpop.f32.mrb[0].mxu0
  %1327 = vmatprep.mubr.f32.mxu0 0.0
  %v1328 = vand.u32 %v264, 4294901760
  %1329 = vmatmul.mubr.f32.gmra.mrb[0].mxu0 %v1328
  %v1330 = vpop.f32.mrb[0].mxu0
  %v1331 = vadd.f32 %v749, %v1330
  %v1332 = vpop.f32.mrb[0].mxu0
  %1333 = vmatprep.mubr.f32.mxu0 0.0
  %v1334 = vand.u32 %v267, 4294901760
  %1335 = vmatmul.mubr.f32.gmra.mrb[0].mxu0 %v1334
  %v1336 = vpop.f32.mrb[0].mxu0
  %v1337 = vadd.f32 %v759, %v1336
  %v1338 = vpop.f32.mrb[0].mxu0
  %1339 = vmatprep.mubr.f32.mxu0 0.0
  %v1340 = vand.u32 %v270, 4294901760
  %1341 = vmatmul.mubr.f32.gmra.mrb[0].mxu0 %v1340
  %v1342 = vpop.f32.mrb[0].mxu0
  %v1343 = vadd.f32 %v769, %v1342
  %v1344 = vpop.f32.mrb[0].mxu0
  %1345 = vmatprep.mubr.f32.mxu0 0.0
  %v1346 = vand.u32 %v273, 4294901760
  %1347 = vmatmul.mubr.f32.gmra.mrb[0].mxu0 %v1346
  %v1348 = vpop.f32.mrb[0].mxu0
  %v1349 = vadd.f32 %v779, %v1348
  %v1350 = vpop.f32.mrb[0].mxu0
  %1351 = vmatprep.mubr.f32.mxu0 0.0
  %v1352 = vand.u32 %v276, 4294901760
  %1353 = vmatmul.mubr.f32.gmra.mrb[0].mxu0 %v1352
  %v1354 = vpop.f32.mrb[0].mxu0
  %v1355 = vadd.f32 %v789, %v1354
  %v1356 = vpop.f32.mrb[0].mxu0
  %1357 = vmatprep.mubr.f32.mxu0 0.0
  %v1358 = vand.u32 %v279, 4294901760
  %1359 = vmatmul.mubr.f32.gmra.mrb[0].mxu0 %v1358
  %v1360 = vpop.f32.mrb[0].mxu0
  %v1361 = vadd.f32 %v799, %v1360
  %v1362 = vpop.f32.mrb[0].mxu0
  %1363 = vmatprep.mubr.f32.mxu0 0.0
  %v1364 = vand.u32 %v282, 4294901760
  %1365 = vmatmul.mubr.f32.gmra.mrb[0].mxu0 %v1364
  %v1366 = vpop.f32.mrb[0].mxu0
  %v1367 = vadd.f32 %v809, %v1366
  %v1368 = vpop.f32.mrb[0].mxu0
  %1369 = vmatprep.mubr.f32.mxu0 0.0
  %v1370 = vand.u32 %v285, 4294901760
  %1371 = vmatmul.mubr.f32.gmra.mrb[0].mxu0 %v1370
  %v1372 = vpop.f32.mrb[0].mxu0
  %v1373 = vadd.f32 %v819, %v1372
  %v1374 = vpop.f32.mrb[0].mxu0
  %1375 = vmatprep.mubr.f32.mxu0 0.0
  %v1376 = vand.u32 %v288, 4294901760
  %1377 = vmatmul.mubr.f32.gmra.mrb[0].mxu0 %v1376
  %v1378 = vpop.f32.mrb[0].mxu0
  %v1379 = vadd.f32 %v829, %v1378
  %v1380 = vpop.f32.mrb[0].mxu0
  %1381 = vmatprep.mubr.f32.mxu0 0.0
  %v1382 = vand.u32 %v291, 4294901760
  %1383 = vmatmul.mubr.f32.gmra.mrb[0].mxu0 %v1382
  %v1384 = vpop.f32.mrb[0].mxu0
  %v1385 = vadd.f32 %v839, %v1384
  %v1386 = vpop.f32.mrb[0].mxu0
  %1387 = vmatprep.mubr.f32.mxu0 0.0
  %v1388 = vand.u32 %v294, 4294901760
  %1389 = vmatmul.mubr.f32.gmra.mrb[0].mxu0 %v1388
  %v1390 = vpop.f32.mrb[0].mxu0
  %v1391 = vadd.f32 %v849, %v1390
  %v1392 = vpop.f32.mrb[0].mxu0
  %1393 = vmatprep.mubr.f32.mxu0 0.0
  %v1394 = vand.u32 %v297, 4294901760
  %1395 = vmatmul.mubr.f32.gmra.mrb[0].mxu0 %v1394
  %v1396 = vpop.f32.mrb[0].mxu0
  %v1397 = vadd.f32 %v859, %v1396
  %v1398 = vpop.f32.mrb[0].mxu0
  %1399 = vmatprep.mubr.f32.mxu0 0.0
  %v1400 = vand.u32 %v300, 4294901760
  %1401 = vmatmul.mubr.f32.gmra.mrb[0].mxu0 %v1400
  %v1402 = vpop.f32.mrb[0].mxu0
  %v1403 = vadd.f32 %v869, %v1402
  %v1404 = vpop.f32.mrb[0].mxu0
  %1405 = vmatprep.mubr.f32.mxu0 0.0
  %v1406 = vand.u32 %v303, 4294901760
  %1407 = vmatmul.mubr.f32.gmra.mrb[0].mxu0 %v1406
  %v1408 = vpop.f32.mrb[0].mxu0
  %v1409 = vadd.f32 %v879, %v1408
  %v1410 = vpop.f32.mrb[0].mxu0
  %1411 = vmatprep.mubr.f32.mxu0 0.0
  %v1412 = vand.u32 %v306, 4294901760
  %1413 = vmatmul.mubr.f32.gmra.mrb[0].mxu0 %v1412
  %v1414 = vpop.f32.mrb[0].mxu0
  %v1415 = vadd.f32 %v889, %v1414
  %v1416 = vpop.f32.mrb[0].mxu0
  %1417 = vmatprep.mubr.f32.mxu0 0.0
  %v1418 = vand.u32 %v309, 4294901760
  %1419 = vmatmul.mubr.f32.gmra.mrb[0].mxu0 %v1418
  %v1420 = vpop.f32.mrb[0].mxu0
  %v1421 = vadd.f32 %v899, %v1420
  %v1422 = vpop.f32.mrb[0].mxu0
  %1423 = vmatprep.mubr.f32.mxu0 0.0
  %v1424 = vand.u32 %v312, 4294901760
  %1425 = vmatmul.mubr.f32.gmra.mrb[0].mxu0 %v1424
  %v1426 = vpop.f32.mrb[0].mxu0
  %v1427 = vadd.f32 %v909, %v1426
  %v1428 = vpop.f32.mrb[0].mxu0
  %1429 = vmatprep.mubr.f32.mxu0 0.0
  %v1430 = vand.u32 %v315, 4294901760
  %1431 = vmatmul.mubr.f32.gmra.mrb[0].mxu0 %v1430
  %v1432 = vpop.f32.mrb[0].mxu0
  %v1433 = vadd.f32 %v919, %v1432
  %v1434 = vpop.f32.mrb[0].mxu0
  %1435 = vmatprep.mubr.f32.mxu0 0.0
  %v1436 = vand.u32 %v318, 4294901760
  %1437 = vmatmul.mubr.f32.gmra.mrb[0].mxu0 %v1436
  %v1438 = vpop.f32.mrb[0].mxu0
  %v1439 = vadd.f32 %v929, %v1438
  %v1440 = vpop.f32.mrb[0].mxu0
  %1441 = vmatprep.mubr.f32.mxu0 0.0
  %v1442 = vand.u32 %v321, 4294901760
  %1443 = vmatmul.mubr.f32.gmra.mrb[0].mxu0 %v1442
  %v1444 = vpop.f32.mrb[0].mxu0
  %v1445 = vadd.f32 %v939, %v1444
  %v1446 = vpop.f32.mrb[0].mxu0
  %1447 = vmatprep.mubr.f32.mxu0 0.0
  %v1448 = vand.u32 %v324, 4294901760
  %1449 = vmatmul.mubr.f32.gmra.mrb[0].mxu0 %v1448
  %v1450 = vpop.f32.mrb[0].mxu0
  %v1451 = vadd.f32 %v949, %v1450
  %v1452 = vpop.f32.mrb[0].mxu0
  %1453 = vmatprep.mubr.f32.mxu0 0.0
  %v1454 = vand.u32 %v327, 4294901760
  %1455 = vmatmul.mubr.f32.gmra.mrb[0].mxu0 %v1454
  %v1456 = vpop.f32.mrb[0].mxu0
  %v1457 = vadd.f32 %v959, %v1456
  %v1458 = vpop.f32.mrb[0].mxu0
  %1459 = vmatprep.mubr.f32.mxu0 0.0
  %v1460 = vand.u32 %v330, 4294901760
  %1461 = vmatmul.mubr.f32.gmra.mrb[0].mxu0 %v1460
  %v1462 = vpop.f32.mrb[0].mxu0
  %v1463 = vadd.f32 %v969, %v1462
  %v1464 = vpop.f32.mrb[0].mxu0
  %1465 = vmatprep.mubr.f32.mxu0 0.0
  %v1466 = vand.u32 %v333, 4294901760
  %1467 = vmatmul.mubr.f32.gmra.mrb[0].mxu0 %v1466
  %v1468 = vpop.f32.mrb[0].mxu0
  %v1469 = vadd.f32 %v979, %v1468
  %v1470 = vpop.f32.mrb[0].mxu0
  %1471 = vmatprep.mubr.f32.mxu0 0.0
  %v1472 = vand.u32 %v336, 4294901760
  %1473 = vmatmul.mubr.f32.gmra.mrb[0].mxu0 %v1472
  %v1474 = vpop.f32.mrb[0].mxu0
  %v1475 = vadd.f32 %v989, %v1474
  %v1476 = vpop.f32.mrb[0].mxu0
  %1477 = vmatprep.mubr.f32.mxu0 0.0
  %v1478 = vand.u32 %v339, 4294901760
  %1479 = vmatmul.mubr.f32.gmra.mrb[0].mxu0 %v1478
  %v1480 = vpop.f32.mrb[0].mxu0
  %v1481 = vadd.f32 %v999, %v1480
  %v1482 = vpop.f32.mrb[0].mxu0
  %1483 = vmatprep.mubr.f32.mxu0 0.0
  %v1484 = vand.u32 %v342, 4294901760
  %1485 = vmatmul.mubr.f32.gmra.mrb[0].mxu0 %v1484
  %v1486 = vpop.f32.mrb[0].mxu0
  %v1487 = vadd.f32 %v1009, %v1486
  %v1488 = vpop.f32.mrb[0].mxu0
  %1489 = vmatprep.mubr.f32.mxu0 0.0
  %v1490 = vand.u32 %v345, 4294901760
  %1491 = vmatmul.mubr.f32.gmra.mrb[0].mxu0 %v1490
  %v1492 = vpop.f32.mrb[0].mxu0
  %v1493 = vadd.f32 %v1019, %v1492
  %v1494 = vpop.f32.mrb[0].mxu0
  %1495 = vmatprep.mubr.f32.mxu0 0.0
  %v1496 = vand.u32 %v348, 4294901760
  %1497 = vmatmul.mubr.f32.gmra.mrb[0].mxu0 %v1496
  %v1498 = vpop.f32.mrb[0].mxu0
  %v1499 = vadd.f32 %v1029, %v1498
  %v1500 = vpop.f32.mrb[0].mxu0
  %1501 = vmatprep.mubr.f32.mxu0 0.0
  %v1502 = vand.u32 %v351, 4294901760
  %1503 = vmatmul.mubr.f32.gmra.mrb[0].mxu0 %v1502
  %v1504 = vpop.f32.mrb[0].mxu0
  %v1505 = vadd.f32 %v1039, %v1504
  %v1506 = vpop.f32.mrb[0].mxu0
  %1507 = vmatprep.mubr.f32.mxu0 0.0
  %v1508 = vand.u32 %v354, 4294901760
  %1509 = vmatmul.mubr.f32.gmra.mrb[0].mxu0 %v1508
  %v1510 = vpop.f32.mrb[0].mxu0
  %v1511 = vadd.f32 %v1049, %v1510
  %v1512 = vpop.f32.mrb[0].mxu0
  %1513 = vmatprep.mubr.f32.mxu0 0.0
  %v1514 = vand.u32 %v357, 4294901760
  %1515 = vmatmul.mubr.f32.gmra.mrb[0].mxu0 %v1514
  %v1516 = vpop.f32.mrb[0].mxu0
  %v1517 = vadd.f32 %v1059, %v1516
  %v1518 = vpop.f32.mrb[0].mxu0
  %1519 = vmatprep.mubr.f32.mxu0 0.0
  %v1520 = vand.u32 %v360, 4294901760
  %1521 = vmatmul.mubr.f32.gmra.mrb[0].mxu0 %v1520
  %v1522 = vpop.f32.mrb[0].mxu0
  %v1523 = vadd.f32 %v1069, %v1522
  %v1524 = vpop.f32.mrb[0].mxu0
  %1525 = vdwg.mxu0
  %1526 = vmatprep.subr.mxu0 0.0
  %v1527 = vand.u32 %v364, 4294901760
  %v1528 = vsub.f32 %v364, %v1527
  %1529 = vmatpush1.msra.mxu0 %v1528
  %1530 = vmatprep.subr.mxu0 0.0
  %1531 = vmatpush1.msra.mxu0 0.0
  %1532 = vmatprep.subr.mxu0 0.0
  %1533 = vmatpush1.msra.mxu0 0.0
  %1534 = vmatprep.subr.mxu0 0.0
  %1535 = vmatpush1.msra.mxu0 0.0
  %1536 = vmatprep.subr.mxu0 0.0
  %1537 = vmatpush1.msra.mxu0 0.0
  %1538 = vmatprep.subr.mxu0 0.0
  %1539 = vmatpush1.msra.mxu0 0.0
  %1540 = vmatprep.subr.mxu0 0.0
  %1541 = vmatpush1.msra.mxu0 0.0
  %1542 = vmatprep.subr.mxu0 0.0
  %1543 = vmatpush1.msra.mxu0 0.0
  %1544 = vmatprep.subr.mxu0 0.0
  %1545 = vmatpush1.msra.mxu0 0.0
  %1546 = vmatprep.subr.mxu0 0.0
  %1547 = vmatpush1.msra.mxu0 0.0
  %1548 = vmatprep.subr.mxu0 0.0
  %1549 = vmatpush1.msra.mxu0 0.0
  %1550 = vmatprep.subr.mxu0 0.0
  %1551 = vmatpush1.msra.mxu0 0.0
  %1552 = vmatprep.subr.mxu0 0.0
  %1553 = vmatpush1.msra.mxu0 0.0
  %1554 = vmatprep.subr.mxu0 0.0
  %1555 = vmatpush1.msra.mxu0 0.0
  %1556 = vmatprep.subr.mxu0 0.0
  %1557 = vmatpush1.msra.mxu0 0.0
  %1558 = vmatprep.subr.mxu0 0.0
  %1559 = vmatpush1.msra.mxu0 0.0
  %1560 = vmatprep.subr.mxu0 0.0
  %1561 = vmatpush1.msra.mxu0 0.0
  %1562 = vmatprep.subr.mxu0 0.0
  %1563 = vmatpush1.msra.mxu0 0.0
  %1564 = vmatprep.subr.mxu0 0.0
  %1565 = vmatpush1.msra.mxu0 0.0
  %1566 = vmatprep.subr.mxu0 0.0
  %1567 = vmatpush1.msra.mxu0 0.0
  %1568 = vmatprep.subr.mxu0 0.0
  %1569 = vmatpush1.msra.mxu0 0.0
  %1570 = vmatprep.subr.mxu0 0.0
  %1571 = vmatpush1.msra.mxu0 0.0
  %1572 = vmatprep.subr.mxu0 0.0
  %1573 = vmatpush1.msra.mxu0 0.0
  %1574 = vmatprep.subr.mxu0 0.0
  %1575 = vmatpush1.msra.mxu0 0.0
  %1576 = vmatprep.subr.mxu0 0.0
  %1577 = vmatpush1.msra.mxu0 0.0
  %1578 = vmatprep.subr.mxu0 0.0
  %1579 = vmatpush1.msra.mxu0 0.0
  %1580 = vmatprep.subr.mxu0 0.0
  %1581 = vmatpush1.msra.mxu0 0.0
  %1582 = vmatprep.subr.mxu0 0.0
  %1583 = vmatpush1.msra.mxu0 0.0
  %1584 = vmatprep.subr.mxu0 0.0
  %1585 = vmatpush1.msra.mxu0 0.0
  %1586 = vmatprep.subr.mxu0 0.0
  %1587 = vmatpush1.msra.mxu0 0.0
  %1588 = vmatprep.subr.mxu0 0.0
  %1589 = vmatpush1.msra.mxu0 0.0
  %1590 = vmatprep.subr.mxu0 0.0
  %1591 = vmatpush1.msra.mxu0 0.0
  %1592 = vmatprep.mubr.f32.mxu0 0.0
  %v1593 = vand.u32 %v171, 4294901760
  %v1594 = vsub.f32 %v171, %v1593
  %1595 = vmatmul.mubr.f32.gmra.mrb[0].mxu0 %v1594
  %v1596 = vpop.f32.mrb[0].mxu0
  %v1597 = vadd.f32 %v1145, %v1596
  %v1598 = vpop.f32.mrb[0].mxu0
  %1599 = vmatprep.mubr.f32.mxu0 0.0
  %v1600 = vand.u32 %v174, 4294901760
  %v1601 = vsub.f32 %v174, %v1600
  %1602 = vmatmul.mubr.f32.gmra.mrb[0].mxu0 %v1601
  %v1603 = vpop.f32.mrb[0].mxu0
  %v1604 = vadd.f32 %v1151, %v1603
  %v1605 = vpop.f32.mrb[0].mxu0
  %1606 = vmatprep.mubr.f32.mxu0 0.0
  %v1607 = vand.u32 %v177, 4294901760
  %v1608 = vsub.f32 %v177, %v1607
  %1609 = vmatmul.mubr.f32.gmra.mrb[0].mxu0 %v1608
  %v1610 = vpop.f32.mrb[0].mxu0
  %v1611 = vadd.f32 %v1157, %v1610
  %v1612 = vpop.f32.mrb[0].mxu0
  %1613 = vmatprep.mubr.f32.mxu0 0.0
  %v1614 = vand.u32 %v180, 4294901760
  %v1615 = vsub.f32 %v180, %v1614
  %1616 = vmatmul.mubr.f32.gmra.mrb[0].mxu0 %v1615
  %v1617 = vpop.f32.mrb[0].mxu0
  %v1618 = vadd.f32 %v1163, %v1617
  %v1619 = vpop.f32.mrb[0].mxu0
  %1620 = vmatprep.mubr.f32.mxu0 0.0
  %v1621 = vand.u32 %v183, 4294901760
  %v1622 = vsub.f32 %v183, %v1621
  %1623 = vmatmul.mubr.f32.gmra.mrb[0].mxu0 %v1622
  %v1624 = vpop.f32.mrb[0].mxu0
  %v1625 = vadd.f32 %v1169, %v1624
  %v1626 = vpop.f32.mrb[0].mxu0
  %1627 = vmatprep.mubr.f32.mxu0 0.0
  %v1628 = vand.u32 %v186, 4294901760
  %v1629 = vsub.f32 %v186, %v1628
  %1630 = vmatmul.mubr.f32.gmra.mrb[0].mxu0 %v1629
  %v1631 = vpop.f32.mrb[0].mxu0
  %v1632 = vadd.f32 %v1175, %v1631
  %v1633 = vpop.f32.mrb[0].mxu0
  %1634 = vmatprep.mubr.f32.mxu0 0.0
  %v1635 = vand.u32 %v189, 4294901760
  %v1636 = vsub.f32 %v189, %v1635
  %1637 = vmatmul.mubr.f32.gmra.mrb[0].mxu0 %v1636
  %v1638 = vpop.f32.mrb[0].mxu0
  %v1639 = vadd.f32 %v1181, %v1638
  %v1640 = vpop.f32.mrb[0].mxu0
  %1641 = vmatprep.mubr.f32.mxu0 0.0
  %v1642 = vand.u32 %v192, 4294901760
  %v1643 = vsub.f32 %v192, %v1642
  %1644 = vmatmul.mubr.f32.gmra.mrb[0].mxu0 %v1643
  %v1645 = vpop.f32.mrb[0].mxu0
  %v1646 = vadd.f32 %v1187, %v1645
  %v1647 = vpop.f32.mrb[0].mxu0
  %1648 = vmatprep.mubr.f32.mxu0 0.0
  %v1649 = vand.u32 %v195, 4294901760
  %v1650 = vsub.f32 %v195, %v1649
  %1651 = vmatmul.mubr.f32.gmra.mrb[0].mxu0 %v1650
  %v1652 = vpop.f32.mrb[0].mxu0
  %v1653 = vadd.f32 %v1193, %v1652
  %v1654 = vpop.f32.mrb[0].mxu0
  %1655 = vmatprep.mubr.f32.mxu0 0.0
  %v1656 = vand.u32 %v198, 4294901760
  %v1657 = vsub.f32 %v198, %v1656
  %1658 = vmatmul.mubr.f32.gmra.mrb[0].mxu0 %v1657
  %v1659 = vpop.f32.mrb[0].mxu0
  %v1660 = vadd.f32 %v1199, %v1659
  %v1661 = vpop.f32.mrb[0].mxu0
  %1662 = vmatprep.mubr.f32.mxu0 0.0
  %v1663 = vand.u32 %v201, 4294901760
  %v1664 = vsub.f32 %v201, %v1663
  %1665 = vmatmul.mubr.f32.gmra.mrb[0].mxu0 %v1664
  %v1666 = vpop.f32.mrb[0].mxu0
  %v1667 = vadd.f32 %v1205, %v1666
  %v1668 = vpop.f32.mrb[0].mxu0
  %1669 = vmatprep.mubr.f32.mxu0 0.0
  %v1670 = vand.u32 %v204, 4294901760
  %v1671 = vsub.f32 %v204, %v1670
  %1672 = vmatmul.mubr.f32.gmra.mrb[0].mxu0 %v1671
  %v1673 = vpop.f32.mrb[0].mxu0
  %v1674 = vadd.f32 %v1211, %v1673
  %v1675 = vpop.f32.mrb[0].mxu0
  %1676 = vmatprep.mubr.f32.mxu0 0.0
  %v1677 = vand.u32 %v207, 4294901760
  %v1678 = vsub.f32 %v207, %v1677
  %1679 = vmatmul.mubr.f32.gmra.mrb[0].mxu0 %v1678
  %v1680 = vpop.f32.mrb[0].mxu0
  %v1681 = vadd.f32 %v1217, %v1680
  %v1682 = vpop.f32.mrb[0].mxu0
  %1683 = vmatprep.mubr.f32.mxu0 0.0
  %v1684 = vand.u32 %v210, 4294901760
  %v1685 = vsub.f32 %v210, %v1684
  %1686 = vmatmul.mubr.f32.gmra.mrb[0].mxu0 %v1685
  %v1687 = vpop.f32.mrb[0].mxu0
  %v1688 = vadd.f32 %v1223, %v1687
  %v1689 = vpop.f32.mrb[0].mxu0
  %1690 = vmatprep.mubr.f32.mxu0 0.0
  %v1691 = vand.u32 %v213, 4294901760
  %v1692 = vsub.f32 %v213, %v1691
  %1693 = vmatmul.mubr.f32.gmra.mrb[0].mxu0 %v1692
  %v1694 = vpop.f32.mrb[0].mxu0
  %v1695 = vadd.f32 %v1229, %v1694
  %v1696 = vpop.f32.mrb[0].mxu0
  %1697 = vmatprep.mubr.f32.mxu0 0.0
  %v1698 = vand.u32 %v216, 4294901760
  %v1699 = vsub.f32 %v216, %v1698
  %1700 = vmatmul.mubr.f32.gmra.mrb[0].mxu0 %v1699
  %v1701 = vpop.f32.mrb[0].mxu0
  %v1702 = vadd.f32 %v1235, %v1701
  %v1703 = vpop.f32.mrb[0].mxu0
  %1704 = vmatprep.mubr.f32.mxu0 0.0
  %v1705 = vand.u32 %v219, 4294901760
  %v1706 = vsub.f32 %v219, %v1705
  %1707 = vmatmul.mubr.f32.gmra.mrb[0].mxu0 %v1706
  %v1708 = vpop.f32.mrb[0].mxu0
  %v1709 = vadd.f32 %v1241, %v1708
  %v1710 = vpop.f32.mrb[0].mxu0
  %1711 = vmatprep.mubr.f32.mxu0 0.0
  %v1712 = vand.u32 %v222, 4294901760
  %v1713 = vsub.f32 %v222, %v1712
  %1714 = vmatmul.mubr.f32.gmra.mrb[0].mxu0 %v1713
  %v1715 = vpop.f32.mrb[0].mxu0
  %v1716 = vadd.f32 %v1247, %v1715
  %v1717 = vpop.f32.mrb[0].mxu0
  %1718 = vmatprep.mubr.f32.mxu0 0.0
  %v1719 = vand.u32 %v225, 4294901760
  %v1720 = vsub.f32 %v225, %v1719
  %1721 = vmatmul.mubr.f32.gmra.mrb[0].mxu0 %v1720
  %v1722 = vpop.f32.mrb[0].mxu0
  %v1723 = vadd.f32 %v1253, %v1722
  %v1724 = vpop.f32.mrb[0].mxu0
  %1725 = vmatprep.mubr.f32.mxu0 0.0
  %v1726 = vand.u32 %v228, 4294901760
  %v1727 = vsub.f32 %v228, %v1726
  %1728 = vmatmul.mubr.f32.gmra.mrb[0].mxu0 %v1727
  %v1729 = vpop.f32.mrb[0].mxu0
  %v1730 = vadd.f32 %v1259, %v1729
  %v1731 = vpop.f32.mrb[0].mxu0
  %1732 = vmatprep.mubr.f32.mxu0 0.0
  %v1733 = vand.u32 %v231, 4294901760
  %v1734 = vsub.f32 %v231, %v1733
  %1735 = vmatmul.mubr.f32.gmra.mrb[0].mxu0 %v1734
  %v1736 = vpop.f32.mrb[0].mxu0
  %v1737 = vadd.f32 %v1265, %v1736
  %v1738 = vpop.f32.mrb[0].mxu0
  %1739 = vmatprep.mubr.f32.mxu0 0.0
  %v1740 = vand.u32 %v234, 4294901760
  %v1741 = vsub.f32 %v234, %v1740
  %1742 = vmatmul.mubr.f32.gmra.mrb[0].mxu0 %v1741
  %v1743 = vpop.f32.mrb[0].mxu0
  %v1744 = vadd.f32 %v1271, %v1743
  %v1745 = vpop.f32.mrb[0].mxu0
  %1746 = vmatprep.mubr.f32.mxu0 0.0
  %v1747 = vand.u32 %v237, 4294901760
  %v1748 = vsub.f32 %v237, %v1747
  %1749 = vmatmul.mubr.f32.gmra.mrb[0].mxu0 %v1748
  %v1750 = vpop.f32.mrb[0].mxu0
  %v1751 = vadd.f32 %v1277, %v1750
  %v1752 = vpop.f32.mrb[0].mxu0
  %1753 = vmatprep.mubr.f32.mxu0 0.0
  %v1754 = vand.u32 %v240, 4294901760
  %v1755 = vsub.f32 %v240, %v1754
  %1756 = vmatmul.mubr.f32.gmra.mrb[0].mxu0 %v1755
  %v1757 = vpop.f32.mrb[0].mxu0
  %v1758 = vadd.f32 %v1283, %v1757
  %v1759 = vpop.f32.mrb[0].mxu0
  %1760 = vmatprep.mubr.f32.mxu0 0.0
  %v1761 = vand.u32 %v243, 4294901760
  %v1762 = vsub.f32 %v243, %v1761
  %1763 = vmatmul.mubr.f32.gmra.mrb[0].mxu0 %v1762
  %v1764 = vpop.f32.mrb[0].mxu0
  %v1765 = vadd.f32 %v1289, %v1764
  %v1766 = vpop.f32.mrb[0].mxu0
  %1767 = vmatprep.mubr.f32.mxu0 0.0
  %v1768 = vand.u32 %v246, 4294901760
  %v1769 = vsub.f32 %v246, %v1768
  %1770 = vmatmul.mubr.f32.gmra.mrb[0].mxu0 %v1769
  %v1771 = vpop.f32.mrb[0].mxu0
  %v1772 = vadd.f32 %v1295, %v1771
  %v1773 = vpop.f32.mrb[0].mxu0
  %1774 = vmatprep.mubr.f32.mxu0 0.0
  %v1775 = vand.u32 %v249, 4294901760
  %v1776 = vsub.f32 %v249, %v1775
  %1777 = vmatmul.mubr.f32.gmra.mrb[0].mxu0 %v1776
  %v1778 = vpop.f32.mrb[0].mxu0
  %v1779 = vadd.f32 %v1301, %v1778
  %v1780 = vpop.f32.mrb[0].mxu0
  %1781 = vmatprep.mubr.f32.mxu0 0.0
  %v1782 = vand.u32 %v252, 4294901760
  %v1783 = vsub.f32 %v252, %v1782
  %1784 = vmatmul.mubr.f32.gmra.mrb[0].mxu0 %v1783
  %v1785 = vpop.f32.mrb[0].mxu0
  %v1786 = vadd.f32 %v1307, %v1785
  %v1787 = vpop.f32.mrb[0].mxu0
  %1788 = vmatprep.mubr.f32.mxu0 0.0
  %v1789 = vand.u32 %v255, 4294901760
  %v1790 = vsub.f32 %v255, %v1789
  %1791 = vmatmul.mubr.f32.gmra.mrb[0].mxu0 %v1790
  %v1792 = vpop.f32.mrb[0].mxu0
  %v1793 = vadd.f32 %v1313, %v1792
  %v1794 = vpop.f32.mrb[0].mxu0
  %1795 = vmatprep.mubr.f32.mxu0 0.0
  %v1796 = vand.u32 %v258, 4294901760
  %v1797 = vsub.f32 %v258, %v1796
  %1798 = vmatmul.mubr.f32.gmra.mrb[0].mxu0 %v1797
  %v1799 = vpop.f32.mrb[0].mxu0
  %v1800 = vadd.f32 %v1319, %v1799
  %v1801 = vpop.f32.mrb[0].mxu0
  %1802 = vmatprep.mubr.f32.mxu0 0.0
  %v1803 = vand.u32 %v261, 4294901760
  %v1804 = vsub.f32 %v261, %v1803
  %1805 = vmatmul.mubr.f32.gmra.mrb[0].mxu0 %v1804
  %v1806 = vpop.f32.mrb[0].mxu0
  %v1807 = vadd.f32 %v1325, %v1806
  %v1808 = vpop.f32.mrb[0].mxu0
  %1809 = vmatprep.mubr.f32.mxu0 0.0
  %v1810 = vand.u32 %v264, 4294901760
  %v1811 = vsub.f32 %v264, %v1810
  %1812 = vmatmul.mubr.f32.gmra.mrb[0].mxu0 %v1811
  %v1813 = vpop.f32.mrb[0].mxu0
  %v1814 = vadd.f32 %v1331, %v1813
  %v1815 = vpop.f32.mrb[0].mxu0
  %1816 = vmatprep.mubr.f32.mxu0 0.0
  %v1817 = vand.u32 %v267, 4294901760
  %v1818 = vsub.f32 %v267, %v1817
  %1819 = vmatmul.mubr.f32.gmra.mrb[0].mxu0 %v1818
  %v1820 = vpop.f32.mrb[0].mxu0
  %v1821 = vadd.f32 %v1337, %v1820
  %v1822 = vpop.f32.mrb[0].mxu0
  %1823 = vmatprep.mubr.f32.mxu0 0.0
  %v1824 = vand.u32 %v270, 4294901760
  %v1825 = vsub.f32 %v270, %v1824
  %1826 = vmatmul.mubr.f32.gmra.mrb[0].mxu0 %v1825
  %v1827 = vpop.f32.mrb[0].mxu0
  %v1828 = vadd.f32 %v1343, %v1827
  %v1829 = vpop.f32.mrb[0].mxu0
  %1830 = vmatprep.mubr.f32.mxu0 0.0
  %v1831 = vand.u32 %v273, 4294901760
  %v1832 = vsub.f32 %v273, %v1831
  %1833 = vmatmul.mubr.f32.gmra.mrb[0].mxu0 %v1832
  %v1834 = vpop.f32.mrb[0].mxu0
  %v1835 = vadd.f32 %v1349, %v1834
  %v1836 = vpop.f32.mrb[0].mxu0
  %1837 = vmatprep.mubr.f32.mxu0 0.0
  %v1838 = vand.u32 %v276, 4294901760
  %v1839 = vsub.f32 %v276, %v1838
  %1840 = vmatmul.mubr.f32.gmra.mrb[0].mxu0 %v1839
  %v1841 = vpop.f32.mrb[0].mxu0
  %v1842 = vadd.f32 %v1355, %v1841
  %v1843 = vpop.f32.mrb[0].mxu0
  %1844 = vmatprep.mubr.f32.mxu0 0.0
  %v1845 = vand.u32 %v279, 4294901760
  %v1846 = vsub.f32 %v279, %v1845
  %1847 = vmatmul.mubr.f32.gmra.mrb[0].mxu0 %v1846
  %v1848 = vpop.f32.mrb[0].mxu0
  %v1849 = vadd.f32 %v1361, %v1848
  %v1850 = vpop.f32.mrb[0].mxu0
  %1851 = vmatprep.mubr.f32.mxu0 0.0
  %v1852 = vand.u32 %v282, 4294901760
  %v1853 = vsub.f32 %v282, %v1852
  %1854 = vmatmul.mubr.f32.gmra.mrb[0].mxu0 %v1853
  %v1855 = vpop.f32.mrb[0].mxu0
  %v1856 = vadd.f32 %v1367, %v1855
  %v1857 = vpop.f32.mrb[0].mxu0
  %1858 = vmatprep.mubr.f32.mxu0 0.0
  %v1859 = vand.u32 %v285, 4294901760
  %v1860 = vsub.f32 %v285, %v1859
  %1861 = vmatmul.mubr.f32.gmra.mrb[0].mxu0 %v1860
  %v1862 = vpop.f32.mrb[0].mxu0
  %v1863 = vadd.f32 %v1373, %v1862
  %v1864 = vpop.f32.mrb[0].mxu0
  %1865 = vmatprep.mubr.f32.mxu0 0.0
  %v1866 = vand.u32 %v288, 4294901760
  %v1867 = vsub.f32 %v288, %v1866
  %1868 = vmatmul.mubr.f32.gmra.mrb[0].mxu0 %v1867
  %v1869 = vpop.f32.mrb[0].mxu0
  %v1870 = vadd.f32 %v1379, %v1869
  %v1871 = vpop.f32.mrb[0].mxu0
  %1872 = vmatprep.mubr.f32.mxu0 0.0
  %v1873 = vand.u32 %v291, 4294901760
  %v1874 = vsub.f32 %v291, %v1873
  %1875 = vmatmul.mubr.f32.gmra.mrb[0].mxu0 %v1874
  %v1876 = vpop.f32.mrb[0].mxu0
  %v1877 = vadd.f32 %v1385, %v1876
  %v1878 = vpop.f32.mrb[0].mxu0
  %1879 = vmatprep.mubr.f32.mxu0 0.0
  %v1880 = vand.u32 %v294, 4294901760
  %v1881 = vsub.f32 %v294, %v1880
  %1882 = vmatmul.mubr.f32.gmra.mrb[0].mxu0 %v1881
  %v1883 = vpop.f32.mrb[0].mxu0
  %v1884 = vadd.f32 %v1391, %v1883
  %v1885 = vpop.f32.mrb[0].mxu0
  %1886 = vmatprep.mubr.f32.mxu0 0.0
  %v1887 = vand.u32 %v297, 4294901760
  %v1888 = vsub.f32 %v297, %v1887
  %1889 = vmatmul.mubr.f32.gmra.mrb[0].mxu0 %v1888
  %v1890 = vpop.f32.mrb[0].mxu0
  %v1891 = vadd.f32 %v1397, %v1890
  %v1892 = vpop.f32.mrb[0].mxu0
  %1893 = vmatprep.mubr.f32.mxu0 0.0
  %v1894 = vand.u32 %v300, 4294901760
  %v1895 = vsub.f32 %v300, %v1894
  %1896 = vmatmul.mubr.f32.gmra.mrb[0].mxu0 %v1895
  %v1897 = vpop.f32.mrb[0].mxu0
  %v1898 = vadd.f32 %v1403, %v1897
  %v1899 = vpop.f32.mrb[0].mxu0
  %1900 = vmatprep.mubr.f32.mxu0 0.0
  %v1901 = vand.u32 %v303, 4294901760
  %v1902 = vsub.f32 %v303, %v1901
  %1903 = vmatmul.mubr.f32.gmra.mrb[0].mxu0 %v1902
  %v1904 = vpop.f32.mrb[0].mxu0
  %v1905 = vadd.f32 %v1409, %v1904
  %v1906 = vpop.f32.mrb[0].mxu0
  %1907 = vmatprep.mubr.f32.mxu0 0.0
  %v1908 = vand.u32 %v306, 4294901760
  %v1909 = vsub.f32 %v306, %v1908
  %1910 = vmatmul.mubr.f32.gmra.mrb[0].mxu0 %v1909
  %v1911 = vpop.f32.mrb[0].mxu0
  %v1912 = vadd.f32 %v1415, %v1911
  %v1913 = vpop.f32.mrb[0].mxu0
  %1914 = vmatprep.mubr.f32.mxu0 0.0
  %v1915 = vand.u32 %v309, 4294901760
  %v1916 = vsub.f32 %v309, %v1915
  %1917 = vmatmul.mubr.f32.gmra.mrb[0].mxu0 %v1916
  %v1918 = vpop.f32.mrb[0].mxu0
  %v1919 = vadd.f32 %v1421, %v1918
  %v1920 = vpop.f32.mrb[0].mxu0
  %1921 = vmatprep.mubr.f32.mxu0 0.0
  %v1922 = vand.u32 %v312, 4294901760
  %v1923 = vsub.f32 %v312, %v1922
  %1924 = vmatmul.mubr.f32.gmra.mrb[0].mxu0 %v1923
  %v1925 = vpop.f32.mrb[0].mxu0
  %v1926 = vadd.f32 %v1427, %v1925
  %v1927 = vpop.f32.mrb[0].mxu0
  %1928 = vmatprep.mubr.f32.mxu0 0.0
  %v1929 = vand.u32 %v315, 4294901760
  %v1930 = vsub.f32 %v315, %v1929
  %1931 = vmatmul.mubr.f32.gmra.mrb[0].mxu0 %v1930
  %v1932 = vpop.f32.mrb[0].mxu0
  %v1933 = vadd.f32 %v1433, %v1932
  %v1934 = vpop.f32.mrb[0].mxu0
  %1935 = vmatprep.mubr.f32.mxu0 0.0
  %v1936 = vand.u32 %v318, 4294901760
  %v1937 = vsub.f32 %v318, %v1936
  %1938 = vmatmul.mubr.f32.gmra.mrb[0].mxu0 %v1937
  %v1939 = vpop.f32.mrb[0].mxu0
  %v1940 = vadd.f32 %v1439, %v1939
  %v1941 = vpop.f32.mrb[0].mxu0
  %1942 = vmatprep.mubr.f32.mxu0 0.0
  %v1943 = vand.u32 %v321, 4294901760
  %v1944 = vsub.f32 %v321, %v1943
  %1945 = vmatmul.mubr.f32.gmra.mrb[0].mxu0 %v1944
  %v1946 = vpop.f32.mrb[0].mxu0
  %v1947 = vadd.f32 %v1445, %v1946
  %v1948 = vpop.f32.mrb[0].mxu0
  %1949 = vmatprep.mubr.f32.mxu0 0.0
  %v1950 = vand.u32 %v324, 4294901760
  %v1951 = vsub.f32 %v324, %v1950
  %1952 = vmatmul.mubr.f32.gmra.mrb[0].mxu0 %v1951
  %v1953 = vpop.f32.mrb[0].mxu0
  %v1954 = vadd.f32 %v1451, %v1953
  %v1955 = vpop.f32.mrb[0].mxu0
  %1956 = vmatprep.mubr.f32.mxu0 0.0
  %v1957 = vand.u32 %v327, 4294901760
  %v1958 = vsub.f32 %v327, %v1957
  %1959 = vmatmul.mubr.f32.gmra.mrb[0].mxu0 %v1958
  %v1960 = vpop.f32.mrb[0].mxu0
  %v1961 = vadd.f32 %v1457, %v1960
  %v1962 = vpop.f32.mrb[0].mxu0
  %1963 = vmatprep.mubr.f32.mxu0 0.0
  %v1964 = vand.u32 %v330, 4294901760
  %v1965 = vsub.f32 %v330, %v1964
  %1966 = vmatmul.mubr.f32.gmra.mrb[0].mxu0 %v1965
  %v1967 = vpop.f32.mrb[0].mxu0
  %v1968 = vadd.f32 %v1463, %v1967
  %v1969 = vpop.f32.mrb[0].mxu0
  %1970 = vmatprep.mubr.f32.mxu0 0.0
  %v1971 = vand.u32 %v333, 4294901760
  %v1972 = vsub.f32 %v333, %v1971
  %1973 = vmatmul.mubr.f32.gmra.mrb[0].mxu0 %v1972
  %v1974 = vpop.f32.mrb[0].mxu0
  %v1975 = vadd.f32 %v1469, %v1974
  %v1976 = vpop.f32.mrb[0].mxu0
  %1977 = vmatprep.mubr.f32.mxu0 0.0
  %v1978 = vand.u32 %v336, 4294901760
  %v1979 = vsub.f32 %v336, %v1978
  %1980 = vmatmul.mubr.f32.gmra.mrb[0].mxu0 %v1979
  %v1981 = vpop.f32.mrb[0].mxu0
  %v1982 = vadd.f32 %v1475, %v1981
  %v1983 = vpop.f32.mrb[0].mxu0
  %1984 = vmatprep.mubr.f32.mxu0 0.0
  %v1985 = vand.u32 %v339, 4294901760
  %v1986 = vsub.f32 %v339, %v1985
  %1987 = vmatmul.mubr.f32.gmra.mrb[0].mxu0 %v1986
  %v1988 = vpop.f32.mrb[0].mxu0
  %v1989 = vadd.f32 %v1481, %v1988
  %v1990 = vpop.f32.mrb[0].mxu0
  %1991 = vmatprep.mubr.f32.mxu0 0.0
  %v1992 = vand.u32 %v342, 4294901760
  %v1993 = vsub.f32 %v342, %v1992
  %1994 = vmatmul.mubr.f32.gmra.mrb[0].mxu0 %v1993
  %v1995 = vpop.f32.mrb[0].mxu0
  %v1996 = vadd.f32 %v1487, %v1995
  %v1997 = vpop.f32.mrb[0].mxu0
  %1998 = vmatprep.mubr.f32.mxu0 0.0
  %v1999 = vand.u32 %v345, 4294901760
  %v2000 = vsub.f32 %v345, %v1999
  %2001 = vmatmul.mubr.f32.gmra.mrb[0].mxu0 %v2000
  %v2002 = vpop.f32.mrb[0].mxu0
  %v2003 = vadd.f32 %v1493, %v2002
  %v2004 = vpop.f32.mrb[0].mxu0
  %2005 = vmatprep.mubr.f32.mxu0 0.0
  %v2006 = vand.u32 %v348, 4294901760
  %v2007 = vsub.f32 %v348, %v2006
  %2008 = vmatmul.mubr.f32.gmra.mrb[0].mxu0 %v2007
  %v2009 = vpop.f32.mrb[0].mxu0
  %v2010 = vadd.f32 %v1499, %v2009
  %v2011 = vpop.f32.mrb[0].mxu0
  %2012 = vmatprep.mubr.f32.mxu0 0.0
  %v2013 = vand.u32 %v351, 4294901760
  %v2014 = vsub.f32 %v351, %v2013
  %2015 = vmatmul.mubr.f32.gmra.mrb[0].mxu0 %v2014
  %v2016 = vpop.f32.mrb[0].mxu0
  %v2017 = vadd.f32 %v1505, %v2016
  %v2018 = vpop.f32.mrb[0].mxu0
  %2019 = vmatprep.mubr.f32.mxu0 0.0
  %v2020 = vand.u32 %v354, 4294901760
  %v2021 = vsub.f32 %v354, %v2020
  %2022 = vmatmul.mubr.f32.gmra.mrb[0].mxu0 %v2021
  %v2023 = vpop.f32.mrb[0].mxu0
  %v2024 = vadd.f32 %v1511, %v2023
  %v2025 = vpop.f32.mrb[0].mxu0
  %2026 = vmatprep.mubr.f32.mxu0 0.0
  %v2027 = vand.u32 %v357, 4294901760
  %v2028 = vsub.f32 %v357, %v2027
  %2029 = vmatmul.mubr.f32.gmra.mrb[0].mxu0 %v2028
  %v2030 = vpop.f32.mrb[0].mxu0
  %v2031 = vadd.f32 %v1517, %v2030
  %v2032 = vpop.f32.mrb[0].mxu0
  %2033 = vmatprep.mubr.f32.mxu0 0.0
  %v2034 = vand.u32 %v360, 4294901760
  %v2035 = vsub.f32 %v360, %v2034
  %2036 = vmatmul.mubr.f32.gmra.mrb[0].mxu0 %v2035
  %v2037 = vpop.f32.mrb[0].mxu0
  %v2038 = vadd.f32 %v1523, %v2037
  %v2039 = vpop.f32.mrb[0].mxu0
  %2040 = vdwg.mxu0
  %2041 = vmatprep.subr.mxu0 0.0
  %v2042 = vand.u32 %v364, 4294901760
  %2043 = vmatpush1.msra.mxu0 %v2042
  %2044 = vmatprep.subr.mxu0 0.0
  %2045 = vmatpush1.msra.mxu0 0.0
  %2046 = vmatprep.subr.mxu0 0.0
  %2047 = vmatpush1.msra.mxu0 0.0
  %2048 = vmatprep.subr.mxu0 0.0
  %2049 = vmatpush1.msra.mxu0 0.0
  %2050 = vmatprep.subr.mxu0 0.0
  %2051 = vmatpush1.msra.mxu0 0.0
  %2052 = vmatprep.subr.mxu0 0.0
  %2053 = vmatpush1.msra.mxu0 0.0
  %2054 = vmatprep.subr.mxu0 0.0
  %2055 = vmatpush1.msra.mxu0 0.0
  %2056 = vmatprep.subr.mxu0 0.0
  %2057 = vmatpush1.msra.mxu0 0.0
  %2058 = vmatprep.subr.mxu0 0.0
  %2059 = vmatpush1.msra.mxu0 0.0
  %2060 = vmatprep.subr.mxu0 0.0
  %2061 = vmatpush1.msra.mxu0 0.0
  %2062 = vmatprep.subr.mxu0 0.0
  %2063 = vmatpush1.msra.mxu0 0.0
  %2064 = vmatprep.subr.mxu0 0.0
  %2065 = vmatpush1.msra.mxu0 0.0
  %2066 = vmatprep.subr.mxu0 0.0
  %2067 = vmatpush1.msra.mxu0 0.0
  %2068 = vmatprep.subr.mxu0 0.0
  %2069 = vmatpush1.msra.mxu0 0.0
  %2070 = vmatprep.subr.mxu0 0.0
  %2071 = vmatpush1.msra.mxu0 0.0
  %2072 = vmatprep.subr.mxu0 0.0
  %2073 = vmatpush1.msra.mxu0 0.0
  %2074 = vmatprep.subr.mxu0 0.0
  %2075 = vmatpush1.msra.mxu0 0.0
  %2076 = vmatprep.subr.mxu0 0.0
  %2077 = vmatpush1.msra.mxu0 0.0
  %2078 = vmatprep.subr.mxu0 0.0
  %2079 = vmatpush1.msra.mxu0 0.0
  %2080 = vmatprep.subr.mxu0 0.0
  %2081 = vmatpush1.msra.mxu0 0.0
  %2082 = vmatprep.subr.mxu0 0.0
  %2083 = vmatpush1.msra.mxu0 0.0
  %2084 = vmatprep.subr.mxu0 0.0
  %2085 = vmatpush1.msra.mxu0 0.0
  %2086 = vmatprep.subr.mxu0 0.0
  %2087 = vmatpush1.msra.mxu0 0.0
  %2088 = vmatprep.subr.mxu0 0.0
  %2089 = vmatpush1.msra.mxu0 0.0
  %2090 = vmatprep.subr.mxu0 0.0
  %2091 = vmatpush1.msra.mxu0 0.0
  %2092 = vmatprep.subr.mxu0 0.0
  %2093 = vmatpush1.msra.mxu0 0.0
  %2094 = vmatprep.subr.mxu0 0.0
  %2095 = vmatpush1.msra.mxu0 0.0
  %2096 = vmatprep.subr.mxu0 0.0
  %2097 = vmatpush1.msra.mxu0 0.0
  %2098 = vmatprep.subr.mxu0 0.0
  %2099 = vmatpush1.msra.mxu0 0.0
  %2100 = vmatprep.subr.mxu0 0.0
  %2101 = vmatpush1.msra.mxu0 0.0
  %2102 = vmatprep.subr.mxu0 0.0
  %2103 = vmatpush1.msra.mxu0 0.0
  %2104 = vmatprep.subr.mxu0 0.0
  %2105 = vmatpush1.msra.mxu0 0.0
  %2106 = vmatprep.mubr.f32.mxu0 0.0
  %v2107 = vand.u32 %v171, 4294901760
  %v2108 = vsub.f32 %v171, %v2107
  %v2109 = vand.u32 %v2108, 4294901760
  %2110 = vmatmul.mubr.f32.gmra.mrb[0].mxu0 %v2109
  %v2111 = vpop.f32.mrb[0].mxu0
  %v2112 = vadd.f32 %v1597, %v2111
  %v2113 = vpop.f32.mrb[0].mxu0
  %2114 = vmatprep.mubr.f32.mxu0 0.0
  %v2115 = vand.u32 %v174, 4294901760
  %v2116 = vsub.f32 %v174, %v2115
  %v2117 = vand.u32 %v2116, 4294901760
  %2118 = vmatmul.mubr.f32.gmra.mrb[0].mxu0 %v2117
  %v2119 = vpop.f32.mrb[0].mxu0
  %v2120 = vadd.f32 %v1604, %v2119
  %v2121 = vpop.f32.mrb[0].mxu0
  %2122 = vmatprep.mubr.f32.mxu0 0.0
  %v2123 = vand.u32 %v177, 4294901760
  %v2124 = vsub.f32 %v177, %v2123
  %v2125 = vand.u32 %v2124, 4294901760
  %2126 = vmatmul.mubr.f32.gmra.mrb[0].mxu0 %v2125
  %v2127 = vpop.f32.mrb[0].mxu0
  %v2128 = vadd.f32 %v1611, %v2127
  %v2129 = vpop.f32.mrb[0].mxu0
  %2130 = vmatprep.mubr.f32.mxu0 0.0
  %v2131 = vand.u32 %v180, 4294901760
  %v2132 = vsub.f32 %v180, %v2131
  %v2133 = vand.u32 %v2132, 4294901760
  %2134 = vmatmul.mubr.f32.gmra.mrb[0].mxu0 %v2133
  %v2135 = vpop.f32.mrb[0].mxu0
  %v2136 = vadd.f32 %v1618, %v2135
  %v2137 = vpop.f32.mrb[0].mxu0
  %2138 = vmatprep.mubr.f32.mxu0 0.0
  %v2139 = vand.u32 %v183, 4294901760
  %v2140 = vsub.f32 %v183, %v2139
  %v2141 = vand.u32 %v2140, 4294901760
  %2142 = vmatmul.mubr.f32.gmra.mrb[0].mxu0 %v2141
  %v2143 = vpop.f32.mrb[0].mxu0
  %v2144 = vadd.f32 %v1625, %v2143
  %v2145 = vpop.f32.mrb[0].mxu0
  %2146 = vmatprep.mubr.f32.mxu0 0.0
  %v2147 = vand.u32 %v186, 4294901760
  %v2148 = vsub.f32 %v186, %v2147
  %v2149 = vand.u32 %v2148, 4294901760
  %2150 = vmatmul.mubr.f32.gmra.mrb[0].mxu0 %v2149
  %v2151 = vpop.f32.mrb[0].mxu0
  %v2152 = vadd.f32 %v1632, %v2151
  %v2153 = vpop.f32.mrb[0].mxu0
  %2154 = vmatprep.mubr.f32.mxu0 0.0
  %v2155 = vand.u32 %v189, 4294901760
  %v2156 = vsub.f32 %v189, %v2155
  %v2157 = vand.u32 %v2156, 4294901760
  %2158 = vmatmul.mubr.f32.gmra.mrb[0].mxu0 %v2157
  %v2159 = vpop.f32.mrb[0].mxu0
  %v2160 = vadd.f32 %v1639, %v2159
  %v2161 = vpop.f32.mrb[0].mxu0
  %2162 = vmatprep.mubr.f32.mxu0 0.0
  %v2163 = vand.u32 %v192, 4294901760
  %v2164 = vsub.f32 %v192, %v2163
  %v2165 = vand.u32 %v2164, 4294901760
  %2166 = vmatmul.mubr.f32.gmra.mrb[0].mxu0 %v2165
  %v2167 = vpop.f32.mrb[0].mxu0
  %v2168 = vadd.f32 %v1646, %v2167
  %v2169 = vpop.f32.mrb[0].mxu0
  %2170 = vmatprep.mubr.f32.mxu0 0.0
  %v2171 = vand.u32 %v195, 4294901760
  %v2172 = vsub.f32 %v195, %v2171
  %v2173 = vand.u32 %v2172, 4294901760
  %2174 = vmatmul.mubr.f32.gmra.mrb[0].mxu0 %v2173
  %v2175 = vpop.f32.mrb[0].mxu0
  %v2176 = vadd.f32 %v1653, %v2175
  %v2177 = vpop.f32.mrb[0].mxu0
  %2178 = vmatprep.mubr.f32.mxu0 0.0
  %v2179 = vand.u32 %v198, 4294901760
  %v2180 = vsub.f32 %v198, %v2179
  %v2181 = vand.u32 %v2180, 4294901760
  %2182 = vmatmul.mubr.f32.gmra.mrb[0].mxu0 %v2181
  %v2183 = vpop.f32.mrb[0].mxu0
  %v2184 = vadd.f32 %v1660, %v2183
  %v2185 = vpop.f32.mrb[0].mxu0
  %2186 = vmatprep.mubr.f32.mxu0 0.0
  %v2187 = vand.u32 %v201, 4294901760
  %v2188 = vsub.f32 %v201, %v2187
  %v2189 = vand.u32 %v2188, 4294901760
  %2190 = vmatmul.mubr.f32.gmra.mrb[0].mxu0 %v2189
  %v2191 = vpop.f32.mrb[0].mxu0
  %v2192 = vadd.f32 %v1667, %v2191
  %v2193 = vpop.f32.mrb[0].mxu0
  %2194 = vmatprep.mubr.f32.mxu0 0.0
  %v2195 = vand.u32 %v204, 4294901760
  %v2196 = vsub.f32 %v204, %v2195
  %v2197 = vand.u32 %v2196, 4294901760
  %2198 = vmatmul.mubr.f32.gmra.mrb[0].mxu0 %v2197
  %v2199 = vpop.f32.mrb[0].mxu0
  %v2200 = vadd.f32 %v1674, %v2199
  %v2201 = vpop.f32.mrb[0].mxu0
  %2202 = vmatprep.mubr.f32.mxu0 0.0
  %v2203 = vand.u32 %v207, 4294901760
  %v2204 = vsub.f32 %v207, %v2203
  %v2205 = vand.u32 %v2204, 4294901760
  %2206 = vmatmul.mubr.f32.gmra.mrb[0].mxu0 %v2205
  %v2207 = vpop.f32.mrb[0].mxu0
  %v2208 = vadd.f32 %v1681, %v2207
  %v2209 = vpop.f32.mrb[0].mxu0
  %2210 = vmatprep.mubr.f32.mxu0 0.0
  %v2211 = vand.u32 %v210, 4294901760
  %v2212 = vsub.f32 %v210, %v2211
  %v2213 = vand.u32 %v2212, 4294901760
  %2214 = vmatmul.mubr.f32.gmra.mrb[0].mxu0 %v2213
  %v2215 = vpop.f32.mrb[0].mxu0
  %v2216 = vadd.f32 %v1688, %v2215
  %v2217 = vpop.f32.mrb[0].mxu0
  %2218 = vmatprep.mubr.f32.mxu0 0.0
  %v2219 = vand.u32 %v213, 4294901760
  %v2220 = vsub.f32 %v213, %v2219
  %v2221 = vand.u32 %v2220, 4294901760
  %2222 = vmatmul.mubr.f32.gmra.mrb[0].mxu0 %v2221
  %v2223 = vpop.f32.mrb[0].mxu0
  %v2224 = vadd.f32 %v1695, %v2223
  %v2225 = vpop.f32.mrb[0].mxu0
  %2226 = vmatprep.mubr.f32.mxu0 0.0
  %v2227 = vand.u32 %v216, 4294901760
  %v2228 = vsub.f32 %v216, %v2227
  %v2229 = vand.u32 %v2228, 4294901760
  %2230 = vmatmul.mubr.f32.gmra.mrb[0].mxu0 %v2229
  %v2231 = vpop.f32.mrb[0].mxu0
  %v2232 = vadd.f32 %v1702, %v2231
  %v2233 = vpop.f32.mrb[0].mxu0
  %2234 = vmatprep.mubr.f32.mxu0 0.0
  %v2235 = vand.u32 %v219, 4294901760
  %v2236 = vsub.f32 %v219, %v2235
  %v2237 = vand.u32 %v2236, 4294901760
  %2238 = vmatmul.mubr.f32.gmra.mrb[0].mxu0 %v2237
  %v2239 = vpop.f32.mrb[0].mxu0
  %v2240 = vadd.f32 %v1709, %v2239
  %v2241 = vpop.f32.mrb[0].mxu0
  %2242 = vmatprep.mubr.f32.mxu0 0.0
  %v2243 = vand.u32 %v222, 4294901760
  %v2244 = vsub.f32 %v222, %v2243
  %v2245 = vand.u32 %v2244, 4294901760
  %2246 = vmatmul.mubr.f32.gmra.mrb[0].mxu0 %v2245
  %v2247 = vpop.f32.mrb[0].mxu0
  %v2248 = vadd.f32 %v1716, %v2247
  %v2249 = vpop.f32.mrb[0].mxu0
  %2250 = vmatprep.mubr.f32.mxu0 0.0
  %v2251 = vand.u32 %v225, 4294901760
  %v2252 = vsub.f32 %v225, %v2251
  %v2253 = vand.u32 %v2252, 4294901760
  %2254 = vmatmul.mubr.f32.gmra.mrb[0].mxu0 %v2253
  %v2255 = vpop.f32.mrb[0].mxu0
  %v2256 = vadd.f32 %v1723, %v2255
  %v2257 = vpop.f32.mrb[0].mxu0
  %2258 = vmatprep.mubr.f32.mxu0 0.0
  %v2259 = vand.u32 %v228, 4294901760
  %v2260 = vsub.f32 %v228, %v2259
  %v2261 = vand.u32 %v2260, 4294901760
  %2262 = vmatmul.mubr.f32.gmra.mrb[0].mxu0 %v2261
  %v2263 = vpop.f32.mrb[0].mxu0
  %v2264 = vadd.f32 %v1730, %v2263
  %v2265 = vpop.f32.mrb[0].mxu0
  %2266 = vmatprep.mubr.f32.mxu0 0.0
  %v2267 = vand.u32 %v231, 4294901760
  %v2268 = vsub.f32 %v231, %v2267
  %v2269 = vand.u32 %v2268, 4294901760
  %2270 = vmatmul.mubr.f32.gmra.mrb[0].mxu0 %v2269
  %v2271 = vpop.f32.mrb[0].mxu0
  %v2272 = vadd.f32 %v1737, %v2271
  %v2273 = vpop.f32.mrb[0].mxu0
  %2274 = vmatprep.mubr.f32.mxu0 0.0
  %v2275 = vand.u32 %v234, 4294901760
  %v2276 = vsub.f32 %v234, %v2275
  %v2277 = vand.u32 %v2276, 4294901760
  %2278 = vmatmul.mubr.f32.gmra.mrb[0].mxu0 %v2277
  %v2279 = vpop.f32.mrb[0].mxu0
  %v2280 = vadd.f32 %v1744, %v2279
  %v2281 = vpop.f32.mrb[0].mxu0
  %2282 = vmatprep.mubr.f32.mxu0 0.0
  %v2283 = vand.u32 %v237, 4294901760
  %v2284 = vsub.f32 %v237, %v2283
  %v2285 = vand.u32 %v2284, 4294901760
  %2286 = vmatmul.mubr.f32.gmra.mrb[0].mxu0 %v2285
  %v2287 = vpop.f32.mrb[0].mxu0
  %v2288 = vadd.f32 %v1751, %v2287
  %v2289 = vpop.f32.mrb[0].mxu0
  %2290 = vmatprep.mubr.f32.mxu0 0.0
  %v2291 = vand.u32 %v240, 4294901760
  %v2292 = vsub.f32 %v240, %v2291
  %v2293 = vand.u32 %v2292, 4294901760
  %2294 = vmatmul.mubr.f32.gmra.mrb[0].mxu0 %v2293
  %v2295 = vpop.f32.mrb[0].mxu0
  %v2296 = vadd.f32 %v1758, %v2295
  %v2297 = vpop.f32.mrb[0].mxu0
  %2298 = vmatprep.mubr.f32.mxu0 0.0
  %v2299 = vand.u32 %v243, 4294901760
  %v2300 = vsub.f32 %v243, %v2299
  %v2301 = vand.u32 %v2300, 4294901760
  %2302 = vmatmul.mubr.f32.gmra.mrb[0].mxu0 %v2301
  %v2303 = vpop.f32.mrb[0].mxu0
  %v2304 = vadd.f32 %v1765, %v2303
  %v2305 = vpop.f32.mrb[0].mxu0
  %2306 = vmatprep.mubr.f32.mxu0 0.0
  %v2307 = vand.u32 %v246, 4294901760
  %v2308 = vsub.f32 %v246, %v2307
  %v2309 = vand.u32 %v2308, 4294901760
  %2310 = vmatmul.mubr.f32.gmra.mrb[0].mxu0 %v2309
  %v2311 = vpop.f32.mrb[0].mxu0
  %v2312 = vadd.f32 %v1772, %v2311
  %v2313 = vpop.f32.mrb[0].mxu0
  %2314 = vmatprep.mubr.f32.mxu0 0.0
  %v2315 = vand.u32 %v249, 4294901760
  %v2316 = vsub.f32 %v249, %v2315
  %v2317 = vand.u32 %v2316, 4294901760
  %2318 = vmatmul.mubr.f32.gmra.mrb[0].mxu0 %v2317
  %v2319 = vpop.f32.mrb[0].mxu0
  %v2320 = vadd.f32 %v1779, %v2319
  %v2321 = vpop.f32.mrb[0].mxu0
  %2322 = vmatprep.mubr.f32.mxu0 0.0
  %v2323 = vand.u32 %v252, 4294901760
  %v2324 = vsub.f32 %v252, %v2323
  %v2325 = vand.u32 %v2324, 4294901760
  %2326 = vmatmul.mubr.f32.gmra.mrb[0].mxu0 %v2325
  %v2327 = vpop.f32.mrb[0].mxu0
  %v2328 = vadd.f32 %v1786, %v2327
  %v2329 = vpop.f32.mrb[0].mxu0
  %2330 = vmatprep.mubr.f32.mxu0 0.0
  %v2331 = vand.u32 %v255, 4294901760
  %v2332 = vsub.f32 %v255, %v2331
  %v2333 = vand.u32 %v2332, 4294901760
  %2334 = vmatmul.mubr.f32.gmra.mrb[0].mxu0 %v2333
  %v2335 = vpop.f32.mrb[0].mxu0
  %v2336 = vadd.f32 %v1793, %v2335
  %v2337 = vpop.f32.mrb[0].mxu0
  %2338 = vmatprep.mubr.f32.mxu0 0.0
  %v2339 = vand.u32 %v258, 4294901760
  %v2340 = vsub.f32 %v258, %v2339
  %v2341 = vand.u32 %v2340, 4294901760
  %2342 = vmatmul.mubr.f32.gmra.mrb[0].mxu0 %v2341
  %v2343 = vpop.f32.mrb[0].mxu0
  %v2344 = vadd.f32 %v1800, %v2343
  %v2345 = vpop.f32.mrb[0].mxu0
  %2346 = vmatprep.mubr.f32.mxu0 0.0
  %v2347 = vand.u32 %v261, 4294901760
  %v2348 = vsub.f32 %v261, %v2347
  %v2349 = vand.u32 %v2348, 4294901760
  %2350 = vmatmul.mubr.f32.gmra.mrb[0].mxu0 %v2349
  %v2351 = vpop.f32.mrb[0].mxu0
  %v2352 = vadd.f32 %v1807, %v2351
  %v2353 = vpop.f32.mrb[0].mxu0
  %2354 = vmatprep.mubr.f32.mxu0 0.0
  %v2355 = vand.u32 %v264, 4294901760
  %v2356 = vsub.f32 %v264, %v2355
  %v2357 = vand.u32 %v2356, 4294901760
  %2358 = vmatmul.mubr.f32.gmra.mrb[0].mxu0 %v2357
  %v2359 = vpop.f32.mrb[0].mxu0
  %v2360 = vadd.f32 %v1814, %v2359
  %v2361 = vpop.f32.mrb[0].mxu0
  %2362 = vmatprep.mubr.f32.mxu0 0.0
  %v2363 = vand.u32 %v267, 4294901760
  %v2364 = vsub.f32 %v267, %v2363
  %v2365 = vand.u32 %v2364, 4294901760
  %2366 = vmatmul.mubr.f32.gmra.mrb[0].mxu0 %v2365
  %v2367 = vpop.f32.mrb[0].mxu0
  %v2368 = vadd.f32 %v1821, %v2367
  %v2369 = vpop.f32.mrb[0].mxu0
  %2370 = vmatprep.mubr.f32.mxu0 0.0
  %v2371 = vand.u32 %v270, 4294901760
  %v2372 = vsub.f32 %v270, %v2371
  %v2373 = vand.u32 %v2372, 4294901760
  %2374 = vmatmul.mubr.f32.gmra.mrb[0].mxu0 %v2373
  %v2375 = vpop.f32.mrb[0].mxu0
  %v2376 = vadd.f32 %v1828, %v2375
  %v2377 = vpop.f32.mrb[0].mxu0
  %2378 = vmatprep.mubr.f32.mxu0 0.0
  %v2379 = vand.u32 %v273, 4294901760
  %v2380 = vsub.f32 %v273, %v2379
  %v2381 = vand.u32 %v2380, 4294901760
  %2382 = vmatmul.mubr.f32.gmra.mrb[0].mxu0 %v2381
  %v2383 = vpop.f32.mrb[0].mxu0
  %v2384 = vadd.f32 %v1835, %v2383
  %v2385 = vpop.f32.mrb[0].mxu0
  %2386 = vmatprep.mubr.f32.mxu0 0.0
  %v2387 = vand.u32 %v276, 4294901760
  %v2388 = vsub.f32 %v276, %v2387
  %v2389 = vand.u32 %v2388, 4294901760
  %2390 = vmatmul.mubr.f32.gmra.mrb[0].mxu0 %v2389
  %v2391 = vpop.f32.mrb[0].mxu0
  %v2392 = vadd.f32 %v1842, %v2391
  %v2393 = vpop.f32.mrb[0].mxu0
  %2394 = vmatprep.mubr.f32.mxu0 0.0
  %v2395 = vand.u32 %v279, 4294901760
  %v2396 = vsub.f32 %v279, %v2395
  %v2397 = vand.u32 %v2396, 4294901760
  %2398 = vmatmul.mubr.f32.gmra.mrb[0].mxu0 %v2397
  %v2399 = vpop.f32.mrb[0].mxu0
  %v2400 = vadd.f32 %v1849, %v2399
  %v2401 = vpop.f32.mrb[0].mxu0
  %2402 = vmatprep.mubr.f32.mxu0 0.0
  %v2403 = vand.u32 %v282, 4294901760
  %v2404 = vsub.f32 %v282, %v2403
  %v2405 = vand.u32 %v2404, 4294901760
  %2406 = vmatmul.mubr.f32.gmra.mrb[0].mxu0 %v2405
  %v2407 = vpop.f32.mrb[0].mxu0
  %v2408 = vadd.f32 %v1856, %v2407
  %v2409 = vpop.f32.mrb[0].mxu0
  %2410 = vmatprep.mubr.f32.mxu0 0.0
  %v2411 = vand.u32 %v285, 4294901760
  %v2412 = vsub.f32 %v285, %v2411
  %v2413 = vand.u32 %v2412, 4294901760
  %2414 = vmatmul.mubr.f32.gmra.mrb[0].mxu0 %v2413
  %v2415 = vpop.f32.mrb[0].mxu0
  %v2416 = vadd.f32 %v1863, %v2415
  %v2417 = vpop.f32.mrb[0].mxu0
  %2418 = vmatprep.mubr.f32.mxu0 0.0
  %v2419 = vand.u32 %v288, 4294901760
  %v2420 = vsub.f32 %v288, %v2419
  %v2421 = vand.u32 %v2420, 4294901760
  %2422 = vmatmul.mubr.f32.gmra.mrb[0].mxu0 %v2421
  %v2423 = vpop.f32.mrb[0].mxu0
  %v2424 = vadd.f32 %v1870, %v2423
  %v2425 = vpop.f32.mrb[0].mxu0
  %2426 = vmatprep.mubr.f32.mxu0 0.0
  %v2427 = vand.u32 %v291, 4294901760
  %v2428 = vsub.f32 %v291, %v2427
  %v2429 = vand.u32 %v2428, 4294901760
  %2430 = vmatmul.mubr.f32.gmra.mrb[0].mxu0 %v2429
  %v2431 = vpop.f32.mrb[0].mxu0
  %v2432 = vadd.f32 %v1877, %v2431
  %v2433 = vpop.f32.mrb[0].mxu0
  %2434 = vmatprep.mubr.f32.mxu0 0.0
  %v2435 = vand.u32 %v294, 4294901760
  %v2436 = vsub.f32 %v294, %v2435
  %v2437 = vand.u32 %v2436, 4294901760
  %2438 = vmatmul.mubr.f32.gmra.mrb[0].mxu0 %v2437
  %v2439 = vpop.f32.mrb[0].mxu0
  %v2440 = vadd.f32 %v1884, %v2439
  %v2441 = vpop.f32.mrb[0].mxu0
  %2442 = vmatprep.mubr.f32.mxu0 0.0
  %v2443 = vand.u32 %v297, 4294901760
  %v2444 = vsub.f32 %v297, %v2443
  %v2445 = vand.u32 %v2444, 4294901760
  %2446 = vmatmul.mubr.f32.gmra.mrb[0].mxu0 %v2445
  %v2447 = vpop.f32.mrb[0].mxu0
  %v2448 = vadd.f32 %v1891, %v2447
  %v2449 = vpop.f32.mrb[0].mxu0
  %2450 = vmatprep.mubr.f32.mxu0 0.0
  %v2451 = vand.u32 %v300, 4294901760
  %v2452 = vsub.f32 %v300, %v2451
  %v2453 = vand.u32 %v2452, 4294901760
  %2454 = vmatmul.mubr.f32.gmra.mrb[0].mxu0 %v2453
  %v2455 = vpop.f32.mrb[0].mxu0
  %v2456 = vadd.f32 %v1898, %v2455
  %v2457 = vpop.f32.mrb[0].mxu0
  %2458 = vmatprep.mubr.f32.mxu0 0.0
  %v2459 = vand.u32 %v303, 4294901760
  %v2460 = vsub.f32 %v303, %v2459
  %v2461 = vand.u32 %v2460, 4294901760
  %2462 = vmatmul.mubr.f32.gmra.mrb[0].mxu0 %v2461
  %v2463 = vpop.f32.mrb[0].mxu0
  %v2464 = vadd.f32 %v1905, %v2463
  %v2465 = vpop.f32.mrb[0].mxu0
  %2466 = vmatprep.mubr.f32.mxu0 0.0
  %v2467 = vand.u32 %v306, 4294901760
  %v2468 = vsub.f32 %v306, %v2467
  %v2469 = vand.u32 %v2468, 4294901760
  %2470 = vmatmul.mubr.f32.gmra.mrb[0].mxu0 %v2469
  %v2471 = vpop.f32.mrb[0].mxu0
  %v2472 = vadd.f32 %v1912, %v2471
  %v2473 = vpop.f32.mrb[0].mxu0
  %2474 = vmatprep.mubr.f32.mxu0 0.0
  %v2475 = vand.u32 %v309, 4294901760
  %v2476 = vsub.f32 %v309, %v2475
  %v2477 = vand.u32 %v2476, 4294901760
  %2478 = vmatmul.mubr.f32.gmra.mrb[0].mxu0 %v2477
  %v2479 = vpop.f32.mrb[0].mxu0
  %v2480 = vadd.f32 %v1919, %v2479
  %v2481 = vpop.f32.mrb[0].mxu0
  %2482 = vmatprep.mubr.f32.mxu0 0.0
  %v2483 = vand.u32 %v312, 4294901760
  %v2484 = vsub.f32 %v312, %v2483
  %v2485 = vand.u32 %v2484, 4294901760
  %2486 = vmatmul.mubr.f32.gmra.mrb[0].mxu0 %v2485
  %v2487 = vpop.f32.mrb[0].mxu0
  %v2488 = vadd.f32 %v1926, %v2487
  %v2489 = vpop.f32.mrb[0].mxu0
  %2490 = vmatprep.mubr.f32.mxu0 0.0
  %v2491 = vand.u32 %v315, 4294901760
  %v2492 = vsub.f32 %v315, %v2491
  %v2493 = vand.u32 %v2492, 4294901760
  %2494 = vmatmul.mubr.f32.gmra.mrb[0].mxu0 %v2493
  %v2495 = vpop.f32.mrb[0].mxu0
  %v2496 = vadd.f32 %v1933, %v2495
  %v2497 = vpop.f32.mrb[0].mxu0
  %2498 = vmatprep.mubr.f32.mxu0 0.0
  %v2499 = vand.u32 %v318, 4294901760
  %v2500 = vsub.f32 %v318, %v2499
  %v2501 = vand.u32 %v2500, 4294901760
  %2502 = vmatmul.mubr.f32.gmra.mrb[0].mxu0 %v2501
  %v2503 = vpop.f32.mrb[0].mxu0
  %v2504 = vadd.f32 %v1940, %v2503
  %v2505 = vpop.f32.mrb[0].mxu0
  %2506 = vmatprep.mubr.f32.mxu0 0.0
  %v2507 = vand.u32 %v321, 4294901760
  %v2508 = vsub.f32 %v321, %v2507
  %v2509 = vand.u32 %v2508, 4294901760
  %2510 = vmatmul.mubr.f32.gmra.mrb[0].mxu0 %v2509
  %v2511 = vpop.f32.mrb[0].mxu0
  %v2512 = vadd.f32 %v1947, %v2511
  %v2513 = vpop.f32.mrb[0].mxu0
  %2514 = vmatprep.mubr.f32.mxu0 0.0
  %v2515 = vand.u32 %v324, 4294901760
  %v2516 = vsub.f32 %v324, %v2515
  %v2517 = vand.u32 %v2516, 4294901760
  %2518 = vmatmul.mubr.f32.gmra.mrb[0].mxu0 %v2517
  %v2519 = vpop.f32.mrb[0].mxu0
  %v2520 = vadd.f32 %v1954, %v2519
  %v2521 = vpop.f32.mrb[0].mxu0
  %2522 = vmatprep.mubr.f32.mxu0 0.0
  %v2523 = vand.u32 %v327, 4294901760
  %v2524 = vsub.f32 %v327, %v2523
  %v2525 = vand.u32 %v2524, 4294901760
  %2526 = vmatmul.mubr.f32.gmra.mrb[0].mxu0 %v2525
  %v2527 = vpop.f32.mrb[0].mxu0
  %v2528 = vadd.f32 %v1961, %v2527
  %v2529 = vpop.f32.mrb[0].mxu0
  %2530 = vmatprep.mubr.f32.mxu0 0.0
  %v2531 = vand.u32 %v330, 4294901760
  %v2532 = vsub.f32 %v330, %v2531
  %v2533 = vand.u32 %v2532, 4294901760
  %2534 = vmatmul.mubr.f32.gmra.mrb[0].mxu0 %v2533
  %v2535 = vpop.f32.mrb[0].mxu0
  %v2536 = vadd.f32 %v1968, %v2535
  %v2537 = vpop.f32.mrb[0].mxu0
  %2538 = vmatprep.mubr.f32.mxu0 0.0
  %v2539 = vand.u32 %v333, 4294901760
  %v2540 = vsub.f32 %v333, %v2539
  %v2541 = vand.u32 %v2540, 4294901760
  %2542 = vmatmul.mubr.f32.gmra.mrb[0].mxu0 %v2541
  %v2543 = vpop.f32.mrb[0].mxu0
  %v2544 = vadd.f32 %v1975, %v2543
  %v2545 = vpop.f32.mrb[0].mxu0
  %2546 = vmatprep.mubr.f32.mxu0 0.0
  %v2547 = vand.u32 %v336, 4294901760
  %v2548 = vsub.f32 %v336, %v2547
  %v2549 = vand.u32 %v2548, 4294901760
  %2550 = vmatmul.mubr.f32.gmra.mrb[0].mxu0 %v2549
  %v2551 = vpop.f32.mrb[0].mxu0
  %v2552 = vadd.f32 %v1982, %v2551
  %v2553 = vpop.f32.mrb[0].mxu0
  %2554 = vmatprep.mubr.f32.mxu0 0.0
  %v2555 = vand.u32 %v339, 4294901760
  %v2556 = vsub.f32 %v339, %v2555
  %v2557 = vand.u32 %v2556, 4294901760
  %2558 = vmatmul.mubr.f32.gmra.mrb[0].mxu0 %v2557
  %v2559 = vpop.f32.mrb[0].mxu0
  %v2560 = vadd.f32 %v1989, %v2559
  %v2561 = vpop.f32.mrb[0].mxu0
  %2562 = vmatprep.mubr.f32.mxu0 0.0
  %v2563 = vand.u32 %v342, 4294901760
  %v2564 = vsub.f32 %v342, %v2563
  %v2565 = vand.u32 %v2564, 4294901760
  %2566 = vmatmul.mubr.f32.gmra.mrb[0].mxu0 %v2565
  %v2567 = vpop.f32.mrb[0].mxu0
  %v2568 = vadd.f32 %v1996, %v2567
  %v2569 = vpop.f32.mrb[0].mxu0
  %2570 = vmatprep.mubr.f32.mxu0 0.0
  %v2571 = vand.u32 %v345, 4294901760
  %v2572 = vsub.f32 %v345, %v2571
  %v2573 = vand.u32 %v2572, 4294901760
  %2574 = vmatmul.mubr.f32.gmra.mrb[0].mxu0 %v2573
  %v2575 = vpop.f32.mrb[0].mxu0
  %v2576 = vadd.f32 %v2003, %v2575
  %v2577 = vpop.f32.mrb[0].mxu0
  %2578 = vmatprep.mubr.f32.mxu0 0.0
  %v2579 = vand.u32 %v348, 4294901760
  %v2580 = vsub.f32 %v348, %v2579
  %v2581 = vand.u32 %v2580, 4294901760
  %2582 = vmatmul.mubr.f32.gmra.mrb[0].mxu0 %v2581
  %v2583 = vpop.f32.mrb[0].mxu0
  %v2584 = vadd.f32 %v2010, %v2583
  %v2585 = vpop.f32.mrb[0].mxu0
  %2586 = vmatprep.mubr.f32.mxu0 0.0
  %v2587 = vand.u32 %v351, 4294901760
  %v2588 = vsub.f32 %v351, %v2587
  %v2589 = vand.u32 %v2588, 4294901760
  %2590 = vmatmul.mubr.f32.gmra.mrb[0].mxu0 %v2589
  %v2591 = vpop.f32.mrb[0].mxu0
  %v2592 = vadd.f32 %v2017, %v2591
  %v2593 = vpop.f32.mrb[0].mxu0
  %2594 = vmatprep.mubr.f32.mxu0 0.0
  %v2595 = vand.u32 %v354, 4294901760
  %v2596 = vsub.f32 %v354, %v2595
  %v2597 = vand.u32 %v2596, 4294901760
  %2598 = vmatmul.mubr.f32.gmra.mrb[0].mxu0 %v2597
  %v2599 = vpop.f32.mrb[0].mxu0
  %v2600 = vadd.f32 %v2024, %v2599
  %v2601 = vpop.f32.mrb[0].mxu0
  %2602 = vmatprep.mubr.f32.mxu0 0.0
  %v2603 = vand.u32 %v357, 4294901760
  %v2604 = vsub.f32 %v357, %v2603
  %v2605 = vand.u32 %v2604, 4294901760
  %2606 = vmatmul.mubr.f32.gmra.mrb[0].mxu0 %v2605
  %v2607 = vpop.f32.mrb[0].mxu0
  %v2608 = vadd.f32 %v2031, %v2607
  %v2609 = vpop.f32.mrb[0].mxu0
  %2610 = vmatprep.mubr.f32.mxu0 0.0
  %v2611 = vand.u32 %v360, 4294901760
  %v2612 = vsub.f32 %v360, %v2611
  %v2613 = vand.u32 %v2612, 4294901760
  %2614 = vmatmul.mubr.f32.gmra.mrb[0].mxu0 %v2613
  %v2615 = vpop.f32.mrb[0].mxu0
  %v2616 = vadd.f32 %v2038, %v2615
  %v2617 = vpop.f32.mrb[0].mxu0
  %2618 = vdwg.mxu0
  %2619 = vmatprep.subr.mxu0 0.0
  %v2620 = vand.u32 %v364, 4294901760
  %v2621 = vsub.f32 %v364, %v2620
  %v2622 = vand.u32 %v2621, 4294901760
  %2623 = vmatpush1.msra.mxu0 %v2622
  %2624 = vmatprep.subr.mxu0 0.0
  %2625 = vmatpush1.msra.mxu0 0.0
  %2626 = vmatprep.subr.mxu0 0.0
  %2627 = vmatpush1.msra.mxu0 0.0
  %2628 = vmatprep.subr.mxu0 0.0
  %2629 = vmatpush1.msra.mxu0 0.0
  %2630 = vmatprep.subr.mxu0 0.0
  %2631 = vmatpush1.msra.mxu0 0.0
  %2632 = vmatprep.subr.mxu0 0.0
  %2633 = vmatpush1.msra.mxu0 0.0
  %2634 = vmatprep.subr.mxu0 0.0
  %2635 = vmatpush1.msra.mxu0 0.0
  %2636 = vmatprep.subr.mxu0 0.0
  %2637 = vmatpush1.msra.mxu0 0.0
  %2638 = vmatprep.subr.mxu0 0.0
  %2639 = vmatpush1.msra.mxu0 0.0
  %2640 = vmatprep.subr.mxu0 0.0
  %2641 = vmatpush1.msra.mxu0 0.0
  %2642 = vmatprep.subr.mxu0 0.0
  %2643 = vmatpush1.msra.mxu0 0.0
  %2644 = vmatprep.subr.mxu0 0.0
  %2645 = vmatpush1.msra.mxu0 0.0
  %2646 = vmatprep.subr.mxu0 0.0
  %2647 = vmatpush1.msra.mxu0 0.0
  %2648 = vmatprep.subr.mxu0 0.0
  %2649 = vmatpush1.msra.mxu0 0.0
  %2650 = vmatprep.subr.mxu0 0.0
  %2651 = vmatpush1.msra.mxu0 0.0
  %2652 = vmatprep.subr.mxu0 0.0
  %2653 = vmatpush1.msra.mxu0 0.0
  %2654 = vmatprep.subr.mxu0 0.0
  %2655 = vmatpush1.msra.mxu0 0.0
  %2656 = vmatprep.subr.mxu0 0.0
  %2657 = vmatpush1.msra.mxu0 0.0
  %2658 = vmatprep.subr.mxu0 0.0
  %2659 = vmatpush1.msra.mxu0 0.0
  %2660 = vmatprep.subr.mxu0 0.0
  %2661 = vmatpush1.msra.mxu0 0.0
  %2662 = vmatprep.subr.mxu0 0.0
  %2663 = vmatpush1.msra.mxu0 0.0
  %2664 = vmatprep.subr.mxu0 0.0
  %2665 = vmatpush1.msra.mxu0 0.0
  %2666 = vmatprep.subr.mxu0 0.0
  %2667 = vmatpush1.msra.mxu0 0.0
  %2668 = vmatprep.subr.mxu0 0.0
  %2669 = vmatpush1.msra.mxu0 0.0
  %2670 = vmatprep.subr.mxu0 0.0
  %2671 = vmatpush1.msra.mxu0 0.0
  %2672 = vmatprep.subr.mxu0 0.0
  %2673 = vmatpush1.msra.mxu0 0.0
  %2674 = vmatprep.subr.mxu0 0.0
  %2675 = vmatpush1.msra.mxu0 0.0
  %2676 = vmatprep.subr.mxu0 0.0
  %2677 = vmatpush1.msra.mxu0 0.0
  %2678 = vmatprep.subr.mxu0 0.0
  %2679 = vmatpush1.msra.mxu0 0.0
  %2680 = vmatprep.subr.mxu0 0.0
  %2681 = vmatpush1.msra.mxu0 0.0
  %2682 = vmatprep.subr.mxu0 0.0
  %2683 = vmatpush1.msra.mxu0 0.0
  %2684 = vmatprep.subr.mxu0 0.0
  %2685 = vmatpush1.msra.mxu0 0.0
  %2686 = vmatprep.mubr.f32.mxu0 0.0
  %v2687 = vand.u32 %v171, 4294901760
  %2688 = vmatmul.mubr.f32.gmra.mrb[0].mxu0 %v2687
  %v2689 = vpop.f32.mrb[0].mxu0
  %v2690 = vadd.f32 %v2112, %v2689
  %v2691 = vpop.f32.mrb[0].mxu0
  %2692 = vmatprep.mubr.f32.mxu0 0.0
  %v2693 = vand.u32 %v174, 4294901760
  %2694 = vmatmul.mubr.f32.gmra.mrb[0].mxu0 %v2693
  %v2695 = vpop.f32.mrb[0].mxu0
  %v2696 = vadd.f32 %v2120, %v2695
  %v2697 = vpop.f32.mrb[0].mxu0
  %2698 = vmatprep.mubr.f32.mxu0 0.0
  %v2699 = vand.u32 %v177, 4294901760
  %2700 = vmatmul.mubr.f32.gmra.mrb[0].mxu0 %v2699
  %v2701 = vpop.f32.mrb[0].mxu0
  %v2702 = vadd.f32 %v2128, %v2701
  %v2703 = vpop.f32.mrb[0].mxu0
  %2704 = vmatprep.mubr.f32.mxu0 0.0
  %v2705 = vand.u32 %v180, 4294901760
  %2706 = vmatmul.mubr.f32.gmra.mrb[0].mxu0 %v2705
  %v2707 = vpop.f32.mrb[0].mxu0
  %v2708 = vadd.f32 %v2136, %v2707
  %v2709 = vpop.f32.mrb[0].mxu0
  %2710 = vmatprep.mubr.f32.mxu0 0.0
  %v2711 = vand.u32 %v183, 4294901760
  %2712 = vmatmul.mubr.f32.gmra.mrb[0].mxu0 %v2711
  %v2713 = vpop.f32.mrb[0].mxu0
  %v2714 = vadd.f32 %v2144, %v2713
  %v2715 = vpop.f32.mrb[0].mxu0
  %2716 = vmatprep.mubr.f32.mxu0 0.0
  %v2717 = vand.u32 %v186, 4294901760
  %2718 = vmatmul.mubr.f32.gmra.mrb[0].mxu0 %v2717
  %v2719 = vpop.f32.mrb[0].mxu0
  %v2720 = vadd.f32 %v2152, %v2719
  %v2721 = vpop.f32.mrb[0].mxu0
  %2722 = vmatprep.mubr.f32.mxu0 0.0
  %v2723 = vand.u32 %v189, 4294901760
  %2724 = vmatmul.mubr.f32.gmra.mrb[0].mxu0 %v2723
  %v2725 = vpop.f32.mrb[0].mxu0
  %v2726 = vadd.f32 %v2160, %v2725
  %v2727 = vpop.f32.mrb[0].mxu0
  %2728 = vmatprep.mubr.f32.mxu0 0.0
  %v2729 = vand.u32 %v192, 4294901760
  %2730 = vmatmul.mubr.f32.gmra.mrb[0].mxu0 %v2729
  %v2731 = vpop.f32.mrb[0].mxu0
  %v2732 = vadd.f32 %v2168, %v2731
  %v2733 = vpop.f32.mrb[0].mxu0
  %2734 = vmatprep.mubr.f32.mxu0 0.0
  %v2735 = vand.u32 %v195, 4294901760
  %2736 = vmatmul.mubr.f32.gmra.mrb[0].mxu0 %v2735
  %v2737 = vpop.f32.mrb[0].mxu0
  %v2738 = vadd.f32 %v2176, %v2737
  %v2739 = vpop.f32.mrb[0].mxu0
  %2740 = vmatprep.mubr.f32.mxu0 0.0
  %v2741 = vand.u32 %v198, 4294901760
  %2742 = vmatmul.mubr.f32.gmra.mrb[0].mxu0 %v2741
  %v2743 = vpop.f32.mrb[0].mxu0
  %v2744 = vadd.f32 %v2184, %v2743
  %v2745 = vpop.f32.mrb[0].mxu0
  %2746 = vmatprep.mubr.f32.mxu0 0.0
  %v2747 = vand.u32 %v201, 4294901760
  %2748 = vmatmul.mubr.f32.gmra.mrb[0].mxu0 %v2747
  %v2749 = vpop.f32.mrb[0].mxu0
  %v2750 = vadd.f32 %v2192, %v2749
  %v2751 = vpop.f32.mrb[0].mxu0
  %2752 = vmatprep.mubr.f32.mxu0 0.0
  %v2753 = vand.u32 %v204, 4294901760
  %2754 = vmatmul.mubr.f32.gmra.mrb[0].mxu0 %v2753
  %v2755 = vpop.f32.mrb[0].mxu0
  %v2756 = vadd.f32 %v2200, %v2755
  %v2757 = vpop.f32.mrb[0].mxu0
  %2758 = vmatprep.mubr.f32.mxu0 0.0
  %v2759 = vand.u32 %v207, 4294901760
  %2760 = vmatmul.mubr.f32.gmra.mrb[0].mxu0 %v2759
  %v2761 = vpop.f32.mrb[0].mxu0
  %v2762 = vadd.f32 %v2208, %v2761
  %v2763 = vpop.f32.mrb[0].mxu0
  %2764 = vmatprep.mubr.f32.mxu0 0.0
  %v2765 = vand.u32 %v210, 4294901760
  %2766 = vmatmul.mubr.f32.gmra.mrb[0].mxu0 %v2765
  %v2767 = vpop.f32.mrb[0].mxu0
  %v2768 = vadd.f32 %v2216, %v2767
  %v2769 = vpop.f32.mrb[0].mxu0
  %2770 = vmatprep.mubr.f32.mxu0 0.0
  %v2771 = vand.u32 %v213, 4294901760
  %2772 = vmatmul.mubr.f32.gmra.mrb[0].mxu0 %v2771
  %v2773 = vpop.f32.mrb[0].mxu0
  %v2774 = vadd.f32 %v2224, %v2773
  %v2775 = vpop.f32.mrb[0].mxu0
  %2776 = vmatprep.mubr.f32.mxu0 0.0
  %v2777 = vand.u32 %v216, 4294901760
  %2778 = vmatmul.mubr.f32.gmra.mrb[0].mxu0 %v2777
  %v2779 = vpop.f32.mrb[0].mxu0
  %v2780 = vadd.f32 %v2232, %v2779
  %v2781 = vpop.f32.mrb[0].mxu0
  %2782 = vmatprep.mubr.f32.mxu0 0.0
  %v2783 = vand.u32 %v219, 4294901760
  %2784 = vmatmul.mubr.f32.gmra.mrb[0].mxu0 %v2783
  %v2785 = vpop.f32.mrb[0].mxu0
  %v2786 = vadd.f32 %v2240, %v2785
  %v2787 = vpop.f32.mrb[0].mxu0
  %2788 = vmatprep.mubr.f32.mxu0 0.0
  %v2789 = vand.u32 %v222, 4294901760
  %2790 = vmatmul.mubr.f32.gmra.mrb[0].mxu0 %v2789
  %v2791 = vpop.f32.mrb[0].mxu0
  %v2792 = vadd.f32 %v2248, %v2791
  %v2793 = vpop.f32.mrb[0].mxu0
  %2794 = vmatprep.mubr.f32.mxu0 0.0
  %v2795 = vand.u32 %v225, 4294901760
  %2796 = vmatmul.mubr.f32.gmra.mrb[0].mxu0 %v2795
  %v2797 = vpop.f32.mrb[0].mxu0
  %v2798 = vadd.f32 %v2256, %v2797
  %v2799 = vpop.f32.mrb[0].mxu0
  %2800 = vmatprep.mubr.f32.mxu0 0.0
  %v2801 = vand.u32 %v228, 4294901760
  %2802 = vmatmul.mubr.f32.gmra.mrb[0].mxu0 %v2801
  %v2803 = vpop.f32.mrb[0].mxu0
  %v2804 = vadd.f32 %v2264, %v2803
  %v2805 = vpop.f32.mrb[0].mxu0
  %2806 = vmatprep.mubr.f32.mxu0 0.0
  %v2807 = vand.u32 %v231, 4294901760
  %2808 = vmatmul.mubr.f32.gmra.mrb[0].mxu0 %v2807
  %v2809 = vpop.f32.mrb[0].mxu0
  %v2810 = vadd.f32 %v2272, %v2809
  %v2811 = vpop.f32.mrb[0].mxu0
  %2812 = vmatprep.mubr.f32.mxu0 0.0
  %v2813 = vand.u32 %v234, 4294901760
  %2814 = vmatmul.mubr.f32.gmra.mrb[0].mxu0 %v2813
  %v2815 = vpop.f32.mrb[0].mxu0
  %v2816 = vadd.f32 %v2280, %v2815
  %v2817 = vpop.f32.mrb[0].mxu0
  %2818 = vmatprep.mubr.f32.mxu0 0.0
  %v2819 = vand.u32 %v237, 4294901760
  %2820 = vmatmul.mubr.f32.gmra.mrb[0].mxu0 %v2819
  %v2821 = vpop.f32.mrb[0].mxu0
  %v2822 = vadd.f32 %v2288, %v2821
  %v2823 = vpop.f32.mrb[0].mxu0
  %2824 = vmatprep.mubr.f32.mxu0 0.0
  %v2825 = vand.u32 %v240, 4294901760
  %2826 = vmatmul.mubr.f32.gmra.mrb[0].mxu0 %v2825
  %v2827 = vpop.f32.mrb[0].mxu0
  %v2828 = vadd.f32 %v2296, %v2827
  %v2829 = vpop.f32.mrb[0].mxu0
  %2830 = vmatprep.mubr.f32.mxu0 0.0
  %v2831 = vand.u32 %v243, 4294901760
  %2832 = vmatmul.mubr.f32.gmra.mrb[0].mxu0 %v2831
  %v2833 = vpop.f32.mrb[0].mxu0
  %v2834 = vadd.f32 %v2304, %v2833
  %v2835 = vpop.f32.mrb[0].mxu0
  %2836 = vmatprep.mubr.f32.mxu0 0.0
  %v2837 = vand.u32 %v246, 4294901760
  %2838 = vmatmul.mubr.f32.gmra.mrb[0].mxu0 %v2837
  %v2839 = vpop.f32.mrb[0].mxu0
  %v2840 = vadd.f32 %v2312, %v2839
  %v2841 = vpop.f32.mrb[0].mxu0
  %2842 = vmatprep.mubr.f32.mxu0 0.0
  %v2843 = vand.u32 %v249, 4294901760
  %2844 = vmatmul.mubr.f32.gmra.mrb[0].mxu0 %v2843
  %v2845 = vpop.f32.mrb[0].mxu0
  %v2846 = vadd.f32 %v2320, %v2845
  %v2847 = vpop.f32.mrb[0].mxu0
  %2848 = vmatprep.mubr.f32.mxu0 0.0
  %v2849 = vand.u32 %v252, 4294901760
  %2850 = vmatmul.mubr.f32.gmra.mrb[0].mxu0 %v2849
  %v2851 = vpop.f32.mrb[0].mxu0
  %v2852 = vadd.f32 %v2328, %v2851
  %v2853 = vpop.f32.mrb[0].mxu0
  %2854 = vmatprep.mubr.f32.mxu0 0.0
  %v2855 = vand.u32 %v255, 4294901760
  %2856 = vmatmul.mubr.f32.gmra.mrb[0].mxu0 %v2855
  %v2857 = vpop.f32.mrb[0].mxu0
  %v2858 = vadd.f32 %v2336, %v2857
  %v2859 = vpop.f32.mrb[0].mxu0
  %2860 = vmatprep.mubr.f32.mxu0 0.0
  %v2861 = vand.u32 %v258, 4294901760
  %2862 = vmatmul.mubr.f32.gmra.mrb[0].mxu0 %v2861
  %v2863 = vpop.f32.mrb[0].mxu0
  %v2864 = vadd.f32 %v2344, %v2863
  %v2865 = vpop.f32.mrb[0].mxu0
  %2866 = vmatprep.mubr.f32.mxu0 0.0
  %v2867 = vand.u32 %v261, 4294901760
  %2868 = vmatmul.mubr.f32.gmra.mrb[0].mxu0 %v2867
  %v2869 = vpop.f32.mrb[0].mxu0
  %v2870 = vadd.f32 %v2352, %v2869
  %v2871 = vpop.f32.mrb[0].mxu0
  %2872 = vmatprep.mubr.f32.mxu0 0.0
  %v2873 = vand.u32 %v264, 4294901760
  %2874 = vmatmul.mubr.f32.gmra.mrb[0].mxu0 %v2873
  %v2875 = vpop.f32.mrb[0].mxu0
  %v2876 = vadd.f32 %v2360, %v2875
  %v2877 = vpop.f32.mrb[0].mxu0
  %2878 = vmatprep.mubr.f32.mxu0 0.0
  %v2879 = vand.u32 %v267, 4294901760
  %2880 = vmatmul.mubr.f32.gmra.mrb[0].mxu0 %v2879
  %v2881 = vpop.f32.mrb[0].mxu0
  %v2882 = vadd.f32 %v2368, %v2881
  %v2883 = vpop.f32.mrb[0].mxu0
  %2884 = vmatprep.mubr.f32.mxu0 0.0
  %v2885 = vand.u32 %v270, 4294901760
  %2886 = vmatmul.mubr.f32.gmra.mrb[0].mxu0 %v2885
  %v2887 = vpop.f32.mrb[0].mxu0
  %v2888 = vadd.f32 %v2376, %v2887
  %v2889 = vpop.f32.mrb[0].mxu0
  %2890 = vmatprep.mubr.f32.mxu0 0.0
  %v2891 = vand.u32 %v273, 4294901760
  %2892 = vmatmul.mubr.f32.gmra.mrb[0].mxu0 %v2891
  %v2893 = vpop.f32.mrb[0].mxu0
  %v2894 = vadd.f32 %v2384, %v2893
  %v2895 = vpop.f32.mrb[0].mxu0
  %2896 = vmatprep.mubr.f32.mxu0 0.0
  %v2897 = vand.u32 %v276, 4294901760
  %2898 = vmatmul.mubr.f32.gmra.mrb[0].mxu0 %v2897
  %v2899 = vpop.f32.mrb[0].mxu0
  %v2900 = vadd.f32 %v2392, %v2899
  %v2901 = vpop.f32.mrb[0].mxu0
  %2902 = vmatprep.mubr.f32.mxu0 0.0
  %v2903 = vand.u32 %v279, 4294901760
  %2904 = vmatmul.mubr.f32.gmra.mrb[0].mxu0 %v2903
  %v2905 = vpop.f32.mrb[0].mxu0
  %v2906 = vadd.f32 %v2400, %v2905
  %v2907 = vpop.f32.mrb[0].mxu0
  %2908 = vmatprep.mubr.f32.mxu0 0.0
  %v2909 = vand.u32 %v282, 4294901760
  %2910 = vmatmul.mubr.f32.gmra.mrb[0].mxu0 %v2909
  %v2911 = vpop.f32.mrb[0].mxu0
  %v2912 = vadd.f32 %v2408, %v2911
  %v2913 = vpop.f32.mrb[0].mxu0
  %2914 = vmatprep.mubr.f32.mxu0 0.0
  %v2915 = vand.u32 %v285, 4294901760
  %2916 = vmatmul.mubr.f32.gmra.mrb[0].mxu0 %v2915
  %v2917 = vpop.f32.mrb[0].mxu0
  %v2918 = vadd.f32 %v2416, %v2917
  %v2919 = vpop.f32.mrb[0].mxu0
  %2920 = vmatprep.mubr.f32.mxu0 0.0
  %v2921 = vand.u32 %v288, 4294901760
  %2922 = vmatmul.mubr.f32.gmra.mrb[0].mxu0 %v2921
  %v2923 = vpop.f32.mrb[0].mxu0
  %v2924 = vadd.f32 %v2424, %v2923
  %v2925 = vpop.f32.mrb[0].mxu0
  %2926 = vmatprep.mubr.f32.mxu0 0.0
  %v2927 = vand.u32 %v291, 4294901760
  %2928 = vmatmul.mubr.f32.gmra.mrb[0].mxu0 %v2927
  %v2929 = vpop.f32.mrb[0].mxu0
  %v2930 = vadd.f32 %v2432, %v2929
  %v2931 = vpop.f32.mrb[0].mxu0
  %2932 = vmatprep.mubr.f32.mxu0 0.0
  %v2933 = vand.u32 %v294, 4294901760
  %2934 = vmatmul.mubr.f32.gmra.mrb[0].mxu0 %v2933
  %v2935 = vpop.f32.mrb[0].mxu0
  %v2936 = vadd.f32 %v2440, %v2935
  %v2937 = vpop.f32.mrb[0].mxu0
  %2938 = vmatprep.mubr.f32.mxu0 0.0
  %v2939 = vand.u32 %v297, 4294901760
  %2940 = vmatmul.mubr.f32.gmra.mrb[0].mxu0 %v2939
  %v2941 = vpop.f32.mrb[0].mxu0
  %v2942 = vadd.f32 %v2448, %v2941
  %v2943 = vpop.f32.mrb[0].mxu0
  %2944 = vmatprep.mubr.f32.mxu0 0.0
  %v2945 = vand.u32 %v300, 4294901760
  %2946 = vmatmul.mubr.f32.gmra.mrb[0].mxu0 %v2945
  %v2947 = vpop.f32.mrb[0].mxu0
  %v2948 = vadd.f32 %v2456, %v2947
  %v2949 = vpop.f32.mrb[0].mxu0
  %2950 = vmatprep.mubr.f32.mxu0 0.0
  %v2951 = vand.u32 %v303, 4294901760
  %2952 = vmatmul.mubr.f32.gmra.mrb[0].mxu0 %v2951
  %v2953 = vpop.f32.mrb[0].mxu0
  %v2954 = vadd.f32 %v2464, %v2953
  %v2955 = vpop.f32.mrb[0].mxu0
  %2956 = vmatprep.mubr.f32.mxu0 0.0
  %v2957 = vand.u32 %v306, 4294901760
  %2958 = vmatmul.mubr.f32.gmra.mrb[0].mxu0 %v2957
  %v2959 = vpop.f32.mrb[0].mxu0
  %v2960 = vadd.f32 %v2472, %v2959
  %v2961 = vpop.f32.mrb[0].mxu0
  %2962 = vmatprep.mubr.f32.mxu0 0.0
  %v2963 = vand.u32 %v309, 4294901760
  %2964 = vmatmul.mubr.f32.gmra.mrb[0].mxu0 %v2963
  %v2965 = vpop.f32.mrb[0].mxu0
  %v2966 = vadd.f32 %v2480, %v2965
  %v2967 = vpop.f32.mrb[0].mxu0
  %2968 = vmatprep.mubr.f32.mxu0 0.0
  %v2969 = vand.u32 %v312, 4294901760
  %2970 = vmatmul.mubr.f32.gmra.mrb[0].mxu0 %v2969
  %v2971 = vpop.f32.mrb[0].mxu0
  %v2972 = vadd.f32 %v2488, %v2971
  %v2973 = vpop.f32.mrb[0].mxu0
  %2974 = vmatprep.mubr.f32.mxu0 0.0
  %v2975 = vand.u32 %v315, 4294901760
  %2976 = vmatmul.mubr.f32.gmra.mrb[0].mxu0 %v2975
  %v2977 = vpop.f32.mrb[0].mxu0
  %v2978 = vadd.f32 %v2496, %v2977
  %v2979 = vpop.f32.mrb[0].mxu0
  %2980 = vmatprep.mubr.f32.mxu0 0.0
  %v2981 = vand.u32 %v318, 4294901760
  %2982 = vmatmul.mubr.f32.gmra.mrb[0].mxu0 %v2981
  %v2983 = vpop.f32.mrb[0].mxu0
  %v2984 = vadd.f32 %v2504, %v2983
  %v2985 = vpop.f32.mrb[0].mxu0
  %2986 = vmatprep.mubr.f32.mxu0 0.0
  %v2987 = vand.u32 %v321, 4294901760
  %2988 = vmatmul.mubr.f32.gmra.mrb[0].mxu0 %v2987
  %v2989 = vpop.f32.mrb[0].mxu0
  %v2990 = vadd.f32 %v2512, %v2989
  %v2991 = vpop.f32.mrb[0].mxu0
  %2992 = vmatprep.mubr.f32.mxu0 0.0
  %v2993 = vand.u32 %v324, 4294901760
  %2994 = vmatmul.mubr.f32.gmra.mrb[0].mxu0 %v2993
  %v2995 = vpop.f32.mrb[0].mxu0
  %v2996 = vadd.f32 %v2520, %v2995
  %v2997 = vpop.f32.mrb[0].mxu0
  %2998 = vmatprep.mubr.f32.mxu0 0.0
  %v2999 = vand.u32 %v327, 4294901760
  %3000 = vmatmul.mubr.f32.gmra.mrb[0].mxu0 %v2999
  %v3001 = vpop.f32.mrb[0].mxu0
  %v3002 = vadd.f32 %v2528, %v3001
  %v3003 = vpop.f32.mrb[0].mxu0
  %3004 = vmatprep.mubr.f32.mxu0 0.0
  %v3005 = vand.u32 %v330, 4294901760
  %3006 = vmatmul.mubr.f32.gmra.mrb[0].mxu0 %v3005
  %v3007 = vpop.f32.mrb[0].mxu0
  %v3008 = vadd.f32 %v2536, %v3007
  %v3009 = vpop.f32.mrb[0].mxu0
  %3010 = vmatprep.mubr.f32.mxu0 0.0
  %v3011 = vand.u32 %v333, 4294901760
  %3012 = vmatmul.mubr.f32.gmra.mrb[0].mxu0 %v3011
  %v3013 = vpop.f32.mrb[0].mxu0
  %v3014 = vadd.f32 %v2544, %v3013
  %v3015 = vpop.f32.mrb[0].mxu0
  %3016 = vmatprep.mubr.f32.mxu0 0.0
  %v3017 = vand.u32 %v336, 4294901760
  %3018 = vmatmul.mubr.f32.gmra.mrb[0].mxu0 %v3017
  %v3019 = vpop.f32.mrb[0].mxu0
  %v3020 = vadd.f32 %v2552, %v3019
  %v3021 = vpop.f32.mrb[0].mxu0
  %3022 = vmatprep.mubr.f32.mxu0 0.0
  %v3023 = vand.u32 %v339, 4294901760
  %3024 = vmatmul.mubr.f32.gmra.mrb[0].mxu0 %v3023
  %v3025 = vpop.f32.mrb[0].mxu0
  %v3026 = vadd.f32 %v2560, %v3025
  %v3027 = vpop.f32.mrb[0].mxu0
  %3028 = vmatprep.mubr.f32.mxu0 0.0
  %v3029 = vand.u32 %v342, 4294901760
  %3030 = vmatmul.mubr.f32.gmra.mrb[0].mxu0 %v3029
  %v3031 = vpop.f32.mrb[0].mxu0
  %v3032 = vadd.f32 %v2568, %v3031
  %v3033 = vpop.f32.mrb[0].mxu0
  %3034 = vmatprep.mubr.f32.mxu0 0.0
  %v3035 = vand.u32 %v345, 4294901760
  %3036 = vmatmul.mubr.f32.gmra.mrb[0].mxu0 %v3035
  %v3037 = vpop.f32.mrb[0].mxu0
  %v3038 = vadd.f32 %v2576, %v3037
  %v3039 = vpop.f32.mrb[0].mxu0
  %3040 = vmatprep.mubr.f32.mxu0 0.0
  %v3041 = vand.u32 %v348, 4294901760
  %3042 = vmatmul.mubr.f32.gmra.mrb[0].mxu0 %v3041
  %v3043 = vpop.f32.mrb[0].mxu0
  %v3044 = vadd.f32 %v2584, %v3043
  %v3045 = vpop.f32.mrb[0].mxu0
  %3046 = vmatprep.mubr.f32.mxu0 0.0
  %v3047 = vand.u32 %v351, 4294901760
  %3048 = vmatmul.mubr.f32.gmra.mrb[0].mxu0 %v3047
  %v3049 = vpop.f32.mrb[0].mxu0
  %v3050 = vadd.f32 %v2592, %v3049
  %v3051 = vpop.f32.mrb[0].mxu0
  %3052 = vmatprep.mubr.f32.mxu0 0.0
  %v3053 = vand.u32 %v354, 4294901760
  %3054 = vmatmul.mubr.f32.gmra.mrb[0].mxu0 %v3053
  %v3055 = vpop.f32.mrb[0].mxu0
  %v3056 = vadd.f32 %v2600, %v3055
  %v3057 = vpop.f32.mrb[0].mxu0
  %3058 = vmatprep.mubr.f32.mxu0 0.0
  %v3059 = vand.u32 %v357, 4294901760
  %3060 = vmatmul.mubr.f32.gmra.mrb[0].mxu0 %v3059
  %v3061 = vpop.f32.mrb[0].mxu0
  %v3062 = vadd.f32 %v2608, %v3061
  %v3063 = vpop.f32.mrb[0].mxu0
  %3064 = vmatprep.mubr.f32.mxu0 0.0
  %v3065 = vand.u32 %v360, 4294901760
  %3066 = vmatmul.mubr.f32.gmra.mrb[0].mxu0 %v3065
  %v3067 = vpop.f32.mrb[0].mxu0
  %v3068 = vadd.f32 %v2616, %v3067
  %v3069 = vpop.f32.mrb[0].mxu0
  %3070 = vdwg.mxu0
  %3071 = vmatprep.subr.mxu0 0.0
  %v3072 = vand.u32 %v364, 4294901760
  %3073 = vmatpush1.msra.mxu0 %v3072
  %3074 = vmatprep.subr.mxu0 0.0
  %3075 = vmatpush1.msra.mxu0 0.0
  %3076 = vmatprep.subr.mxu0 0.0
  %3077 = vmatpush1.msra.mxu0 0.0
  %3078 = vmatprep.subr.mxu0 0.0
  %3079 = vmatpush1.msra.mxu0 0.0
  %3080 = vmatprep.subr.mxu0 0.0
  %3081 = vmatpush1.msra.mxu0 0.0
  %3082 = vmatprep.subr.mxu0 0.0
  %3083 = vmatpush1.msra.mxu0 0.0
  %3084 = vmatprep.subr.mxu0 0.0
  %3085 = vmatpush1.msra.mxu0 0.0
  %3086 = vmatprep.subr.mxu0 0.0
  %3087 = vmatpush1.msra.mxu0 0.0
  %3088 = vmatprep.subr.mxu0 0.0
  %3089 = vmatpush1.msra.mxu0 0.0
  %3090 = vmatprep.subr.mxu0 0.0
  %3091 = vmatpush1.msra.mxu0 0.0
  %3092 = vmatprep.subr.mxu0 0.0
  %3093 = vmatpush1.msra.mxu0 0.0
  %3094 = vmatprep.subr.mxu0 0.0
  %3095 = vmatpush1.msra.mxu0 0.0
  %3096 = vmatprep.subr.mxu0 0.0
  %3097 = vmatpush1.msra.mxu0 0.0
  %3098 = vmatprep.subr.mxu0 0.0
  %3099 = vmatpush1.msra.mxu0 0.0
  %3100 = vmatprep.subr.mxu0 0.0
  %3101 = vmatpush1.msra.mxu0 0.0
  %3102 = vmatprep.subr.mxu0 0.0
  %3103 = vmatpush1.msra.mxu0 0.0
  %3104 = vmatprep.subr.mxu0 0.0
  %3105 = vmatpush1.msra.mxu0 0.0
  %3106 = vmatprep.subr.mxu0 0.0
  %3107 = vmatpush1.msra.mxu0 0.0
  %3108 = vmatprep.subr.mxu0 0.0
  %3109 = vmatpush1.msra.mxu0 0.0
  %3110 = vmatprep.subr.mxu0 0.0
  %3111 = vmatpush1.msra.mxu0 0.0
  %3112 = vmatprep.subr.mxu0 0.0
  %3113 = vmatpush1.msra.mxu0 0.0
  %3114 = vmatprep.subr.mxu0 0.0
  %3115 = vmatpush1.msra.mxu0 0.0
  %3116 = vmatprep.subr.mxu0 0.0
  %3117 = vmatpush1.msra.mxu0 0.0
  %3118 = vmatprep.subr.mxu0 0.0
  %3119 = vmatpush1.msra.mxu0 0.0
  %3120 = vmatprep.subr.mxu0 0.0
  %3121 = vmatpush1.msra.mxu0 0.0
  %3122 = vmatprep.subr.mxu0 0.0
  %3123 = vmatpush1.msra.mxu0 0.0
  %3124 = vmatprep.subr.mxu0 0.0
  %3125 = vmatpush1.msra.mxu0 0.0
  %3126 = vmatprep.subr.mxu0 0.0
  %3127 = vmatpush1.msra.mxu0 0.0
  %3128 = vmatprep.subr.mxu0 0.0
  %3129 = vmatpush1.msra.mxu0 0.0
  %3130 = vmatprep.subr.mxu0 0.0
  %3131 = vmatpush1.msra.mxu0 0.0
  %3132 = vmatprep.subr.mxu0 0.0
  %3133 = vmatpush1.msra.mxu0 0.0
  %3134 = vmatprep.subr.mxu0 0.0
  %3135 = vmatpush1.msra.mxu0 0.0
  %3136 = vmatprep.mubr.f32.mxu0 0.0
  %v3137 = vand.u32 %v171, 4294901760
  %3138 = vmatmul.mubr.f32.gmra.mrb[0].mxu0 %v3137
  %v3139 = vpop.f32.mrb[0].mxu0
  %v3140 = vadd.f32 %v2690, %v3139
  %v3141 = vpop.f32.mrb[0].mxu0
  %3142 = vmatprep.mubr.f32.mxu0 0.0
  %v3143 = vand.u32 %v174, 4294901760
  %3144 = vmatmul.mubr.f32.gmra.mrb[0].mxu0 %v3143
  %v3145 = vpop.f32.mrb[0].mxu0
  %v3146 = vadd.f32 %v2696, %v3145
  %v3147 = vpop.f32.mrb[0].mxu0
  %3148 = vmatprep.mubr.f32.mxu0 0.0
  %v3149 = vand.u32 %v177, 4294901760
  %3150 = vmatmul.mubr.f32.gmra.mrb[0].mxu0 %v3149
  %v3151 = vpop.f32.mrb[0].mxu0
  %v3152 = vadd.f32 %v2702, %v3151
  %v3153 = vpop.f32.mrb[0].mxu0
  %3154 = vmatprep.mubr.f32.mxu0 0.0
  %v3155 = vand.u32 %v180, 4294901760
  %3156 = vmatmul.mubr.f32.gmra.mrb[0].mxu0 %v3155
  %v3157 = vpop.f32.mrb[0].mxu0
  %v3158 = vadd.f32 %v2708, %v3157
  %v3159 = vpop.f32.mrb[0].mxu0
  %3160 = vmatprep.mubr.f32.mxu0 0.0
  %v3161 = vand.u32 %v183, 4294901760
  %3162 = vmatmul.mubr.f32.gmra.mrb[0].mxu0 %v3161
  %v3163 = vpop.f32.mrb[0].mxu0
  %v3164 = vadd.f32 %v2714, %v3163
  %v3165 = vpop.f32.mrb[0].mxu0
  %3166 = vmatprep.mubr.f32.mxu0 0.0
  %v3167 = vand.u32 %v186, 4294901760
  %3168 = vmatmul.mubr.f32.gmra.mrb[0].mxu0 %v3167
  %v3169 = vpop.f32.mrb[0].mxu0
  %v3170 = vadd.f32 %v2720, %v3169
  %v3171 = vpop.f32.mrb[0].mxu0
  %3172 = vmatprep.mubr.f32.mxu0 0.0
  %v3173 = vand.u32 %v189, 4294901760
  %3174 = vmatmul.mubr.f32.gmra.mrb[0].mxu0 %v3173
  %v3175 = vpop.f32.mrb[0].mxu0
  %v3176 = vadd.f32 %v2726, %v3175
  %v3177 = vpop.f32.mrb[0].mxu0
  %3178 = vmatprep.mubr.f32.mxu0 0.0
  %v3179 = vand.u32 %v192, 4294901760
  %3180 = vmatmul.mubr.f32.gmra.mrb[0].mxu0 %v3179
  %v3181 = vpop.f32.mrb[0].mxu0
  %v3182 = vadd.f32 %v2732, %v3181
  %v3183 = vpop.f32.mrb[0].mxu0
  %3184 = vmatprep.mubr.f32.mxu0 0.0
  %v3185 = vand.u32 %v195, 4294901760
  %3186 = vmatmul.mubr.f32.gmra.mrb[0].mxu0 %v3185
  %v3187 = vpop.f32.mrb[0].mxu0
  %v3188 = vadd.f32 %v2738, %v3187
  %v3189 = vpop.f32.mrb[0].mxu0
  %3190 = vmatprep.mubr.f32.mxu0 0.0
  %v3191 = vand.u32 %v198, 4294901760
  %3192 = vmatmul.mubr.f32.gmra.mrb[0].mxu0 %v3191
  %v3193 = vpop.f32.mrb[0].mxu0
  %v3194 = vadd.f32 %v2744, %v3193
  %v3195 = vpop.f32.mrb[0].mxu0
  %3196 = vmatprep.mubr.f32.mxu0 0.0
  %v3197 = vand.u32 %v201, 4294901760
  %3198 = vmatmul.mubr.f32.gmra.mrb[0].mxu0 %v3197
  %v3199 = vpop.f32.mrb[0].mxu0
  %v3200 = vadd.f32 %v2750, %v3199
  %v3201 = vpop.f32.mrb[0].mxu0
  %3202 = vmatprep.mubr.f32.mxu0 0.0
  %v3203 = vand.u32 %v204, 4294901760
  %3204 = vmatmul.mubr.f32.gmra.mrb[0].mxu0 %v3203
  %v3205 = vpop.f32.mrb[0].mxu0
  %v3206 = vadd.f32 %v2756, %v3205
  %v3207 = vpop.f32.mrb[0].mxu0
  %3208 = vmatprep.mubr.f32.mxu0 0.0
  %v3209 = vand.u32 %v207, 4294901760
  %3210 = vmatmul.mubr.f32.gmra.mrb[0].mxu0 %v3209
  %v3211 = vpop.f32.mrb[0].mxu0
  %v3212 = vadd.f32 %v2762, %v3211
  %v3213 = vpop.f32.mrb[0].mxu0
  %3214 = vmatprep.mubr.f32.mxu0 0.0
  %v3215 = vand.u32 %v210, 4294901760
  %3216 = vmatmul.mubr.f32.gmra.mrb[0].mxu0 %v3215
  %v3217 = vpop.f32.mrb[0].mxu0
  %v3218 = vadd.f32 %v2768, %v3217
  %v3219 = vpop.f32.mrb[0].mxu0
  %3220 = vmatprep.mubr.f32.mxu0 0.0
  %v3221 = vand.u32 %v213, 4294901760
  %3222 = vmatmul.mubr.f32.gmra.mrb[0].mxu0 %v3221
  %v3223 = vpop.f32.mrb[0].mxu0
  %v3224 = vadd.f32 %v2774, %v3223
  %v3225 = vpop.f32.mrb[0].mxu0
  %3226 = vmatprep.mubr.f32.mxu0 0.0
  %v3227 = vand.u32 %v216, 4294901760
  %3228 = vmatmul.mubr.f32.gmra.mrb[0].mxu0 %v3227
  %v3229 = vpop.f32.mrb[0].mxu0
  %v3230 = vadd.f32 %v2780, %v3229
  %v3231 = vpop.f32.mrb[0].mxu0
  %3232 = vmatprep.mubr.f32.mxu0 0.0
  %v3233 = vand.u32 %v219, 4294901760
  %3234 = vmatmul.mubr.f32.gmra.mrb[0].mxu0 %v3233
  %v3235 = vpop.f32.mrb[0].mxu0
  %v3236 = vadd.f32 %v2786, %v3235
  %v3237 = vpop.f32.mrb[0].mxu0
  %3238 = vmatprep.mubr.f32.mxu0 0.0
  %v3239 = vand.u32 %v222, 4294901760
  %3240 = vmatmul.mubr.f32.gmra.mrb[0].mxu0 %v3239
  %v3241 = vpop.f32.mrb[0].mxu0
  %v3242 = vadd.f32 %v2792, %v3241
  %v3243 = vpop.f32.mrb[0].mxu0
  %3244 = vmatprep.mubr.f32.mxu0 0.0
  %v3245 = vand.u32 %v225, 4294901760
  %3246 = vmatmul.mubr.f32.gmra.mrb[0].mxu0 %v3245
  %v3247 = vpop.f32.mrb[0].mxu0
  %v3248 = vadd.f32 %v2798, %v3247
  %v3249 = vpop.f32.mrb[0].mxu0
  %3250 = vmatprep.mubr.f32.mxu0 0.0
  %v3251 = vand.u32 %v228, 4294901760
  %3252 = vmatmul.mubr.f32.gmra.mrb[0].mxu0 %v3251
  %v3253 = vpop.f32.mrb[0].mxu0
  %v3254 = vadd.f32 %v2804, %v3253
  %v3255 = vpop.f32.mrb[0].mxu0
  %3256 = vmatprep.mubr.f32.mxu0 0.0
  %v3257 = vand.u32 %v231, 4294901760
  %3258 = vmatmul.mubr.f32.gmra.mrb[0].mxu0 %v3257
  %v3259 = vpop.f32.mrb[0].mxu0
  %v3260 = vadd.f32 %v2810, %v3259
  %v3261 = vpop.f32.mrb[0].mxu0
  %3262 = vmatprep.mubr.f32.mxu0 0.0
  %v3263 = vand.u32 %v234, 4294901760
  %3264 = vmatmul.mubr.f32.gmra.mrb[0].mxu0 %v3263
  %v3265 = vpop.f32.mrb[0].mxu0
  %v3266 = vadd.f32 %v2816, %v3265
  %v3267 = vpop.f32.mrb[0].mxu0
  %3268 = vmatprep.mubr.f32.mxu0 0.0
  %v3269 = vand.u32 %v237, 4294901760
  %3270 = vmatmul.mubr.f32.gmra.mrb[0].mxu0 %v3269
  %v3271 = vpop.f32.mrb[0].mxu0
  %v3272 = vadd.f32 %v2822, %v3271
  %v3273 = vpop.f32.mrb[0].mxu0
  %3274 = vmatprep.mubr.f32.mxu0 0.0
  %v3275 = vand.u32 %v240, 4294901760
  %3276 = vmatmul.mubr.f32.gmra.mrb[0].mxu0 %v3275
  %v3277 = vpop.f32.mrb[0].mxu0
  %v3278 = vadd.f32 %v2828, %v3277
  %v3279 = vpop.f32.mrb[0].mxu0
  %3280 = vmatprep.mubr.f32.mxu0 0.0
  %v3281 = vand.u32 %v243, 4294901760
  %3282 = vmatmul.mubr.f32.gmra.mrb[0].mxu0 %v3281
  %v3283 = vpop.f32.mrb[0].mxu0
  %v3284 = vadd.f32 %v2834, %v3283
  %v3285 = vpop.f32.mrb[0].mxu0
  %3286 = vmatprep.mubr.f32.mxu0 0.0
  %v3287 = vand.u32 %v246, 4294901760
  %3288 = vmatmul.mubr.f32.gmra.mrb[0].mxu0 %v3287
  %v3289 = vpop.f32.mrb[0].mxu0
  %v3290 = vadd.f32 %v2840, %v3289
  %v3291 = vpop.f32.mrb[0].mxu0
  %3292 = vmatprep.mubr.f32.mxu0 0.0
  %v3293 = vand.u32 %v249, 4294901760
  %3294 = vmatmul.mubr.f32.gmra.mrb[0].mxu0 %v3293
  %v3295 = vpop.f32.mrb[0].mxu0
  %v3296 = vadd.f32 %v2846, %v3295
  %v3297 = vpop.f32.mrb[0].mxu0
  %3298 = vmatprep.mubr.f32.mxu0 0.0
  %v3299 = vand.u32 %v252, 4294901760
  %3300 = vmatmul.mubr.f32.gmra.mrb[0].mxu0 %v3299
  %v3301 = vpop.f32.mrb[0].mxu0
  %v3302 = vadd.f32 %v2852, %v3301
  %v3303 = vpop.f32.mrb[0].mxu0
  %3304 = vmatprep.mubr.f32.mxu0 0.0
  %v3305 = vand.u32 %v255, 4294901760
  %3306 = vmatmul.mubr.f32.gmra.mrb[0].mxu0 %v3305
  %v3307 = vpop.f32.mrb[0].mxu0
  %v3308 = vadd.f32 %v2858, %v3307
  %v3309 = vpop.f32.mrb[0].mxu0
  %3310 = vmatprep.mubr.f32.mxu0 0.0
  %v3311 = vand.u32 %v258, 4294901760
  %3312 = vmatmul.mubr.f32.gmra.mrb[0].mxu0 %v3311
  %v3313 = vpop.f32.mrb[0].mxu0
  %v3314 = vadd.f32 %v2864, %v3313
  %v3315 = vpop.f32.mrb[0].mxu0
  %3316 = vmatprep.mubr.f32.mxu0 0.0
  %v3317 = vand.u32 %v261, 4294901760
  %3318 = vmatmul.mubr.f32.gmra.mrb[0].mxu0 %v3317
  %v3319 = vpop.f32.mrb[0].mxu0
  %v3320 = vadd.f32 %v2870, %v3319
  %v3321 = vpop.f32.mrb[0].mxu0
  %3322 = vmatprep.mubr.f32.mxu0 0.0
  %v3323 = vand.u32 %v264, 4294901760
  %3324 = vmatmul.mubr.f32.gmra.mrb[0].mxu0 %v3323
  %v3325 = vpop.f32.mrb[0].mxu0
  %v3326 = vadd.f32 %v2876, %v3325
  %v3327 = vpop.f32.mrb[0].mxu0
  %3328 = vmatprep.mubr.f32.mxu0 0.0
  %v3329 = vand.u32 %v267, 4294901760
  %3330 = vmatmul.mubr.f32.gmra.mrb[0].mxu0 %v3329
  %v3331 = vpop.f32.mrb[0].mxu0
  %v3332 = vadd.f32 %v2882, %v3331
  %v3333 = vpop.f32.mrb[0].mxu0
  %3334 = vmatprep.mubr.f32.mxu0 0.0
  %v3335 = vand.u32 %v270, 4294901760
  %3336 = vmatmul.mubr.f32.gmra.mrb[0].mxu0 %v3335
  %v3337 = vpop.f32.mrb[0].mxu0
  %v3338 = vadd.f32 %v2888, %v3337
  %v3339 = vpop.f32.mrb[0].mxu0
  %3340 = vmatprep.mubr.f32.mxu0 0.0
  %v3341 = vand.u32 %v273, 4294901760
  %3342 = vmatmul.mubr.f32.gmra.mrb[0].mxu0 %v3341
  %v3343 = vpop.f32.mrb[0].mxu0
  %v3344 = vadd.f32 %v2894, %v3343
  %v3345 = vpop.f32.mrb[0].mxu0
  %3346 = vmatprep.mubr.f32.mxu0 0.0
  %v3347 = vand.u32 %v276, 4294901760
  %3348 = vmatmul.mubr.f32.gmra.mrb[0].mxu0 %v3347
  %v3349 = vpop.f32.mrb[0].mxu0
  %v3350 = vadd.f32 %v2900, %v3349
  %v3351 = vpop.f32.mrb[0].mxu0
  %3352 = vmatprep.mubr.f32.mxu0 0.0
  %v3353 = vand.u32 %v279, 4294901760
  %3354 = vmatmul.mubr.f32.gmra.mrb[0].mxu0 %v3353
  %v3355 = vpop.f32.mrb[0].mxu0
  %v3356 = vadd.f32 %v2906, %v3355
  %v3357 = vpop.f32.mrb[0].mxu0
  %3358 = vmatprep.mubr.f32.mxu0 0.0
  %v3359 = vand.u32 %v282, 4294901760
  %3360 = vmatmul.mubr.f32.gmra.mrb[0].mxu0 %v3359
  %v3361 = vpop.f32.mrb[0].mxu0
  %v3362 = vadd.f32 %v2912, %v3361
  %v3363 = vpop.f32.mrb[0].mxu0
  %3364 = vmatprep.mubr.f32.mxu0 0.0
  %v3365 = vand.u32 %v285, 4294901760
  %3366 = vmatmul.mubr.f32.gmra.mrb[0].mxu0 %v3365
  %v3367 = vpop.f32.mrb[0].mxu0
  %v3368 = vadd.f32 %v2918, %v3367
  %v3369 = vpop.f32.mrb[0].mxu0
  %3370 = vmatprep.mubr.f32.mxu0 0.0
  %v3371 = vand.u32 %v288, 4294901760
  %3372 = vmatmul.mubr.f32.gmra.mrb[0].mxu0 %v3371
  %v3373 = vpop.f32.mrb[0].mxu0
  %v3374 = vadd.f32 %v2924, %v3373
  %v3375 = vpop.f32.mrb[0].mxu0
  %3376 = vmatprep.mubr.f32.mxu0 0.0
  %v3377 = vand.u32 %v291, 4294901760
  %3378 = vmatmul.mubr.f32.gmra.mrb[0].mxu0 %v3377
  %v3379 = vpop.f32.mrb[0].mxu0
  %v3380 = vadd.f32 %v2930, %v3379
  %v3381 = vpop.f32.mrb[0].mxu0
  %3382 = vmatprep.mubr.f32.mxu0 0.0
  %v3383 = vand.u32 %v294, 4294901760
  %3384 = vmatmul.mubr.f32.gmra.mrb[0].mxu0 %v3383
  %v3385 = vpop.f32.mrb[0].mxu0
  %v3386 = vadd.f32 %v2936, %v3385
  %v3387 = vpop.f32.mrb[0].mxu0
  %3388 = vmatprep.mubr.f32.mxu0 0.0
  %v3389 = vand.u32 %v297, 4294901760
  %3390 = vmatmul.mubr.f32.gmra.mrb[0].mxu0 %v3389
  %v3391 = vpop.f32.mrb[0].mxu0
  %v3392 = vadd.f32 %v2942, %v3391
  %v3393 = vpop.f32.mrb[0].mxu0
  %3394 = vmatprep.mubr.f32.mxu0 0.0
  %v3395 = vand.u32 %v300, 4294901760
  %3396 = vmatmul.mubr.f32.gmra.mrb[0].mxu0 %v3395
  %v3397 = vpop.f32.mrb[0].mxu0
  %v3398 = vadd.f32 %v2948, %v3397
  %v3399 = vpop.f32.mrb[0].mxu0
  %3400 = vmatprep.mubr.f32.mxu0 0.0
  %v3401 = vand.u32 %v303, 4294901760
  %3402 = vmatmul.mubr.f32.gmra.mrb[0].mxu0 %v3401
  %v3403 = vpop.f32.mrb[0].mxu0
  %v3404 = vadd.f32 %v2954, %v3403
  %v3405 = vpop.f32.mrb[0].mxu0
  %3406 = vmatprep.mubr.f32.mxu0 0.0
  %v3407 = vand.u32 %v306, 4294901760
  %3408 = vmatmul.mubr.f32.gmra.mrb[0].mxu0 %v3407
  %v3409 = vpop.f32.mrb[0].mxu0
  %v3410 = vadd.f32 %v2960, %v3409
  %v3411 = vpop.f32.mrb[0].mxu0
  %3412 = vmatprep.mubr.f32.mxu0 0.0
  %v3413 = vand.u32 %v309, 4294901760
  %3414 = vmatmul.mubr.f32.gmra.mrb[0].mxu0 %v3413
  %v3415 = vpop.f32.mrb[0].mxu0
  %v3416 = vadd.f32 %v2966, %v3415
  %v3417 = vpop.f32.mrb[0].mxu0
  %3418 = vmatprep.mubr.f32.mxu0 0.0
  %v3419 = vand.u32 %v312, 4294901760
  %3420 = vmatmul.mubr.f32.gmra.mrb[0].mxu0 %v3419
  %v3421 = vpop.f32.mrb[0].mxu0
  %v3422 = vadd.f32 %v2972, %v3421
  %v3423 = vpop.f32.mrb[0].mxu0
  %3424 = vmatprep.mubr.f32.mxu0 0.0
  %v3425 = vand.u32 %v315, 4294901760
  %3426 = vmatmul.mubr.f32.gmra.mrb[0].mxu0 %v3425
  %v3427 = vpop.f32.mrb[0].mxu0
  %v3428 = vadd.f32 %v2978, %v3427
  %v3429 = vpop.f32.mrb[0].mxu0
  %3430 = vmatprep.mubr.f32.mxu0 0.0
  %v3431 = vand.u32 %v318, 4294901760
  %3432 = vmatmul.mubr.f32.gmra.mrb[0].mxu0 %v3431
  %v3433 = vpop.f32.mrb[0].mxu0
  %v3434 = vadd.f32 %v2984, %v3433
  %v3435 = vpop.f32.mrb[0].mxu0
  %3436 = vmatprep.mubr.f32.mxu0 0.0
  %v3437 = vand.u32 %v321, 4294901760
  %3438 = vmatmul.mubr.f32.gmra.mrb[0].mxu0 %v3437
  %v3439 = vpop.f32.mrb[0].mxu0
  %v3440 = vadd.f32 %v2990, %v3439
  %v3441 = vpop.f32.mrb[0].mxu0
  %3442 = vmatprep.mubr.f32.mxu0 0.0
  %v3443 = vand.u32 %v324, 4294901760
  %3444 = vmatmul.mubr.f32.gmra.mrb[0].mxu0 %v3443
  %v3445 = vpop.f32.mrb[0].mxu0
  %v3446 = vadd.f32 %v2996, %v3445
  %v3447 = vpop.f32.mrb[0].mxu0
  %3448 = vmatprep.mubr.f32.mxu0 0.0
  %v3449 = vand.u32 %v327, 4294901760
  %3450 = vmatmul.mubr.f32.gmra.mrb[0].mxu0 %v3449
  %v3451 = vpop.f32.mrb[0].mxu0
  %v3452 = vadd.f32 %v3002, %v3451
  %v3453 = vpop.f32.mrb[0].mxu0
  %3454 = vmatprep.mubr.f32.mxu0 0.0
  %v3455 = vand.u32 %v330, 4294901760
  %3456 = vmatmul.mubr.f32.gmra.mrb[0].mxu0 %v3455
  %v3457 = vpop.f32.mrb[0].mxu0
  %v3458 = vadd.f32 %v3008, %v3457
  %v3459 = vpop.f32.mrb[0].mxu0
  %3460 = vmatprep.mubr.f32.mxu0 0.0
  %v3461 = vand.u32 %v333, 4294901760
  %3462 = vmatmul.mubr.f32.gmra.mrb[0].mxu0 %v3461
  %v3463 = vpop.f32.mrb[0].mxu0
  %v3464 = vadd.f32 %v3014, %v3463
  %v3465 = vpop.f32.mrb[0].mxu0
  %3466 = vmatprep.mubr.f32.mxu0 0.0
  %v3467 = vand.u32 %v336, 4294901760
  %3468 = vmatmul.mubr.f32.gmra.mrb[0].mxu0 %v3467
  %v3469 = vpop.f32.mrb[0].mxu0
  %v3470 = vadd.f32 %v3020, %v3469
  %v3471 = vpop.f32.mrb[0].mxu0
  %3472 = vmatprep.mubr.f32.mxu0 0.0
  %v3473 = vand.u32 %v339, 4294901760
  %3474 = vmatmul.mubr.f32.gmra.mrb[0].mxu0 %v3473
  %v3475 = vpop.f32.mrb[0].mxu0
  %v3476 = vadd.f32 %v3026, %v3475
  %v3477 = vpop.f32.mrb[0].mxu0
  %3478 = vmatprep.mubr.f32.mxu0 0.0
  %v3479 = vand.u32 %v342, 4294901760
  %3480 = vmatmul.mubr.f32.gmra.mrb[0].mxu0 %v3479
  %v3481 = vpop.f32.mrb[0].mxu0
  %v3482 = vadd.f32 %v3032, %v3481
  %v3483 = vpop.f32.mrb[0].mxu0
  %3484 = vmatprep.mubr.f32.mxu0 0.0
  %v3485 = vand.u32 %v345, 4294901760
  %3486 = vmatmul.mubr.f32.gmra.mrb[0].mxu0 %v3485
  %v3487 = vpop.f32.mrb[0].mxu0
  %v3488 = vadd.f32 %v3038, %v3487
  %v3489 = vpop.f32.mrb[0].mxu0
  %3490 = vmatprep.mubr.f32.mxu0 0.0
  %v3491 = vand.u32 %v348, 4294901760
  %3492 = vmatmul.mubr.f32.gmra.mrb[0].mxu0 %v3491
  %v3493 = vpop.f32.mrb[0].mxu0
  %v3494 = vadd.f32 %v3044, %v3493
  %v3495 = vpop.f32.mrb[0].mxu0
  %3496 = vmatprep.mubr.f32.mxu0 0.0
  %v3497 = vand.u32 %v351, 4294901760
  %3498 = vmatmul.mubr.f32.gmra.mrb[0].mxu0 %v3497
  %v3499 = vpop.f32.mrb[0].mxu0
  %v3500 = vadd.f32 %v3050, %v3499
  %v3501 = vpop.f32.mrb[0].mxu0
  %3502 = vmatprep.mubr.f32.mxu0 0.0
  %v3503 = vand.u32 %v354, 4294901760
  %3504 = vmatmul.mubr.f32.gmra.mrb[0].mxu0 %v3503
  %v3505 = vpop.f32.mrb[0].mxu0
  %v3506 = vadd.f32 %v3056, %v3505
  %v3507 = vpop.f32.mrb[0].mxu0
  %3508 = vmatprep.mubr.f32.mxu0 0.0
  %v3509 = vand.u32 %v357, 4294901760
  %3510 = vmatmul.mubr.f32.gmra.mrb[0].mxu0 %v3509
  %v3511 = vpop.f32.mrb[0].mxu0
  %v3512 = vadd.f32 %v3062, %v3511
  %v3513 = vpop.f32.mrb[0].mxu0
  %3514 = vmatprep.mubr.f32.mxu0 0.0
  %v3515 = vand.u32 %v360, 4294901760
  %3516 = vmatmul.mubr.f32.gmra.mrb[0].mxu0 %v3515
  %v3517 = vpop.f32.mrb[0].mxu0
  %v3518 = vadd.f32 %v3068, %v3517
  %v3519 = vpop.f32.mrb[0].mxu0
  %3520 = vdwg.mxu0
  %vm3521 = vcmask 261120
  %v3523 = vsel %vm3521, %v41, 0
  %v3526 = vsel %vm3521, %v42, 0
  %v3529 = vsel %vm3521, %v43, 0
  %v3532 = vsel %vm3521, %v44, 0
  %v3535 = vsel %vm3521, %v45, 0
  %v3538 = vsel %vm3521, %v46, 0
  %v3541 = vsel %vm3521, %v47, 0
  %v3544 = vsel %vm3521, %v48, 0
  %v3547 = vsel %vm3521, %v49, 0
  %v3550 = vsel %vm3521, %v50, 0
  %v3553 = vsel %vm3521, %v51, 0
  %v3556 = vsel %vm3521, %v52, 0
  %v3559 = vsel %vm3521, %v53, 0
  %v3562 = vsel %vm3521, %v54, 0
  %v3565 = vsel %vm3521, %v55, 0
  %v3568 = vsel %vm3521, %v56, 0
  %v3571 = vsel %vm3521, %v57, 0
  %v3574 = vsel %vm3521, %v58, 0
  %v3577 = vsel %vm3521, %v59, 0
  %v3580 = vsel %vm3521, %v60, 0
  %v3583 = vsel %vm3521, %v61, 0
  %v3586 = vsel %vm3521, %v62, 0
  %v3589 = vsel %vm3521, %v63, 0
  %v3592 = vsel %vm3521, %v64, 0
  %v3595 = vsel %vm3521, %v65, 0
  %v3598 = vsel %vm3521, %v66, 0
  %v3601 = vsel %vm3521, %v67, 0
  %v3604 = vsel %vm3521, %v68, 0
  %v3607 = vsel %vm3521, %v69, 0
  %v3610 = vsel %vm3521, %v70, 0
  %v3613 = vsel %vm3521, %v71, 0
  %v3616 = vsel %vm3521, %v72, 0
  %v3619 = vsel %vm3521, %v73, 0
  %v3622 = vsel %vm3521, %v74, 0
  %v3625 = vsel %vm3521, %v75, 0
  %v3628 = vsel %vm3521, %v76, 0
  %v3631 = vsel %vm3521, %v77, 0
  %v3634 = vsel %vm3521, %v78, 0
  %v3637 = vsel %vm3521, %v79, 0
  %v3640 = vsel %vm3521, %v80, 0
  %v3643 = vsel %vm3521, %v81, 0
  %v3646 = vsel %vm3521, %v82, 0
  %v3649 = vsel %vm3521, %v83, 0
  %v3652 = vsel %vm3521, %v84, 0
  %v3655 = vsel %vm3521, %v85, 0
  %v3658 = vsel %vm3521, %v86, 0
  %v3661 = vsel %vm3521, %v87, 0
  %v3664 = vsel %vm3521, %v88, 0
  %v3667 = vsel %vm3521, %v89, 0
  %v3670 = vsel %vm3521, %v90, 0
  %v3673 = vsel %vm3521, %v91, 0
  %v3676 = vsel %vm3521, %v92, 0
  %v3679 = vsel %vm3521, %v93, 0
  %v3682 = vsel %vm3521, %v94, 0
  %v3685 = vsel %vm3521, %v95, 0
  %v3688 = vsel %vm3521, %v96, 0
  %v3691 = vsel %vm3521, %v97, 0
  %v3694 = vsel %vm3521, %v98, 0
  %v3697 = vsel %vm3521, %v99, 0
  %v3700 = vsel %vm3521, %v100, 0
  %v3703 = vsel %vm3521, %v101, 0
  %v3706 = vsel %vm3521, %v102, 0
  %v3709 = vsel %vm3521, %v103, 0
  %v3712 = vsel %vm3521, %v104, 0
  %3714 = vmatprep.subr.mxu0 0.0
  %v3715 = vand.u32 %v32, 4294901760
  %3716 = vmatpush1.msra.mxu0 %v3715
  %3717 = vmatprep.subr.mxu0 0.0
  %v3718 = vand.u32 %v33, 4294901760
  %3719 = vmatpush1.msra.mxu0 %v3718
  %3720 = vmatprep.subr.mxu0 0.0
  %v3721 = vand.u32 %v34, 4294901760
  %3722 = vmatpush1.msra.mxu0 %v3721
  %3723 = vmatprep.subr.mxu0 0.0
  %v3724 = vand.u32 %v35, 4294901760
  %3725 = vmatpush1.msra.mxu0 %v3724
  %3726 = vmatprep.subr.mxu0 0.0
  %3727 = vmatpush1.msra.mxu0 0.0
  %3728 = vmatprep.subr.mxu0 0.0
  %3729 = vmatpush1.msra.mxu0 0.0
  %3730 = vmatprep.subr.mxu0 0.0
  %3731 = vmatpush1.msra.mxu0 0.0
  %3732 = vmatprep.subr.mxu0 0.0
  %3733 = vmatpush1.msra.mxu0 0.0
  %3734 = vmatprep.subr.mxu0 0.0
  %3735 = vmatpush1.msra.mxu0 0.0
  %3736 = vmatprep.subr.mxu0 0.0
  %3737 = vmatpush1.msra.mxu0 0.0
  %3738 = vmatprep.subr.mxu0 0.0
  %3739 = vmatpush1.msra.mxu0 0.0
  %3740 = vmatprep.subr.mxu0 0.0
  %3741 = vmatpush1.msra.mxu0 0.0
  %3742 = vmatprep.subr.mxu0 0.0
  %3743 = vmatpush1.msra.mxu0 0.0
  %3744 = vmatprep.subr.mxu0 0.0
  %3745 = vmatpush1.msra.mxu0 0.0
  %3746 = vmatprep.subr.mxu0 0.0
  %3747 = vmatpush1.msra.mxu0 0.0
  %3748 = vmatprep.subr.mxu0 0.0
  %3749 = vmatpush1.msra.mxu0 0.0
  %3750 = vmatprep.subr.mxu0 0.0
  %3751 = vmatpush1.msra.mxu0 0.0
  %3752 = vmatprep.subr.mxu0 0.0
  %3753 = vmatpush1.msra.mxu0 0.0
  %3754 = vmatprep.subr.mxu0 0.0
  %3755 = vmatpush1.msra.mxu0 0.0
  %3756 = vmatprep.subr.mxu0 0.0
  %3757 = vmatpush1.msra.mxu0 0.0
  %3758 = vmatprep.subr.mxu0 0.0
  %3759 = vmatpush1.msra.mxu0 0.0
  %3760 = vmatprep.subr.mxu0 0.0
  %3761 = vmatpush1.msra.mxu0 0.0
  %3762 = vmatprep.subr.mxu0 0.0
  %3763 = vmatpush1.msra.mxu0 0.0
  %3764 = vmatprep.subr.mxu0 0.0
  %3765 = vmatpush1.msra.mxu0 0.0
  %3766 = vmatprep.subr.mxu0 0.0
  %3767 = vmatpush1.msra.mxu0 0.0
  %3768 = vmatprep.subr.mxu0 0.0
  %3769 = vmatpush1.msra.mxu0 0.0
  %3770 = vmatprep.subr.mxu0 0.0
  %3771 = vmatpush1.msra.mxu0 0.0
  %3772 = vmatprep.subr.mxu0 0.0
  %3773 = vmatpush1.msra.mxu0 0.0
  %3774 = vmatprep.subr.mxu0 0.0
  %3775 = vmatpush1.msra.mxu0 0.0
  %3776 = vmatprep.subr.mxu0 0.0
  %3777 = vmatpush1.msra.mxu0 0.0
  %3778 = vmatprep.subr.mxu0 0.0
  %3779 = vmatpush1.msra.mxu0 0.0
  %3780 = vmatprep.subr.mxu0 0.0
  %3781 = vmatpush1.msra.mxu0 0.0
  %3782 = vmatprep.mubr.f32.mxu0 0.0
  %v3783 = vand.u32 %v3523, 4294901760
  %v3784 = vsub.f32 %v3523, %v3783
  %v3785 = vand.u32 %v3784, 4294901760
  %v3786 = vsub.f32 %v3784, %v3785
  %v3787 = vand.u32 %v3786, 4294901760
  %3788 = vmatmul.mubr.f32.gmra.mrb[0].mxu0 %v3787
  %v3789 = vpop.f32.mrb[0].mxu0
  %v3790 = vadd.f32 %v3140, %v3789
  %v3791 = vpop.f32.mrb[0].mxu0
  %3792 = vmatprep.mubr.f32.mxu0 0.0
  %v3793 = vand.u32 %v3526, 4294901760
  %v3794 = vsub.f32 %v3526, %v3793
  %v3795 = vand.u32 %v3794, 4294901760
  %v3796 = vsub.f32 %v3794, %v3795
  %v3797 = vand.u32 %v3796, 4294901760
  %3798 = vmatmul.mubr.f32.gmra.mrb[0].mxu0 %v3797
  %v3799 = vpop.f32.mrb[0].mxu0
  %v3800 = vadd.f32 %v3146, %v3799
  %v3801 = vpop.f32.mrb[0].mxu0
  %3802 = vmatprep.mubr.f32.mxu0 0.0
  %v3803 = vand.u32 %v3529, 4294901760
  %v3804 = vsub.f32 %v3529, %v3803
  %v3805 = vand.u32 %v3804, 4294901760
  %v3806 = vsub.f32 %v3804, %v3805
  %v3807 = vand.u32 %v3806, 4294901760
  %3808 = vmatmul.mubr.f32.gmra.mrb[0].mxu0 %v3807
  %v3809 = vpop.f32.mrb[0].mxu0
  %v3810 = vadd.f32 %v3152, %v3809
  %v3811 = vpop.f32.mrb[0].mxu0
  %3812 = vmatprep.mubr.f32.mxu0 0.0
  %v3813 = vand.u32 %v3532, 4294901760
  %v3814 = vsub.f32 %v3532, %v3813
  %v3815 = vand.u32 %v3814, 4294901760
  %v3816 = vsub.f32 %v3814, %v3815
  %v3817 = vand.u32 %v3816, 4294901760
  %3818 = vmatmul.mubr.f32.gmra.mrb[0].mxu0 %v3817
  %v3819 = vpop.f32.mrb[0].mxu0
  %v3820 = vadd.f32 %v3158, %v3819
  %v3821 = vpop.f32.mrb[0].mxu0
  %3822 = vmatprep.mubr.f32.mxu0 0.0
  %v3823 = vand.u32 %v3535, 4294901760
  %v3824 = vsub.f32 %v3535, %v3823
  %v3825 = vand.u32 %v3824, 4294901760
  %v3826 = vsub.f32 %v3824, %v3825
  %v3827 = vand.u32 %v3826, 4294901760
  %3828 = vmatmul.mubr.f32.gmra.mrb[0].mxu0 %v3827
  %v3829 = vpop.f32.mrb[0].mxu0
  %v3830 = vadd.f32 %v3164, %v3829
  %v3831 = vpop.f32.mrb[0].mxu0
  %3832 = vmatprep.mubr.f32.mxu0 0.0
  %v3833 = vand.u32 %v3538, 4294901760
  %v3834 = vsub.f32 %v3538, %v3833
  %v3835 = vand.u32 %v3834, 4294901760
  %v3836 = vsub.f32 %v3834, %v3835
  %v3837 = vand.u32 %v3836, 4294901760
  %3838 = vmatmul.mubr.f32.gmra.mrb[0].mxu0 %v3837
  %v3839 = vpop.f32.mrb[0].mxu0
  %v3840 = vadd.f32 %v3170, %v3839
  %v3841 = vpop.f32.mrb[0].mxu0
  %3842 = vmatprep.mubr.f32.mxu0 0.0
  %v3843 = vand.u32 %v3541, 4294901760
  %v3844 = vsub.f32 %v3541, %v3843
  %v3845 = vand.u32 %v3844, 4294901760
  %v3846 = vsub.f32 %v3844, %v3845
  %v3847 = vand.u32 %v3846, 4294901760
  %3848 = vmatmul.mubr.f32.gmra.mrb[0].mxu0 %v3847
  %v3849 = vpop.f32.mrb[0].mxu0
  %v3850 = vadd.f32 %v3176, %v3849
  %v3851 = vpop.f32.mrb[0].mxu0
  %3852 = vmatprep.mubr.f32.mxu0 0.0
  %v3853 = vand.u32 %v3544, 4294901760
  %v3854 = vsub.f32 %v3544, %v3853
  %v3855 = vand.u32 %v3854, 4294901760
  %v3856 = vsub.f32 %v3854, %v3855
  %v3857 = vand.u32 %v3856, 4294901760
  %3858 = vmatmul.mubr.f32.gmra.mrb[0].mxu0 %v3857
  %v3859 = vpop.f32.mrb[0].mxu0
  %v3860 = vadd.f32 %v3182, %v3859
  %v3861 = vpop.f32.mrb[0].mxu0
  %3862 = vmatprep.mubr.f32.mxu0 0.0
  %v3863 = vand.u32 %v3547, 4294901760
  %v3864 = vsub.f32 %v3547, %v3863
  %v3865 = vand.u32 %v3864, 4294901760
  %v3866 = vsub.f32 %v3864, %v3865
  %v3867 = vand.u32 %v3866, 4294901760
  %3868 = vmatmul.mubr.f32.gmra.mrb[0].mxu0 %v3867
  %v3869 = vpop.f32.mrb[0].mxu0
  %v3870 = vadd.f32 %v3188, %v3869
  %v3871 = vpop.f32.mrb[0].mxu0
  %3872 = vmatprep.mubr.f32.mxu0 0.0
  %v3873 = vand.u32 %v3550, 4294901760
  %v3874 = vsub.f32 %v3550, %v3873
  %v3875 = vand.u32 %v3874, 4294901760
  %v3876 = vsub.f32 %v3874, %v3875
  %v3877 = vand.u32 %v3876, 4294901760
  %3878 = vmatmul.mubr.f32.gmra.mrb[0].mxu0 %v3877
  %v3879 = vpop.f32.mrb[0].mxu0
  %v3880 = vadd.f32 %v3194, %v3879
  %v3881 = vpop.f32.mrb[0].mxu0
  %3882 = vmatprep.mubr.f32.mxu0 0.0
  %v3883 = vand.u32 %v3553, 4294901760
  %v3884 = vsub.f32 %v3553, %v3883
  %v3885 = vand.u32 %v3884, 4294901760
  %v3886 = vsub.f32 %v3884, %v3885
  %v3887 = vand.u32 %v3886, 4294901760
  %3888 = vmatmul.mubr.f32.gmra.mrb[0].mxu0 %v3887
  %v3889 = vpop.f32.mrb[0].mxu0
  %v3890 = vadd.f32 %v3200, %v3889
  %v3891 = vpop.f32.mrb[0].mxu0
  %3892 = vmatprep.mubr.f32.mxu0 0.0
  %v3893 = vand.u32 %v3556, 4294901760
  %v3894 = vsub.f32 %v3556, %v3893
  %v3895 = vand.u32 %v3894, 4294901760
  %v3896 = vsub.f32 %v3894, %v3895
  %v3897 = vand.u32 %v3896, 4294901760
  %3898 = vmatmul.mubr.f32.gmra.mrb[0].mxu0 %v3897
  %v3899 = vpop.f32.mrb[0].mxu0
  %v3900 = vadd.f32 %v3206, %v3899
  %v3901 = vpop.f32.mrb[0].mxu0
  %3902 = vmatprep.mubr.f32.mxu0 0.0
  %v3903 = vand.u32 %v3559, 4294901760
  %v3904 = vsub.f32 %v3559, %v3903
  %v3905 = vand.u32 %v3904, 4294901760
  %v3906 = vsub.f32 %v3904, %v3905
  %v3907 = vand.u32 %v3906, 4294901760
  %3908 = vmatmul.mubr.f32.gmra.mrb[0].mxu0 %v3907
  %v3909 = vpop.f32.mrb[0].mxu0
  %v3910 = vadd.f32 %v3212, %v3909
  %v3911 = vpop.f32.mrb[0].mxu0
  %3912 = vmatprep.mubr.f32.mxu0 0.0
  %v3913 = vand.u32 %v3562, 4294901760
  %v3914 = vsub.f32 %v3562, %v3913
  %v3915 = vand.u32 %v3914, 4294901760
  %v3916 = vsub.f32 %v3914, %v3915
  %v3917 = vand.u32 %v3916, 4294901760
  %3918 = vmatmul.mubr.f32.gmra.mrb[0].mxu0 %v3917
  %v3919 = vpop.f32.mrb[0].mxu0
  %v3920 = vadd.f32 %v3218, %v3919
  %v3921 = vpop.f32.mrb[0].mxu0
  %3922 = vmatprep.mubr.f32.mxu0 0.0
  %v3923 = vand.u32 %v3565, 4294901760
  %v3924 = vsub.f32 %v3565, %v3923
  %v3925 = vand.u32 %v3924, 4294901760
  %v3926 = vsub.f32 %v3924, %v3925
  %v3927 = vand.u32 %v3926, 4294901760
  %3928 = vmatmul.mubr.f32.gmra.mrb[0].mxu0 %v3927
  %v3929 = vpop.f32.mrb[0].mxu0
  %v3930 = vadd.f32 %v3224, %v3929
  %v3931 = vpop.f32.mrb[0].mxu0
  %3932 = vmatprep.mubr.f32.mxu0 0.0
  %v3933 = vand.u32 %v3568, 4294901760
  %v3934 = vsub.f32 %v3568, %v3933
  %v3935 = vand.u32 %v3934, 4294901760
  %v3936 = vsub.f32 %v3934, %v3935
  %v3937 = vand.u32 %v3936, 4294901760
  %3938 = vmatmul.mubr.f32.gmra.mrb[0].mxu0 %v3937
  %v3939 = vpop.f32.mrb[0].mxu0
  %v3940 = vadd.f32 %v3230, %v3939
  %v3941 = vpop.f32.mrb[0].mxu0
  %3942 = vmatprep.mubr.f32.mxu0 0.0
  %v3943 = vand.u32 %v3571, 4294901760
  %v3944 = vsub.f32 %v3571, %v3943
  %v3945 = vand.u32 %v3944, 4294901760
  %v3946 = vsub.f32 %v3944, %v3945
  %v3947 = vand.u32 %v3946, 4294901760
  %3948 = vmatmul.mubr.f32.gmra.mrb[0].mxu0 %v3947
  %v3949 = vpop.f32.mrb[0].mxu0
  %v3950 = vadd.f32 %v3236, %v3949
  %v3951 = vpop.f32.mrb[0].mxu0
  %3952 = vmatprep.mubr.f32.mxu0 0.0
  %v3953 = vand.u32 %v3574, 4294901760
  %v3954 = vsub.f32 %v3574, %v3953
  %v3955 = vand.u32 %v3954, 4294901760
  %v3956 = vsub.f32 %v3954, %v3955
  %v3957 = vand.u32 %v3956, 4294901760
  %3958 = vmatmul.mubr.f32.gmra.mrb[0].mxu0 %v3957
  %v3959 = vpop.f32.mrb[0].mxu0
  %v3960 = vadd.f32 %v3242, %v3959
  %v3961 = vpop.f32.mrb[0].mxu0
  %3962 = vmatprep.mubr.f32.mxu0 0.0
  %v3963 = vand.u32 %v3577, 4294901760
  %v3964 = vsub.f32 %v3577, %v3963
  %v3965 = vand.u32 %v3964, 4294901760
  %v3966 = vsub.f32 %v3964, %v3965
  %v3967 = vand.u32 %v3966, 4294901760
  %3968 = vmatmul.mubr.f32.gmra.mrb[0].mxu0 %v3967
  %v3969 = vpop.f32.mrb[0].mxu0
  %v3970 = vadd.f32 %v3248, %v3969
  %v3971 = vpop.f32.mrb[0].mxu0
  %3972 = vmatprep.mubr.f32.mxu0 0.0
  %v3973 = vand.u32 %v3580, 4294901760
  %v3974 = vsub.f32 %v3580, %v3973
  %v3975 = vand.u32 %v3974, 4294901760
  %v3976 = vsub.f32 %v3974, %v3975
  %v3977 = vand.u32 %v3976, 4294901760
  %3978 = vmatmul.mubr.f32.gmra.mrb[0].mxu0 %v3977
  %v3979 = vpop.f32.mrb[0].mxu0
  %v3980 = vadd.f32 %v3254, %v3979
  %v3981 = vpop.f32.mrb[0].mxu0
  %3982 = vmatprep.mubr.f32.mxu0 0.0
  %v3983 = vand.u32 %v3583, 4294901760
  %v3984 = vsub.f32 %v3583, %v3983
  %v3985 = vand.u32 %v3984, 4294901760
  %v3986 = vsub.f32 %v3984, %v3985
  %v3987 = vand.u32 %v3986, 4294901760
  %3988 = vmatmul.mubr.f32.gmra.mrb[0].mxu0 %v3987
  %v3989 = vpop.f32.mrb[0].mxu0
  %v3990 = vadd.f32 %v3260, %v3989
  %v3991 = vpop.f32.mrb[0].mxu0
  %3992 = vmatprep.mubr.f32.mxu0 0.0
  %v3993 = vand.u32 %v3586, 4294901760
  %v3994 = vsub.f32 %v3586, %v3993
  %v3995 = vand.u32 %v3994, 4294901760
  %v3996 = vsub.f32 %v3994, %v3995
  %v3997 = vand.u32 %v3996, 4294901760
  %3998 = vmatmul.mubr.f32.gmra.mrb[0].mxu0 %v3997
  %v3999 = vpop.f32.mrb[0].mxu0
  %v4000 = vadd.f32 %v3266, %v3999
  %v4001 = vpop.f32.mrb[0].mxu0
  %4002 = vmatprep.mubr.f32.mxu0 0.0
  %v4003 = vand.u32 %v3589, 4294901760
  %v4004 = vsub.f32 %v3589, %v4003
  %v4005 = vand.u32 %v4004, 4294901760
  %v4006 = vsub.f32 %v4004, %v4005
  %v4007 = vand.u32 %v4006, 4294901760
  %4008 = vmatmul.mubr.f32.gmra.mrb[0].mxu0 %v4007
  %v4009 = vpop.f32.mrb[0].mxu0
  %v4010 = vadd.f32 %v3272, %v4009
  %v4011 = vpop.f32.mrb[0].mxu0
  %4012 = vmatprep.mubr.f32.mxu0 0.0
  %v4013 = vand.u32 %v3592, 4294901760
  %v4014 = vsub.f32 %v3592, %v4013
  %v4015 = vand.u32 %v4014, 4294901760
  %v4016 = vsub.f32 %v4014, %v4015
  %v4017 = vand.u32 %v4016, 4294901760
  %4018 = vmatmul.mubr.f32.gmra.mrb[0].mxu0 %v4017
  %v4019 = vpop.f32.mrb[0].mxu0
  %v4020 = vadd.f32 %v3278, %v4019
  %v4021 = vpop.f32.mrb[0].mxu0
  %4022 = vmatprep.mubr.f32.mxu0 0.0
  %v4023 = vand.u32 %v3595, 4294901760
  %v4024 = vsub.f32 %v3595, %v4023
  %v4025 = vand.u32 %v4024, 4294901760
  %v4026 = vsub.f32 %v4024, %v4025
  %v4027 = vand.u32 %v4026, 4294901760
  %4028 = vmatmul.mubr.f32.gmra.mrb[0].mxu0 %v4027
  %v4029 = vpop.f32.mrb[0].mxu0
  %v4030 = vadd.f32 %v3284, %v4029
  %v4031 = vpop.f32.mrb[0].mxu0
  %4032 = vmatprep.mubr.f32.mxu0 0.0
  %v4033 = vand.u32 %v3598, 4294901760
  %v4034 = vsub.f32 %v3598, %v4033
  %v4035 = vand.u32 %v4034, 4294901760
  %v4036 = vsub.f32 %v4034, %v4035
  %v4037 = vand.u32 %v4036, 4294901760
  %4038 = vmatmul.mubr.f32.gmra.mrb[0].mxu0 %v4037
  %v4039 = vpop.f32.mrb[0].mxu0
  %v4040 = vadd.f32 %v3290, %v4039
  %v4041 = vpop.f32.mrb[0].mxu0
  %4042 = vmatprep.mubr.f32.mxu0 0.0
  %v4043 = vand.u32 %v3601, 4294901760
  %v4044 = vsub.f32 %v3601, %v4043
  %v4045 = vand.u32 %v4044, 4294901760
  %v4046 = vsub.f32 %v4044, %v4045
  %v4047 = vand.u32 %v4046, 4294901760
  %4048 = vmatmul.mubr.f32.gmra.mrb[0].mxu0 %v4047
  %v4049 = vpop.f32.mrb[0].mxu0
  %v4050 = vadd.f32 %v3296, %v4049
  %v4051 = vpop.f32.mrb[0].mxu0
  %4052 = vmatprep.mubr.f32.mxu0 0.0
  %v4053 = vand.u32 %v3604, 4294901760
  %v4054 = vsub.f32 %v3604, %v4053
  %v4055 = vand.u32 %v4054, 4294901760
  %v4056 = vsub.f32 %v4054, %v4055
  %v4057 = vand.u32 %v4056, 4294901760
  %4058 = vmatmul.mubr.f32.gmra.mrb[0].mxu0 %v4057
  %v4059 = vpop.f32.mrb[0].mxu0
  %v4060 = vadd.f32 %v3302, %v4059
  %v4061 = vpop.f32.mrb[0].mxu0
  %4062 = vmatprep.mubr.f32.mxu0 0.0
  %v4063 = vand.u32 %v3607, 4294901760
  %v4064 = vsub.f32 %v3607, %v4063
  %v4065 = vand.u32 %v4064, 4294901760
  %v4066 = vsub.f32 %v4064, %v4065
  %v4067 = vand.u32 %v4066, 4294901760
  %4068 = vmatmul.mubr.f32.gmra.mrb[0].mxu0 %v4067
  %v4069 = vpop.f32.mrb[0].mxu0
  %v4070 = vadd.f32 %v3308, %v4069
  %v4071 = vpop.f32.mrb[0].mxu0
  %4072 = vmatprep.mubr.f32.mxu0 0.0
  %v4073 = vand.u32 %v3610, 4294901760
  %v4074 = vsub.f32 %v3610, %v4073
  %v4075 = vand.u32 %v4074, 4294901760
  %v4076 = vsub.f32 %v4074, %v4075
  %v4077 = vand.u32 %v4076, 4294901760
  %4078 = vmatmul.mubr.f32.gmra.mrb[0].mxu0 %v4077
  %v4079 = vpop.f32.mrb[0].mxu0
  %v4080 = vadd.f32 %v3314, %v4079
  %v4081 = vpop.f32.mrb[0].mxu0
  %4082 = vmatprep.mubr.f32.mxu0 0.0
  %v4083 = vand.u32 %v3613, 4294901760
  %v4084 = vsub.f32 %v3613, %v4083
  %v4085 = vand.u32 %v4084, 4294901760
  %v4086 = vsub.f32 %v4084, %v4085
  %v4087 = vand.u32 %v4086, 4294901760
  %4088 = vmatmul.mubr.f32.gmra.mrb[0].mxu0 %v4087
  %v4089 = vpop.f32.mrb[0].mxu0
  %v4090 = vadd.f32 %v3320, %v4089
  %v4091 = vpop.f32.mrb[0].mxu0
  %4092 = vmatprep.mubr.f32.mxu0 0.0
  %v4093 = vand.u32 %v3616, 4294901760
  %v4094 = vsub.f32 %v3616, %v4093
  %v4095 = vand.u32 %v4094, 4294901760
  %v4096 = vsub.f32 %v4094, %v4095
  %v4097 = vand.u32 %v4096, 4294901760
  %4098 = vmatmul.mubr.f32.gmra.mrb[0].mxu0 %v4097
  %v4099 = vpop.f32.mrb[0].mxu0
  %v4100 = vadd.f32 %v3326, %v4099
  %v4101 = vpop.f32.mrb[0].mxu0
  %4102 = vmatprep.mubr.f32.mxu0 0.0
  %v4103 = vand.u32 %v3619, 4294901760
  %v4104 = vsub.f32 %v3619, %v4103
  %v4105 = vand.u32 %v4104, 4294901760
  %v4106 = vsub.f32 %v4104, %v4105
  %v4107 = vand.u32 %v4106, 4294901760
  %4108 = vmatmul.mubr.f32.gmra.mrb[0].mxu0 %v4107
  %v4109 = vpop.f32.mrb[0].mxu0
  %v4110 = vadd.f32 %v3332, %v4109
  %v4111 = vpop.f32.mrb[0].mxu0
  %4112 = vmatprep.mubr.f32.mxu0 0.0
  %v4113 = vand.u32 %v3622, 4294901760
  %v4114 = vsub.f32 %v3622, %v4113
  %v4115 = vand.u32 %v4114, 4294901760
  %v4116 = vsub.f32 %v4114, %v4115
  %v4117 = vand.u32 %v4116, 4294901760
  %4118 = vmatmul.mubr.f32.gmra.mrb[0].mxu0 %v4117
  %v4119 = vpop.f32.mrb[0].mxu0
  %v4120 = vadd.f32 %v3338, %v4119
  %v4121 = vpop.f32.mrb[0].mxu0
  %4122 = vmatprep.mubr.f32.mxu0 0.0
  %v4123 = vand.u32 %v3625, 4294901760
  %v4124 = vsub.f32 %v3625, %v4123
  %v4125 = vand.u32 %v4124, 4294901760
  %v4126 = vsub.f32 %v4124, %v4125
  %v4127 = vand.u32 %v4126, 4294901760
  %4128 = vmatmul.mubr.f32.gmra.mrb[0].mxu0 %v4127
  %v4129 = vpop.f32.mrb[0].mxu0
  %v4130 = vadd.f32 %v3344, %v4129
  %v4131 = vpop.f32.mrb[0].mxu0
  %4132 = vmatprep.mubr.f32.mxu0 0.0
  %v4133 = vand.u32 %v3628, 4294901760
  %v4134 = vsub.f32 %v3628, %v4133
  %v4135 = vand.u32 %v4134, 4294901760
  %v4136 = vsub.f32 %v4134, %v4135
  %v4137 = vand.u32 %v4136, 4294901760
  %4138 = vmatmul.mubr.f32.gmra.mrb[0].mxu0 %v4137
  %v4139 = vpop.f32.mrb[0].mxu0
  %v4140 = vadd.f32 %v3350, %v4139
  %v4141 = vpop.f32.mrb[0].mxu0
  %4142 = vmatprep.mubr.f32.mxu0 0.0
  %v4143 = vand.u32 %v3631, 4294901760
  %v4144 = vsub.f32 %v3631, %v4143
  %v4145 = vand.u32 %v4144, 4294901760
  %v4146 = vsub.f32 %v4144, %v4145
  %v4147 = vand.u32 %v4146, 4294901760
  %4148 = vmatmul.mubr.f32.gmra.mrb[0].mxu0 %v4147
  %v4149 = vpop.f32.mrb[0].mxu0
  %v4150 = vadd.f32 %v3356, %v4149
  %v4151 = vpop.f32.mrb[0].mxu0
  %4152 = vmatprep.mubr.f32.mxu0 0.0
  %v4153 = vand.u32 %v3634, 4294901760
  %v4154 = vsub.f32 %v3634, %v4153
  %v4155 = vand.u32 %v4154, 4294901760
  %v4156 = vsub.f32 %v4154, %v4155
  %v4157 = vand.u32 %v4156, 4294901760
  %4158 = vmatmul.mubr.f32.gmra.mrb[0].mxu0 %v4157
  %v4159 = vpop.f32.mrb[0].mxu0
  %v4160 = vadd.f32 %v3362, %v4159
  %v4161 = vpop.f32.mrb[0].mxu0
  %4162 = vmatprep.mubr.f32.mxu0 0.0
  %v4163 = vand.u32 %v3637, 4294901760
  %v4164 = vsub.f32 %v3637, %v4163
  %v4165 = vand.u32 %v4164, 4294901760
  %v4166 = vsub.f32 %v4164, %v4165
  %v4167 = vand.u32 %v4166, 4294901760
  %4168 = vmatmul.mubr.f32.gmra.mrb[0].mxu0 %v4167
  %v4169 = vpop.f32.mrb[0].mxu0
  %v4170 = vadd.f32 %v3368, %v4169
  %v4171 = vpop.f32.mrb[0].mxu0
  %4172 = vmatprep.mubr.f32.mxu0 0.0
  %v4173 = vand.u32 %v3640, 4294901760
  %v4174 = vsub.f32 %v3640, %v4173
  %v4175 = vand.u32 %v4174, 4294901760
  %v4176 = vsub.f32 %v4174, %v4175
  %v4177 = vand.u32 %v4176, 4294901760
  %4178 = vmatmul.mubr.f32.gmra.mrb[0].mxu0 %v4177
  %v4179 = vpop.f32.mrb[0].mxu0
  %v4180 = vadd.f32 %v3374, %v4179
  %v4181 = vpop.f32.mrb[0].mxu0
  %4182 = vmatprep.mubr.f32.mxu0 0.0
  %v4183 = vand.u32 %v3643, 4294901760
  %v4184 = vsub.f32 %v3643, %v4183
  %v4185 = vand.u32 %v4184, 4294901760
  %v4186 = vsub.f32 %v4184, %v4185
  %v4187 = vand.u32 %v4186, 4294901760
  %4188 = vmatmul.mubr.f32.gmra.mrb[0].mxu0 %v4187
  %v4189 = vpop.f32.mrb[0].mxu0
  %v4190 = vadd.f32 %v3380, %v4189
  %v4191 = vpop.f32.mrb[0].mxu0
  %4192 = vmatprep.mubr.f32.mxu0 0.0
  %v4193 = vand.u32 %v3646, 4294901760
  %v4194 = vsub.f32 %v3646, %v4193
  %v4195 = vand.u32 %v4194, 4294901760
  %v4196 = vsub.f32 %v4194, %v4195
  %v4197 = vand.u32 %v4196, 4294901760
  %4198 = vmatmul.mubr.f32.gmra.mrb[0].mxu0 %v4197
  %v4199 = vpop.f32.mrb[0].mxu0
  %v4200 = vadd.f32 %v3386, %v4199
  %v4201 = vpop.f32.mrb[0].mxu0
  %4202 = vmatprep.mubr.f32.mxu0 0.0
  %v4203 = vand.u32 %v3649, 4294901760
  %v4204 = vsub.f32 %v3649, %v4203
  %v4205 = vand.u32 %v4204, 4294901760
  %v4206 = vsub.f32 %v4204, %v4205
  %v4207 = vand.u32 %v4206, 4294901760
  %4208 = vmatmul.mubr.f32.gmra.mrb[0].mxu0 %v4207
  %v4209 = vpop.f32.mrb[0].mxu0
  %v4210 = vadd.f32 %v3392, %v4209
  %v4211 = vpop.f32.mrb[0].mxu0
  %4212 = vmatprep.mubr.f32.mxu0 0.0
  %v4213 = vand.u32 %v3652, 4294901760
  %v4214 = vsub.f32 %v3652, %v4213
  %v4215 = vand.u32 %v4214, 4294901760
  %v4216 = vsub.f32 %v4214, %v4215
  %v4217 = vand.u32 %v4216, 4294901760
  %4218 = vmatmul.mubr.f32.gmra.mrb[0].mxu0 %v4217
  %v4219 = vpop.f32.mrb[0].mxu0
  %v4220 = vadd.f32 %v3398, %v4219
  %v4221 = vpop.f32.mrb[0].mxu0
  %4222 = vmatprep.mubr.f32.mxu0 0.0
  %v4223 = vand.u32 %v3655, 4294901760
  %v4224 = vsub.f32 %v3655, %v4223
  %v4225 = vand.u32 %v4224, 4294901760
  %v4226 = vsub.f32 %v4224, %v4225
  %v4227 = vand.u32 %v4226, 4294901760
  %4228 = vmatmul.mubr.f32.gmra.mrb[0].mxu0 %v4227
  %v4229 = vpop.f32.mrb[0].mxu0
  %v4230 = vadd.f32 %v3404, %v4229
  %v4231 = vpop.f32.mrb[0].mxu0
  %4232 = vmatprep.mubr.f32.mxu0 0.0
  %v4233 = vand.u32 %v3658, 4294901760
  %v4234 = vsub.f32 %v3658, %v4233
  %v4235 = vand.u32 %v4234, 4294901760
  %v4236 = vsub.f32 %v4234, %v4235
  %v4237 = vand.u32 %v4236, 4294901760
  %4238 = vmatmul.mubr.f32.gmra.mrb[0].mxu0 %v4237
  %v4239 = vpop.f32.mrb[0].mxu0
  %v4240 = vadd.f32 %v3410, %v4239
  %v4241 = vpop.f32.mrb[0].mxu0
  %4242 = vmatprep.mubr.f32.mxu0 0.0
  %v4243 = vand.u32 %v3661, 4294901760
  %v4244 = vsub.f32 %v3661, %v4243
  %v4245 = vand.u32 %v4244, 4294901760
  %v4246 = vsub.f32 %v4244, %v4245
  %v4247 = vand.u32 %v4246, 4294901760
  %4248 = vmatmul.mubr.f32.gmra.mrb[0].mxu0 %v4247
  %v4249 = vpop.f32.mrb[0].mxu0
  %v4250 = vadd.f32 %v3416, %v4249
  %v4251 = vpop.f32.mrb[0].mxu0
  %4252 = vmatprep.mubr.f32.mxu0 0.0
  %v4253 = vand.u32 %v3664, 4294901760
  %v4254 = vsub.f32 %v3664, %v4253
  %v4255 = vand.u32 %v4254, 4294901760
  %v4256 = vsub.f32 %v4254, %v4255
  %v4257 = vand.u32 %v4256, 4294901760
  %4258 = vmatmul.mubr.f32.gmra.mrb[0].mxu0 %v4257
  %v4259 = vpop.f32.mrb[0].mxu0
  %v4260 = vadd.f32 %v3422, %v4259
  %v4261 = vpop.f32.mrb[0].mxu0
  %4262 = vmatprep.mubr.f32.mxu0 0.0
  %v4263 = vand.u32 %v3667, 4294901760
  %v4264 = vsub.f32 %v3667, %v4263
  %v4265 = vand.u32 %v4264, 4294901760
  %v4266 = vsub.f32 %v4264, %v4265
  %v4267 = vand.u32 %v4266, 4294901760
  %4268 = vmatmul.mubr.f32.gmra.mrb[0].mxu0 %v4267
  %v4269 = vpop.f32.mrb[0].mxu0
  %v4270 = vadd.f32 %v3428, %v4269
  %v4271 = vpop.f32.mrb[0].mxu0
  %4272 = vmatprep.mubr.f32.mxu0 0.0
  %v4273 = vand.u32 %v3670, 4294901760
  %v4274 = vsub.f32 %v3670, %v4273
  %v4275 = vand.u32 %v4274, 4294901760
  %v4276 = vsub.f32 %v4274, %v4275
  %v4277 = vand.u32 %v4276, 4294901760
  %4278 = vmatmul.mubr.f32.gmra.mrb[0].mxu0 %v4277
  %v4279 = vpop.f32.mrb[0].mxu0
  %v4280 = vadd.f32 %v3434, %v4279
  %v4281 = vpop.f32.mrb[0].mxu0
  %4282 = vmatprep.mubr.f32.mxu0 0.0
  %v4283 = vand.u32 %v3673, 4294901760
  %v4284 = vsub.f32 %v3673, %v4283
  %v4285 = vand.u32 %v4284, 4294901760
  %v4286 = vsub.f32 %v4284, %v4285
  %v4287 = vand.u32 %v4286, 4294901760
  %4288 = vmatmul.mubr.f32.gmra.mrb[0].mxu0 %v4287
  %v4289 = vpop.f32.mrb[0].mxu0
  %v4290 = vadd.f32 %v3440, %v4289
  %v4291 = vpop.f32.mrb[0].mxu0
  %4292 = vmatprep.mubr.f32.mxu0 0.0
  %v4293 = vand.u32 %v3676, 4294901760
  %v4294 = vsub.f32 %v3676, %v4293
  %v4295 = vand.u32 %v4294, 4294901760
  %v4296 = vsub.f32 %v4294, %v4295
  %v4297 = vand.u32 %v4296, 4294901760
  %4298 = vmatmul.mubr.f32.gmra.mrb[0].mxu0 %v4297
  %v4299 = vpop.f32.mrb[0].mxu0
  %v4300 = vadd.f32 %v3446, %v4299
  %v4301 = vpop.f32.mrb[0].mxu0
  %4302 = vmatprep.mubr.f32.mxu0 0.0
  %v4303 = vand.u32 %v3679, 4294901760
  %v4304 = vsub.f32 %v3679, %v4303
  %v4305 = vand.u32 %v4304, 4294901760
  %v4306 = vsub.f32 %v4304, %v4305
  %v4307 = vand.u32 %v4306, 4294901760
  %4308 = vmatmul.mubr.f32.gmra.mrb[0].mxu0 %v4307
  %v4309 = vpop.f32.mrb[0].mxu0
  %v4310 = vadd.f32 %v3452, %v4309
  %v4311 = vpop.f32.mrb[0].mxu0
  %4312 = vmatprep.mubr.f32.mxu0 0.0
  %v4313 = vand.u32 %v3682, 4294901760
  %v4314 = vsub.f32 %v3682, %v4313
  %v4315 = vand.u32 %v4314, 4294901760
  %v4316 = vsub.f32 %v4314, %v4315
  %v4317 = vand.u32 %v4316, 4294901760
  %4318 = vmatmul.mubr.f32.gmra.mrb[0].mxu0 %v4317
  %v4319 = vpop.f32.mrb[0].mxu0
  %v4320 = vadd.f32 %v3458, %v4319
  %v4321 = vpop.f32.mrb[0].mxu0
  %4322 = vmatprep.mubr.f32.mxu0 0.0
  %v4323 = vand.u32 %v3685, 4294901760
  %v4324 = vsub.f32 %v3685, %v4323
  %v4325 = vand.u32 %v4324, 4294901760
  %v4326 = vsub.f32 %v4324, %v4325
  %v4327 = vand.u32 %v4326, 4294901760
  %4328 = vmatmul.mubr.f32.gmra.mrb[0].mxu0 %v4327
  %v4329 = vpop.f32.mrb[0].mxu0
  %v4330 = vadd.f32 %v3464, %v4329
  %v4331 = vpop.f32.mrb[0].mxu0
  %4332 = vmatprep.mubr.f32.mxu0 0.0
  %v4333 = vand.u32 %v3688, 4294901760
  %v4334 = vsub.f32 %v3688, %v4333
  %v4335 = vand.u32 %v4334, 4294901760
  %v4336 = vsub.f32 %v4334, %v4335
  %v4337 = vand.u32 %v4336, 4294901760
  %4338 = vmatmul.mubr.f32.gmra.mrb[0].mxu0 %v4337
  %v4339 = vpop.f32.mrb[0].mxu0
  %v4340 = vadd.f32 %v3470, %v4339
  %v4341 = vpop.f32.mrb[0].mxu0
  %4342 = vmatprep.mubr.f32.mxu0 0.0
  %v4343 = vand.u32 %v3691, 4294901760
  %v4344 = vsub.f32 %v3691, %v4343
  %v4345 = vand.u32 %v4344, 4294901760
  %v4346 = vsub.f32 %v4344, %v4345
  %v4347 = vand.u32 %v4346, 4294901760
  %4348 = vmatmul.mubr.f32.gmra.mrb[0].mxu0 %v4347
  %v4349 = vpop.f32.mrb[0].mxu0
  %v4350 = vadd.f32 %v3476, %v4349
  %v4351 = vpop.f32.mrb[0].mxu0
  %4352 = vmatprep.mubr.f32.mxu0 0.0
  %v4353 = vand.u32 %v3694, 4294901760
  %v4354 = vsub.f32 %v3694, %v4353
  %v4355 = vand.u32 %v4354, 4294901760
  %v4356 = vsub.f32 %v4354, %v4355
  %v4357 = vand.u32 %v4356, 4294901760
  %4358 = vmatmul.mubr.f32.gmra.mrb[0].mxu0 %v4357
  %v4359 = vpop.f32.mrb[0].mxu0
  %v4360 = vadd.f32 %v3482, %v4359
  %v4361 = vpop.f32.mrb[0].mxu0
  %4362 = vmatprep.mubr.f32.mxu0 0.0
  %v4363 = vand.u32 %v3697, 4294901760
  %v4364 = vsub.f32 %v3697, %v4363
  %v4365 = vand.u32 %v4364, 4294901760
  %v4366 = vsub.f32 %v4364, %v4365
  %v4367 = vand.u32 %v4366, 4294901760
  %4368 = vmatmul.mubr.f32.gmra.mrb[0].mxu0 %v4367
  %v4369 = vpop.f32.mrb[0].mxu0
  %v4370 = vadd.f32 %v3488, %v4369
  %v4371 = vpop.f32.mrb[0].mxu0
  %4372 = vmatprep.mubr.f32.mxu0 0.0
  %v4373 = vand.u32 %v3700, 4294901760
  %v4374 = vsub.f32 %v3700, %v4373
  %v4375 = vand.u32 %v4374, 4294901760
  %v4376 = vsub.f32 %v4374, %v4375
  %v4377 = vand.u32 %v4376, 4294901760
  %4378 = vmatmul.mubr.f32.gmra.mrb[0].mxu0 %v4377
  %v4379 = vpop.f32.mrb[0].mxu0
  %v4380 = vadd.f32 %v3494, %v4379
  %v4381 = vpop.f32.mrb[0].mxu0
  %4382 = vmatprep.mubr.f32.mxu0 0.0
  %v4383 = vand.u32 %v3703, 4294901760
  %v4384 = vsub.f32 %v3703, %v4383
  %v4385 = vand.u32 %v4384, 4294901760
  %v4386 = vsub.f32 %v4384, %v4385
  %v4387 = vand.u32 %v4386, 4294901760
  %4388 = vmatmul.mubr.f32.gmra.mrb[0].mxu0 %v4387
  %v4389 = vpop.f32.mrb[0].mxu0
  %v4390 = vadd.f32 %v3500, %v4389
  %v4391 = vpop.f32.mrb[0].mxu0
  %4392 = vmatprep.mubr.f32.mxu0 0.0
  %v4393 = vand.u32 %v3706, 4294901760
  %v4394 = vsub.f32 %v3706, %v4393
  %v4395 = vand.u32 %v4394, 4294901760
  %v4396 = vsub.f32 %v4394, %v4395
  %v4397 = vand.u32 %v4396, 4294901760
  %4398 = vmatmul.mubr.f32.gmra.mrb[0].mxu0 %v4397
  %v4399 = vpop.f32.mrb[0].mxu0
  %v4400 = vadd.f32 %v3506, %v4399
  %v4401 = vpop.f32.mrb[0].mxu0
  %4402 = vmatprep.mubr.f32.mxu0 0.0
  %v4403 = vand.u32 %v3709, 4294901760
  %v4404 = vsub.f32 %v3709, %v4403
  %v4405 = vand.u32 %v4404, 4294901760
  %v4406 = vsub.f32 %v4404, %v4405
  %v4407 = vand.u32 %v4406, 4294901760
  %4408 = vmatmul.mubr.f32.gmra.mrb[0].mxu0 %v4407
  %v4409 = vpop.f32.mrb[0].mxu0
  %v4410 = vadd.f32 %v3512, %v4409
  %v4411 = vpop.f32.mrb[0].mxu0
  %4412 = vmatprep.mubr.f32.mxu0 0.0
  %v4413 = vand.u32 %v3712, 4294901760
  %v4414 = vsub.f32 %v3712, %v4413
  %v4415 = vand.u32 %v4414, 4294901760
  %v4416 = vsub.f32 %v4414, %v4415
  %v4417 = vand.u32 %v4416, 4294901760
  %4418 = vmatmul.mubr.f32.gmra.mrb[0].mxu0 %v4417
  %v4419 = vpop.f32.mrb[0].mxu0
  %v4420 = vadd.f32 %v3518, %v4419
  %v4421 = vpop.f32.mrb[0].mxu0
  %4422 = vdwg.mxu0
  %4423 = vmatprep.subr.mxu0 0.0
  %v4424 = vand.u32 %v32, 4294901760
  %v4425 = vsub.f32 %v32, %v4424
  %v4426 = vand.u32 %v4425, 4294901760
  %v4427 = vsub.f32 %v4425, %v4426
  %v4428 = vand.u32 %v4427, 4294901760
  %4429 = vmatpush1.msra.mxu0 %v4428
  %4430 = vmatprep.subr.mxu0 0.0
  %v4431 = vand.u32 %v33, 4294901760
  %v4432 = vsub.f32 %v33, %v4431
  %v4433 = vand.u32 %v4432, 4294901760
  %v4434 = vsub.f32 %v4432, %v4433
  %v4435 = vand.u32 %v4434, 4294901760
  %4436 = vmatpush1.msra.mxu0 %v4435
  %4437 = vmatprep.subr.mxu0 0.0
  %v4438 = vand.u32 %v34, 4294901760
  %v4439 = vsub.f32 %v34, %v4438
  %v4440 = vand.u32 %v4439, 4294901760
  %v4441 = vsub.f32 %v4439, %v4440
  %v4442 = vand.u32 %v4441, 4294901760
  %4443 = vmatpush1.msra.mxu0 %v4442
  %4444 = vmatprep.subr.mxu0 0.0
  %v4445 = vand.u32 %v35, 4294901760
  %v4446 = vsub.f32 %v35, %v4445
  %v4447 = vand.u32 %v4446, 4294901760
  %v4448 = vsub.f32 %v4446, %v4447
  %v4449 = vand.u32 %v4448, 4294901760
  %4450 = vmatpush1.msra.mxu0 %v4449
  %4451 = vmatprep.subr.mxu0 0.0
  %4452 = vmatpush1.msra.mxu0 0.0
  %4453 = vmatprep.subr.mxu0 0.0
  %4454 = vmatpush1.msra.mxu0 0.0
  %4455 = vmatprep.subr.mxu0 0.0
  %4456 = vmatpush1.msra.mxu0 0.0
  %4457 = vmatprep.subr.mxu0 0.0
  %4458 = vmatpush1.msra.mxu0 0.0
  %4459 = vmatprep.subr.mxu0 0.0
  %4460 = vmatpush1.msra.mxu0 0.0
  %4461 = vmatprep.subr.mxu0 0.0
  %4462 = vmatpush1.msra.mxu0 0.0
  %4463 = vmatprep.subr.mxu0 0.0
  %4464 = vmatpush1.msra.mxu0 0.0
  %4465 = vmatprep.subr.mxu0 0.0
  %4466 = vmatpush1.msra.mxu0 0.0
  %4467 = vmatprep.subr.mxu0 0.0
  %4468 = vmatpush1.msra.mxu0 0.0
  %4469 = vmatprep.subr.mxu0 0.0
  %4470 = vmatpush1.msra.mxu0 0.0
  %4471 = vmatprep.subr.mxu0 0.0
  %4472 = vmatpush1.msra.mxu0 0.0
  %4473 = vmatprep.subr.mxu0 0.0
  %4474 = vmatpush1.msra.mxu0 0.0
  %4475 = vmatprep.subr.mxu0 0.0
  %4476 = vmatpush1.msra.mxu0 0.0
  %4477 = vmatprep.subr.mxu0 0.0
  %4478 = vmatpush1.msra.mxu0 0.0
  %4479 = vmatprep.subr.mxu0 0.0
  %4480 = vmatpush1.msra.mxu0 0.0
  %4481 = vmatprep.subr.mxu0 0.0
  %4482 = vmatpush1.msra.mxu0 0.0
  %4483 = vmatprep.subr.mxu0 0.0
  %4484 = vmatpush1.msra.mxu0 0.0
  %4485 = vmatprep.subr.mxu0 0.0
  %4486 = vmatpush1.msra.mxu0 0.0
  %4487 = vmatprep.subr.mxu0 0.0
  %4488 = vmatpush1.msra.mxu0 0.0
  %4489 = vmatprep.subr.mxu0 0.0
  %4490 = vmatpush1.msra.mxu0 0.0
  %4491 = vmatprep.subr.mxu0 0.0
  %4492 = vmatpush1.msra.mxu0 0.0
  %4493 = vmatprep.subr.mxu0 0.0
  %4494 = vmatpush1.msra.mxu0 0.0
  %4495 = vmatprep.subr.mxu0 0.0
  %4496 = vmatpush1.msra.mxu0 0.0
  %4497 = vmatprep.subr.mxu0 0.0
  %4498 = vmatpush1.msra.mxu0 0.0
  %4499 = vmatprep.subr.mxu0 0.0
  %4500 = vmatpush1.msra.mxu0 0.0
  %4501 = vmatprep.subr.mxu0 0.0
  %4502 = vmatpush1.msra.mxu0 0.0
  %4503 = vmatprep.subr.mxu0 0.0
  %4504 = vmatpush1.msra.mxu0 0.0
  %4505 = vmatprep.subr.mxu0 0.0
  %4506 = vmatpush1.msra.mxu0 0.0
  %4507 = vmatprep.mubr.f32.mxu0 0.0
  %v4508 = vand.u32 %v3523, 4294901760
  %4509 = vmatmul.mubr.f32.gmra.mrb[0].mxu0 %v4508
  %v4510 = vpop.f32.mrb[0].mxu0
  %v4511 = vadd.f32 %v3790, %v4510
  %v4512 = vpop.f32.mrb[0].mxu0
  %4513 = vmatprep.mubr.f32.mxu0 0.0
  %v4514 = vand.u32 %v3526, 4294901760
  %4515 = vmatmul.mubr.f32.gmra.mrb[0].mxu0 %v4514
  %v4516 = vpop.f32.mrb[0].mxu0
  %v4517 = vadd.f32 %v3800, %v4516
  %v4518 = vpop.f32.mrb[0].mxu0
  %4519 = vmatprep.mubr.f32.mxu0 0.0
  %v4520 = vand.u32 %v3529, 4294901760
  %4521 = vmatmul.mubr.f32.gmra.mrb[0].mxu0 %v4520
  %v4522 = vpop.f32.mrb[0].mxu0
  %v4523 = vadd.f32 %v3810, %v4522
  %v4524 = vpop.f32.mrb[0].mxu0
  %4525 = vmatprep.mubr.f32.mxu0 0.0
  %v4526 = vand.u32 %v3532, 4294901760
  %4527 = vmatmul.mubr.f32.gmra.mrb[0].mxu0 %v4526
  %v4528 = vpop.f32.mrb[0].mxu0
  %v4529 = vadd.f32 %v3820, %v4528
  %v4530 = vpop.f32.mrb[0].mxu0
  %4531 = vmatprep.mubr.f32.mxu0 0.0
  %v4532 = vand.u32 %v3535, 4294901760
  %4533 = vmatmul.mubr.f32.gmra.mrb[0].mxu0 %v4532
  %v4534 = vpop.f32.mrb[0].mxu0
  %v4535 = vadd.f32 %v3830, %v4534
  %v4536 = vpop.f32.mrb[0].mxu0
  %4537 = vmatprep.mubr.f32.mxu0 0.0
  %v4538 = vand.u32 %v3538, 4294901760
  %4539 = vmatmul.mubr.f32.gmra.mrb[0].mxu0 %v4538
  %v4540 = vpop.f32.mrb[0].mxu0
  %v4541 = vadd.f32 %v3840, %v4540
  %v4542 = vpop.f32.mrb[0].mxu0
  %4543 = vmatprep.mubr.f32.mxu0 0.0
  %v4544 = vand.u32 %v3541, 4294901760
  %4545 = vmatmul.mubr.f32.gmra.mrb[0].mxu0 %v4544
  %v4546 = vpop.f32.mrb[0].mxu0
  %v4547 = vadd.f32 %v3850, %v4546
  %v4548 = vpop.f32.mrb[0].mxu0
  %4549 = vmatprep.mubr.f32.mxu0 0.0
  %v4550 = vand.u32 %v3544, 4294901760
  %4551 = vmatmul.mubr.f32.gmra.mrb[0].mxu0 %v4550
  %v4552 = vpop.f32.mrb[0].mxu0
  %v4553 = vadd.f32 %v3860, %v4552
  %v4554 = vpop.f32.mrb[0].mxu0
  %4555 = vmatprep.mubr.f32.mxu0 0.0
  %v4556 = vand.u32 %v3547, 4294901760
  %4557 = vmatmul.mubr.f32.gmra.mrb[0].mxu0 %v4556
  %v4558 = vpop.f32.mrb[0].mxu0
  %v4559 = vadd.f32 %v3870, %v4558
  %v4560 = vpop.f32.mrb[0].mxu0
  %4561 = vmatprep.mubr.f32.mxu0 0.0
  %v4562 = vand.u32 %v3550, 4294901760
  %4563 = vmatmul.mubr.f32.gmra.mrb[0].mxu0 %v4562
  %v4564 = vpop.f32.mrb[0].mxu0
  %v4565 = vadd.f32 %v3880, %v4564
  %v4566 = vpop.f32.mrb[0].mxu0
  %4567 = vmatprep.mubr.f32.mxu0 0.0
  %v4568 = vand.u32 %v3553, 4294901760
  %4569 = vmatmul.mubr.f32.gmra.mrb[0].mxu0 %v4568
  %v4570 = vpop.f32.mrb[0].mxu0
  %v4571 = vadd.f32 %v3890, %v4570
  %v4572 = vpop.f32.mrb[0].mxu0
  %4573 = vmatprep.mubr.f32.mxu0 0.0
  %v4574 = vand.u32 %v3556, 4294901760
  %4575 = vmatmul.mubr.f32.gmra.mrb[0].mxu0 %v4574
  %v4576 = vpop.f32.mrb[0].mxu0
  %v4577 = vadd.f32 %v3900, %v4576
  %v4578 = vpop.f32.mrb[0].mxu0
  %4579 = vmatprep.mubr.f32.mxu0 0.0
  %v4580 = vand.u32 %v3559, 4294901760
  %4581 = vmatmul.mubr.f32.gmra.mrb[0].mxu0 %v4580
  %v4582 = vpop.f32.mrb[0].mxu0
  %v4583 = vadd.f32 %v3910, %v4582
  %v4584 = vpop.f32.mrb[0].mxu0
  %4585 = vmatprep.mubr.f32.mxu0 0.0
  %v4586 = vand.u32 %v3562, 4294901760
  %4587 = vmatmul.mubr.f32.gmra.mrb[0].mxu0 %v4586
  %v4588 = vpop.f32.mrb[0].mxu0
  %v4589 = vadd.f32 %v3920, %v4588
  %v4590 = vpop.f32.mrb[0].mxu0
  %4591 = vmatprep.mubr.f32.mxu0 0.0
  %v4592 = vand.u32 %v3565, 4294901760
  %4593 = vmatmul.mubr.f32.gmra.mrb[0].mxu0 %v4592
  %v4594 = vpop.f32.mrb[0].mxu0
  %v4595 = vadd.f32 %v3930, %v4594
  %v4596 = vpop.f32.mrb[0].mxu0
  %4597 = vmatprep.mubr.f32.mxu0 0.0
  %v4598 = vand.u32 %v3568, 4294901760
  %4599 = vmatmul.mubr.f32.gmra.mrb[0].mxu0 %v4598
  %v4600 = vpop.f32.mrb[0].mxu0
  %v4601 = vadd.f32 %v3940, %v4600
  %v4602 = vpop.f32.mrb[0].mxu0
  %4603 = vmatprep.mubr.f32.mxu0 0.0
  %v4604 = vand.u32 %v3571, 4294901760
  %4605 = vmatmul.mubr.f32.gmra.mrb[0].mxu0 %v4604
  %v4606 = vpop.f32.mrb[0].mxu0
  %v4607 = vadd.f32 %v3950, %v4606
  %v4608 = vpop.f32.mrb[0].mxu0
  %4609 = vmatprep.mubr.f32.mxu0 0.0
  %v4610 = vand.u32 %v3574, 4294901760
  %4611 = vmatmul.mubr.f32.gmra.mrb[0].mxu0 %v4610
  %v4612 = vpop.f32.mrb[0].mxu0
  %v4613 = vadd.f32 %v3960, %v4612
  %v4614 = vpop.f32.mrb[0].mxu0
  %4615 = vmatprep.mubr.f32.mxu0 0.0
  %v4616 = vand.u32 %v3577, 4294901760
  %4617 = vmatmul.mubr.f32.gmra.mrb[0].mxu0 %v4616
  %v4618 = vpop.f32.mrb[0].mxu0
  %v4619 = vadd.f32 %v3970, %v4618
  %v4620 = vpop.f32.mrb[0].mxu0
  %4621 = vmatprep.mubr.f32.mxu0 0.0
  %v4622 = vand.u32 %v3580, 4294901760
  %4623 = vmatmul.mubr.f32.gmra.mrb[0].mxu0 %v4622
  %v4624 = vpop.f32.mrb[0].mxu0
  %v4625 = vadd.f32 %v3980, %v4624
  %v4626 = vpop.f32.mrb[0].mxu0
  %4627 = vmatprep.mubr.f32.mxu0 0.0
  %v4628 = vand.u32 %v3583, 4294901760
  %4629 = vmatmul.mubr.f32.gmra.mrb[0].mxu0 %v4628
  %v4630 = vpop.f32.mrb[0].mxu0
  %v4631 = vadd.f32 %v3990, %v4630
  %v4632 = vpop.f32.mrb[0].mxu0
  %4633 = vmatprep.mubr.f32.mxu0 0.0
  %v4634 = vand.u32 %v3586, 4294901760
  %4635 = vmatmul.mubr.f32.gmra.mrb[0].mxu0 %v4634
  %v4636 = vpop.f32.mrb[0].mxu0
  %v4637 = vadd.f32 %v4000, %v4636
  %v4638 = vpop.f32.mrb[0].mxu0
  %4639 = vmatprep.mubr.f32.mxu0 0.0
  %v4640 = vand.u32 %v3589, 4294901760
  %4641 = vmatmul.mubr.f32.gmra.mrb[0].mxu0 %v4640
  %v4642 = vpop.f32.mrb[0].mxu0
  %v4643 = vadd.f32 %v4010, %v4642
  %v4644 = vpop.f32.mrb[0].mxu0
  %4645 = vmatprep.mubr.f32.mxu0 0.0
  %v4646 = vand.u32 %v3592, 4294901760
  %4647 = vmatmul.mubr.f32.gmra.mrb[0].mxu0 %v4646
  %v4648 = vpop.f32.mrb[0].mxu0
  %v4649 = vadd.f32 %v4020, %v4648
  %v4650 = vpop.f32.mrb[0].mxu0
  %4651 = vmatprep.mubr.f32.mxu0 0.0
  %v4652 = vand.u32 %v3595, 4294901760
  %4653 = vmatmul.mubr.f32.gmra.mrb[0].mxu0 %v4652
  %v4654 = vpop.f32.mrb[0].mxu0
  %v4655 = vadd.f32 %v4030, %v4654
  %v4656 = vpop.f32.mrb[0].mxu0
  %4657 = vmatprep.mubr.f32.mxu0 0.0
  %v4658 = vand.u32 %v3598, 4294901760
  %4659 = vmatmul.mubr.f32.gmra.mrb[0].mxu0 %v4658
  %v4660 = vpop.f32.mrb[0].mxu0
  %v4661 = vadd.f32 %v4040, %v4660
  %v4662 = vpop.f32.mrb[0].mxu0
  %4663 = vmatprep.mubr.f32.mxu0 0.0
  %v4664 = vand.u32 %v3601, 4294901760
  %4665 = vmatmul.mubr.f32.gmra.mrb[0].mxu0 %v4664
  %v4666 = vpop.f32.mrb[0].mxu0
  %v4667 = vadd.f32 %v4050, %v4666
  %v4668 = vpop.f32.mrb[0].mxu0
  %4669 = vmatprep.mubr.f32.mxu0 0.0
  %v4670 = vand.u32 %v3604, 4294901760
  %4671 = vmatmul.mubr.f32.gmra.mrb[0].mxu0 %v4670
  %v4672 = vpop.f32.mrb[0].mxu0
  %v4673 = vadd.f32 %v4060, %v4672
  %v4674 = vpop.f32.mrb[0].mxu0
  %4675 = vmatprep.mubr.f32.mxu0 0.0
  %v4676 = vand.u32 %v3607, 4294901760
  %4677 = vmatmul.mubr.f32.gmra.mrb[0].mxu0 %v4676
  %v4678 = vpop.f32.mrb[0].mxu0
  %v4679 = vadd.f32 %v4070, %v4678
  %v4680 = vpop.f32.mrb[0].mxu0
  %4681 = vmatprep.mubr.f32.mxu0 0.0
  %v4682 = vand.u32 %v3610, 4294901760
  %4683 = vmatmul.mubr.f32.gmra.mrb[0].mxu0 %v4682
  %v4684 = vpop.f32.mrb[0].mxu0
  %v4685 = vadd.f32 %v4080, %v4684
  %v4686 = vpop.f32.mrb[0].mxu0
  %4687 = vmatprep.mubr.f32.mxu0 0.0
  %v4688 = vand.u32 %v3613, 4294901760
  %4689 = vmatmul.mubr.f32.gmra.mrb[0].mxu0 %v4688
  %v4690 = vpop.f32.mrb[0].mxu0
  %v4691 = vadd.f32 %v4090, %v4690
  %v4692 = vpop.f32.mrb[0].mxu0
  %4693 = vmatprep.mubr.f32.mxu0 0.0
  %v4694 = vand.u32 %v3616, 4294901760
  %4695 = vmatmul.mubr.f32.gmra.mrb[0].mxu0 %v4694
  %v4696 = vpop.f32.mrb[0].mxu0
  %v4697 = vadd.f32 %v4100, %v4696
  %v4698 = vpop.f32.mrb[0].mxu0
  %4699 = vmatprep.mubr.f32.mxu0 0.0
  %v4700 = vand.u32 %v3619, 4294901760
  %4701 = vmatmul.mubr.f32.gmra.mrb[0].mxu0 %v4700
  %v4702 = vpop.f32.mrb[0].mxu0
  %v4703 = vadd.f32 %v4110, %v4702
  %v4704 = vpop.f32.mrb[0].mxu0
  %4705 = vmatprep.mubr.f32.mxu0 0.0
  %v4706 = vand.u32 %v3622, 4294901760
  %4707 = vmatmul.mubr.f32.gmra.mrb[0].mxu0 %v4706
  %v4708 = vpop.f32.mrb[0].mxu0
  %v4709 = vadd.f32 %v4120, %v4708
  %v4710 = vpop.f32.mrb[0].mxu0
  %4711 = vmatprep.mubr.f32.mxu0 0.0
  %v4712 = vand.u32 %v3625, 4294901760
  %4713 = vmatmul.mubr.f32.gmra.mrb[0].mxu0 %v4712
  %v4714 = vpop.f32.mrb[0].mxu0
  %v4715 = vadd.f32 %v4130, %v4714
  %v4716 = vpop.f32.mrb[0].mxu0
  %4717 = vmatprep.mubr.f32.mxu0 0.0
  %v4718 = vand.u32 %v3628, 4294901760
  %4719 = vmatmul.mubr.f32.gmra.mrb[0].mxu0 %v4718
  %v4720 = vpop.f32.mrb[0].mxu0
  %v4721 = vadd.f32 %v4140, %v4720
  %v4722 = vpop.f32.mrb[0].mxu0
  %4723 = vmatprep.mubr.f32.mxu0 0.0
  %v4724 = vand.u32 %v3631, 4294901760
  %4725 = vmatmul.mubr.f32.gmra.mrb[0].mxu0 %v4724
  %v4726 = vpop.f32.mrb[0].mxu0
  %v4727 = vadd.f32 %v4150, %v4726
  %v4728 = vpop.f32.mrb[0].mxu0
  %4729 = vmatprep.mubr.f32.mxu0 0.0
  %v4730 = vand.u32 %v3634, 4294901760
  %4731 = vmatmul.mubr.f32.gmra.mrb[0].mxu0 %v4730
  %v4732 = vpop.f32.mrb[0].mxu0
  %v4733 = vadd.f32 %v4160, %v4732
  %v4734 = vpop.f32.mrb[0].mxu0
  %4735 = vmatprep.mubr.f32.mxu0 0.0
  %v4736 = vand.u32 %v3637, 4294901760
  %4737 = vmatmul.mubr.f32.gmra.mrb[0].mxu0 %v4736
  %v4738 = vpop.f32.mrb[0].mxu0
  %v4739 = vadd.f32 %v4170, %v4738
  %v4740 = vpop.f32.mrb[0].mxu0
  %4741 = vmatprep.mubr.f32.mxu0 0.0
  %v4742 = vand.u32 %v3640, 4294901760
  %4743 = vmatmul.mubr.f32.gmra.mrb[0].mxu0 %v4742
  %v4744 = vpop.f32.mrb[0].mxu0
  %v4745 = vadd.f32 %v4180, %v4744
  %v4746 = vpop.f32.mrb[0].mxu0
  %4747 = vmatprep.mubr.f32.mxu0 0.0
  %v4748 = vand.u32 %v3643, 4294901760
  %4749 = vmatmul.mubr.f32.gmra.mrb[0].mxu0 %v4748
  %v4750 = vpop.f32.mrb[0].mxu0
  %v4751 = vadd.f32 %v4190, %v4750
  %v4752 = vpop.f32.mrb[0].mxu0
  %4753 = vmatprep.mubr.f32.mxu0 0.0
  %v4754 = vand.u32 %v3646, 4294901760
  %4755 = vmatmul.mubr.f32.gmra.mrb[0].mxu0 %v4754
  %v4756 = vpop.f32.mrb[0].mxu0
  %v4757 = vadd.f32 %v4200, %v4756
  %v4758 = vpop.f32.mrb[0].mxu0
  %4759 = vmatprep.mubr.f32.mxu0 0.0
  %v4760 = vand.u32 %v3649, 4294901760
  %4761 = vmatmul.mubr.f32.gmra.mrb[0].mxu0 %v4760
  %v4762 = vpop.f32.mrb[0].mxu0
  %v4763 = vadd.f32 %v4210, %v4762
  %v4764 = vpop.f32.mrb[0].mxu0
  %4765 = vmatprep.mubr.f32.mxu0 0.0
  %v4766 = vand.u32 %v3652, 4294901760
  %4767 = vmatmul.mubr.f32.gmra.mrb[0].mxu0 %v4766
  %v4768 = vpop.f32.mrb[0].mxu0
  %v4769 = vadd.f32 %v4220, %v4768
  %v4770 = vpop.f32.mrb[0].mxu0
  %4771 = vmatprep.mubr.f32.mxu0 0.0
  %v4772 = vand.u32 %v3655, 4294901760
  %4773 = vmatmul.mubr.f32.gmra.mrb[0].mxu0 %v4772
  %v4774 = vpop.f32.mrb[0].mxu0
  %v4775 = vadd.f32 %v4230, %v4774
  %v4776 = vpop.f32.mrb[0].mxu0
  %4777 = vmatprep.mubr.f32.mxu0 0.0
  %v4778 = vand.u32 %v3658, 4294901760
  %4779 = vmatmul.mubr.f32.gmra.mrb[0].mxu0 %v4778
  %v4780 = vpop.f32.mrb[0].mxu0
  %v4781 = vadd.f32 %v4240, %v4780
  %v4782 = vpop.f32.mrb[0].mxu0
  %4783 = vmatprep.mubr.f32.mxu0 0.0
  %v4784 = vand.u32 %v3661, 4294901760
  %4785 = vmatmul.mubr.f32.gmra.mrb[0].mxu0 %v4784
  %v4786 = vpop.f32.mrb[0].mxu0
  %v4787 = vadd.f32 %v4250, %v4786
  %v4788 = vpop.f32.mrb[0].mxu0
  %4789 = vmatprep.mubr.f32.mxu0 0.0
  %v4790 = vand.u32 %v3664, 4294901760
  %4791 = vmatmul.mubr.f32.gmra.mrb[0].mxu0 %v4790
  %v4792 = vpop.f32.mrb[0].mxu0
  %v4793 = vadd.f32 %v4260, %v4792
  %v4794 = vpop.f32.mrb[0].mxu0
  %4795 = vmatprep.mubr.f32.mxu0 0.0
  %v4796 = vand.u32 %v3667, 4294901760
  %4797 = vmatmul.mubr.f32.gmra.mrb[0].mxu0 %v4796
  %v4798 = vpop.f32.mrb[0].mxu0
  %v4799 = vadd.f32 %v4270, %v4798
  %v4800 = vpop.f32.mrb[0].mxu0
  %4801 = vmatprep.mubr.f32.mxu0 0.0
  %v4802 = vand.u32 %v3670, 4294901760
  %4803 = vmatmul.mubr.f32.gmra.mrb[0].mxu0 %v4802
  %v4804 = vpop.f32.mrb[0].mxu0
  %v4805 = vadd.f32 %v4280, %v4804
  %v4806 = vpop.f32.mrb[0].mxu0
  %4807 = vmatprep.mubr.f32.mxu0 0.0
  %v4808 = vand.u32 %v3673, 4294901760
  %4809 = vmatmul.mubr.f32.gmra.mrb[0].mxu0 %v4808
  %v4810 = vpop.f32.mrb[0].mxu0
  %v4811 = vadd.f32 %v4290, %v4810
  %v4812 = vpop.f32.mrb[0].mxu0
  %4813 = vmatprep.mubr.f32.mxu0 0.0
  %v4814 = vand.u32 %v3676, 4294901760
  %4815 = vmatmul.mubr.f32.gmra.mrb[0].mxu0 %v4814
  %v4816 = vpop.f32.mrb[0].mxu0
  %v4817 = vadd.f32 %v4300, %v4816
  %v4818 = vpop.f32.mrb[0].mxu0
  %4819 = vmatprep.mubr.f32.mxu0 0.0
  %v4820 = vand.u32 %v3679, 4294901760
  %4821 = vmatmul.mubr.f32.gmra.mrb[0].mxu0 %v4820
  %v4822 = vpop.f32.mrb[0].mxu0
  %v4823 = vadd.f32 %v4310, %v4822
  %v4824 = vpop.f32.mrb[0].mxu0
  %4825 = vmatprep.mubr.f32.mxu0 0.0
  %v4826 = vand.u32 %v3682, 4294901760
  %4827 = vmatmul.mubr.f32.gmra.mrb[0].mxu0 %v4826
  %v4828 = vpop.f32.mrb[0].mxu0
  %v4829 = vadd.f32 %v4320, %v4828
  %v4830 = vpop.f32.mrb[0].mxu0
  %4831 = vmatprep.mubr.f32.mxu0 0.0
  %v4832 = vand.u32 %v3685, 4294901760
  %4833 = vmatmul.mubr.f32.gmra.mrb[0].mxu0 %v4832
  %v4834 = vpop.f32.mrb[0].mxu0
  %v4835 = vadd.f32 %v4330, %v4834
  %v4836 = vpop.f32.mrb[0].mxu0
  %4837 = vmatprep.mubr.f32.mxu0 0.0
  %v4838 = vand.u32 %v3688, 4294901760
  %4839 = vmatmul.mubr.f32.gmra.mrb[0].mxu0 %v4838
  %v4840 = vpop.f32.mrb[0].mxu0
  %v4841 = vadd.f32 %v4340, %v4840
  %v4842 = vpop.f32.mrb[0].mxu0
  %4843 = vmatprep.mubr.f32.mxu0 0.0
  %v4844 = vand.u32 %v3691, 4294901760
  %4845 = vmatmul.mubr.f32.gmra.mrb[0].mxu0 %v4844
  %v4846 = vpop.f32.mrb[0].mxu0
  %v4847 = vadd.f32 %v4350, %v4846
  %v4848 = vpop.f32.mrb[0].mxu0
  %4849 = vmatprep.mubr.f32.mxu0 0.0
  %v4850 = vand.u32 %v3694, 4294901760
  %4851 = vmatmul.mubr.f32.gmra.mrb[0].mxu0 %v4850
  %v4852 = vpop.f32.mrb[0].mxu0
  %v4853 = vadd.f32 %v4360, %v4852
  %v4854 = vpop.f32.mrb[0].mxu0
  %4855 = vmatprep.mubr.f32.mxu0 0.0
  %v4856 = vand.u32 %v3697, 4294901760
  %4857 = vmatmul.mubr.f32.gmra.mrb[0].mxu0 %v4856
  %v4858 = vpop.f32.mrb[0].mxu0
  %v4859 = vadd.f32 %v4370, %v4858
  %v4860 = vpop.f32.mrb[0].mxu0
  %4861 = vmatprep.mubr.f32.mxu0 0.0
  %v4862 = vand.u32 %v3700, 4294901760
  %4863 = vmatmul.mubr.f32.gmra.mrb[0].mxu0 %v4862
  %v4864 = vpop.f32.mrb[0].mxu0
  %v4865 = vadd.f32 %v4380, %v4864
  %v4866 = vpop.f32.mrb[0].mxu0
  %4867 = vmatprep.mubr.f32.mxu0 0.0
  %v4868 = vand.u32 %v3703, 4294901760
  %4869 = vmatmul.mubr.f32.gmra.mrb[0].mxu0 %v4868
  %v4870 = vpop.f32.mrb[0].mxu0
  %v4871 = vadd.f32 %v4390, %v4870
  %v4872 = vpop.f32.mrb[0].mxu0
  %4873 = vmatprep.mubr.f32.mxu0 0.0
  %v4874 = vand.u32 %v3706, 4294901760
  %4875 = vmatmul.mubr.f32.gmra.mrb[0].mxu0 %v4874
  %v4876 = vpop.f32.mrb[0].mxu0
  %v4877 = vadd.f32 %v4400, %v4876
  %v4878 = vpop.f32.mrb[0].mxu0
  %4879 = vmatprep.mubr.f32.mxu0 0.0
  %v4880 = vand.u32 %v3709, 4294901760
  %4881 = vmatmul.mubr.f32.gmra.mrb[0].mxu0 %v4880
  %v4882 = vpop.f32.mrb[0].mxu0
  %v4883 = vadd.f32 %v4410, %v4882
  %v4884 = vpop.f32.mrb[0].mxu0
  %4885 = vmatprep.mubr.f32.mxu0 0.0
  %v4886 = vand.u32 %v3712, 4294901760
  %4887 = vmatmul.mubr.f32.gmra.mrb[0].mxu0 %v4886
  %v4888 = vpop.f32.mrb[0].mxu0
  %v4889 = vadd.f32 %v4420, %v4888
  %v4890 = vpop.f32.mrb[0].mxu0
  %4891 = vdwg.mxu0
  %4892 = vmatprep.subr.mxu0 0.0
  %v4893 = vand.u32 %v32, 4294901760
  %v4894 = vsub.f32 %v32, %v4893
  %4895 = vmatpush1.msra.mxu0 %v4894
  %4896 = vmatprep.subr.mxu0 0.0
  %v4897 = vand.u32 %v33, 4294901760
  %v4898 = vsub.f32 %v33, %v4897
  %4899 = vmatpush1.msra.mxu0 %v4898
  %4900 = vmatprep.subr.mxu0 0.0
  %v4901 = vand.u32 %v34, 4294901760
  %v4902 = vsub.f32 %v34, %v4901
  %4903 = vmatpush1.msra.mxu0 %v4902
  %4904 = vmatprep.subr.mxu0 0.0
  %v4905 = vand.u32 %v35, 4294901760
  %v4906 = vsub.f32 %v35, %v4905
  %4907 = vmatpush1.msra.mxu0 %v4906
  %4908 = vmatprep.subr.mxu0 0.0
  %4909 = vmatpush1.msra.mxu0 0.0
  %4910 = vmatprep.subr.mxu0 0.0
  %4911 = vmatpush1.msra.mxu0 0.0
  %4912 = vmatprep.subr.mxu0 0.0
  %4913 = vmatpush1.msra.mxu0 0.0
  %4914 = vmatprep.subr.mxu0 0.0
  %4915 = vmatpush1.msra.mxu0 0.0
  %4916 = vmatprep.subr.mxu0 0.0
  %4917 = vmatpush1.msra.mxu0 0.0
  %4918 = vmatprep.subr.mxu0 0.0
  %4919 = vmatpush1.msra.mxu0 0.0
  %4920 = vmatprep.subr.mxu0 0.0
  %4921 = vmatpush1.msra.mxu0 0.0
  %4922 = vmatprep.subr.mxu0 0.0
  %4923 = vmatpush1.msra.mxu0 0.0
  %4924 = vmatprep.subr.mxu0 0.0
  %4925 = vmatpush1.msra.mxu0 0.0
  %4926 = vmatprep.subr.mxu0 0.0
  %4927 = vmatpush1.msra.mxu0 0.0
  %4928 = vmatprep.subr.mxu0 0.0
  %4929 = vmatpush1.msra.mxu0 0.0
  %4930 = vmatprep.subr.mxu0 0.0
  %4931 = vmatpush1.msra.mxu0 0.0
  %4932 = vmatprep.subr.mxu0 0.0
  %4933 = vmatpush1.msra.mxu0 0.0
  %4934 = vmatprep.subr.mxu0 0.0
  %4935 = vmatpush1.msra.mxu0 0.0
  %4936 = vmatprep.subr.mxu0 0.0
  %4937 = vmatpush1.msra.mxu0 0.0
  %4938 = vmatprep.subr.mxu0 0.0
  %4939 = vmatpush1.msra.mxu0 0.0
  %4940 = vmatprep.subr.mxu0 0.0
  %4941 = vmatpush1.msra.mxu0 0.0
  %4942 = vmatprep.subr.mxu0 0.0
  %4943 = vmatpush1.msra.mxu0 0.0
  %4944 = vmatprep.subr.mxu0 0.0
  %4945 = vmatpush1.msra.mxu0 0.0
  %4946 = vmatprep.subr.mxu0 0.0
  %4947 = vmatpush1.msra.mxu0 0.0
  %4948 = vmatprep.subr.mxu0 0.0
  %4949 = vmatpush1.msra.mxu0 0.0
  %4950 = vmatprep.subr.mxu0 0.0
  %4951 = vmatpush1.msra.mxu0 0.0
  %4952 = vmatprep.subr.mxu0 0.0
  %4953 = vmatpush1.msra.mxu0 0.0
  %4954 = vmatprep.subr.mxu0 0.0
  %4955 = vmatpush1.msra.mxu0 0.0
  %4956 = vmatprep.subr.mxu0 0.0
  %4957 = vmatpush1.msra.mxu0 0.0
  %4958 = vmatprep.subr.mxu0 0.0
  %4959 = vmatpush1.msra.mxu0 0.0
  %4960 = vmatprep.subr.mxu0 0.0
  %4961 = vmatpush1.msra.mxu0 0.0
  %4962 = vmatprep.subr.mxu0 0.0
  %4963 = vmatpush1.msra.mxu0 0.0
  %4964 = vmatprep.mubr.f32.mxu0 0.0
  %v4965 = vand.u32 %v3523, 4294901760
  %v4966 = vsub.f32 %v3523, %v4965
  %4967 = vmatmul.mubr.f32.gmra.mrb[0].mxu0 %v4966
  %v4968 = vpop.f32.mrb[0].mxu0
  %v4969 = vadd.f32 %v4511, %v4968
  %v4970 = vpop.f32.mrb[0].mxu0
  %4971 = vmatprep.mubr.f32.mxu0 0.0
  %v4972 = vand.u32 %v3526, 4294901760
  %v4973 = vsub.f32 %v3526, %v4972
  %4974 = vmatmul.mubr.f32.gmra.mrb[0].mxu0 %v4973
  %v4975 = vpop.f32.mrb[0].mxu0
  %v4976 = vadd.f32 %v4517, %v4975
  %v4977 = vpop.f32.mrb[0].mxu0
  %4978 = vmatprep.mubr.f32.mxu0 0.0
  %v4979 = vand.u32 %v3529, 4294901760
  %v4980 = vsub.f32 %v3529, %v4979
  %4981 = vmatmul.mubr.f32.gmra.mrb[0].mxu0 %v4980
  %v4982 = vpop.f32.mrb[0].mxu0
  %v4983 = vadd.f32 %v4523, %v4982
  %v4984 = vpop.f32.mrb[0].mxu0
  %4985 = vmatprep.mubr.f32.mxu0 0.0
  %v4986 = vand.u32 %v3532, 4294901760
  %v4987 = vsub.f32 %v3532, %v4986
  %4988 = vmatmul.mubr.f32.gmra.mrb[0].mxu0 %v4987
  %v4989 = vpop.f32.mrb[0].mxu0
  %v4990 = vadd.f32 %v4529, %v4989
  %v4991 = vpop.f32.mrb[0].mxu0
  %4992 = vmatprep.mubr.f32.mxu0 0.0
  %v4993 = vand.u32 %v3535, 4294901760
  %v4994 = vsub.f32 %v3535, %v4993
  %4995 = vmatmul.mubr.f32.gmra.mrb[0].mxu0 %v4994
  %v4996 = vpop.f32.mrb[0].mxu0
  %v4997 = vadd.f32 %v4535, %v4996
  %v4998 = vpop.f32.mrb[0].mxu0
  %4999 = vmatprep.mubr.f32.mxu0 0.0
  %v5000 = vand.u32 %v3538, 4294901760
  %v5001 = vsub.f32 %v3538, %v5000
  %5002 = vmatmul.mubr.f32.gmra.mrb[0].mxu0 %v5001
  %v5003 = vpop.f32.mrb[0].mxu0
  %v5004 = vadd.f32 %v4541, %v5003
  %v5005 = vpop.f32.mrb[0].mxu0
  %5006 = vmatprep.mubr.f32.mxu0 0.0
  %v5007 = vand.u32 %v3541, 4294901760
  %v5008 = vsub.f32 %v3541, %v5007
  %5009 = vmatmul.mubr.f32.gmra.mrb[0].mxu0 %v5008
  %v5010 = vpop.f32.mrb[0].mxu0
  %v5011 = vadd.f32 %v4547, %v5010
  %v5012 = vpop.f32.mrb[0].mxu0
  %5013 = vmatprep.mubr.f32.mxu0 0.0
  %v5014 = vand.u32 %v3544, 4294901760
  %v5015 = vsub.f32 %v3544, %v5014
  %5016 = vmatmul.mubr.f32.gmra.mrb[0].mxu0 %v5015
  %v5017 = vpop.f32.mrb[0].mxu0
  %v5018 = vadd.f32 %v4553, %v5017
  %v5019 = vpop.f32.mrb[0].mxu0
  %5020 = vmatprep.mubr.f32.mxu0 0.0
  %v5021 = vand.u32 %v3547, 4294901760
  %v5022 = vsub.f32 %v3547, %v5021
  %5023 = vmatmul.mubr.f32.gmra.mrb[0].mxu0 %v5022
  %v5024 = vpop.f32.mrb[0].mxu0
  %v5025 = vadd.f32 %v4559, %v5024
  %v5026 = vpop.f32.mrb[0].mxu0
  %5027 = vmatprep.mubr.f32.mxu0 0.0
  %v5028 = vand.u32 %v3550, 4294901760
  %v5029 = vsub.f32 %v3550, %v5028
  %5030 = vmatmul.mubr.f32.gmra.mrb[0].mxu0 %v5029
  %v5031 = vpop.f32.mrb[0].mxu0
  %v5032 = vadd.f32 %v4565, %v5031
  %v5033 = vpop.f32.mrb[0].mxu0
  %5034 = vmatprep.mubr.f32.mxu0 0.0
  %v5035 = vand.u32 %v3553, 4294901760
  %v5036 = vsub.f32 %v3553, %v5035
  %5037 = vmatmul.mubr.f32.gmra.mrb[0].mxu0 %v5036
  %v5038 = vpop.f32.mrb[0].mxu0
  %v5039 = vadd.f32 %v4571, %v5038
  %v5040 = vpop.f32.mrb[0].mxu0
  %5041 = vmatprep.mubr.f32.mxu0 0.0
  %v5042 = vand.u32 %v3556, 4294901760
  %v5043 = vsub.f32 %v3556, %v5042
  %5044 = vmatmul.mubr.f32.gmra.mrb[0].mxu0 %v5043
  %v5045 = vpop.f32.mrb[0].mxu0
  %v5046 = vadd.f32 %v4577, %v5045
  %v5047 = vpop.f32.mrb[0].mxu0
  %5048 = vmatprep.mubr.f32.mxu0 0.0
  %v5049 = vand.u32 %v3559, 4294901760
  %v5050 = vsub.f32 %v3559, %v5049
  %5051 = vmatmul.mubr.f32.gmra.mrb[0].mxu0 %v5050
  %v5052 = vpop.f32.mrb[0].mxu0
  %v5053 = vadd.f32 %v4583, %v5052
  %v5054 = vpop.f32.mrb[0].mxu0
  %5055 = vmatprep.mubr.f32.mxu0 0.0
  %v5056 = vand.u32 %v3562, 4294901760
  %v5057 = vsub.f32 %v3562, %v5056
  %5058 = vmatmul.mubr.f32.gmra.mrb[0].mxu0 %v5057
  %v5059 = vpop.f32.mrb[0].mxu0
  %v5060 = vadd.f32 %v4589, %v5059
  %v5061 = vpop.f32.mrb[0].mxu0
  %5062 = vmatprep.mubr.f32.mxu0 0.0
  %v5063 = vand.u32 %v3565, 4294901760
  %v5064 = vsub.f32 %v3565, %v5063
  %5065 = vmatmul.mubr.f32.gmra.mrb[0].mxu0 %v5064
  %v5066 = vpop.f32.mrb[0].mxu0
  %v5067 = vadd.f32 %v4595, %v5066
  %v5068 = vpop.f32.mrb[0].mxu0
  %5069 = vmatprep.mubr.f32.mxu0 0.0
  %v5070 = vand.u32 %v3568, 4294901760
  %v5071 = vsub.f32 %v3568, %v5070
  %5072 = vmatmul.mubr.f32.gmra.mrb[0].mxu0 %v5071
  %v5073 = vpop.f32.mrb[0].mxu0
  %v5074 = vadd.f32 %v4601, %v5073
  %v5075 = vpop.f32.mrb[0].mxu0
  %5076 = vmatprep.mubr.f32.mxu0 0.0
  %v5077 = vand.u32 %v3571, 4294901760
  %v5078 = vsub.f32 %v3571, %v5077
  %5079 = vmatmul.mubr.f32.gmra.mrb[0].mxu0 %v5078
  %v5080 = vpop.f32.mrb[0].mxu0
  %v5081 = vadd.f32 %v4607, %v5080
  %v5082 = vpop.f32.mrb[0].mxu0
  %5083 = vmatprep.mubr.f32.mxu0 0.0
  %v5084 = vand.u32 %v3574, 4294901760
  %v5085 = vsub.f32 %v3574, %v5084
  %5086 = vmatmul.mubr.f32.gmra.mrb[0].mxu0 %v5085
  %v5087 = vpop.f32.mrb[0].mxu0
  %v5088 = vadd.f32 %v4613, %v5087
  %v5089 = vpop.f32.mrb[0].mxu0
  %5090 = vmatprep.mubr.f32.mxu0 0.0
  %v5091 = vand.u32 %v3577, 4294901760
  %v5092 = vsub.f32 %v3577, %v5091
  %5093 = vmatmul.mubr.f32.gmra.mrb[0].mxu0 %v5092
  %v5094 = vpop.f32.mrb[0].mxu0
  %v5095 = vadd.f32 %v4619, %v5094
  %v5096 = vpop.f32.mrb[0].mxu0
  %5097 = vmatprep.mubr.f32.mxu0 0.0
  %v5098 = vand.u32 %v3580, 4294901760
  %v5099 = vsub.f32 %v3580, %v5098
  %5100 = vmatmul.mubr.f32.gmra.mrb[0].mxu0 %v5099
  %v5101 = vpop.f32.mrb[0].mxu0
  %v5102 = vadd.f32 %v4625, %v5101
  %v5103 = vpop.f32.mrb[0].mxu0
  %5104 = vmatprep.mubr.f32.mxu0 0.0
  %v5105 = vand.u32 %v3583, 4294901760
  %v5106 = vsub.f32 %v3583, %v5105
  %5107 = vmatmul.mubr.f32.gmra.mrb[0].mxu0 %v5106
  %v5108 = vpop.f32.mrb[0].mxu0
  %v5109 = vadd.f32 %v4631, %v5108
  %v5110 = vpop.f32.mrb[0].mxu0
  %5111 = vmatprep.mubr.f32.mxu0 0.0
  %v5112 = vand.u32 %v3586, 4294901760
  %v5113 = vsub.f32 %v3586, %v5112
  %5114 = vmatmul.mubr.f32.gmra.mrb[0].mxu0 %v5113
  %v5115 = vpop.f32.mrb[0].mxu0
  %v5116 = vadd.f32 %v4637, %v5115
  %v5117 = vpop.f32.mrb[0].mxu0
  %5118 = vmatprep.mubr.f32.mxu0 0.0
  %v5119 = vand.u32 %v3589, 4294901760
  %v5120 = vsub.f32 %v3589, %v5119
  %5121 = vmatmul.mubr.f32.gmra.mrb[0].mxu0 %v5120
  %v5122 = vpop.f32.mrb[0].mxu0
  %v5123 = vadd.f32 %v4643, %v5122
  %v5124 = vpop.f32.mrb[0].mxu0
  %5125 = vmatprep.mubr.f32.mxu0 0.0
  %v5126 = vand.u32 %v3592, 4294901760
  %v5127 = vsub.f32 %v3592, %v5126
  %5128 = vmatmul.mubr.f32.gmra.mrb[0].mxu0 %v5127
  %v5129 = vpop.f32.mrb[0].mxu0
  %v5130 = vadd.f32 %v4649, %v5129
  %v5131 = vpop.f32.mrb[0].mxu0
  %5132 = vmatprep.mubr.f32.mxu0 0.0
  %v5133 = vand.u32 %v3595, 4294901760
  %v5134 = vsub.f32 %v3595, %v5133
  %5135 = vmatmul.mubr.f32.gmra.mrb[0].mxu0 %v5134
  %v5136 = vpop.f32.mrb[0].mxu0
  %v5137 = vadd.f32 %v4655, %v5136
  %v5138 = vpop.f32.mrb[0].mxu0
  %5139 = vmatprep.mubr.f32.mxu0 0.0
  %v5140 = vand.u32 %v3598, 4294901760
  %v5141 = vsub.f32 %v3598, %v5140
  %5142 = vmatmul.mubr.f32.gmra.mrb[0].mxu0 %v5141
  %v5143 = vpop.f32.mrb[0].mxu0
  %v5144 = vadd.f32 %v4661, %v5143
  %v5145 = vpop.f32.mrb[0].mxu0
  %5146 = vmatprep.mubr.f32.mxu0 0.0
  %v5147 = vand.u32 %v3601, 4294901760
  %v5148 = vsub.f32 %v3601, %v5147
  %5149 = vmatmul.mubr.f32.gmra.mrb[0].mxu0 %v5148
  %v5150 = vpop.f32.mrb[0].mxu0
  %v5151 = vadd.f32 %v4667, %v5150
  %v5152 = vpop.f32.mrb[0].mxu0
  %5153 = vmatprep.mubr.f32.mxu0 0.0
  %v5154 = vand.u32 %v3604, 4294901760
  %v5155 = vsub.f32 %v3604, %v5154
  %5156 = vmatmul.mubr.f32.gmra.mrb[0].mxu0 %v5155
  %v5157 = vpop.f32.mrb[0].mxu0
  %v5158 = vadd.f32 %v4673, %v5157
  %v5159 = vpop.f32.mrb[0].mxu0
  %5160 = vmatprep.mubr.f32.mxu0 0.0
  %v5161 = vand.u32 %v3607, 4294901760
  %v5162 = vsub.f32 %v3607, %v5161
  %5163 = vmatmul.mubr.f32.gmra.mrb[0].mxu0 %v5162
  %v5164 = vpop.f32.mrb[0].mxu0
  %v5165 = vadd.f32 %v4679, %v5164
  %v5166 = vpop.f32.mrb[0].mxu0
  %5167 = vmatprep.mubr.f32.mxu0 0.0
  %v5168 = vand.u32 %v3610, 4294901760
  %v5169 = vsub.f32 %v3610, %v5168
  %5170 = vmatmul.mubr.f32.gmra.mrb[0].mxu0 %v5169
  %v5171 = vpop.f32.mrb[0].mxu0
  %v5172 = vadd.f32 %v4685, %v5171
  %v5173 = vpop.f32.mrb[0].mxu0
  %5174 = vmatprep.mubr.f32.mxu0 0.0
  %v5175 = vand.u32 %v3613, 4294901760
  %v5176 = vsub.f32 %v3613, %v5175
  %5177 = vmatmul.mubr.f32.gmra.mrb[0].mxu0 %v5176
  %v5178 = vpop.f32.mrb[0].mxu0
  %v5179 = vadd.f32 %v4691, %v5178
  %v5180 = vpop.f32.mrb[0].mxu0
  %5181 = vmatprep.mubr.f32.mxu0 0.0
  %v5182 = vand.u32 %v3616, 4294901760
  %v5183 = vsub.f32 %v3616, %v5182
  %5184 = vmatmul.mubr.f32.gmra.mrb[0].mxu0 %v5183
  %v5185 = vpop.f32.mrb[0].mxu0
  %v5186 = vadd.f32 %v4697, %v5185
  %v5187 = vpop.f32.mrb[0].mxu0
  %5188 = vmatprep.mubr.f32.mxu0 0.0
  %v5189 = vand.u32 %v3619, 4294901760
  %v5190 = vsub.f32 %v3619, %v5189
  %5191 = vmatmul.mubr.f32.gmra.mrb[0].mxu0 %v5190
  %v5192 = vpop.f32.mrb[0].mxu0
  %v5193 = vadd.f32 %v4703, %v5192
  %v5194 = vpop.f32.mrb[0].mxu0
  %5195 = vmatprep.mubr.f32.mxu0 0.0
  %v5196 = vand.u32 %v3622, 4294901760
  %v5197 = vsub.f32 %v3622, %v5196
  %5198 = vmatmul.mubr.f32.gmra.mrb[0].mxu0 %v5197
  %v5199 = vpop.f32.mrb[0].mxu0
  %v5200 = vadd.f32 %v4709, %v5199
  %v5201 = vpop.f32.mrb[0].mxu0
  %5202 = vmatprep.mubr.f32.mxu0 0.0
  %v5203 = vand.u32 %v3625, 4294901760
  %v5204 = vsub.f32 %v3625, %v5203
  %5205 = vmatmul.mubr.f32.gmra.mrb[0].mxu0 %v5204
  %v5206 = vpop.f32.mrb[0].mxu0
  %v5207 = vadd.f32 %v4715, %v5206
  %v5208 = vpop.f32.mrb[0].mxu0
  %5209 = vmatprep.mubr.f32.mxu0 0.0
  %v5210 = vand.u32 %v3628, 4294901760
  %v5211 = vsub.f32 %v3628, %v5210
  %5212 = vmatmul.mubr.f32.gmra.mrb[0].mxu0 %v5211
  %v5213 = vpop.f32.mrb[0].mxu0
  %v5214 = vadd.f32 %v4721, %v5213
  %v5215 = vpop.f32.mrb[0].mxu0
  %5216 = vmatprep.mubr.f32.mxu0 0.0
  %v5217 = vand.u32 %v3631, 4294901760
  %v5218 = vsub.f32 %v3631, %v5217
  %5219 = vmatmul.mubr.f32.gmra.mrb[0].mxu0 %v5218
  %v5220 = vpop.f32.mrb[0].mxu0
  %v5221 = vadd.f32 %v4727, %v5220
  %v5222 = vpop.f32.mrb[0].mxu0
  %5223 = vmatprep.mubr.f32.mxu0 0.0
  %v5224 = vand.u32 %v3634, 4294901760
  %v5225 = vsub.f32 %v3634, %v5224
  %5226 = vmatmul.mubr.f32.gmra.mrb[0].mxu0 %v5225
  %v5227 = vpop.f32.mrb[0].mxu0
  %v5228 = vadd.f32 %v4733, %v5227
  %v5229 = vpop.f32.mrb[0].mxu0
  %5230 = vmatprep.mubr.f32.mxu0 0.0
  %v5231 = vand.u32 %v3637, 4294901760
  %v5232 = vsub.f32 %v3637, %v5231
  %5233 = vmatmul.mubr.f32.gmra.mrb[0].mxu0 %v5232
  %v5234 = vpop.f32.mrb[0].mxu0
  %v5235 = vadd.f32 %v4739, %v5234
  %v5236 = vpop.f32.mrb[0].mxu0
  %5237 = vmatprep.mubr.f32.mxu0 0.0
  %v5238 = vand.u32 %v3640, 4294901760
  %v5239 = vsub.f32 %v3640, %v5238
  %5240 = vmatmul.mubr.f32.gmra.mrb[0].mxu0 %v5239
  %v5241 = vpop.f32.mrb[0].mxu0
  %v5242 = vadd.f32 %v4745, %v5241
  %v5243 = vpop.f32.mrb[0].mxu0
  %5244 = vmatprep.mubr.f32.mxu0 0.0
  %v5245 = vand.u32 %v3643, 4294901760
  %v5246 = vsub.f32 %v3643, %v5245
  %5247 = vmatmul.mubr.f32.gmra.mrb[0].mxu0 %v5246
  %v5248 = vpop.f32.mrb[0].mxu0
  %v5249 = vadd.f32 %v4751, %v5248
  %v5250 = vpop.f32.mrb[0].mxu0
  %5251 = vmatprep.mubr.f32.mxu0 0.0
  %v5252 = vand.u32 %v3646, 4294901760
  %v5253 = vsub.f32 %v3646, %v5252
  %5254 = vmatmul.mubr.f32.gmra.mrb[0].mxu0 %v5253
  %v5255 = vpop.f32.mrb[0].mxu0
  %v5256 = vadd.f32 %v4757, %v5255
  %v5257 = vpop.f32.mrb[0].mxu0
  %5258 = vmatprep.mubr.f32.mxu0 0.0
  %v5259 = vand.u32 %v3649, 4294901760
  %v5260 = vsub.f32 %v3649, %v5259
  %5261 = vmatmul.mubr.f32.gmra.mrb[0].mxu0 %v5260
  %v5262 = vpop.f32.mrb[0].mxu0
  %v5263 = vadd.f32 %v4763, %v5262
  %v5264 = vpop.f32.mrb[0].mxu0
  %5265 = vmatprep.mubr.f32.mxu0 0.0
  %v5266 = vand.u32 %v3652, 4294901760
  %v5267 = vsub.f32 %v3652, %v5266
  %5268 = vmatmul.mubr.f32.gmra.mrb[0].mxu0 %v5267
  %v5269 = vpop.f32.mrb[0].mxu0
  %v5270 = vadd.f32 %v4769, %v5269
  %v5271 = vpop.f32.mrb[0].mxu0
  %5272 = vmatprep.mubr.f32.mxu0 0.0
  %v5273 = vand.u32 %v3655, 4294901760
  %v5274 = vsub.f32 %v3655, %v5273
  %5275 = vmatmul.mubr.f32.gmra.mrb[0].mxu0 %v5274
  %v5276 = vpop.f32.mrb[0].mxu0
  %v5277 = vadd.f32 %v4775, %v5276
  %v5278 = vpop.f32.mrb[0].mxu0
  %5279 = vmatprep.mubr.f32.mxu0 0.0
  %v5280 = vand.u32 %v3658, 4294901760
  %v5281 = vsub.f32 %v3658, %v5280
  %5282 = vmatmul.mubr.f32.gmra.mrb[0].mxu0 %v5281
  %v5283 = vpop.f32.mrb[0].mxu0
  %v5284 = vadd.f32 %v4781, %v5283
  %v5285 = vpop.f32.mrb[0].mxu0
  %5286 = vmatprep.mubr.f32.mxu0 0.0
  %v5287 = vand.u32 %v3661, 4294901760
  %v5288 = vsub.f32 %v3661, %v5287
  %5289 = vmatmul.mubr.f32.gmra.mrb[0].mxu0 %v5288
  %v5290 = vpop.f32.mrb[0].mxu0
  %v5291 = vadd.f32 %v4787, %v5290
  %v5292 = vpop.f32.mrb[0].mxu0
  %5293 = vmatprep.mubr.f32.mxu0 0.0
  %v5294 = vand.u32 %v3664, 4294901760
  %v5295 = vsub.f32 %v3664, %v5294
  %5296 = vmatmul.mubr.f32.gmra.mrb[0].mxu0 %v5295
  %v5297 = vpop.f32.mrb[0].mxu0
  %v5298 = vadd.f32 %v4793, %v5297
  %v5299 = vpop.f32.mrb[0].mxu0
  %5300 = vmatprep.mubr.f32.mxu0 0.0
  %v5301 = vand.u32 %v3667, 4294901760
  %v5302 = vsub.f32 %v3667, %v5301
  %5303 = vmatmul.mubr.f32.gmra.mrb[0].mxu0 %v5302
  %v5304 = vpop.f32.mrb[0].mxu0
  %v5305 = vadd.f32 %v4799, %v5304
  %v5306 = vpop.f32.mrb[0].mxu0
  %5307 = vmatprep.mubr.f32.mxu0 0.0
  %v5308 = vand.u32 %v3670, 4294901760
  %v5309 = vsub.f32 %v3670, %v5308
  %5310 = vmatmul.mubr.f32.gmra.mrb[0].mxu0 %v5309
  %v5311 = vpop.f32.mrb[0].mxu0
  %v5312 = vadd.f32 %v4805, %v5311
  %v5313 = vpop.f32.mrb[0].mxu0
  %5314 = vmatprep.mubr.f32.mxu0 0.0
  %v5315 = vand.u32 %v3673, 4294901760
  %v5316 = vsub.f32 %v3673, %v5315
  %5317 = vmatmul.mubr.f32.gmra.mrb[0].mxu0 %v5316
  %v5318 = vpop.f32.mrb[0].mxu0
  %v5319 = vadd.f32 %v4811, %v5318
  %v5320 = vpop.f32.mrb[0].mxu0
  %5321 = vmatprep.mubr.f32.mxu0 0.0
  %v5322 = vand.u32 %v3676, 4294901760
  %v5323 = vsub.f32 %v3676, %v5322
  %5324 = vmatmul.mubr.f32.gmra.mrb[0].mxu0 %v5323
  %v5325 = vpop.f32.mrb[0].mxu0
  %v5326 = vadd.f32 %v4817, %v5325
  %v5327 = vpop.f32.mrb[0].mxu0
  %5328 = vmatprep.mubr.f32.mxu0 0.0
  %v5329 = vand.u32 %v3679, 4294901760
  %v5330 = vsub.f32 %v3679, %v5329
  %5331 = vmatmul.mubr.f32.gmra.mrb[0].mxu0 %v5330
  %v5332 = vpop.f32.mrb[0].mxu0
  %v5333 = vadd.f32 %v4823, %v5332
  %v5334 = vpop.f32.mrb[0].mxu0
  %5335 = vmatprep.mubr.f32.mxu0 0.0
  %v5336 = vand.u32 %v3682, 4294901760
  %v5337 = vsub.f32 %v3682, %v5336
  %5338 = vmatmul.mubr.f32.gmra.mrb[0].mxu0 %v5337
  %v5339 = vpop.f32.mrb[0].mxu0
  %v5340 = vadd.f32 %v4829, %v5339
  %v5341 = vpop.f32.mrb[0].mxu0
  %5342 = vmatprep.mubr.f32.mxu0 0.0
  %v5343 = vand.u32 %v3685, 4294901760
  %v5344 = vsub.f32 %v3685, %v5343
  %5345 = vmatmul.mubr.f32.gmra.mrb[0].mxu0 %v5344
  %v5346 = vpop.f32.mrb[0].mxu0
  %v5347 = vadd.f32 %v4835, %v5346
  %v5348 = vpop.f32.mrb[0].mxu0
  %5349 = vmatprep.mubr.f32.mxu0 0.0
  %v5350 = vand.u32 %v3688, 4294901760
  %v5351 = vsub.f32 %v3688, %v5350
  %5352 = vmatmul.mubr.f32.gmra.mrb[0].mxu0 %v5351
  %v5353 = vpop.f32.mrb[0].mxu0
  %v5354 = vadd.f32 %v4841, %v5353
  %v5355 = vpop.f32.mrb[0].mxu0
  %5356 = vmatprep.mubr.f32.mxu0 0.0
  %v5357 = vand.u32 %v3691, 4294901760
  %v5358 = vsub.f32 %v3691, %v5357
  %5359 = vmatmul.mubr.f32.gmra.mrb[0].mxu0 %v5358
  %v5360 = vpop.f32.mrb[0].mxu0
  %v5361 = vadd.f32 %v4847, %v5360
  %v5362 = vpop.f32.mrb[0].mxu0
  %5363 = vmatprep.mubr.f32.mxu0 0.0
  %v5364 = vand.u32 %v3694, 4294901760
  %v5365 = vsub.f32 %v3694, %v5364
  %5366 = vmatmul.mubr.f32.gmra.mrb[0].mxu0 %v5365
  %v5367 = vpop.f32.mrb[0].mxu0
  %v5368 = vadd.f32 %v4853, %v5367
  %v5369 = vpop.f32.mrb[0].mxu0
  %5370 = vmatprep.mubr.f32.mxu0 0.0
  %v5371 = vand.u32 %v3697, 4294901760
  %v5372 = vsub.f32 %v3697, %v5371
  %5373 = vmatmul.mubr.f32.gmra.mrb[0].mxu0 %v5372
  %v5374 = vpop.f32.mrb[0].mxu0
  %v5375 = vadd.f32 %v4859, %v5374
  %v5376 = vpop.f32.mrb[0].mxu0
  %5377 = vmatprep.mubr.f32.mxu0 0.0
  %v5378 = vand.u32 %v3700, 4294901760
  %v5379 = vsub.f32 %v3700, %v5378
  %5380 = vmatmul.mubr.f32.gmra.mrb[0].mxu0 %v5379
  %v5381 = vpop.f32.mrb[0].mxu0
  %v5382 = vadd.f32 %v4865, %v5381
  %v5383 = vpop.f32.mrb[0].mxu0
  %5384 = vmatprep.mubr.f32.mxu0 0.0
  %v5385 = vand.u32 %v3703, 4294901760
  %v5386 = vsub.f32 %v3703, %v5385
  %5387 = vmatmul.mubr.f32.gmra.mrb[0].mxu0 %v5386
  %v5388 = vpop.f32.mrb[0].mxu0
  %v5389 = vadd.f32 %v4871, %v5388
  %v5390 = vpop.f32.mrb[0].mxu0
  %5391 = vmatprep.mubr.f32.mxu0 0.0
  %v5392 = vand.u32 %v3706, 4294901760
  %v5393 = vsub.f32 %v3706, %v5392
  %5394 = vmatmul.mubr.f32.gmra.mrb[0].mxu0 %v5393
  %v5395 = vpop.f32.mrb[0].mxu0
  %v5396 = vadd.f32 %v4877, %v5395
  %v5397 = vpop.f32.mrb[0].mxu0
  %5398 = vmatprep.mubr.f32.mxu0 0.0
  %v5399 = vand.u32 %v3709, 4294901760
  %v5400 = vsub.f32 %v3709, %v5399
  %5401 = vmatmul.mubr.f32.gmra.mrb[0].mxu0 %v5400
  %v5402 = vpop.f32.mrb[0].mxu0
  %v5403 = vadd.f32 %v4883, %v5402
  %v5404 = vpop.f32.mrb[0].mxu0
  %5405 = vmatprep.mubr.f32.mxu0 0.0
  %v5406 = vand.u32 %v3712, 4294901760
  %v5407 = vsub.f32 %v3712, %v5406
  %5408 = vmatmul.mubr.f32.gmra.mrb[0].mxu0 %v5407
  %v5409 = vpop.f32.mrb[0].mxu0
  %v5410 = vadd.f32 %v4889, %v5409
  %v5411 = vpop.f32.mrb[0].mxu0
  %5412 = vdwg.mxu0
  %5413 = vmatprep.subr.mxu0 0.0
  %v5414 = vand.u32 %v32, 4294901760
  %5415 = vmatpush1.msra.mxu0 %v5414
  %5416 = vmatprep.subr.mxu0 0.0
  %v5417 = vand.u32 %v33, 4294901760
  %5418 = vmatpush1.msra.mxu0 %v5417
  %5419 = vmatprep.subr.mxu0 0.0
  %v5420 = vand.u32 %v34, 4294901760
  %5421 = vmatpush1.msra.mxu0 %v5420
  %5422 = vmatprep.subr.mxu0 0.0
  %v5423 = vand.u32 %v35, 4294901760
  %5424 = vmatpush1.msra.mxu0 %v5423
  %5425 = vmatprep.subr.mxu0 0.0
  %5426 = vmatpush1.msra.mxu0 0.0
  %5427 = vmatprep.subr.mxu0 0.0
  %5428 = vmatpush1.msra.mxu0 0.0
  %5429 = vmatprep.subr.mxu0 0.0
  %5430 = vmatpush1.msra.mxu0 0.0
  %5431 = vmatprep.subr.mxu0 0.0
  %5432 = vmatpush1.msra.mxu0 0.0
  %5433 = vmatprep.subr.mxu0 0.0
  %5434 = vmatpush1.msra.mxu0 0.0
  %5435 = vmatprep.subr.mxu0 0.0
  %5436 = vmatpush1.msra.mxu0 0.0
  %5437 = vmatprep.subr.mxu0 0.0
  %5438 = vmatpush1.msra.mxu0 0.0
  %5439 = vmatprep.subr.mxu0 0.0
  %5440 = vmatpush1.msra.mxu0 0.0
  %5441 = vmatprep.subr.mxu0 0.0
  %5442 = vmatpush1.msra.mxu0 0.0
  %5443 = vmatprep.subr.mxu0 0.0
  %5444 = vmatpush1.msra.mxu0 0.0
  %5445 = vmatprep.subr.mxu0 0.0
  %5446 = vmatpush1.msra.mxu0 0.0
  %5447 = vmatprep.subr.mxu0 0.0
  %5448 = vmatpush1.msra.mxu0 0.0
  %5449 = vmatprep.subr.mxu0 0.0
  %5450 = vmatpush1.msra.mxu0 0.0
  %5451 = vmatprep.subr.mxu0 0.0
  %5452 = vmatpush1.msra.mxu0 0.0
  %5453 = vmatprep.subr.mxu0 0.0
  %5454 = vmatpush1.msra.mxu0 0.0
  %5455 = vmatprep.subr.mxu0 0.0
  %5456 = vmatpush1.msra.mxu0 0.0
  %5457 = vmatprep.subr.mxu0 0.0
  %5458 = vmatpush1.msra.mxu0 0.0
  %5459 = vmatprep.subr.mxu0 0.0
  %5460 = vmatpush1.msra.mxu0 0.0
  %5461 = vmatprep.subr.mxu0 0.0
  %5462 = vmatpush1.msra.mxu0 0.0
  %5463 = vmatprep.subr.mxu0 0.0
  %5464 = vmatpush1.msra.mxu0 0.0
  %5465 = vmatprep.subr.mxu0 0.0
  %5466 = vmatpush1.msra.mxu0 0.0
  %5467 = vmatprep.subr.mxu0 0.0
  %5468 = vmatpush1.msra.mxu0 0.0
  %5469 = vmatprep.subr.mxu0 0.0
  %5470 = vmatpush1.msra.mxu0 0.0
  %5471 = vmatprep.subr.mxu0 0.0
  %5472 = vmatpush1.msra.mxu0 0.0
  %5473 = vmatprep.subr.mxu0 0.0
  %5474 = vmatpush1.msra.mxu0 0.0
  %5475 = vmatprep.subr.mxu0 0.0
  %5476 = vmatpush1.msra.mxu0 0.0
  %5477 = vmatprep.subr.mxu0 0.0
  %5478 = vmatpush1.msra.mxu0 0.0
  %5479 = vmatprep.subr.mxu0 0.0
  %5480 = vmatpush1.msra.mxu0 0.0
  %5481 = vmatprep.mubr.f32.mxu0 0.0
  %v5482 = vand.u32 %v3523, 4294901760
  %v5483 = vsub.f32 %v3523, %v5482
  %v5484 = vand.u32 %v5483, 4294901760
  %5485 = vmatmul.mubr.f32.gmra.mrb[0].mxu0 %v5484
  %v5486 = vpop.f32.mrb[0].mxu0
  %v5487 = vadd.f32 %v4969, %v5486
  %v5488 = vpop.f32.mrb[0].mxu0
  %5489 = vmatprep.mubr.f32.mxu0 0.0
  %v5490 = vand.u32 %v3526, 4294901760
  %v5491 = vsub.f32 %v3526, %v5490
  %v5492 = vand.u32 %v5491, 4294901760
  %5493 = vmatmul.mubr.f32.gmra.mrb[0].mxu0 %v5492
  %v5494 = vpop.f32.mrb[0].mxu0
  %v5495 = vadd.f32 %v4976, %v5494
  %v5496 = vpop.f32.mrb[0].mxu0
  %5497 = vmatprep.mubr.f32.mxu0 0.0
  %v5498 = vand.u32 %v3529, 4294901760
  %v5499 = vsub.f32 %v3529, %v5498
  %v5500 = vand.u32 %v5499, 4294901760
  %5501 = vmatmul.mubr.f32.gmra.mrb[0].mxu0 %v5500
  %v5502 = vpop.f32.mrb[0].mxu0
  %v5503 = vadd.f32 %v4983, %v5502
  %v5504 = vpop.f32.mrb[0].mxu0
  %5505 = vmatprep.mubr.f32.mxu0 0.0
  %v5506 = vand.u32 %v3532, 4294901760
  %v5507 = vsub.f32 %v3532, %v5506
  %v5508 = vand.u32 %v5507, 4294901760
  %5509 = vmatmul.mubr.f32.gmra.mrb[0].mxu0 %v5508
  %v5510 = vpop.f32.mrb[0].mxu0
  %v5511 = vadd.f32 %v4990, %v5510
  %v5512 = vpop.f32.mrb[0].mxu0
  %5513 = vmatprep.mubr.f32.mxu0 0.0
  %v5514 = vand.u32 %v3535, 4294901760
  %v5515 = vsub.f32 %v3535, %v5514
  %v5516 = vand.u32 %v5515, 4294901760
  %5517 = vmatmul.mubr.f32.gmra.mrb[0].mxu0 %v5516
  %v5518 = vpop.f32.mrb[0].mxu0
  %v5519 = vadd.f32 %v4997, %v5518
  %v5520 = vpop.f32.mrb[0].mxu0
  %5521 = vmatprep.mubr.f32.mxu0 0.0
  %v5522 = vand.u32 %v3538, 4294901760
  %v5523 = vsub.f32 %v3538, %v5522
  %v5524 = vand.u32 %v5523, 4294901760
  %5525 = vmatmul.mubr.f32.gmra.mrb[0].mxu0 %v5524
  %v5526 = vpop.f32.mrb[0].mxu0
  %v5527 = vadd.f32 %v5004, %v5526
  %v5528 = vpop.f32.mrb[0].mxu0
  %5529 = vmatprep.mubr.f32.mxu0 0.0
  %v5530 = vand.u32 %v3541, 4294901760
  %v5531 = vsub.f32 %v3541, %v5530
  %v5532 = vand.u32 %v5531, 4294901760
  %5533 = vmatmul.mubr.f32.gmra.mrb[0].mxu0 %v5532
  %v5534 = vpop.f32.mrb[0].mxu0
  %v5535 = vadd.f32 %v5011, %v5534
  %v5536 = vpop.f32.mrb[0].mxu0
  %5537 = vmatprep.mubr.f32.mxu0 0.0
  %v5538 = vand.u32 %v3544, 4294901760
  %v5539 = vsub.f32 %v3544, %v5538
  %v5540 = vand.u32 %v5539, 4294901760
  %5541 = vmatmul.mubr.f32.gmra.mrb[0].mxu0 %v5540
  %v5542 = vpop.f32.mrb[0].mxu0
  %v5543 = vadd.f32 %v5018, %v5542
  %v5544 = vpop.f32.mrb[0].mxu0
  %5545 = vmatprep.mubr.f32.mxu0 0.0
  %v5546 = vand.u32 %v3547, 4294901760
  %v5547 = vsub.f32 %v3547, %v5546
  %v5548 = vand.u32 %v5547, 4294901760
  %5549 = vmatmul.mubr.f32.gmra.mrb[0].mxu0 %v5548
  %v5550 = vpop.f32.mrb[0].mxu0
  %v5551 = vadd.f32 %v5025, %v5550
  %v5552 = vpop.f32.mrb[0].mxu0
  %5553 = vmatprep.mubr.f32.mxu0 0.0
  %v5554 = vand.u32 %v3550, 4294901760
  %v5555 = vsub.f32 %v3550, %v5554
  %v5556 = vand.u32 %v5555, 4294901760
  %5557 = vmatmul.mubr.f32.gmra.mrb[0].mxu0 %v5556
  %v5558 = vpop.f32.mrb[0].mxu0
  %v5559 = vadd.f32 %v5032, %v5558
  %v5560 = vpop.f32.mrb[0].mxu0
  %5561 = vmatprep.mubr.f32.mxu0 0.0
  %v5562 = vand.u32 %v3553, 4294901760
  %v5563 = vsub.f32 %v3553, %v5562
  %v5564 = vand.u32 %v5563, 4294901760
  %5565 = vmatmul.mubr.f32.gmra.mrb[0].mxu0 %v5564
  %v5566 = vpop.f32.mrb[0].mxu0
  %v5567 = vadd.f32 %v5039, %v5566
  %v5568 = vpop.f32.mrb[0].mxu0
  %5569 = vmatprep.mubr.f32.mxu0 0.0
  %v5570 = vand.u32 %v3556, 4294901760
  %v5571 = vsub.f32 %v3556, %v5570
  %v5572 = vand.u32 %v5571, 4294901760
  %5573 = vmatmul.mubr.f32.gmra.mrb[0].mxu0 %v5572
  %v5574 = vpop.f32.mrb[0].mxu0
  %v5575 = vadd.f32 %v5046, %v5574
  %v5576 = vpop.f32.mrb[0].mxu0
  %5577 = vmatprep.mubr.f32.mxu0 0.0
  %v5578 = vand.u32 %v3559, 4294901760
  %v5579 = vsub.f32 %v3559, %v5578
  %v5580 = vand.u32 %v5579, 4294901760
  %5581 = vmatmul.mubr.f32.gmra.mrb[0].mxu0 %v5580
  %v5582 = vpop.f32.mrb[0].mxu0
  %v5583 = vadd.f32 %v5053, %v5582
  %v5584 = vpop.f32.mrb[0].mxu0
  %5585 = vmatprep.mubr.f32.mxu0 0.0
  %v5586 = vand.u32 %v3562, 4294901760
  %v5587 = vsub.f32 %v3562, %v5586
  %v5588 = vand.u32 %v5587, 4294901760
  %5589 = vmatmul.mubr.f32.gmra.mrb[0].mxu0 %v5588
  %v5590 = vpop.f32.mrb[0].mxu0
  %v5591 = vadd.f32 %v5060, %v5590
  %v5592 = vpop.f32.mrb[0].mxu0
  %5593 = vmatprep.mubr.f32.mxu0 0.0
  %v5594 = vand.u32 %v3565, 4294901760
  %v5595 = vsub.f32 %v3565, %v5594
  %v5596 = vand.u32 %v5595, 4294901760
  %5597 = vmatmul.mubr.f32.gmra.mrb[0].mxu0 %v5596
  %v5598 = vpop.f32.mrb[0].mxu0
  %v5599 = vadd.f32 %v5067, %v5598
  %v5600 = vpop.f32.mrb[0].mxu0
  %5601 = vmatprep.mubr.f32.mxu0 0.0
  %v5602 = vand.u32 %v3568, 4294901760
  %v5603 = vsub.f32 %v3568, %v5602
  %v5604 = vand.u32 %v5603, 4294901760
  %5605 = vmatmul.mubr.f32.gmra.mrb[0].mxu0 %v5604
  %v5606 = vpop.f32.mrb[0].mxu0
  %v5607 = vadd.f32 %v5074, %v5606
  %v5608 = vpop.f32.mrb[0].mxu0
  %5609 = vmatprep.mubr.f32.mxu0 0.0
  %v5610 = vand.u32 %v3571, 4294901760
  %v5611 = vsub.f32 %v3571, %v5610
  %v5612 = vand.u32 %v5611, 4294901760
  %5613 = vmatmul.mubr.f32.gmra.mrb[0].mxu0 %v5612
  %v5614 = vpop.f32.mrb[0].mxu0
  %v5615 = vadd.f32 %v5081, %v5614
  %v5616 = vpop.f32.mrb[0].mxu0
  %5617 = vmatprep.mubr.f32.mxu0 0.0
  %v5618 = vand.u32 %v3574, 4294901760
  %v5619 = vsub.f32 %v3574, %v5618
  %v5620 = vand.u32 %v5619, 4294901760
  %5621 = vmatmul.mubr.f32.gmra.mrb[0].mxu0 %v5620
  %v5622 = vpop.f32.mrb[0].mxu0
  %v5623 = vadd.f32 %v5088, %v5622
  %v5624 = vpop.f32.mrb[0].mxu0
  %5625 = vmatprep.mubr.f32.mxu0 0.0
  %v5626 = vand.u32 %v3577, 4294901760
  %v5627 = vsub.f32 %v3577, %v5626
  %v5628 = vand.u32 %v5627, 4294901760
  %5629 = vmatmul.mubr.f32.gmra.mrb[0].mxu0 %v5628
  %v5630 = vpop.f32.mrb[0].mxu0
  %v5631 = vadd.f32 %v5095, %v5630
  %v5632 = vpop.f32.mrb[0].mxu0
  %5633 = vmatprep.mubr.f32.mxu0 0.0
  %v5634 = vand.u32 %v3580, 4294901760
  %v5635 = vsub.f32 %v3580, %v5634
  %v5636 = vand.u32 %v5635, 4294901760
  %5637 = vmatmul.mubr.f32.gmra.mrb[0].mxu0 %v5636
  %v5638 = vpop.f32.mrb[0].mxu0
  %v5639 = vadd.f32 %v5102, %v5638
  %v5640 = vpop.f32.mrb[0].mxu0
  %5641 = vmatprep.mubr.f32.mxu0 0.0
  %v5642 = vand.u32 %v3583, 4294901760
  %v5643 = vsub.f32 %v3583, %v5642
  %v5644 = vand.u32 %v5643, 4294901760
  %5645 = vmatmul.mubr.f32.gmra.mrb[0].mxu0 %v5644
  %v5646 = vpop.f32.mrb[0].mxu0
  %v5647 = vadd.f32 %v5109, %v5646
  %v5648 = vpop.f32.mrb[0].mxu0
  %5649 = vmatprep.mubr.f32.mxu0 0.0
  %v5650 = vand.u32 %v3586, 4294901760
  %v5651 = vsub.f32 %v3586, %v5650
  %v5652 = vand.u32 %v5651, 4294901760
  %5653 = vmatmul.mubr.f32.gmra.mrb[0].mxu0 %v5652
  %v5654 = vpop.f32.mrb[0].mxu0
  %v5655 = vadd.f32 %v5116, %v5654
  %v5656 = vpop.f32.mrb[0].mxu0
  %5657 = vmatprep.mubr.f32.mxu0 0.0
  %v5658 = vand.u32 %v3589, 4294901760
  %v5659 = vsub.f32 %v3589, %v5658
  %v5660 = vand.u32 %v5659, 4294901760
  %5661 = vmatmul.mubr.f32.gmra.mrb[0].mxu0 %v5660
  %v5662 = vpop.f32.mrb[0].mxu0
  %v5663 = vadd.f32 %v5123, %v5662
  %v5664 = vpop.f32.mrb[0].mxu0
  %5665 = vmatprep.mubr.f32.mxu0 0.0
  %v5666 = vand.u32 %v3592, 4294901760
  %v5667 = vsub.f32 %v3592, %v5666
  %v5668 = vand.u32 %v5667, 4294901760
  %5669 = vmatmul.mubr.f32.gmra.mrb[0].mxu0 %v5668
  %v5670 = vpop.f32.mrb[0].mxu0
  %v5671 = vadd.f32 %v5130, %v5670
  %v5672 = vpop.f32.mrb[0].mxu0
  %5673 = vmatprep.mubr.f32.mxu0 0.0
  %v5674 = vand.u32 %v3595, 4294901760
  %v5675 = vsub.f32 %v3595, %v5674
  %v5676 = vand.u32 %v5675, 4294901760
  %5677 = vmatmul.mubr.f32.gmra.mrb[0].mxu0 %v5676
  %v5678 = vpop.f32.mrb[0].mxu0
  %v5679 = vadd.f32 %v5137, %v5678
  %v5680 = vpop.f32.mrb[0].mxu0
  %5681 = vmatprep.mubr.f32.mxu0 0.0
  %v5682 = vand.u32 %v3598, 4294901760
  %v5683 = vsub.f32 %v3598, %v5682
  %v5684 = vand.u32 %v5683, 4294901760
  %5685 = vmatmul.mubr.f32.gmra.mrb[0].mxu0 %v5684
  %v5686 = vpop.f32.mrb[0].mxu0
  %v5687 = vadd.f32 %v5144, %v5686
  %v5688 = vpop.f32.mrb[0].mxu0
  %5689 = vmatprep.mubr.f32.mxu0 0.0
  %v5690 = vand.u32 %v3601, 4294901760
  %v5691 = vsub.f32 %v3601, %v5690
  %v5692 = vand.u32 %v5691, 4294901760
  %5693 = vmatmul.mubr.f32.gmra.mrb[0].mxu0 %v5692
  %v5694 = vpop.f32.mrb[0].mxu0
  %v5695 = vadd.f32 %v5151, %v5694
  %v5696 = vpop.f32.mrb[0].mxu0
  %5697 = vmatprep.mubr.f32.mxu0 0.0
  %v5698 = vand.u32 %v3604, 4294901760
  %v5699 = vsub.f32 %v3604, %v5698
  %v5700 = vand.u32 %v5699, 4294901760
  %5701 = vmatmul.mubr.f32.gmra.mrb[0].mxu0 %v5700
  %v5702 = vpop.f32.mrb[0].mxu0
  %v5703 = vadd.f32 %v5158, %v5702
  %v5704 = vpop.f32.mrb[0].mxu0
  %5705 = vmatprep.mubr.f32.mxu0 0.0
  %v5706 = vand.u32 %v3607, 4294901760
  %v5707 = vsub.f32 %v3607, %v5706
  %v5708 = vand.u32 %v5707, 4294901760
  %5709 = vmatmul.mubr.f32.gmra.mrb[0].mxu0 %v5708
  %v5710 = vpop.f32.mrb[0].mxu0
  %v5711 = vadd.f32 %v5165, %v5710
  %v5712 = vpop.f32.mrb[0].mxu0
  %5713 = vmatprep.mubr.f32.mxu0 0.0
  %v5714 = vand.u32 %v3610, 4294901760
  %v5715 = vsub.f32 %v3610, %v5714
  %v5716 = vand.u32 %v5715, 4294901760
  %5717 = vmatmul.mubr.f32.gmra.mrb[0].mxu0 %v5716
  %v5718 = vpop.f32.mrb[0].mxu0
  %v5719 = vadd.f32 %v5172, %v5718
  %v5720 = vpop.f32.mrb[0].mxu0
  %5721 = vmatprep.mubr.f32.mxu0 0.0
  %v5722 = vand.u32 %v3613, 4294901760
  %v5723 = vsub.f32 %v3613, %v5722
  %v5724 = vand.u32 %v5723, 4294901760
  %5725 = vmatmul.mubr.f32.gmra.mrb[0].mxu0 %v5724
  %v5726 = vpop.f32.mrb[0].mxu0
  %v5727 = vadd.f32 %v5179, %v5726
  %v5728 = vpop.f32.mrb[0].mxu0
  %5729 = vmatprep.mubr.f32.mxu0 0.0
  %v5730 = vand.u32 %v3616, 4294901760
  %v5731 = vsub.f32 %v3616, %v5730
  %v5732 = vand.u32 %v5731, 4294901760
  %5733 = vmatmul.mubr.f32.gmra.mrb[0].mxu0 %v5732
  %v5734 = vpop.f32.mrb[0].mxu0
  %v5735 = vadd.f32 %v5186, %v5734
  %v5736 = vpop.f32.mrb[0].mxu0
  %5737 = vmatprep.mubr.f32.mxu0 0.0
  %v5738 = vand.u32 %v3619, 4294901760
  %v5739 = vsub.f32 %v3619, %v5738
  %v5740 = vand.u32 %v5739, 4294901760
  %5741 = vmatmul.mubr.f32.gmra.mrb[0].mxu0 %v5740
  %v5742 = vpop.f32.mrb[0].mxu0
  %v5743 = vadd.f32 %v5193, %v5742
  %v5744 = vpop.f32.mrb[0].mxu0
  %5745 = vmatprep.mubr.f32.mxu0 0.0
  %v5746 = vand.u32 %v3622, 4294901760
  %v5747 = vsub.f32 %v3622, %v5746
  %v5748 = vand.u32 %v5747, 4294901760
  %5749 = vmatmul.mubr.f32.gmra.mrb[0].mxu0 %v5748
  %v5750 = vpop.f32.mrb[0].mxu0
  %v5751 = vadd.f32 %v5200, %v5750
  %v5752 = vpop.f32.mrb[0].mxu0
  %5753 = vmatprep.mubr.f32.mxu0 0.0
  %v5754 = vand.u32 %v3625, 4294901760
  %v5755 = vsub.f32 %v3625, %v5754
  %v5756 = vand.u32 %v5755, 4294901760
  %5757 = vmatmul.mubr.f32.gmra.mrb[0].mxu0 %v5756
  %v5758 = vpop.f32.mrb[0].mxu0
  %v5759 = vadd.f32 %v5207, %v5758
  %v5760 = vpop.f32.mrb[0].mxu0
  %5761 = vmatprep.mubr.f32.mxu0 0.0
  %v5762 = vand.u32 %v3628, 4294901760
  %v5763 = vsub.f32 %v3628, %v5762
  %v5764 = vand.u32 %v5763, 4294901760
  %5765 = vmatmul.mubr.f32.gmra.mrb[0].mxu0 %v5764
  %v5766 = vpop.f32.mrb[0].mxu0
  %v5767 = vadd.f32 %v5214, %v5766
  %v5768 = vpop.f32.mrb[0].mxu0
  %5769 = vmatprep.mubr.f32.mxu0 0.0
  %v5770 = vand.u32 %v3631, 4294901760
  %v5771 = vsub.f32 %v3631, %v5770
  %v5772 = vand.u32 %v5771, 4294901760
  %5773 = vmatmul.mubr.f32.gmra.mrb[0].mxu0 %v5772
  %v5774 = vpop.f32.mrb[0].mxu0
  %v5775 = vadd.f32 %v5221, %v5774
  %v5776 = vpop.f32.mrb[0].mxu0
  %5777 = vmatprep.mubr.f32.mxu0 0.0
  %v5778 = vand.u32 %v3634, 4294901760
  %v5779 = vsub.f32 %v3634, %v5778
  %v5780 = vand.u32 %v5779, 4294901760
  %5781 = vmatmul.mubr.f32.gmra.mrb[0].mxu0 %v5780
  %v5782 = vpop.f32.mrb[0].mxu0
  %v5783 = vadd.f32 %v5228, %v5782
  %v5784 = vpop.f32.mrb[0].mxu0
  %5785 = vmatprep.mubr.f32.mxu0 0.0
  %v5786 = vand.u32 %v3637, 4294901760
  %v5787 = vsub.f32 %v3637, %v5786
  %v5788 = vand.u32 %v5787, 4294901760
  %5789 = vmatmul.mubr.f32.gmra.mrb[0].mxu0 %v5788
  %v5790 = vpop.f32.mrb[0].mxu0
  %v5791 = vadd.f32 %v5235, %v5790
  %v5792 = vpop.f32.mrb[0].mxu0
  %5793 = vmatprep.mubr.f32.mxu0 0.0
  %v5794 = vand.u32 %v3640, 4294901760
  %v5795 = vsub.f32 %v3640, %v5794
  %v5796 = vand.u32 %v5795, 4294901760
  %5797 = vmatmul.mubr.f32.gmra.mrb[0].mxu0 %v5796
  %v5798 = vpop.f32.mrb[0].mxu0
  %v5799 = vadd.f32 %v5242, %v5798
  %v5800 = vpop.f32.mrb[0].mxu0
  %5801 = vmatprep.mubr.f32.mxu0 0.0
  %v5802 = vand.u32 %v3643, 4294901760
  %v5803 = vsub.f32 %v3643, %v5802
  %v5804 = vand.u32 %v5803, 4294901760
  %5805 = vmatmul.mubr.f32.gmra.mrb[0].mxu0 %v5804
  %v5806 = vpop.f32.mrb[0].mxu0
  %v5807 = vadd.f32 %v5249, %v5806
  %v5808 = vpop.f32.mrb[0].mxu0
  %5809 = vmatprep.mubr.f32.mxu0 0.0
  %v5810 = vand.u32 %v3646, 4294901760
  %v5811 = vsub.f32 %v3646, %v5810
  %v5812 = vand.u32 %v5811, 4294901760
  %5813 = vmatmul.mubr.f32.gmra.mrb[0].mxu0 %v5812
  %v5814 = vpop.f32.mrb[0].mxu0
  %v5815 = vadd.f32 %v5256, %v5814
  %v5816 = vpop.f32.mrb[0].mxu0
  %5817 = vmatprep.mubr.f32.mxu0 0.0
  %v5818 = vand.u32 %v3649, 4294901760
  %v5819 = vsub.f32 %v3649, %v5818
  %v5820 = vand.u32 %v5819, 4294901760
  %5821 = vmatmul.mubr.f32.gmra.mrb[0].mxu0 %v5820
  %v5822 = vpop.f32.mrb[0].mxu0
  %v5823 = vadd.f32 %v5263, %v5822
  %v5824 = vpop.f32.mrb[0].mxu0
  %5825 = vmatprep.mubr.f32.mxu0 0.0
  %v5826 = vand.u32 %v3652, 4294901760
  %v5827 = vsub.f32 %v3652, %v5826
  %v5828 = vand.u32 %v5827, 4294901760
  %5829 = vmatmul.mubr.f32.gmra.mrb[0].mxu0 %v5828
  %v5830 = vpop.f32.mrb[0].mxu0
  %v5831 = vadd.f32 %v5270, %v5830
  %v5832 = vpop.f32.mrb[0].mxu0
  %5833 = vmatprep.mubr.f32.mxu0 0.0
  %v5834 = vand.u32 %v3655, 4294901760
  %v5835 = vsub.f32 %v3655, %v5834
  %v5836 = vand.u32 %v5835, 4294901760
  %5837 = vmatmul.mubr.f32.gmra.mrb[0].mxu0 %v5836
  %v5838 = vpop.f32.mrb[0].mxu0
  %v5839 = vadd.f32 %v5277, %v5838
  %v5840 = vpop.f32.mrb[0].mxu0
  %5841 = vmatprep.mubr.f32.mxu0 0.0
  %v5842 = vand.u32 %v3658, 4294901760
  %v5843 = vsub.f32 %v3658, %v5842
  %v5844 = vand.u32 %v5843, 4294901760
  %5845 = vmatmul.mubr.f32.gmra.mrb[0].mxu0 %v5844
  %v5846 = vpop.f32.mrb[0].mxu0
  %v5847 = vadd.f32 %v5284, %v5846
  %v5848 = vpop.f32.mrb[0].mxu0
  %5849 = vmatprep.mubr.f32.mxu0 0.0
  %v5850 = vand.u32 %v3661, 4294901760
  %v5851 = vsub.f32 %v3661, %v5850
  %v5852 = vand.u32 %v5851, 4294901760
  %5853 = vmatmul.mubr.f32.gmra.mrb[0].mxu0 %v5852
  %v5854 = vpop.f32.mrb[0].mxu0
  %v5855 = vadd.f32 %v5291, %v5854
  %v5856 = vpop.f32.mrb[0].mxu0
  %5857 = vmatprep.mubr.f32.mxu0 0.0
  %v5858 = vand.u32 %v3664, 4294901760
  %v5859 = vsub.f32 %v3664, %v5858
  %v5860 = vand.u32 %v5859, 4294901760
  %5861 = vmatmul.mubr.f32.gmra.mrb[0].mxu0 %v5860
  %v5862 = vpop.f32.mrb[0].mxu0
  %v5863 = vadd.f32 %v5298, %v5862
  %v5864 = vpop.f32.mrb[0].mxu0
  %5865 = vmatprep.mubr.f32.mxu0 0.0
  %v5866 = vand.u32 %v3667, 4294901760
  %v5867 = vsub.f32 %v3667, %v5866
  %v5868 = vand.u32 %v5867, 4294901760
  %5869 = vmatmul.mubr.f32.gmra.mrb[0].mxu0 %v5868
  %v5870 = vpop.f32.mrb[0].mxu0
  %v5871 = vadd.f32 %v5305, %v5870
  %v5872 = vpop.f32.mrb[0].mxu0
  %5873 = vmatprep.mubr.f32.mxu0 0.0
  %v5874 = vand.u32 %v3670, 4294901760
  %v5875 = vsub.f32 %v3670, %v5874
  %v5876 = vand.u32 %v5875, 4294901760
  %5877 = vmatmul.mubr.f32.gmra.mrb[0].mxu0 %v5876
  %v5878 = vpop.f32.mrb[0].mxu0
  %v5879 = vadd.f32 %v5312, %v5878
  %v5880 = vpop.f32.mrb[0].mxu0
  %5881 = vmatprep.mubr.f32.mxu0 0.0
  %v5882 = vand.u32 %v3673, 4294901760
  %v5883 = vsub.f32 %v3673, %v5882
  %v5884 = vand.u32 %v5883, 4294901760
  %5885 = vmatmul.mubr.f32.gmra.mrb[0].mxu0 %v5884
  %v5886 = vpop.f32.mrb[0].mxu0
  %v5887 = vadd.f32 %v5319, %v5886
  %v5888 = vpop.f32.mrb[0].mxu0
  %5889 = vmatprep.mubr.f32.mxu0 0.0
  %v5890 = vand.u32 %v3676, 4294901760
  %v5891 = vsub.f32 %v3676, %v5890
  %v5892 = vand.u32 %v5891, 4294901760
  %5893 = vmatmul.mubr.f32.gmra.mrb[0].mxu0 %v5892
  %v5894 = vpop.f32.mrb[0].mxu0
  %v5895 = vadd.f32 %v5326, %v5894
  %v5896 = vpop.f32.mrb[0].mxu0
  %5897 = vmatprep.mubr.f32.mxu0 0.0
  %v5898 = vand.u32 %v3679, 4294901760
  %v5899 = vsub.f32 %v3679, %v5898
  %v5900 = vand.u32 %v5899, 4294901760
  %5901 = vmatmul.mubr.f32.gmra.mrb[0].mxu0 %v5900
  %v5902 = vpop.f32.mrb[0].mxu0
  %v5903 = vadd.f32 %v5333, %v5902
  %v5904 = vpop.f32.mrb[0].mxu0
  %5905 = vmatprep.mubr.f32.mxu0 0.0
  %v5906 = vand.u32 %v3682, 4294901760
  %v5907 = vsub.f32 %v3682, %v5906
  %v5908 = vand.u32 %v5907, 4294901760
  %5909 = vmatmul.mubr.f32.gmra.mrb[0].mxu0 %v5908
  %v5910 = vpop.f32.mrb[0].mxu0
  %v5911 = vadd.f32 %v5340, %v5910
  %v5912 = vpop.f32.mrb[0].mxu0
  %5913 = vmatprep.mubr.f32.mxu0 0.0
  %v5914 = vand.u32 %v3685, 4294901760
  %v5915 = vsub.f32 %v3685, %v5914
  %v5916 = vand.u32 %v5915, 4294901760
  %5917 = vmatmul.mubr.f32.gmra.mrb[0].mxu0 %v5916
  %v5918 = vpop.f32.mrb[0].mxu0
  %v5919 = vadd.f32 %v5347, %v5918
  %v5920 = vpop.f32.mrb[0].mxu0
  %5921 = vmatprep.mubr.f32.mxu0 0.0
  %v5922 = vand.u32 %v3688, 4294901760
  %v5923 = vsub.f32 %v3688, %v5922
  %v5924 = vand.u32 %v5923, 4294901760
  %5925 = vmatmul.mubr.f32.gmra.mrb[0].mxu0 %v5924
  %v5926 = vpop.f32.mrb[0].mxu0
  %v5927 = vadd.f32 %v5354, %v5926
  %v5928 = vpop.f32.mrb[0].mxu0
  %5929 = vmatprep.mubr.f32.mxu0 0.0
  %v5930 = vand.u32 %v3691, 4294901760
  %v5931 = vsub.f32 %v3691, %v5930
  %v5932 = vand.u32 %v5931, 4294901760
  %5933 = vmatmul.mubr.f32.gmra.mrb[0].mxu0 %v5932
  %v5934 = vpop.f32.mrb[0].mxu0
  %v5935 = vadd.f32 %v5361, %v5934
  %v5936 = vpop.f32.mrb[0].mxu0
  %5937 = vmatprep.mubr.f32.mxu0 0.0
  %v5938 = vand.u32 %v3694, 4294901760
  %v5939 = vsub.f32 %v3694, %v5938
  %v5940 = vand.u32 %v5939, 4294901760
  %5941 = vmatmul.mubr.f32.gmra.mrb[0].mxu0 %v5940
  %v5942 = vpop.f32.mrb[0].mxu0
  %v5943 = vadd.f32 %v5368, %v5942
  %v5944 = vpop.f32.mrb[0].mxu0
  %5945 = vmatprep.mubr.f32.mxu0 0.0
  %v5946 = vand.u32 %v3697, 4294901760
  %v5947 = vsub.f32 %v3697, %v5946
  %v5948 = vand.u32 %v5947, 4294901760
  %5949 = vmatmul.mubr.f32.gmra.mrb[0].mxu0 %v5948
  %v5950 = vpop.f32.mrb[0].mxu0
  %v5951 = vadd.f32 %v5375, %v5950
  %v5952 = vpop.f32.mrb[0].mxu0
  %5953 = vmatprep.mubr.f32.mxu0 0.0
  %v5954 = vand.u32 %v3700, 4294901760
  %v5955 = vsub.f32 %v3700, %v5954
  %v5956 = vand.u32 %v5955, 4294901760
  %5957 = vmatmul.mubr.f32.gmra.mrb[0].mxu0 %v5956
  %v5958 = vpop.f32.mrb[0].mxu0
  %v5959 = vadd.f32 %v5382, %v5958
  %v5960 = vpop.f32.mrb[0].mxu0
  %5961 = vmatprep.mubr.f32.mxu0 0.0
  %v5962 = vand.u32 %v3703, 4294901760
  %v5963 = vsub.f32 %v3703, %v5962
  %v5964 = vand.u32 %v5963, 4294901760
  %5965 = vmatmul.mubr.f32.gmra.mrb[0].mxu0 %v5964
  %v5966 = vpop.f32.mrb[0].mxu0
  %v5967 = vadd.f32 %v5389, %v5966
  %v5968 = vpop.f32.mrb[0].mxu0
  %5969 = vmatprep.mubr.f32.mxu0 0.0
  %v5970 = vand.u32 %v3706, 4294901760
  %v5971 = vsub.f32 %v3706, %v5970
  %v5972 = vand.u32 %v5971, 4294901760
  %5973 = vmatmul.mubr.f32.gmra.mrb[0].mxu0 %v5972
  %v5974 = vpop.f32.mrb[0].mxu0
  %v5975 = vadd.f32 %v5396, %v5974
  %v5976 = vpop.f32.mrb[0].mxu0
  %5977 = vmatprep.mubr.f32.mxu0 0.0
  %v5978 = vand.u32 %v3709, 4294901760
  %v5979 = vsub.f32 %v3709, %v5978
  %v5980 = vand.u32 %v5979, 4294901760
  %5981 = vmatmul.mubr.f32.gmra.mrb[0].mxu0 %v5980
  %v5982 = vpop.f32.mrb[0].mxu0
  %v5983 = vadd.f32 %v5403, %v5982
  %v5984 = vpop.f32.mrb[0].mxu0
  %5985 = vmatprep.mubr.f32.mxu0 0.0
  %v5986 = vand.u32 %v3712, 4294901760
  %v5987 = vsub.f32 %v3712, %v5986
  %v5988 = vand.u32 %v5987, 4294901760
  %5989 = vmatmul.mubr.f32.gmra.mrb[0].mxu0 %v5988
  %v5990 = vpop.f32.mrb[0].mxu0
  %v5991 = vadd.f32 %v5410, %v5990
  %v5992 = vpop.f32.mrb[0].mxu0
  %5993 = vdwg.mxu0
  %5994 = vmatprep.subr.mxu0 0.0
  %v5995 = vand.u32 %v32, 4294901760
  %v5996 = vsub.f32 %v32, %v5995
  %v5997 = vand.u32 %v5996, 4294901760
  %5998 = vmatpush1.msra.mxu0 %v5997
  %5999 = vmatprep.subr.mxu0 0.0
  %v6000 = vand.u32 %v33, 4294901760
  %v6001 = vsub.f32 %v33, %v6000
  %v6002 = vand.u32 %v6001, 4294901760
  %6003 = vmatpush1.msra.mxu0 %v6002
  %6004 = vmatprep.subr.mxu0 0.0
  %v6005 = vand.u32 %v34, 4294901760
  %v6006 = vsub.f32 %v34, %v6005
  %v6007 = vand.u32 %v6006, 4294901760
  %6008 = vmatpush1.msra.mxu0 %v6007
  %6009 = vmatprep.subr.mxu0 0.0
  %v6010 = vand.u32 %v35, 4294901760
  %v6011 = vsub.f32 %v35, %v6010
  %v6012 = vand.u32 %v6011, 4294901760
  %6013 = vmatpush1.msra.mxu0 %v6012
  %6014 = vmatprep.subr.mxu0 0.0
  %6015 = vmatpush1.msra.mxu0 0.0
  %6016 = vmatprep.subr.mxu0 0.0
  %6017 = vmatpush1.msra.mxu0 0.0
  %6018 = vmatprep.subr.mxu0 0.0
  %6019 = vmatpush1.msra.mxu0 0.0
  %6020 = vmatprep.subr.mxu0 0.0
  %6021 = vmatpush1.msra.mxu0 0.0
  %6022 = vmatprep.subr.mxu0 0.0
  %6023 = vmatpush1.msra.mxu0 0.0
  %6024 = vmatprep.subr.mxu0 0.0
  %6025 = vmatpush1.msra.mxu0 0.0
  %6026 = vmatprep.subr.mxu0 0.0
  %6027 = vmatpush1.msra.mxu0 0.0
  %6028 = vmatprep.subr.mxu0 0.0
  %6029 = vmatpush1.msra.mxu0 0.0
  %6030 = vmatprep.subr.mxu0 0.0
  %6031 = vmatpush1.msra.mxu0 0.0
  %6032 = vmatprep.subr.mxu0 0.0
  %6033 = vmatpush1.msra.mxu0 0.0
  %6034 = vmatprep.subr.mxu0 0.0
  %6035 = vmatpush1.msra.mxu0 0.0
  %6036 = vmatprep.subr.mxu0 0.0
  %6037 = vmatpush1.msra.mxu0 0.0
  %6038 = vmatprep.subr.mxu0 0.0
  %6039 = vmatpush1.msra.mxu0 0.0
  %6040 = vmatprep.subr.mxu0 0.0
  %6041 = vmatpush1.msra.mxu0 0.0
  %6042 = vmatprep.subr.mxu0 0.0
  %6043 = vmatpush1.msra.mxu0 0.0
  %6044 = vmatprep.subr.mxu0 0.0
  %6045 = vmatpush1.msra.mxu0 0.0
  %6046 = vmatprep.subr.mxu0 0.0
  %6047 = vmatpush1.msra.mxu0 0.0
  %6048 = vmatprep.subr.mxu0 0.0
  %6049 = vmatpush1.msra.mxu0 0.0
  %6050 = vmatprep.subr.mxu0 0.0
  %6051 = vmatpush1.msra.mxu0 0.0
  %6052 = vmatprep.subr.mxu0 0.0
  %6053 = vmatpush1.msra.mxu0 0.0
  %6054 = vmatprep.subr.mxu0 0.0
  %6055 = vmatpush1.msra.mxu0 0.0
  %6056 = vmatprep.subr.mxu0 0.0
  %6057 = vmatpush1.msra.mxu0 0.0
  %6058 = vmatprep.subr.mxu0 0.0
  %6059 = vmatpush1.msra.mxu0 0.0
  %6060 = vmatprep.subr.mxu0 0.0
  %6061 = vmatpush1.msra.mxu0 0.0
  %6062 = vmatprep.subr.mxu0 0.0
  %6063 = vmatpush1.msra.mxu0 0.0
  %6064 = vmatprep.subr.mxu0 0.0
  %6065 = vmatpush1.msra.mxu0 0.0
  %6066 = vmatprep.subr.mxu0 0.0
  %6067 = vmatpush1.msra.mxu0 0.0
  %6068 = vmatprep.subr.mxu0 0.0
  %6069 = vmatpush1.msra.mxu0 0.0
  %6070 = vmatprep.mubr.f32.mxu0 0.0
  %v6071 = vand.u32 %v3523, 4294901760
  %6072 = vmatmul.mubr.f32.gmra.mrb[0].mxu0 %v6071
  %v6073 = vpop.f32.mrb[0].mxu0
  %v6074 = vadd.f32 %v5487, %v6073
  %v6075 = vpop.f32.mrb[0].mxu0
  %6076 = vmatprep.mubr.f32.mxu0 0.0
  %v6077 = vand.u32 %v3526, 4294901760
  %6078 = vmatmul.mubr.f32.gmra.mrb[0].mxu0 %v6077
  %v6079 = vpop.f32.mrb[0].mxu0
  %v6080 = vadd.f32 %v5495, %v6079
  %v6081 = vpop.f32.mrb[0].mxu0
  %6082 = vmatprep.mubr.f32.mxu0 0.0
  %v6083 = vand.u32 %v3529, 4294901760
  %6084 = vmatmul.mubr.f32.gmra.mrb[0].mxu0 %v6083
  %v6085 = vpop.f32.mrb[0].mxu0
  %v6086 = vadd.f32 %v5503, %v6085
  %v6087 = vpop.f32.mrb[0].mxu0
  %6088 = vmatprep.mubr.f32.mxu0 0.0
  %v6089 = vand.u32 %v3532, 4294901760
  %6090 = vmatmul.mubr.f32.gmra.mrb[0].mxu0 %v6089
  %v6091 = vpop.f32.mrb[0].mxu0
  %v6092 = vadd.f32 %v5511, %v6091
  %v6093 = vpop.f32.mrb[0].mxu0
  %6094 = vmatprep.mubr.f32.mxu0 0.0
  %v6095 = vand.u32 %v3535, 4294901760
  %6096 = vmatmul.mubr.f32.gmra.mrb[0].mxu0 %v6095
  %v6097 = vpop.f32.mrb[0].mxu0
  %v6098 = vadd.f32 %v5519, %v6097
  %v6099 = vpop.f32.mrb[0].mxu0
  %6100 = vmatprep.mubr.f32.mxu0 0.0
  %v6101 = vand.u32 %v3538, 4294901760
  %6102 = vmatmul.mubr.f32.gmra.mrb[0].mxu0 %v6101
  %v6103 = vpop.f32.mrb[0].mxu0
  %v6104 = vadd.f32 %v5527, %v6103
  %v6105 = vpop.f32.mrb[0].mxu0
  %6106 = vmatprep.mubr.f32.mxu0 0.0
  %v6107 = vand.u32 %v3541, 4294901760
  %6108 = vmatmul.mubr.f32.gmra.mrb[0].mxu0 %v6107
  %v6109 = vpop.f32.mrb[0].mxu0
  %v6110 = vadd.f32 %v5535, %v6109
  %v6111 = vpop.f32.mrb[0].mxu0
  %6112 = vmatprep.mubr.f32.mxu0 0.0
  %v6113 = vand.u32 %v3544, 4294901760
  %6114 = vmatmul.mubr.f32.gmra.mrb[0].mxu0 %v6113
  %v6115 = vpop.f32.mrb[0].mxu0
  %v6116 = vadd.f32 %v5543, %v6115
  %v6117 = vpop.f32.mrb[0].mxu0
  %6118 = vmatprep.mubr.f32.mxu0 0.0
  %v6119 = vand.u32 %v3547, 4294901760
  %6120 = vmatmul.mubr.f32.gmra.mrb[0].mxu0 %v6119
  %v6121 = vpop.f32.mrb[0].mxu0
  %v6122 = vadd.f32 %v5551, %v6121
  %v6123 = vpop.f32.mrb[0].mxu0
  %6124 = vmatprep.mubr.f32.mxu0 0.0
  %v6125 = vand.u32 %v3550, 4294901760
  %6126 = vmatmul.mubr.f32.gmra.mrb[0].mxu0 %v6125
  %v6127 = vpop.f32.mrb[0].mxu0
  %v6128 = vadd.f32 %v5559, %v6127
  %v6129 = vpop.f32.mrb[0].mxu0
  %6130 = vmatprep.mubr.f32.mxu0 0.0
  %v6131 = vand.u32 %v3553, 4294901760
  %6132 = vmatmul.mubr.f32.gmra.mrb[0].mxu0 %v6131
  %v6133 = vpop.f32.mrb[0].mxu0
  %v6134 = vadd.f32 %v5567, %v6133
  %v6135 = vpop.f32.mrb[0].mxu0
  %6136 = vmatprep.mubr.f32.mxu0 0.0
  %v6137 = vand.u32 %v3556, 4294901760
  %6138 = vmatmul.mubr.f32.gmra.mrb[0].mxu0 %v6137
  %v6139 = vpop.f32.mrb[0].mxu0
  %v6140 = vadd.f32 %v5575, %v6139
  %v6141 = vpop.f32.mrb[0].mxu0
  %6142 = vmatprep.mubr.f32.mxu0 0.0
  %v6143 = vand.u32 %v3559, 4294901760
  %6144 = vmatmul.mubr.f32.gmra.mrb[0].mxu0 %v6143
  %v6145 = vpop.f32.mrb[0].mxu0
  %v6146 = vadd.f32 %v5583, %v6145
  %v6147 = vpop.f32.mrb[0].mxu0
  %6148 = vmatprep.mubr.f32.mxu0 0.0
  %v6149 = vand.u32 %v3562, 4294901760
  %6150 = vmatmul.mubr.f32.gmra.mrb[0].mxu0 %v6149
  %v6151 = vpop.f32.mrb[0].mxu0
  %v6152 = vadd.f32 %v5591, %v6151
  %v6153 = vpop.f32.mrb[0].mxu0
  %6154 = vmatprep.mubr.f32.mxu0 0.0
  %v6155 = vand.u32 %v3565, 4294901760
  %6156 = vmatmul.mubr.f32.gmra.mrb[0].mxu0 %v6155
  %v6157 = vpop.f32.mrb[0].mxu0
  %v6158 = vadd.f32 %v5599, %v6157
  %v6159 = vpop.f32.mrb[0].mxu0
  %6160 = vmatprep.mubr.f32.mxu0 0.0
  %v6161 = vand.u32 %v3568, 4294901760
  %6162 = vmatmul.mubr.f32.gmra.mrb[0].mxu0 %v6161
  %v6163 = vpop.f32.mrb[0].mxu0
  %v6164 = vadd.f32 %v5607, %v6163
  %v6165 = vpop.f32.mrb[0].mxu0
  %6166 = vmatprep.mubr.f32.mxu0 0.0
  %v6167 = vand.u32 %v3571, 4294901760
  %6168 = vmatmul.mubr.f32.gmra.mrb[0].mxu0 %v6167
  %v6169 = vpop.f32.mrb[0].mxu0
  %v6170 = vadd.f32 %v5615, %v6169
  %v6171 = vpop.f32.mrb[0].mxu0
  %6172 = vmatprep.mubr.f32.mxu0 0.0
  %v6173 = vand.u32 %v3574, 4294901760
  %6174 = vmatmul.mubr.f32.gmra.mrb[0].mxu0 %v6173
  %v6175 = vpop.f32.mrb[0].mxu0
  %v6176 = vadd.f32 %v5623, %v6175
  %v6177 = vpop.f32.mrb[0].mxu0
  %6178 = vmatprep.mubr.f32.mxu0 0.0
  %v6179 = vand.u32 %v3577, 4294901760
  %6180 = vmatmul.mubr.f32.gmra.mrb[0].mxu0 %v6179
  %v6181 = vpop.f32.mrb[0].mxu0
  %v6182 = vadd.f32 %v5631, %v6181
  %v6183 = vpop.f32.mrb[0].mxu0
  %6184 = vmatprep.mubr.f32.mxu0 0.0
  %v6185 = vand.u32 %v3580, 4294901760
  %6186 = vmatmul.mubr.f32.gmra.mrb[0].mxu0 %v6185
  %v6187 = vpop.f32.mrb[0].mxu0
  %v6188 = vadd.f32 %v5639, %v6187
  %v6189 = vpop.f32.mrb[0].mxu0
  %6190 = vmatprep.mubr.f32.mxu0 0.0
  %v6191 = vand.u32 %v3583, 4294901760
  %6192 = vmatmul.mubr.f32.gmra.mrb[0].mxu0 %v6191
  %v6193 = vpop.f32.mrb[0].mxu0
  %v6194 = vadd.f32 %v5647, %v6193
  %v6195 = vpop.f32.mrb[0].mxu0
  %6196 = vmatprep.mubr.f32.mxu0 0.0
  %v6197 = vand.u32 %v3586, 4294901760
  %6198 = vmatmul.mubr.f32.gmra.mrb[0].mxu0 %v6197
  %v6199 = vpop.f32.mrb[0].mxu0
  %v6200 = vadd.f32 %v5655, %v6199
  %v6201 = vpop.f32.mrb[0].mxu0
  %6202 = vmatprep.mubr.f32.mxu0 0.0
  %v6203 = vand.u32 %v3589, 4294901760
  %6204 = vmatmul.mubr.f32.gmra.mrb[0].mxu0 %v6203
  %v6205 = vpop.f32.mrb[0].mxu0
  %v6206 = vadd.f32 %v5663, %v6205
  %v6207 = vpop.f32.mrb[0].mxu0
  %6208 = vmatprep.mubr.f32.mxu0 0.0
  %v6209 = vand.u32 %v3592, 4294901760
  %6210 = vmatmul.mubr.f32.gmra.mrb[0].mxu0 %v6209
  %v6211 = vpop.f32.mrb[0].mxu0
  %v6212 = vadd.f32 %v5671, %v6211
  %v6213 = vpop.f32.mrb[0].mxu0
  %6214 = vmatprep.mubr.f32.mxu0 0.0
  %v6215 = vand.u32 %v3595, 4294901760
  %6216 = vmatmul.mubr.f32.gmra.mrb[0].mxu0 %v6215
  %v6217 = vpop.f32.mrb[0].mxu0
  %v6218 = vadd.f32 %v5679, %v6217
  %v6219 = vpop.f32.mrb[0].mxu0
  %6220 = vmatprep.mubr.f32.mxu0 0.0
  %v6221 = vand.u32 %v3598, 4294901760
  %6222 = vmatmul.mubr.f32.gmra.mrb[0].mxu0 %v6221
  %v6223 = vpop.f32.mrb[0].mxu0
  %v6224 = vadd.f32 %v5687, %v6223
  %v6225 = vpop.f32.mrb[0].mxu0
  %6226 = vmatprep.mubr.f32.mxu0 0.0
  %v6227 = vand.u32 %v3601, 4294901760
  %6228 = vmatmul.mubr.f32.gmra.mrb[0].mxu0 %v6227
  %v6229 = vpop.f32.mrb[0].mxu0
  %v6230 = vadd.f32 %v5695, %v6229
  %v6231 = vpop.f32.mrb[0].mxu0
  %6232 = vmatprep.mubr.f32.mxu0 0.0
  %v6233 = vand.u32 %v3604, 4294901760
  %6234 = vmatmul.mubr.f32.gmra.mrb[0].mxu0 %v6233
  %v6235 = vpop.f32.mrb[0].mxu0
  %v6236 = vadd.f32 %v5703, %v6235
  %v6237 = vpop.f32.mrb[0].mxu0
  %6238 = vmatprep.mubr.f32.mxu0 0.0
  %v6239 = vand.u32 %v3607, 4294901760
  %6240 = vmatmul.mubr.f32.gmra.mrb[0].mxu0 %v6239
  %v6241 = vpop.f32.mrb[0].mxu0
  %v6242 = vadd.f32 %v5711, %v6241
  %v6243 = vpop.f32.mrb[0].mxu0
  %6244 = vmatprep.mubr.f32.mxu0 0.0
  %v6245 = vand.u32 %v3610, 4294901760
  %6246 = vmatmul.mubr.f32.gmra.mrb[0].mxu0 %v6245
  %v6247 = vpop.f32.mrb[0].mxu0
  %v6248 = vadd.f32 %v5719, %v6247
  %v6249 = vpop.f32.mrb[0].mxu0
  %6250 = vmatprep.mubr.f32.mxu0 0.0
  %v6251 = vand.u32 %v3613, 4294901760
  %6252 = vmatmul.mubr.f32.gmra.mrb[0].mxu0 %v6251
  %v6253 = vpop.f32.mrb[0].mxu0
  %v6254 = vadd.f32 %v5727, %v6253
  %v6255 = vpop.f32.mrb[0].mxu0
  %6256 = vmatprep.mubr.f32.mxu0 0.0
  %v6257 = vand.u32 %v3616, 4294901760
  %6258 = vmatmul.mubr.f32.gmra.mrb[0].mxu0 %v6257
  %v6259 = vpop.f32.mrb[0].mxu0
  %v6260 = vadd.f32 %v5735, %v6259
  %v6261 = vpop.f32.mrb[0].mxu0
  %6262 = vmatprep.mubr.f32.mxu0 0.0
  %v6263 = vand.u32 %v3619, 4294901760
  %6264 = vmatmul.mubr.f32.gmra.mrb[0].mxu0 %v6263
  %v6265 = vpop.f32.mrb[0].mxu0
  %v6266 = vadd.f32 %v5743, %v6265
  %v6267 = vpop.f32.mrb[0].mxu0
  %6268 = vmatprep.mubr.f32.mxu0 0.0
  %v6269 = vand.u32 %v3622, 4294901760
  %6270 = vmatmul.mubr.f32.gmra.mrb[0].mxu0 %v6269
  %v6271 = vpop.f32.mrb[0].mxu0
  %v6272 = vadd.f32 %v5751, %v6271
  %v6273 = vpop.f32.mrb[0].mxu0
  %6274 = vmatprep.mubr.f32.mxu0 0.0
  %v6275 = vand.u32 %v3625, 4294901760
  %6276 = vmatmul.mubr.f32.gmra.mrb[0].mxu0 %v6275
  %v6277 = vpop.f32.mrb[0].mxu0
  %v6278 = vadd.f32 %v5759, %v6277
  %v6279 = vpop.f32.mrb[0].mxu0
  %6280 = vmatprep.mubr.f32.mxu0 0.0
  %v6281 = vand.u32 %v3628, 4294901760
  %6282 = vmatmul.mubr.f32.gmra.mrb[0].mxu0 %v6281
  %v6283 = vpop.f32.mrb[0].mxu0
  %v6284 = vadd.f32 %v5767, %v6283
  %v6285 = vpop.f32.mrb[0].mxu0
  %6286 = vmatprep.mubr.f32.mxu0 0.0
  %v6287 = vand.u32 %v3631, 4294901760
  %6288 = vmatmul.mubr.f32.gmra.mrb[0].mxu0 %v6287
  %v6289 = vpop.f32.mrb[0].mxu0
  %v6290 = vadd.f32 %v5775, %v6289
  %v6291 = vpop.f32.mrb[0].mxu0
  %6292 = vmatprep.mubr.f32.mxu0 0.0
  %v6293 = vand.u32 %v3634, 4294901760
  %6294 = vmatmul.mubr.f32.gmra.mrb[0].mxu0 %v6293
  %v6295 = vpop.f32.mrb[0].mxu0
  %v6296 = vadd.f32 %v5783, %v6295
  %v6297 = vpop.f32.mrb[0].mxu0
  %6298 = vmatprep.mubr.f32.mxu0 0.0
  %v6299 = vand.u32 %v3637, 4294901760
  %6300 = vmatmul.mubr.f32.gmra.mrb[0].mxu0 %v6299
  %v6301 = vpop.f32.mrb[0].mxu0
  %v6302 = vadd.f32 %v5791, %v6301
  %v6303 = vpop.f32.mrb[0].mxu0
  %6304 = vmatprep.mubr.f32.mxu0 0.0
  %v6305 = vand.u32 %v3640, 4294901760
  %6306 = vmatmul.mubr.f32.gmra.mrb[0].mxu0 %v6305
  %v6307 = vpop.f32.mrb[0].mxu0
  %v6308 = vadd.f32 %v5799, %v6307
  %v6309 = vpop.f32.mrb[0].mxu0
  %6310 = vmatprep.mubr.f32.mxu0 0.0
  %v6311 = vand.u32 %v3643, 4294901760
  %6312 = vmatmul.mubr.f32.gmra.mrb[0].mxu0 %v6311
  %v6313 = vpop.f32.mrb[0].mxu0
  %v6314 = vadd.f32 %v5807, %v6313
  %v6315 = vpop.f32.mrb[0].mxu0
  %6316 = vmatprep.mubr.f32.mxu0 0.0
  %v6317 = vand.u32 %v3646, 4294901760
  %6318 = vmatmul.mubr.f32.gmra.mrb[0].mxu0 %v6317
  %v6319 = vpop.f32.mrb[0].mxu0
  %v6320 = vadd.f32 %v5815, %v6319
  %v6321 = vpop.f32.mrb[0].mxu0
  %6322 = vmatprep.mubr.f32.mxu0 0.0
  %v6323 = vand.u32 %v3649, 4294901760
  %6324 = vmatmul.mubr.f32.gmra.mrb[0].mxu0 %v6323
  %v6325 = vpop.f32.mrb[0].mxu0
  %v6326 = vadd.f32 %v5823, %v6325
  %v6327 = vpop.f32.mrb[0].mxu0
  %6328 = vmatprep.mubr.f32.mxu0 0.0
  %v6329 = vand.u32 %v3652, 4294901760
  %6330 = vmatmul.mubr.f32.gmra.mrb[0].mxu0 %v6329
  %v6331 = vpop.f32.mrb[0].mxu0
  %v6332 = vadd.f32 %v5831, %v6331
  %v6333 = vpop.f32.mrb[0].mxu0
  %6334 = vmatprep.mubr.f32.mxu0 0.0
  %v6335 = vand.u32 %v3655, 4294901760
  %6336 = vmatmul.mubr.f32.gmra.mrb[0].mxu0 %v6335
  %v6337 = vpop.f32.mrb[0].mxu0
  %v6338 = vadd.f32 %v5839, %v6337
  %v6339 = vpop.f32.mrb[0].mxu0
  %6340 = vmatprep.mubr.f32.mxu0 0.0
  %v6341 = vand.u32 %v3658, 4294901760
  %6342 = vmatmul.mubr.f32.gmra.mrb[0].mxu0 %v6341
  %v6343 = vpop.f32.mrb[0].mxu0
  %v6344 = vadd.f32 %v5847, %v6343
  %v6345 = vpop.f32.mrb[0].mxu0
  %6346 = vmatprep.mubr.f32.mxu0 0.0
  %v6347 = vand.u32 %v3661, 4294901760
  %6348 = vmatmul.mubr.f32.gmra.mrb[0].mxu0 %v6347
  %v6349 = vpop.f32.mrb[0].mxu0
  %v6350 = vadd.f32 %v5855, %v6349
  %v6351 = vpop.f32.mrb[0].mxu0
  %6352 = vmatprep.mubr.f32.mxu0 0.0
  %v6353 = vand.u32 %v3664, 4294901760
  %6354 = vmatmul.mubr.f32.gmra.mrb[0].mxu0 %v6353
  %v6355 = vpop.f32.mrb[0].mxu0
  %v6356 = vadd.f32 %v5863, %v6355
  %v6357 = vpop.f32.mrb[0].mxu0
  %6358 = vmatprep.mubr.f32.mxu0 0.0
  %v6359 = vand.u32 %v3667, 4294901760
  %6360 = vmatmul.mubr.f32.gmra.mrb[0].mxu0 %v6359
  %v6361 = vpop.f32.mrb[0].mxu0
  %v6362 = vadd.f32 %v5871, %v6361
  %v6363 = vpop.f32.mrb[0].mxu0
  %6364 = vmatprep.mubr.f32.mxu0 0.0
  %v6365 = vand.u32 %v3670, 4294901760
  %6366 = vmatmul.mubr.f32.gmra.mrb[0].mxu0 %v6365
  %v6367 = vpop.f32.mrb[0].mxu0
  %v6368 = vadd.f32 %v5879, %v6367
  %v6369 = vpop.f32.mrb[0].mxu0
  %6370 = vmatprep.mubr.f32.mxu0 0.0
  %v6371 = vand.u32 %v3673, 4294901760
  %6372 = vmatmul.mubr.f32.gmra.mrb[0].mxu0 %v6371
  %v6373 = vpop.f32.mrb[0].mxu0
  %v6374 = vadd.f32 %v5887, %v6373
  %v6375 = vpop.f32.mrb[0].mxu0
  %6376 = vmatprep.mubr.f32.mxu0 0.0
  %v6377 = vand.u32 %v3676, 4294901760
  %6378 = vmatmul.mubr.f32.gmra.mrb[0].mxu0 %v6377
  %v6379 = vpop.f32.mrb[0].mxu0
  %v6380 = vadd.f32 %v5895, %v6379
  %v6381 = vpop.f32.mrb[0].mxu0
  %6382 = vmatprep.mubr.f32.mxu0 0.0
  %v6383 = vand.u32 %v3679, 4294901760
  %6384 = vmatmul.mubr.f32.gmra.mrb[0].mxu0 %v6383
  %v6385 = vpop.f32.mrb[0].mxu0
  %v6386 = vadd.f32 %v5903, %v6385
  %v6387 = vpop.f32.mrb[0].mxu0
  %6388 = vmatprep.mubr.f32.mxu0 0.0
  %v6389 = vand.u32 %v3682, 4294901760
  %6390 = vmatmul.mubr.f32.gmra.mrb[0].mxu0 %v6389
  %v6391 = vpop.f32.mrb[0].mxu0
  %v6392 = vadd.f32 %v5911, %v6391
  %v6393 = vpop.f32.mrb[0].mxu0
  %6394 = vmatprep.mubr.f32.mxu0 0.0
  %v6395 = vand.u32 %v3685, 4294901760
  %6396 = vmatmul.mubr.f32.gmra.mrb[0].mxu0 %v6395
  %v6397 = vpop.f32.mrb[0].mxu0
  %v6398 = vadd.f32 %v5919, %v6397
  %v6399 = vpop.f32.mrb[0].mxu0
  %6400 = vmatprep.mubr.f32.mxu0 0.0
  %v6401 = vand.u32 %v3688, 4294901760
  %6402 = vmatmul.mubr.f32.gmra.mrb[0].mxu0 %v6401
  %v6403 = vpop.f32.mrb[0].mxu0
  %v6404 = vadd.f32 %v5927, %v6403
  %v6405 = vpop.f32.mrb[0].mxu0
  %6406 = vmatprep.mubr.f32.mxu0 0.0
  %v6407 = vand.u32 %v3691, 4294901760
  %6408 = vmatmul.mubr.f32.gmra.mrb[0].mxu0 %v6407
  %v6409 = vpop.f32.mrb[0].mxu0
  %v6410 = vadd.f32 %v5935, %v6409
  %v6411 = vpop.f32.mrb[0].mxu0
  %6412 = vmatprep.mubr.f32.mxu0 0.0
  %v6413 = vand.u32 %v3694, 4294901760
  %6414 = vmatmul.mubr.f32.gmra.mrb[0].mxu0 %v6413
  %v6415 = vpop.f32.mrb[0].mxu0
  %v6416 = vadd.f32 %v5943, %v6415
  %v6417 = vpop.f32.mrb[0].mxu0
  %6418 = vmatprep.mubr.f32.mxu0 0.0
  %v6419 = vand.u32 %v3697, 4294901760
  %6420 = vmatmul.mubr.f32.gmra.mrb[0].mxu0 %v6419
  %v6421 = vpop.f32.mrb[0].mxu0
  %v6422 = vadd.f32 %v5951, %v6421
  %v6423 = vpop.f32.mrb[0].mxu0
  %6424 = vmatprep.mubr.f32.mxu0 0.0
  %v6425 = vand.u32 %v3700, 4294901760
  %6426 = vmatmul.mubr.f32.gmra.mrb[0].mxu0 %v6425
  %v6427 = vpop.f32.mrb[0].mxu0
  %v6428 = vadd.f32 %v5959, %v6427
  %v6429 = vpop.f32.mrb[0].mxu0
  %6430 = vmatprep.mubr.f32.mxu0 0.0
  %v6431 = vand.u32 %v3703, 4294901760
  %6432 = vmatmul.mubr.f32.gmra.mrb[0].mxu0 %v6431
  %v6433 = vpop.f32.mrb[0].mxu0
  %v6434 = vadd.f32 %v5967, %v6433
  %v6435 = vpop.f32.mrb[0].mxu0
  %6436 = vmatprep.mubr.f32.mxu0 0.0
  %v6437 = vand.u32 %v3706, 4294901760
  %6438 = vmatmul.mubr.f32.gmra.mrb[0].mxu0 %v6437
  %v6439 = vpop.f32.mrb[0].mxu0
  %v6440 = vadd.f32 %v5975, %v6439
  %v6441 = vpop.f32.mrb[0].mxu0
  %6442 = vmatprep.mubr.f32.mxu0 0.0
  %v6443 = vand.u32 %v3709, 4294901760
  %6444 = vmatmul.mubr.f32.gmra.mrb[0].mxu0 %v6443
  %v6445 = vpop.f32.mrb[0].mxu0
  %v6446 = vadd.f32 %v5983, %v6445
  %v6447 = vpop.f32.mrb[0].mxu0
  %6448 = vmatprep.mubr.f32.mxu0 0.0
  %v6449 = vand.u32 %v3712, 4294901760
  %6450 = vmatmul.mubr.f32.gmra.mrb[0].mxu0 %v6449
  %v6451 = vpop.f32.mrb[0].mxu0
  %v6452 = vadd.f32 %v5991, %v6451
  %v6453 = vpop.f32.mrb[0].mxu0
  %6454 = vdwg.mxu0
  %6455 = vmatprep.subr.mxu0 0.0
  %v6456 = vand.u32 %v32, 4294901760
  %6457 = vmatpush1.msra.mxu0 %v6456
  %6458 = vmatprep.subr.mxu0 0.0
  %v6459 = vand.u32 %v33, 4294901760
  %6460 = vmatpush1.msra.mxu0 %v6459
  %6461 = vmatprep.subr.mxu0 0.0
  %v6462 = vand.u32 %v34, 4294901760
  %6463 = vmatpush1.msra.mxu0 %v6462
  %6464 = vmatprep.subr.mxu0 0.0
  %v6465 = vand.u32 %v35, 4294901760
  %6466 = vmatpush1.msra.mxu0 %v6465
  %6467 = vmatprep.subr.mxu0 0.0
  %6468 = vmatpush1.msra.mxu0 0.0
  %6469 = vmatprep.subr.mxu0 0.0
  %6470 = vmatpush1.msra.mxu0 0.0
  %6471 = vmatprep.subr.mxu0 0.0
  %6472 = vmatpush1.msra.mxu0 0.0
  %6473 = vmatprep.subr.mxu0 0.0
  %6474 = vmatpush1.msra.mxu0 0.0
  %6475 = vmatprep.subr.mxu0 0.0
  %6476 = vmatpush1.msra.mxu0 0.0
  %6477 = vmatprep.subr.mxu0 0.0
  %6478 = vmatpush1.msra.mxu0 0.0
  %6479 = vmatprep.subr.mxu0 0.0
  %6480 = vmatpush1.msra.mxu0 0.0
  %6481 = vmatprep.subr.mxu0 0.0
  %6482 = vmatpush1.msra.mxu0 0.0
  %6483 = vmatprep.subr.mxu0 0.0
  %6484 = vmatpush1.msra.mxu0 0.0
  %6485 = vmatprep.subr.mxu0 0.0
  %6486 = vmatpush1.msra.mxu0 0.0
  %6487 = vmatprep.subr.mxu0 0.0
  %6488 = vmatpush1.msra.mxu0 0.0
  %6489 = vmatprep.subr.mxu0 0.0
  %6490 = vmatpush1.msra.mxu0 0.0
  %6491 = vmatprep.subr.mxu0 0.0
  %6492 = vmatpush1.msra.mxu0 0.0
  %6493 = vmatprep.subr.mxu0 0.0
  %6494 = vmatpush1.msra.mxu0 0.0
  %6495 = vmatprep.subr.mxu0 0.0
  %6496 = vmatpush1.msra.mxu0 0.0
  %6497 = vmatprep.subr.mxu0 0.0
  %6498 = vmatpush1.msra.mxu0 0.0
  %6499 = vmatprep.subr.mxu0 0.0
  %6500 = vmatpush1.msra.mxu0 0.0
  %6501 = vmatprep.subr.mxu0 0.0
  %6502 = vmatpush1.msra.mxu0 0.0
  %6503 = vmatprep.subr.mxu0 0.0
  %6504 = vmatpush1.msra.mxu0 0.0
  %6505 = vmatprep.subr.mxu0 0.0
  %6506 = vmatpush1.msra.mxu0 0.0
  %6507 = vmatprep.subr.mxu0 0.0
  %6508 = vmatpush1.msra.mxu0 0.0
  %6509 = vmatprep.subr.mxu0 0.0
  %6510 = vmatpush1.msra.mxu0 0.0
  %6511 = vmatprep.subr.mxu0 0.0
  %6512 = vmatpush1.msra.mxu0 0.0
  %6513 = vmatprep.subr.mxu0 0.0
  %6514 = vmatpush1.msra.mxu0 0.0
  %6515 = vmatprep.subr.mxu0 0.0
  %6516 = vmatpush1.msra.mxu0 0.0
  %6517 = vmatprep.subr.mxu0 0.0
  %6518 = vmatpush1.msra.mxu0 0.0
  %6519 = vmatprep.subr.mxu0 0.0
  %6520 = vmatpush1.msra.mxu0 0.0
  %6521 = vmatprep.subr.mxu0 0.0
  %6522 = vmatpush1.msra.mxu0 0.0
  %6523 = vmatprep.mubr.f32.mxu0 0.0
  %v6524 = vand.u32 %v3523, 4294901760
  %6525 = vmatmul.mubr.f32.gmra.mrb[0].mxu0 %v6524
  %v6526 = vpop.f32.mrb[0].mxu0
  %v6527 = vadd.f32 %v6074, %v6526
  %v6528 = vpop.f32.mrb[0].mxu0
  %6529 = vmatprep.mubr.f32.mxu0 0.0
  %v6530 = vand.u32 %v3526, 4294901760
  %6531 = vmatmul.mubr.f32.gmra.mrb[0].mxu0 %v6530
  %v6532 = vpop.f32.mrb[0].mxu0
  %v6533 = vadd.f32 %v6080, %v6532
  %v6534 = vpop.f32.mrb[0].mxu0
  %6535 = vmatprep.mubr.f32.mxu0 0.0
  %v6536 = vand.u32 %v3529, 4294901760
  %6537 = vmatmul.mubr.f32.gmra.mrb[0].mxu0 %v6536
  %v6538 = vpop.f32.mrb[0].mxu0
  %v6539 = vadd.f32 %v6086, %v6538
  %v6540 = vpop.f32.mrb[0].mxu0
  %6541 = vmatprep.mubr.f32.mxu0 0.0
  %v6542 = vand.u32 %v3532, 4294901760
  %6543 = vmatmul.mubr.f32.gmra.mrb[0].mxu0 %v6542
  %v6544 = vpop.f32.mrb[0].mxu0
  %v6545 = vadd.f32 %v6092, %v6544
  %v6546 = vpop.f32.mrb[0].mxu0
  %6547 = vmatprep.mubr.f32.mxu0 0.0
  %v6548 = vand.u32 %v3535, 4294901760
  %6549 = vmatmul.mubr.f32.gmra.mrb[0].mxu0 %v6548
  %v6550 = vpop.f32.mrb[0].mxu0
  %v6551 = vadd.f32 %v6098, %v6550
  %v6552 = vpop.f32.mrb[0].mxu0
  %6553 = vmatprep.mubr.f32.mxu0 0.0
  %v6554 = vand.u32 %v3538, 4294901760
  %6555 = vmatmul.mubr.f32.gmra.mrb[0].mxu0 %v6554
  %v6556 = vpop.f32.mrb[0].mxu0
  %v6557 = vadd.f32 %v6104, %v6556
  %v6558 = vpop.f32.mrb[0].mxu0
  %6559 = vmatprep.mubr.f32.mxu0 0.0
  %v6560 = vand.u32 %v3541, 4294901760
  %6561 = vmatmul.mubr.f32.gmra.mrb[0].mxu0 %v6560
  %v6562 = vpop.f32.mrb[0].mxu0
  %v6563 = vadd.f32 %v6110, %v6562
  %v6564 = vpop.f32.mrb[0].mxu0
  %6565 = vmatprep.mubr.f32.mxu0 0.0
  %v6566 = vand.u32 %v3544, 4294901760
  %6567 = vmatmul.mubr.f32.gmra.mrb[0].mxu0 %v6566
  %v6568 = vpop.f32.mrb[0].mxu0
  %v6569 = vadd.f32 %v6116, %v6568
  %v6570 = vpop.f32.mrb[0].mxu0
  %6571 = vmatprep.mubr.f32.mxu0 0.0
  %v6572 = vand.u32 %v3547, 4294901760
  %6573 = vmatmul.mubr.f32.gmra.mrb[0].mxu0 %v6572
  %v6574 = vpop.f32.mrb[0].mxu0
  %v6575 = vadd.f32 %v6122, %v6574
  %v6576 = vpop.f32.mrb[0].mxu0
  %6577 = vmatprep.mubr.f32.mxu0 0.0
  %v6578 = vand.u32 %v3550, 4294901760
  %6579 = vmatmul.mubr.f32.gmra.mrb[0].mxu0 %v6578
  %v6580 = vpop.f32.mrb[0].mxu0
  %v6581 = vadd.f32 %v6128, %v6580
  %v6582 = vpop.f32.mrb[0].mxu0
  %6583 = vmatprep.mubr.f32.mxu0 0.0
  %v6584 = vand.u32 %v3553, 4294901760
  %6585 = vmatmul.mubr.f32.gmra.mrb[0].mxu0 %v6584
  %v6586 = vpop.f32.mrb[0].mxu0
  %v6587 = vadd.f32 %v6134, %v6586
  %v6588 = vpop.f32.mrb[0].mxu0
  %6589 = vmatprep.mubr.f32.mxu0 0.0
  %v6590 = vand.u32 %v3556, 4294901760
  %6591 = vmatmul.mubr.f32.gmra.mrb[0].mxu0 %v6590
  %v6592 = vpop.f32.mrb[0].mxu0
  %v6593 = vadd.f32 %v6140, %v6592
  %v6594 = vpop.f32.mrb[0].mxu0
  %6595 = vmatprep.mubr.f32.mxu0 0.0
  %v6596 = vand.u32 %v3559, 4294901760
  %6597 = vmatmul.mubr.f32.gmra.mrb[0].mxu0 %v6596
  %v6598 = vpop.f32.mrb[0].mxu0
  %v6599 = vadd.f32 %v6146, %v6598
  %v6600 = vpop.f32.mrb[0].mxu0
  %6601 = vmatprep.mubr.f32.mxu0 0.0
  %v6602 = vand.u32 %v3562, 4294901760
  %6603 = vmatmul.mubr.f32.gmra.mrb[0].mxu0 %v6602
  %v6604 = vpop.f32.mrb[0].mxu0
  %v6605 = vadd.f32 %v6152, %v6604
  %v6606 = vpop.f32.mrb[0].mxu0
  %6607 = vmatprep.mubr.f32.mxu0 0.0
  %v6608 = vand.u32 %v3565, 4294901760
  %6609 = vmatmul.mubr.f32.gmra.mrb[0].mxu0 %v6608
  %v6610 = vpop.f32.mrb[0].mxu0
  %v6611 = vadd.f32 %v6158, %v6610
  %v6612 = vpop.f32.mrb[0].mxu0
  %6613 = vmatprep.mubr.f32.mxu0 0.0
  %v6614 = vand.u32 %v3568, 4294901760
  %6615 = vmatmul.mubr.f32.gmra.mrb[0].mxu0 %v6614
  %v6616 = vpop.f32.mrb[0].mxu0
  %v6617 = vadd.f32 %v6164, %v6616
  %v6618 = vpop.f32.mrb[0].mxu0
  %6619 = vmatprep.mubr.f32.mxu0 0.0
  %v6620 = vand.u32 %v3571, 4294901760
  %6621 = vmatmul.mubr.f32.gmra.mrb[0].mxu0 %v6620
  %v6622 = vpop.f32.mrb[0].mxu0
  %v6623 = vadd.f32 %v6170, %v6622
  %v6624 = vpop.f32.mrb[0].mxu0
  %6625 = vmatprep.mubr.f32.mxu0 0.0
  %v6626 = vand.u32 %v3574, 4294901760
  %6627 = vmatmul.mubr.f32.gmra.mrb[0].mxu0 %v6626
  %v6628 = vpop.f32.mrb[0].mxu0
  %v6629 = vadd.f32 %v6176, %v6628
  %v6630 = vpop.f32.mrb[0].mxu0
  %6631 = vmatprep.mubr.f32.mxu0 0.0
  %v6632 = vand.u32 %v3577, 4294901760
  %6633 = vmatmul.mubr.f32.gmra.mrb[0].mxu0 %v6632
  %v6634 = vpop.f32.mrb[0].mxu0
  %v6635 = vadd.f32 %v6182, %v6634
  %v6636 = vpop.f32.mrb[0].mxu0
  %6637 = vmatprep.mubr.f32.mxu0 0.0
  %v6638 = vand.u32 %v3580, 4294901760
  %6639 = vmatmul.mubr.f32.gmra.mrb[0].mxu0 %v6638
  %v6640 = vpop.f32.mrb[0].mxu0
  %v6641 = vadd.f32 %v6188, %v6640
  %v6642 = vpop.f32.mrb[0].mxu0
  %6643 = vmatprep.mubr.f32.mxu0 0.0
  %v6644 = vand.u32 %v3583, 4294901760
  %6645 = vmatmul.mubr.f32.gmra.mrb[0].mxu0 %v6644
  %v6646 = vpop.f32.mrb[0].mxu0
  %v6647 = vadd.f32 %v6194, %v6646
  %v6648 = vpop.f32.mrb[0].mxu0
  %6649 = vmatprep.mubr.f32.mxu0 0.0
  %v6650 = vand.u32 %v3586, 4294901760
  %6651 = vmatmul.mubr.f32.gmra.mrb[0].mxu0 %v6650
  %v6652 = vpop.f32.mrb[0].mxu0
  %v6653 = vadd.f32 %v6200, %v6652
  %v6654 = vpop.f32.mrb[0].mxu0
  %6655 = vmatprep.mubr.f32.mxu0 0.0
  %v6656 = vand.u32 %v3589, 4294901760
  %6657 = vmatmul.mubr.f32.gmra.mrb[0].mxu0 %v6656
  %v6658 = vpop.f32.mrb[0].mxu0
  %v6659 = vadd.f32 %v6206, %v6658
  %v6660 = vpop.f32.mrb[0].mxu0
  %6661 = vmatprep.mubr.f32.mxu0 0.0
  %v6662 = vand.u32 %v3592, 4294901760
  %6663 = vmatmul.mubr.f32.gmra.mrb[0].mxu0 %v6662
  %v6664 = vpop.f32.mrb[0].mxu0
  %v6665 = vadd.f32 %v6212, %v6664
  %v6666 = vpop.f32.mrb[0].mxu0
  %6667 = vmatprep.mubr.f32.mxu0 0.0
  %v6668 = vand.u32 %v3595, 4294901760
  %6669 = vmatmul.mubr.f32.gmra.mrb[0].mxu0 %v6668
  %v6670 = vpop.f32.mrb[0].mxu0
  %v6671 = vadd.f32 %v6218, %v6670
  %v6672 = vpop.f32.mrb[0].mxu0
  %6673 = vmatprep.mubr.f32.mxu0 0.0
  %v6674 = vand.u32 %v3598, 4294901760
  %6675 = vmatmul.mubr.f32.gmra.mrb[0].mxu0 %v6674
  %v6676 = vpop.f32.mrb[0].mxu0
  %v6677 = vadd.f32 %v6224, %v6676
  %v6678 = vpop.f32.mrb[0].mxu0
  %6679 = vmatprep.mubr.f32.mxu0 0.0
  %v6680 = vand.u32 %v3601, 4294901760
  %6681 = vmatmul.mubr.f32.gmra.mrb[0].mxu0 %v6680
  %v6682 = vpop.f32.mrb[0].mxu0
  %v6683 = vadd.f32 %v6230, %v6682
  %v6684 = vpop.f32.mrb[0].mxu0
  %6685 = vmatprep.mubr.f32.mxu0 0.0
  %v6686 = vand.u32 %v3604, 4294901760
  %6687 = vmatmul.mubr.f32.gmra.mrb[0].mxu0 %v6686
  %v6688 = vpop.f32.mrb[0].mxu0
  %v6689 = vadd.f32 %v6236, %v6688
  %v6690 = vpop.f32.mrb[0].mxu0
  %6691 = vmatprep.mubr.f32.mxu0 0.0
  %v6692 = vand.u32 %v3607, 4294901760
  %6693 = vmatmul.mubr.f32.gmra.mrb[0].mxu0 %v6692
  %v6694 = vpop.f32.mrb[0].mxu0
  %v6695 = vadd.f32 %v6242, %v6694
  %v6696 = vpop.f32.mrb[0].mxu0
  %6697 = vmatprep.mubr.f32.mxu0 0.0
  %v6698 = vand.u32 %v3610, 4294901760
  %6699 = vmatmul.mubr.f32.gmra.mrb[0].mxu0 %v6698
  %v6700 = vpop.f32.mrb[0].mxu0
  %v6701 = vadd.f32 %v6248, %v6700
  %v6702 = vpop.f32.mrb[0].mxu0
  %6703 = vmatprep.mubr.f32.mxu0 0.0
  %v6704 = vand.u32 %v3613, 4294901760
  %6705 = vmatmul.mubr.f32.gmra.mrb[0].mxu0 %v6704
  %v6706 = vpop.f32.mrb[0].mxu0
  %v6707 = vadd.f32 %v6254, %v6706
  %v6708 = vpop.f32.mrb[0].mxu0
  %6709 = vmatprep.mubr.f32.mxu0 0.0
  %v6710 = vand.u32 %v3616, 4294901760
  %6711 = vmatmul.mubr.f32.gmra.mrb[0].mxu0 %v6710
  %v6712 = vpop.f32.mrb[0].mxu0
  %v6713 = vadd.f32 %v6260, %v6712
  %v6714 = vpop.f32.mrb[0].mxu0
  %6715 = vmatprep.mubr.f32.mxu0 0.0
  %v6716 = vand.u32 %v3619, 4294901760
  %6717 = vmatmul.mubr.f32.gmra.mrb[0].mxu0 %v6716
  %v6718 = vpop.f32.mrb[0].mxu0
  %v6719 = vadd.f32 %v6266, %v6718
  %v6720 = vpop.f32.mrb[0].mxu0
  %6721 = vmatprep.mubr.f32.mxu0 0.0
  %v6722 = vand.u32 %v3622, 4294901760
  %6723 = vmatmul.mubr.f32.gmra.mrb[0].mxu0 %v6722
  %v6724 = vpop.f32.mrb[0].mxu0
  %v6725 = vadd.f32 %v6272, %v6724
  %v6726 = vpop.f32.mrb[0].mxu0
  %6727 = vmatprep.mubr.f32.mxu0 0.0
  %v6728 = vand.u32 %v3625, 4294901760
  %6729 = vmatmul.mubr.f32.gmra.mrb[0].mxu0 %v6728
  %v6730 = vpop.f32.mrb[0].mxu0
  %v6731 = vadd.f32 %v6278, %v6730
  %v6732 = vpop.f32.mrb[0].mxu0
  %6733 = vmatprep.mubr.f32.mxu0 0.0
  %v6734 = vand.u32 %v3628, 4294901760
  %6735 = vmatmul.mubr.f32.gmra.mrb[0].mxu0 %v6734
  %v6736 = vpop.f32.mrb[0].mxu0
  %v6737 = vadd.f32 %v6284, %v6736
  %v6738 = vpop.f32.mrb[0].mxu0
  %6739 = vmatprep.mubr.f32.mxu0 0.0
  %v6740 = vand.u32 %v3631, 4294901760
  %6741 = vmatmul.mubr.f32.gmra.mrb[0].mxu0 %v6740
  %v6742 = vpop.f32.mrb[0].mxu0
  %v6743 = vadd.f32 %v6290, %v6742
  %v6744 = vpop.f32.mrb[0].mxu0
  %6745 = vmatprep.mubr.f32.mxu0 0.0
  %v6746 = vand.u32 %v3634, 4294901760
  %6747 = vmatmul.mubr.f32.gmra.mrb[0].mxu0 %v6746
  %v6748 = vpop.f32.mrb[0].mxu0
  %v6749 = vadd.f32 %v6296, %v6748
  %v6750 = vpop.f32.mrb[0].mxu0
  %6751 = vmatprep.mubr.f32.mxu0 0.0
  %v6752 = vand.u32 %v3637, 4294901760
  %6753 = vmatmul.mubr.f32.gmra.mrb[0].mxu0 %v6752
  %v6754 = vpop.f32.mrb[0].mxu0
  %v6755 = vadd.f32 %v6302, %v6754
  %v6756 = vpop.f32.mrb[0].mxu0
  %6757 = vmatprep.mubr.f32.mxu0 0.0
  %v6758 = vand.u32 %v3640, 4294901760
  %6759 = vmatmul.mubr.f32.gmra.mrb[0].mxu0 %v6758
  %v6760 = vpop.f32.mrb[0].mxu0
  %v6761 = vadd.f32 %v6308, %v6760
  %v6762 = vpop.f32.mrb[0].mxu0
  %6763 = vmatprep.mubr.f32.mxu0 0.0
  %v6764 = vand.u32 %v3643, 4294901760
  %6765 = vmatmul.mubr.f32.gmra.mrb[0].mxu0 %v6764
  %v6766 = vpop.f32.mrb[0].mxu0
  %v6767 = vadd.f32 %v6314, %v6766
  %v6768 = vpop.f32.mrb[0].mxu0
  %6769 = vmatprep.mubr.f32.mxu0 0.0
  %v6770 = vand.u32 %v3646, 4294901760
  %6771 = vmatmul.mubr.f32.gmra.mrb[0].mxu0 %v6770
  %v6772 = vpop.f32.mrb[0].mxu0
  %v6773 = vadd.f32 %v6320, %v6772
  %v6774 = vpop.f32.mrb[0].mxu0
  %6775 = vmatprep.mubr.f32.mxu0 0.0
  %v6776 = vand.u32 %v3649, 4294901760
  %6777 = vmatmul.mubr.f32.gmra.mrb[0].mxu0 %v6776
  %v6778 = vpop.f32.mrb[0].mxu0
  %v6779 = vadd.f32 %v6326, %v6778
  %v6780 = vpop.f32.mrb[0].mxu0
  %6781 = vmatprep.mubr.f32.mxu0 0.0
  %v6782 = vand.u32 %v3652, 4294901760
  %6783 = vmatmul.mubr.f32.gmra.mrb[0].mxu0 %v6782
  %v6784 = vpop.f32.mrb[0].mxu0
  %v6785 = vadd.f32 %v6332, %v6784
  %v6786 = vpop.f32.mrb[0].mxu0
  %6787 = vmatprep.mubr.f32.mxu0 0.0
  %v6788 = vand.u32 %v3655, 4294901760
  %6789 = vmatmul.mubr.f32.gmra.mrb[0].mxu0 %v6788
  %v6790 = vpop.f32.mrb[0].mxu0
  %v6791 = vadd.f32 %v6338, %v6790
  %v6792 = vpop.f32.mrb[0].mxu0
  %6793 = vmatprep.mubr.f32.mxu0 0.0
  %v6794 = vand.u32 %v3658, 4294901760
  %6795 = vmatmul.mubr.f32.gmra.mrb[0].mxu0 %v6794
  %v6796 = vpop.f32.mrb[0].mxu0
  %v6797 = vadd.f32 %v6344, %v6796
  %v6798 = vpop.f32.mrb[0].mxu0
  %6799 = vmatprep.mubr.f32.mxu0 0.0
  %v6800 = vand.u32 %v3661, 4294901760
  %6801 = vmatmul.mubr.f32.gmra.mrb[0].mxu0 %v6800
  %v6802 = vpop.f32.mrb[0].mxu0
  %v6803 = vadd.f32 %v6350, %v6802
  %v6804 = vpop.f32.mrb[0].mxu0
  %6805 = vmatprep.mubr.f32.mxu0 0.0
  %v6806 = vand.u32 %v3664, 4294901760
  %6807 = vmatmul.mubr.f32.gmra.mrb[0].mxu0 %v6806
  %v6808 = vpop.f32.mrb[0].mxu0
  %v6809 = vadd.f32 %v6356, %v6808
  %v6810 = vpop.f32.mrb[0].mxu0
  %6811 = vmatprep.mubr.f32.mxu0 0.0
  %v6812 = vand.u32 %v3667, 4294901760
  %6813 = vmatmul.mubr.f32.gmra.mrb[0].mxu0 %v6812
  %v6814 = vpop.f32.mrb[0].mxu0
  %v6815 = vadd.f32 %v6362, %v6814
  %v6816 = vpop.f32.mrb[0].mxu0
  %6817 = vmatprep.mubr.f32.mxu0 0.0
  %v6818 = vand.u32 %v3670, 4294901760
  %6819 = vmatmul.mubr.f32.gmra.mrb[0].mxu0 %v6818
  %v6820 = vpop.f32.mrb[0].mxu0
  %v6821 = vadd.f32 %v6368, %v6820
  %v6822 = vpop.f32.mrb[0].mxu0
  %6823 = vmatprep.mubr.f32.mxu0 0.0
  %v6824 = vand.u32 %v3673, 4294901760
  %6825 = vmatmul.mubr.f32.gmra.mrb[0].mxu0 %v6824
  %v6826 = vpop.f32.mrb[0].mxu0
  %v6827 = vadd.f32 %v6374, %v6826
  %v6828 = vpop.f32.mrb[0].mxu0
  %6829 = vmatprep.mubr.f32.mxu0 0.0
  %v6830 = vand.u32 %v3676, 4294901760
  %6831 = vmatmul.mubr.f32.gmra.mrb[0].mxu0 %v6830
  %v6832 = vpop.f32.mrb[0].mxu0
  %v6833 = vadd.f32 %v6380, %v6832
  %v6834 = vpop.f32.mrb[0].mxu0
  %6835 = vmatprep.mubr.f32.mxu0 0.0
  %v6836 = vand.u32 %v3679, 4294901760
  %6837 = vmatmul.mubr.f32.gmra.mrb[0].mxu0 %v6836
  %v6838 = vpop.f32.mrb[0].mxu0
  %v6839 = vadd.f32 %v6386, %v6838
  %v6840 = vpop.f32.mrb[0].mxu0
  %6841 = vmatprep.mubr.f32.mxu0 0.0
  %v6842 = vand.u32 %v3682, 4294901760
  %6843 = vmatmul.mubr.f32.gmra.mrb[0].mxu0 %v6842
  %v6844 = vpop.f32.mrb[0].mxu0
  %v6845 = vadd.f32 %v6392, %v6844
  %v6846 = vpop.f32.mrb[0].mxu0
  %6847 = vmatprep.mubr.f32.mxu0 0.0
  %v6848 = vand.u32 %v3685, 4294901760
  %6849 = vmatmul.mubr.f32.gmra.mrb[0].mxu0 %v6848
  %v6850 = vpop.f32.mrb[0].mxu0
  %v6851 = vadd.f32 %v6398, %v6850
  %v6852 = vpop.f32.mrb[0].mxu0
  %6853 = vmatprep.mubr.f32.mxu0 0.0
  %v6854 = vand.u32 %v3688, 4294901760
  %6855 = vmatmul.mubr.f32.gmra.mrb[0].mxu0 %v6854
  %v6856 = vpop.f32.mrb[0].mxu0
  %v6857 = vadd.f32 %v6404, %v6856
  %v6858 = vpop.f32.mrb[0].mxu0
  %6859 = vmatprep.mubr.f32.mxu0 0.0
  %v6860 = vand.u32 %v3691, 4294901760
  %6861 = vmatmul.mubr.f32.gmra.mrb[0].mxu0 %v6860
  %v6862 = vpop.f32.mrb[0].mxu0
  %v6863 = vadd.f32 %v6410, %v6862
  %v6864 = vpop.f32.mrb[0].mxu0
  %6865 = vmatprep.mubr.f32.mxu0 0.0
  %v6866 = vand.u32 %v3694, 4294901760
  %6867 = vmatmul.mubr.f32.gmra.mrb[0].mxu0 %v6866
  %v6868 = vpop.f32.mrb[0].mxu0
  %v6869 = vadd.f32 %v6416, %v6868
  %v6870 = vpop.f32.mrb[0].mxu0
  %6871 = vmatprep.mubr.f32.mxu0 0.0
  %v6872 = vand.u32 %v3697, 4294901760
  %6873 = vmatmul.mubr.f32.gmra.mrb[0].mxu0 %v6872
  %v6874 = vpop.f32.mrb[0].mxu0
  %v6875 = vadd.f32 %v6422, %v6874
  %v6876 = vpop.f32.mrb[0].mxu0
  %6877 = vmatprep.mubr.f32.mxu0 0.0
  %v6878 = vand.u32 %v3700, 4294901760
  %6879 = vmatmul.mubr.f32.gmra.mrb[0].mxu0 %v6878
  %v6880 = vpop.f32.mrb[0].mxu0
  %v6881 = vadd.f32 %v6428, %v6880
  %v6882 = vpop.f32.mrb[0].mxu0
  %6883 = vmatprep.mubr.f32.mxu0 0.0
  %v6884 = vand.u32 %v3703, 4294901760
  %6885 = vmatmul.mubr.f32.gmra.mrb[0].mxu0 %v6884
  %v6886 = vpop.f32.mrb[0].mxu0
  %v6887 = vadd.f32 %v6434, %v6886
  %v6888 = vpop.f32.mrb[0].mxu0
  %6889 = vmatprep.mubr.f32.mxu0 0.0
  %v6890 = vand.u32 %v3706, 4294901760
  %6891 = vmatmul.mubr.f32.gmra.mrb[0].mxu0 %v6890
  %v6892 = vpop.f32.mrb[0].mxu0
  %v6893 = vadd.f32 %v6440, %v6892
  %v6894 = vpop.f32.mrb[0].mxu0
  %6895 = vmatprep.mubr.f32.mxu0 0.0
  %v6896 = vand.u32 %v3709, 4294901760
  %6897 = vmatmul.mubr.f32.gmra.mrb[0].mxu0 %v6896
  %v6898 = vpop.f32.mrb[0].mxu0
  %v6899 = vadd.f32 %v6446, %v6898
  %v6900 = vpop.f32.mrb[0].mxu0
  %6901 = vmatprep.mubr.f32.mxu0 0.0
  %v6902 = vand.u32 %v3712, 4294901760
  %6903 = vmatmul.mubr.f32.gmra.mrb[0].mxu0 %v6902
  %v6904 = vpop.f32.mrb[0].mxu0
  %v6905 = vadd.f32 %v6452, %v6904
  %v6906 = vpop.f32.mrb[0].mxu0
  %6907 = vdwg.mxu0
  %6908 = vxpose.xlu0.b32.start [1/16] %v6527, 128
  %6909 = vxpose.xlu0.b32.cont [2/16] %v6533, 128
  %6910 = vxpose.xlu0.b32.cont [3/16] %v6539, 128
  %6911 = vxpose.xlu0.b32.cont [4/16] %v6545, 128
  %6912 = vxpose.xlu0.b32.cont [5/16] %v6551, 128
  %6913 = vxpose.xlu0.b32.cont [6/16] %v6557, 128
  %6914 = vxpose.xlu0.b32.cont [7/16] %v6563, 128
  %6915 = vxpose.xlu0.b32.cont [8/16] %v6569, 128
  %6916 = vxpose.xlu0.b32.cont [9/16] %v6575, 128
  %6917 = vxpose.xlu0.b32.cont [10/16] %v6581, 128
  %6918 = vxpose.xlu0.b32.cont [11/16] %v6587, 128
  %6919 = vxpose.xlu0.b32.cont [12/16] %v6593, 128
  %6920 = vxpose.xlu0.b32.cont [13/16] %v6599, 128
  %6921 = vxpose.xlu0.b32.cont [14/16] %v6605, 128
  %6922 = vxpose.xlu0.b32.cont [15/16] %v6611, 128
  %6923 = vxpose.xlu0.b32.end [16/16] %v6617, 128
  %v6924 = vpop.trf.xlu0
  %v6925 = vpop.trf.xlu0
  %v6926 = vpop.trf.xlu0
  %v6927 = vpop.trf.xlu0
  %v6928 = vpop.trf.xlu0
  %v6929 = vpop.trf.xlu0
  %v6930 = vpop.trf.xlu0
  %v6931 = vpop.trf.xlu0
  %v6932 = vpop.trf.xlu0
  %v6933 = vpop.trf.xlu0
  %v6934 = vpop.trf.xlu0
  %v6935 = vpop.trf.xlu0
  %v6936 = vpop.trf.xlu0
  %v6937 = vpop.trf.xlu0
  %v6938 = vpop.trf.xlu0
  %v6939 = vpop.trf.xlu0
  %6940 = vxpose.xlu0.b32.start [1/16] %v6623, 128
  %6941 = vxpose.xlu0.b32.cont [2/16] %v6629, 128
  %6942 = vxpose.xlu0.b32.cont [3/16] %v6635, 128
  %6943 = vxpose.xlu0.b32.cont [4/16] %v6641, 128
  %6944 = vxpose.xlu0.b32.cont [5/16] %v6647, 128
  %6945 = vxpose.xlu0.b32.cont [6/16] %v6653, 128
  %6946 = vxpose.xlu0.b32.cont [7/16] %v6659, 128
  %6947 = vxpose.xlu0.b32.cont [8/16] %v6665, 128
  %6948 = vxpose.xlu0.b32.cont [9/16] %v6671, 128
  %6949 = vxpose.xlu0.b32.cont [10/16] %v6677, 128
  %6950 = vxpose.xlu0.b32.cont [11/16] %v6683, 128
  %6951 = vxpose.xlu0.b32.cont [12/16] %v6689, 128
  %6952 = vxpose.xlu0.b32.cont [13/16] %v6695, 128
  %6953 = vxpose.xlu0.b32.cont [14/16] %v6701, 128
  %6954 = vxpose.xlu0.b32.cont [15/16] %v6707, 128
  %6955 = vxpose.xlu0.b32.end [16/16] %v6713, 128
  %v6956 = vpop.trf.xlu0
  %v6957 = vpop.trf.xlu0
  %v6958 = vpop.trf.xlu0
  %v6959 = vpop.trf.xlu0
  %v6960 = vpop.trf.xlu0
  %v6961 = vpop.trf.xlu0
  %v6962 = vpop.trf.xlu0
  %v6963 = vpop.trf.xlu0
  %v6964 = vpop.trf.xlu0
  %v6965 = vpop.trf.xlu0
  %v6966 = vpop.trf.xlu0
  %v6967 = vpop.trf.xlu0
  %v6968 = vpop.trf.xlu0
  %v6969 = vpop.trf.xlu0
  %v6970 = vpop.trf.xlu0
  %v6971 = vpop.trf.xlu0
  %6972 = vxpose.xlu0.b32.start [1/16] %v6719, 128
  %6973 = vxpose.xlu0.b32.cont [2/16] %v6725, 128
  %6974 = vxpose.xlu0.b32.cont [3/16] %v6731, 128
  %6975 = vxpose.xlu0.b32.cont [4/16] %v6737, 128
  %6976 = vxpose.xlu0.b32.cont [5/16] %v6743, 128
  %6977 = vxpose.xlu0.b32.cont [6/16] %v6749, 128
  %6978 = vxpose.xlu0.b32.cont [7/16] %v6755, 128
  %6979 = vxpose.xlu0.b32.cont [8/16] %v6761, 128
  %6980 = vxpose.xlu0.b32.cont [9/16] %v6767, 128
  %6981 = vxpose.xlu0.b32.cont [10/16] %v6773, 128
  %6982 = vxpose.xlu0.b32.cont [11/16] %v6779, 128
  %6983 = vxpose.xlu0.b32.cont [12/16] %v6785, 128
  %6984 = vxpose.xlu0.b32.cont [13/16] %v6791, 128
  %6985 = vxpose.xlu0.b32.cont [14/16] %v6797, 128
  %6986 = vxpose.xlu0.b32.cont [15/16] %v6803, 128
  %6987 = vxpose.xlu0.b32.end [16/16] %v6809, 128
  %v6988 = vpop.trf.xlu0
  %v6989 = vpop.trf.xlu0
  %v6990 = vpop.trf.xlu0
  %v6991 = vpop.trf.xlu0
  %v6992 = vpop.trf.xlu0
  %v6993 = vpop.trf.xlu0
  %v6994 = vpop.trf.xlu0
  %v6995 = vpop.trf.xlu0
  %v6996 = vpop.trf.xlu0
  %v6997 = vpop.trf.xlu0
  %v6998 = vpop.trf.xlu0
  %v6999 = vpop.trf.xlu0
  %v7000 = vpop.trf.xlu0
  %v7001 = vpop.trf.xlu0
  %v7002 = vpop.trf.xlu0
  %v7003 = vpop.trf.xlu0
  %7004 = vxpose.xlu0.b32.start [1/16] %v6815, 128
  %7005 = vxpose.xlu0.b32.cont [2/16] %v6821, 128
  %7006 = vxpose.xlu0.b32.cont [3/16] %v6827, 128
  %7007 = vxpose.xlu0.b32.cont [4/16] %v6833, 128
  %7008 = vxpose.xlu0.b32.cont [5/16] %v6839, 128
  %7009 = vxpose.xlu0.b32.cont [6/16] %v6845, 128
  %7010 = vxpose.xlu0.b32.cont [7/16] %v6851, 128
  %7011 = vxpose.xlu0.b32.cont [8/16] %v6857, 128
  %7012 = vxpose.xlu0.b32.cont [9/16] %v6863, 128
  %7013 = vxpose.xlu0.b32.cont [10/16] %v6869, 128
  %7014 = vxpose.xlu0.b32.cont [11/16] %v6875, 128
  %7015 = vxpose.xlu0.b32.cont [12/16] %v6881, 128
  %7016 = vxpose.xlu0.b32.cont [13/16] %v6887, 128
  %7017 = vxpose.xlu0.b32.cont [14/16] %v6893, 128
  %7018 = vxpose.xlu0.b32.cont [15/16] %v6899, 128
  %7019 = vxpose.xlu0.b32.end [16/16] %v6905, 128
  %v7020 = vpop.trf.xlu0
  %v7021 = vpop.trf.xlu0
  %v7022 = vpop.trf.xlu0
  %v7023 = vpop.trf.xlu0
  %v7024 = vpop.trf.xlu0
  %v7025 = vpop.trf.xlu0
  %v7026 = vpop.trf.xlu0
  %v7027 = vpop.trf.xlu0
  %v7028 = vpop.trf.xlu0
  %v7029 = vpop.trf.xlu0
  %v7030 = vpop.trf.xlu0
  %v7031 = vpop.trf.xlu0
  %v7032 = vpop.trf.xlu0
  %v7033 = vpop.trf.xlu0
  %v7034 = vpop.trf.xlu0
  %v7035 = vpop.trf.xlu0
  %7037 = vset.pattern.permute.xlu0 0
  %7038 = vperm.xlu0 %7037, %v37
  %v7039 = vpop.permute.xlu0 %7038
  %7042 = vset.pattern.permute.xlu0 0
  %7043 = vperm.xlu0 %7042, %v38
  %v7044 = vpop.permute.xlu0 %7043
  %7047 = vset.pattern.permute.xlu0 0
  %7048 = vperm.xlu0 %7047, %v39
  %v7049 = vpop.permute.xlu0 %7048
  %7052 = vset.pattern.permute.xlu0 0
  %7053 = vperm.xlu0 %7052, %v40
  %v7054 = vpop.permute.xlu0 %7053
  %v7056 = vadd.f32 %v6924, %v7039
  %v7057 = vadd.f32 %v6956, %v7039
  %v7058 = vadd.f32 %v6988, %v7039
  %v7059 = vadd.f32 %v7020, %v7039
  %v7060 = vadd.f32 %v6925, %v7044
  %v7061 = vadd.f32 %v6957, %v7044
  %v7062 = vadd.f32 %v6989, %v7044
  %v7063 = vadd.f32 %v7021, %v7044
  %v7064 = vadd.f32 %v6926, %v7049
  %v7065 = vadd.f32 %v6958, %v7049
  %v7066 = vadd.f32 %v6990, %v7049
  %v7067 = vadd.f32 %v7022, %v7049
  %v7068 = vadd.f32 %v6927, %v7054
  %v7069 = vadd.f32 %v6959, %v7054
  %v7070 = vadd.f32 %v6991, %v7054
  %v7071 = vadd.f32 %v7023, %v7054
  %v7072 = vand.u32 2147483647, %v7056
  %vm7073 = vcmp.le.f32.partialorder %v7072, 0.7853982
  %vm7074 = vcmp.lt.s32.totalorder %v7056, 0
  %v7075 = vand.u32 %v7056, 2139095040
  %v7076 = vshrl.u32 %v7075, 23
  %v7077 = vsub.s32 %v7076, 127
  %v7078 = vand.u32 2147483647, %v7056
  %v7079 = vand.u32 %v7078, 8388607
  %v7080 = vor.u32 %v7079, 8388608
  %v7081 = vsub.s32 0, %v7080
  %v7082 = vadd.s32 %v7077, 1
  %vm7083 = vcmp.gt.s32.totalorder %v7082, 0
  %v7084 = vsel %vm7083, %v7082, 0
  %v7085 = vshrl.u32 %v7084, 5
  %v7086 = vand.u32 %v7084, 31
  %v7087 = vsub.s32 32, %v7086
  %v7088 = vshrl.u32 683565275, %v7087
  %v7089 = vshll.u32 683565275, %v7086
  %v7090 = vshrl.u32 2475754826, %v7087
  %v7091 = vor.u32 %v7089, %v7090
  %v7092 = vshll.u32 2475754826, %v7086
  %v7093 = vshrl.u32 2131351028, %v7087
  %v7094 = vor.u32 %v7092, %v7093
  %v7095 = vshll.u32 2131351028, %v7086
  %v7096 = vshrl.u32 2102212464, %v7087
  %v7097 = vor.u32 %v7095, %v7096
  %v7098 = vshll.u32 2102212464, %v7086
  %v7099 = vshrl.u32 920167782, %v7087
  %v7100 = vor.u32 %v7098, %v7099
  %v7101 = vshll.u32 920167782, %v7086
  %v7102 = vshrl.u32 1326507024, %v7087
  %v7103 = vor.u32 %v7101, %v7102
  %vm7104 = vcmp.lt.s32.totalorder %v7085, 1
  %vm7105 = vcmp.lt.s32.totalorder %v7085, 2
  %vm7106 = vcmp.lt.s32.totalorder %v7085, 3
  %vm7107 = vcmp.lt.s32.totalorder %v7085, 4
  %v7108 = vsel %vm7104, %v7088, %v7091
  %v7109 = vsel %vm7107, %v7097, 2102212464
  %v7110 = vsel %vm7106, %v7094, %v7109
  %v7111 = vsel %vm7105, %v7108, %v7110
  %v7112 = vsel %vm7104, %v7091, %v7094
  %v7113 = vsel %vm7107, %v7100, 920167782
  %v7114 = vsel %vm7106, %v7097, %v7113
  %v7115 = vsel %vm7105, %v7112, %v7114
  %v7116 = vsel %vm7104, %v7094, %v7097
  %v7117 = vsel %vm7107, %v7103, 1326507024
  %v7118 = vsel %vm7106, %v7100, %v7117
  %v7119 = vsel %vm7105, %v7116, %v7118
  %v7120 = vshll.u32 %v7080, 8
  %v7121 = vmul.u32.u64.compose %v7120, %v7119
  %v7122 = vextract.low.u32 %v7121
  %v7123 = vextract.high.u32 %v7121
  %v7124 = vmul.u32.u64.compose %v7120, %v7115
  %v7125 = vextract.low.u32 %v7124
  %v7126 = vextract.high.u32 %v7124
  %v7127 = vmul.u32 %v7120, %v7111
  %v7128 = vadd.s32 %v7123, %v7125
  %vm7129 = vc.u32 %v7123, %v7125
  %v7130 = vadd.s32 %v7126, 1
  %v7131 = vsel %vm7129, %v7130, %v7126
  %v7132 = vadd.s32 %v7127, %v7131
  %v7133 = vadd.s32 %v7132, 536870912
  %v7134 = vshrl.u32 %v7133, 30
  %v7135 = vshll.u32 %v7134, 30
  %v7136 = vsub.s32 %v7132, %v7135
  %vm7137 = vcmp.lt.s32.totalorder %v7136, 0
  %v7138 = vsub.s32 0, %v7136
  %v7139 = vsel %vm7137, %v7138, %v7136
  %v7140 = vclz %v7139
  %v7141 = vsub.s32 %v7140, 2
  %vm7142 = vcmp.gt.s32.totalorder 0, %v7141
  %v7143 = vsel %vm7142, 0, %v7141
  %v7144 = vsub.s32 32, %v7143
  %v7145 = vshll.u32 %v7136, %v7143
  %v7146 = vshrl.u32 %v7128, %v7144
  %v7147 = vor.u32 %v7145, %v7146
  %v7148 = vsub.s32 4294967266, %v7143
  %v7149 = vadd.s32 %v7148, 127
  %v7150 = vshll.u32 %v7149, 23
  %v7151 = vor.u32 4788187, %v7150
  %v7152 = vand.u32 2147483647, %v7151
  %v7154 = vcvt.s32.f32 %v7147
  %v7155 = vmul.f32 %v7154, %v7152
  %v7156 = vxor.u32 %v7155, 2147483648
  %v7157 = vsel %vm7074, %v7156, %v7155
  %v7158 = vsub.s32 4, %v7134
  %v7159 = vsel %vm7074, %v7158, %v7134
  %v7160 = vsel %vm7073, %v7056, %v7157
  %v7161 = vsel %vm7073, 0, %v7159
  %v7162 = vcosq.f32.pop %v7160
  %v7163 = vsinq.f32.pop %v7160
  %vm7164 = vweird.f32 %v7056
  %v7165 = vadd.s32 %v7161, 3
  %v7166 = vand.u32 %v7165, 3
  %vm7167 = vcmp.lt.s32.totalorder %v7166, 2
  %vm7168 = vcmp.eq.s32.totalorder %v7166, 0
  %v7169 = vxor.u32 %v7163, 2147483648
  %v7170 = vsel %vm7168, %v7162, %v7169
  %vm7171 = vcmp.eq.s32.totalorder %v7166, 2
  %v7172 = vxor.u32 %v7162, 2147483648
  %v7173 = vsel %vm7171, %v7172, %v7163
  %v7174 = vsel %vm7167, %v7170, %v7173
  %v7175 = vsel %vm7164, nan, %v7174
  %v7176 = vand.u32 2147483647, %v7057
  %vm7177 = vcmp.le.f32.partialorder %v7176, 0.7853982
  %vm7178 = vcmp.lt.s32.totalorder %v7057, 0
  %v7179 = vand.u32 %v7057, 2139095040
  %v7180 = vshrl.u32 %v7179, 23
  %v7181 = vsub.s32 %v7180, 127
  %v7182 = vand.u32 2147483647, %v7057
  %v7183 = vand.u32 %v7182, 8388607
  %v7184 = vor.u32 %v7183, 8388608
  %v7185 = vsub.s32 0, %v7184
  %v7186 = vadd.s32 %v7181, 1
  %vm7187 = vcmp.gt.s32.totalorder %v7186, 0
  %v7188 = vsel %vm7187, %v7186, 0
  %v7189 = vshrl.u32 %v7188, 5
  %v7190 = vand.u32 %v7188, 31
  %v7191 = vsub.s32 32, %v7190
  %v7192 = vshrl.u32 683565275, %v7191
  %v7193 = vshll.u32 683565275, %v7190
  %v7194 = vshrl.u32 2475754826, %v7191
  %v7195 = vor.u32 %v7193, %v7194
  %v7196 = vshll.u32 2475754826, %v7190
  %v7197 = vshrl.u32 2131351028, %v7191
  %v7198 = vor.u32 %v7196, %v7197
  %v7199 = vshll.u32 2131351028, %v7190
  %v7200 = vshrl.u32 2102212464, %v7191
  %v7201 = vor.u32 %v7199, %v7200
  %v7202 = vshll.u32 2102212464, %v7190
  %v7203 = vshrl.u32 920167782, %v7191
  %v7204 = vor.u32 %v7202, %v7203
  %v7205 = vshll.u32 920167782, %v7190
  %v7206 = vshrl.u32 1326507024, %v7191
  %v7207 = vor.u32 %v7205, %v7206
  %vm7208 = vcmp.lt.s32.totalorder %v7189, 1
  %vm7209 = vcmp.lt.s32.totalorder %v7189, 2
  %vm7210 = vcmp.lt.s32.totalorder %v7189, 3
  %vm7211 = vcmp.lt.s32.totalorder %v7189, 4
  %v7212 = vsel %vm7208, %v7192, %v7195
  %v7213 = vsel %vm7211, %v7201, 2102212464
  %v7214 = vsel %vm7210, %v7198, %v7213
  %v7215 = vsel %vm7209, %v7212, %v7214
  %v7216 = vsel %vm7208, %v7195, %v7198
  %v7217 = vsel %vm7211, %v7204, 920167782
  %v7218 = vsel %vm7210, %v7201, %v7217
  %v7219 = vsel %vm7209, %v7216, %v7218
  %v7220 = vsel %vm7208, %v7198, %v7201
  %v7221 = vsel %vm7211, %v7207, 1326507024
  %v7222 = vsel %vm7210, %v7204, %v7221
  %v7223 = vsel %vm7209, %v7220, %v7222
  %v7224 = vshll.u32 %v7184, 8
  %v7225 = vmul.u32.u64.compose %v7224, %v7223
  %v7226 = vextract.low.u32 %v7225
  %v7227 = vextract.high.u32 %v7225
  %v7228 = vmul.u32.u64.compose %v7224, %v7219
  %v7229 = vextract.low.u32 %v7228
  %v7230 = vextract.high.u32 %v7228
  %v7231 = vmul.u32 %v7224, %v7215
  %v7232 = vadd.s32 %v7227, %v7229
  %vm7233 = vc.u32 %v7227, %v7229
  %v7234 = vadd.s32 %v7230, 1
  %v7235 = vsel %vm7233, %v7234, %v7230
  %v7236 = vadd.s32 %v7231, %v7235
  %v7237 = vadd.s32 %v7236, 536870912
  %v7238 = vshrl.u32 %v7237, 30
  %v7239 = vshll.u32 %v7238, 30
  %v7240 = vsub.s32 %v7236, %v7239
  %vm7241 = vcmp.lt.s32.totalorder %v7240, 0
  %v7242 = vsub.s32 0, %v7240
  %v7243 = vsel %vm7241, %v7242, %v7240
  %v7244 = vclz %v7243
  %v7245 = vsub.s32 %v7244, 2
  %vm7246 = vcmp.gt.s32.totalorder 0, %v7245
  %v7247 = vsel %vm7246, 0, %v7245
  %v7248 = vsub.s32 32, %v7247
  %v7249 = vshll.u32 %v7240, %v7247
  %v7250 = vshrl.u32 %v7232, %v7248
  %v7251 = vor.u32 %v7249, %v7250
  %v7252 = vsub.s32 4294967266, %v7247
  %v7253 = vadd.s32 %v7252, 127
  %v7254 = vshll.u32 %v7253, 23
  %v7255 = vor.u32 4788187, %v7254
  %v7256 = vand.u32 2147483647, %v7255
  %v7258 = vcvt.s32.f32 %v7251
  %v7259 = vmul.f32 %v7258, %v7256
  %v7260 = vxor.u32 %v7259, 2147483648
  %v7261 = vsel %vm7178, %v7260, %v7259
  %v7262 = vsub.s32 4, %v7238
  %v7263 = vsel %vm7178, %v7262, %v7238
  %v7264 = vsel %vm7177, %v7057, %v7261
  %v7265 = vsel %vm7177, 0, %v7263
  %v7266 = vcosq.f32.pop %v7264
  %v7267 = vsinq.f32.pop %v7264
  %vm7268 = vweird.f32 %v7057
  %v7269 = vadd.s32 %v7265, 3
  %v7270 = vand.u32 %v7269, 3
  %vm7271 = vcmp.lt.s32.totalorder %v7270, 2
  %vm7272 = vcmp.eq.s32.totalorder %v7270, 0
  %v7273 = vxor.u32 %v7267, 2147483648
  %v7274 = vsel %vm7272, %v7266, %v7273
  %vm7275 = vcmp.eq.s32.totalorder %v7270, 2
  %v7276 = vxor.u32 %v7266, 2147483648
  %v7277 = vsel %vm7275, %v7276, %v7267
  %v7278 = vsel %vm7271, %v7274, %v7277
  %v7279 = vsel %vm7268, nan, %v7278
  %v7280 = vand.u32 2147483647, %v7058
  %vm7281 = vcmp.le.f32.partialorder %v7280, 0.7853982
  %vm7282 = vcmp.lt.s32.totalorder %v7058, 0
  %v7283 = vand.u32 %v7058, 2139095040
  %v7284 = vshrl.u32 %v7283, 23
  %v7285 = vsub.s32 %v7284, 127
  %v7286 = vand.u32 2147483647, %v7058
  %v7287 = vand.u32 %v7286, 8388607
  %v7288 = vor.u32 %v7287, 8388608
  %v7289 = vsub.s32 0, %v7288
  %v7290 = vadd.s32 %v7285, 1
  %vm7291 = vcmp.gt.s32.totalorder %v7290, 0
  %v7292 = vsel %vm7291, %v7290, 0
  %v7293 = vshrl.u32 %v7292, 5
  %v7294 = vand.u32 %v7292, 31
  %v7295 = vsub.s32 32, %v7294
  %v7296 = vshrl.u32 683565275, %v7295
  %v7297 = vshll.u32 683565275, %v7294
  %v7298 = vshrl.u32 2475754826, %v7295
  %v7299 = vor.u32 %v7297, %v7298
  %v7300 = vshll.u32 2475754826, %v7294
  %v7301 = vshrl.u32 2131351028, %v7295
  %v7302 = vor.u32 %v7300, %v7301
  %v7303 = vshll.u32 2131351028, %v7294
  %v7304 = vshrl.u32 2102212464, %v7295
  %v7305 = vor.u32 %v7303, %v7304
  %v7306 = vshll.u32 2102212464, %v7294
  %v7307 = vshrl.u32 920167782, %v7295
  %v7308 = vor.u32 %v7306, %v7307
  %v7309 = vshll.u32 920167782, %v7294
  %v7310 = vshrl.u32 1326507024, %v7295
  %v7311 = vor.u32 %v7309, %v7310
  %vm7312 = vcmp.lt.s32.totalorder %v7293, 1
  %vm7313 = vcmp.lt.s32.totalorder %v7293, 2
  %vm7314 = vcmp.lt.s32.totalorder %v7293, 3
  %vm7315 = vcmp.lt.s32.totalorder %v7293, 4
  %v7316 = vsel %vm7312, %v7296, %v7299
  %v7317 = vsel %vm7315, %v7305, 2102212464
  %v7318 = vsel %vm7314, %v7302, %v7317
  %v7319 = vsel %vm7313, %v7316, %v7318
  %v7320 = vsel %vm7312, %v7299, %v7302
  %v7321 = vsel %vm7315, %v7308, 920167782
  %v7322 = vsel %vm7314, %v7305, %v7321
  %v7323 = vsel %vm7313, %v7320, %v7322
  %v7324 = vsel %vm7312, %v7302, %v7305
  %v7325 = vsel %vm7315, %v7311, 1326507024
  %v7326 = vsel %vm7314, %v7308, %v7325
  %v7327 = vsel %vm7313, %v7324, %v7326
  %v7328 = vshll.u32 %v7288, 8
  %v7329 = vmul.u32.u64.compose %v7328, %v7327
  %v7330 = vextract.low.u32 %v7329
  %v7331 = vextract.high.u32 %v7329
  %v7332 = vmul.u32.u64.compose %v7328, %v7323
  %v7333 = vextract.low.u32 %v7332
  %v7334 = vextract.high.u32 %v7332
  %v7335 = vmul.u32 %v7328, %v7319
  %v7336 = vadd.s32 %v7331, %v7333
  %vm7337 = vc.u32 %v7331, %v7333
  %v7338 = vadd.s32 %v7334, 1
  %v7339 = vsel %vm7337, %v7338, %v7334
  %v7340 = vadd.s32 %v7335, %v7339
  %v7341 = vadd.s32 %v7340, 536870912
  %v7342 = vshrl.u32 %v7341, 30
  %v7343 = vshll.u32 %v7342, 30
  %v7344 = vsub.s32 %v7340, %v7343
  %vm7345 = vcmp.lt.s32.totalorder %v7344, 0
  %v7346 = vsub.s32 0, %v7344
  %v7347 = vsel %vm7345, %v7346, %v7344
  %v7348 = vclz %v7347
  %v7349 = vsub.s32 %v7348, 2
  %vm7350 = vcmp.gt.s32.totalorder 0, %v7349
  %v7351 = vsel %vm7350, 0, %v7349
  %v7352 = vsub.s32 32, %v7351
  %v7353 = vshll.u32 %v7344, %v7351
  %v7354 = vshrl.u32 %v7336, %v7352
  %v7355 = vor.u32 %v7353, %v7354
  %v7356 = vsub.s32 4294967266, %v7351
  %v7357 = vadd.s32 %v7356, 127
  %v7358 = vshll.u32 %v7357, 23
  %v7359 = vor.u32 4788187, %v7358
  %v7360 = vand.u32 2147483647, %v7359
  %v7362 = vcvt.s32.f32 %v7355
  %v7363 = vmul.f32 %v7362, %v7360
  %v7364 = vxor.u32 %v7363, 2147483648
  %v7365 = vsel %vm7282, %v7364, %v7363
  %v7366 = vsub.s32 4, %v7342
  %v7367 = vsel %vm7282, %v7366, %v7342
  %v7368 = vsel %vm7281, %v7058, %v7365
  %v7369 = vsel %vm7281, 0, %v7367
  %v7370 = vcosq.f32.pop %v7368
  %v7371 = vsinq.f32.pop %v7368
  %vm7372 = vweird.f32 %v7058
  %v7373 = vadd.s32 %v7369, 3
  %v7374 = vand.u32 %v7373, 3
  %vm7375 = vcmp.lt.s32.totalorder %v7374, 2
  %vm7376 = vcmp.eq.s32.totalorder %v7374, 0
  %v7377 = vxor.u32 %v7371, 2147483648
  %v7378 = vsel %vm7376, %v7370, %v7377
  %vm7379 = vcmp.eq.s32.totalorder %v7374, 2
  %v7380 = vxor.u32 %v7370, 2147483648
  %v7381 = vsel %vm7379, %v7380, %v7371
  %v7382 = vsel %vm7375, %v7378, %v7381
  %v7383 = vsel %vm7372, nan, %v7382
  %v7384 = vand.u32 2147483647, %v7059
  %vm7385 = vcmp.le.f32.partialorder %v7384, 0.7853982
  %vm7386 = vcmp.lt.s32.totalorder %v7059, 0
  %v7387 = vand.u32 %v7059, 2139095040
  %v7388 = vshrl.u32 %v7387, 23
  %v7389 = vsub.s32 %v7388, 127
  %v7390 = vand.u32 2147483647, %v7059
  %v7391 = vand.u32 %v7390, 8388607
  %v7392 = vor.u32 %v7391, 8388608
  %v7393 = vsub.s32 0, %v7392
  %v7394 = vadd.s32 %v7389, 1
  %vm7395 = vcmp.gt.s32.totalorder %v7394, 0
  %v7396 = vsel %vm7395, %v7394, 0
  %v7397 = vshrl.u32 %v7396, 5
  %v7398 = vand.u32 %v7396, 31
  %v7399 = vsub.s32 32, %v7398
  %v7400 = vshrl.u32 683565275, %v7399
  %v7401 = vshll.u32 683565275, %v7398
  %v7402 = vshrl.u32 2475754826, %v7399
  %v7403 = vor.u32 %v7401, %v7402
  %v7404 = vshll.u32 2475754826, %v7398
  %v7405 = vshrl.u32 2131351028, %v7399
  %v7406 = vor.u32 %v7404, %v7405
  %v7407 = vshll.u32 2131351028, %v7398
  %v7408 = vshrl.u32 2102212464, %v7399
  %v7409 = vor.u32 %v7407, %v7408
  %v7410 = vshll.u32 2102212464, %v7398
  %v7411 = vshrl.u32 920167782, %v7399
  %v7412 = vor.u32 %v7410, %v7411
  %v7413 = vshll.u32 920167782, %v7398
  %v7414 = vshrl.u32 1326507024, %v7399
  %v7415 = vor.u32 %v7413, %v7414
  %vm7416 = vcmp.lt.s32.totalorder %v7397, 1
  %vm7417 = vcmp.lt.s32.totalorder %v7397, 2
  %vm7418 = vcmp.lt.s32.totalorder %v7397, 3
  %vm7419 = vcmp.lt.s32.totalorder %v7397, 4
  %v7420 = vsel %vm7416, %v7400, %v7403
  %v7421 = vsel %vm7419, %v7409, 2102212464
  %v7422 = vsel %vm7418, %v7406, %v7421
  %v7423 = vsel %vm7417, %v7420, %v7422
  %v7424 = vsel %vm7416, %v7403, %v7406
  %v7425 = vsel %vm7419, %v7412, 920167782
  %v7426 = vsel %vm7418, %v7409, %v7425
  %v7427 = vsel %vm7417, %v7424, %v7426
  %v7428 = vsel %vm7416, %v7406, %v7409
  %v7429 = vsel %vm7419, %v7415, 1326507024
  %v7430 = vsel %vm7418, %v7412, %v7429
  %v7431 = vsel %vm7417, %v7428, %v7430
  %v7432 = vshll.u32 %v7392, 8
  %v7433 = vmul.u32.u64.compose %v7432, %v7431
  %v7434 = vextract.low.u32 %v7433
  %v7435 = vextract.high.u32 %v7433
  %v7436 = vmul.u32.u64.compose %v7432, %v7427
  %v7437 = vextract.low.u32 %v7436
  %v7438 = vextract.high.u32 %v7436
  %v7439 = vmul.u32 %v7432, %v7423
  %v7440 = vadd.s32 %v7435, %v7437
  %vm7441 = vc.u32 %v7435, %v7437
  %v7442 = vadd.s32 %v7438, 1
  %v7443 = vsel %vm7441, %v7442, %v7438
  %v7444 = vadd.s32 %v7439, %v7443
  %v7445 = vadd.s32 %v7444, 536870912
  %v7446 = vshrl.u32 %v7445, 30
  %v7447 = vshll.u32 %v7446, 30
  %v7448 = vsub.s32 %v7444, %v7447
  %vm7449 = vcmp.lt.s32.totalorder %v7448, 0
  %v7450 = vsub.s32 0, %v7448
  %v7451 = vsel %vm7449, %v7450, %v7448
  %v7452 = vclz %v7451
  %v7453 = vsub.s32 %v7452, 2
  %vm7454 = vcmp.gt.s32.totalorder 0, %v7453
  %v7455 = vsel %vm7454, 0, %v7453
  %v7456 = vsub.s32 32, %v7455
  %v7457 = vshll.u32 %v7448, %v7455
  %v7458 = vshrl.u32 %v7440, %v7456
  %v7459 = vor.u32 %v7457, %v7458
  %v7460 = vsub.s32 4294967266, %v7455
  %v7461 = vadd.s32 %v7460, 127
  %v7462 = vshll.u32 %v7461, 23
  %v7463 = vor.u32 4788187, %v7462
  %v7464 = vand.u32 2147483647, %v7463
  %v7466 = vcvt.s32.f32 %v7459
  %v7467 = vmul.f32 %v7466, %v7464
  %v7468 = vxor.u32 %v7467, 2147483648
  %v7469 = vsel %vm7386, %v7468, %v7467
  %v7470 = vsub.s32 4, %v7446
  %v7471 = vsel %vm7386, %v7470, %v7446
  %v7472 = vsel %vm7385, %v7059, %v7469
  %v7473 = vsel %vm7385, 0, %v7471
  %v7474 = vcosq.f32.pop %v7472
  %v7475 = vsinq.f32.pop %v7472
  %vm7476 = vweird.f32 %v7059
  %v7477 = vadd.s32 %v7473, 3
  %v7478 = vand.u32 %v7477, 3
  %vm7479 = vcmp.lt.s32.totalorder %v7478, 2
  %vm7480 = vcmp.eq.s32.totalorder %v7478, 0
  %v7481 = vxor.u32 %v7475, 2147483648
  %v7482 = vsel %vm7480, %v7474, %v7481
  %vm7483 = vcmp.eq.s32.totalorder %v7478, 2
  %v7484 = vxor.u32 %v7474, 2147483648
  %v7485 = vsel %vm7483, %v7484, %v7475
  %v7486 = vsel %vm7479, %v7482, %v7485
  %v7487 = vsel %vm7476, nan, %v7486
  %v7488 = vand.u32 2147483647, %v7060
  %vm7489 = vcmp.le.f32.partialorder %v7488, 0.7853982
  %vm7490 = vcmp.lt.s32.totalorder %v7060, 0
  %v7491 = vand.u32 %v7060, 2139095040
  %v7492 = vshrl.u32 %v7491, 23
  %v7493 = vsub.s32 %v7492, 127
  %v7494 = vand.u32 2147483647, %v7060
  %v7495 = vand.u32 %v7494, 8388607
  %v7496 = vor.u32 %v7495, 8388608
  %v7497 = vsub.s32 0, %v7496
  %v7498 = vadd.s32 %v7493, 1
  %vm7499 = vcmp.gt.s32.totalorder %v7498, 0
  %v7500 = vsel %vm7499, %v7498, 0
  %v7501 = vshrl.u32 %v7500, 5
  %v7502 = vand.u32 %v7500, 31
  %v7503 = vsub.s32 32, %v7502
  %v7504 = vshrl.u32 683565275, %v7503
  %v7505 = vshll.u32 683565275, %v7502
  %v7506 = vshrl.u32 2475754826, %v7503
  %v7507 = vor.u32 %v7505, %v7506
  %v7508 = vshll.u32 2475754826, %v7502
  %v7509 = vshrl.u32 2131351028, %v7503
  %v7510 = vor.u32 %v7508, %v7509
  %v7511 = vshll.u32 2131351028, %v7502
  %v7512 = vshrl.u32 2102212464, %v7503
  %v7513 = vor.u32 %v7511, %v7512
  %v7514 = vshll.u32 2102212464, %v7502
  %v7515 = vshrl.u32 920167782, %v7503
  %v7516 = vor.u32 %v7514, %v7515
  %v7517 = vshll.u32 920167782, %v7502
  %v7518 = vshrl.u32 1326507024, %v7503
  %v7519 = vor.u32 %v7517, %v7518
  %vm7520 = vcmp.lt.s32.totalorder %v7501, 1
  %vm7521 = vcmp.lt.s32.totalorder %v7501, 2
  %vm7522 = vcmp.lt.s32.totalorder %v7501, 3
  %vm7523 = vcmp.lt.s32.totalorder %v7501, 4
  %v7524 = vsel %vm7520, %v7504, %v7507
  %v7525 = vsel %vm7523, %v7513, 2102212464
  %v7526 = vsel %vm7522, %v7510, %v7525
  %v7527 = vsel %vm7521, %v7524, %v7526
  %v7528 = vsel %vm7520, %v7507, %v7510
  %v7529 = vsel %vm7523, %v7516, 920167782
  %v7530 = vsel %vm7522, %v7513, %v7529
  %v7531 = vsel %vm7521, %v7528, %v7530
  %v7532 = vsel %vm7520, %v7510, %v7513
  %v7533 = vsel %vm7523, %v7519, 1326507024
  %v7534 = vsel %vm7522, %v7516, %v7533
  %v7535 = vsel %vm7521, %v7532, %v7534
  %v7536 = vshll.u32 %v7496, 8
  %v7537 = vmul.u32.u64.compose %v7536, %v7535
  %v7538 = vextract.low.u32 %v7537
  %v7539 = vextract.high.u32 %v7537
  %v7540 = vmul.u32.u64.compose %v7536, %v7531
  %v7541 = vextract.low.u32 %v7540
  %v7542 = vextract.high.u32 %v7540
  %v7543 = vmul.u32 %v7536, %v7527
  %v7544 = vadd.s32 %v7539, %v7541
  %vm7545 = vc.u32 %v7539, %v7541
  %v7546 = vadd.s32 %v7542, 1
  %v7547 = vsel %vm7545, %v7546, %v7542
  %v7548 = vadd.s32 %v7543, %v7547
  %v7549 = vadd.s32 %v7548, 536870912
  %v7550 = vshrl.u32 %v7549, 30
  %v7551 = vshll.u32 %v7550, 30
  %v7552 = vsub.s32 %v7548, %v7551
  %vm7553 = vcmp.lt.s32.totalorder %v7552, 0
  %v7554 = vsub.s32 0, %v7552
  %v7555 = vsel %vm7553, %v7554, %v7552
  %v7556 = vclz %v7555
  %v7557 = vsub.s32 %v7556, 2
  %vm7558 = vcmp.gt.s32.totalorder 0, %v7557
  %v7559 = vsel %vm7558, 0, %v7557
  %v7560 = vsub.s32 32, %v7559
  %v7561 = vshll.u32 %v7552, %v7559
  %v7562 = vshrl.u32 %v7544, %v7560
  %v7563 = vor.u32 %v7561, %v7562
  %v7564 = vsub.s32 4294967266, %v7559
  %v7565 = vadd.s32 %v7564, 127
  %v7566 = vshll.u32 %v7565, 23
  %v7567 = vor.u32 4788187, %v7566
  %v7568 = vand.u32 2147483647, %v7567
  %v7570 = vcvt.s32.f32 %v7563
  %v7571 = vmul.f32 %v7570, %v7568
  %v7572 = vxor.u32 %v7571, 2147483648
  %v7573 = vsel %vm7490, %v7572, %v7571
  %v7574 = vsub.s32 4, %v7550
  %v7575 = vsel %vm7490, %v7574, %v7550
  %v7576 = vsel %vm7489, %v7060, %v7573
  %v7577 = vsel %vm7489, 0, %v7575
  %v7578 = vcosq.f32.pop %v7576
  %v7579 = vsinq.f32.pop %v7576
  %vm7580 = vweird.f32 %v7060
  %v7581 = vadd.s32 %v7577, 3
  %v7582 = vand.u32 %v7581, 3
  %vm7583 = vcmp.lt.s32.totalorder %v7582, 2
  %vm7584 = vcmp.eq.s32.totalorder %v7582, 0
  %v7585 = vxor.u32 %v7579, 2147483648
  %v7586 = vsel %vm7584, %v7578, %v7585
  %vm7587 = vcmp.eq.s32.totalorder %v7582, 2
  %v7588 = vxor.u32 %v7578, 2147483648
  %v7589 = vsel %vm7587, %v7588, %v7579
  %v7590 = vsel %vm7583, %v7586, %v7589
  %v7591 = vsel %vm7580, nan, %v7590
  %v7592 = vand.u32 2147483647, %v7061
  %vm7593 = vcmp.le.f32.partialorder %v7592, 0.7853982
  %vm7594 = vcmp.lt.s32.totalorder %v7061, 0
  %v7595 = vand.u32 %v7061, 2139095040
  %v7596 = vshrl.u32 %v7595, 23
  %v7597 = vsub.s32 %v7596, 127
  %v7598 = vand.u32 2147483647, %v7061
  %v7599 = vand.u32 %v7598, 8388607
  %v7600 = vor.u32 %v7599, 8388608
  %v7601 = vsub.s32 0, %v7600
  %v7602 = vadd.s32 %v7597, 1
  %vm7603 = vcmp.gt.s32.totalorder %v7602, 0
  %v7604 = vsel %vm7603, %v7602, 0
  %v7605 = vshrl.u32 %v7604, 5
  %v7606 = vand.u32 %v7604, 31
  %v7607 = vsub.s32 32, %v7606
  %v7608 = vshrl.u32 683565275, %v7607
  %v7609 = vshll.u32 683565275, %v7606
  %v7610 = vshrl.u32 2475754826, %v7607
  %v7611 = vor.u32 %v7609, %v7610
  %v7612 = vshll.u32 2475754826, %v7606
  %v7613 = vshrl.u32 2131351028, %v7607
  %v7614 = vor.u32 %v7612, %v7613
  %v7615 = vshll.u32 2131351028, %v7606
  %v7616 = vshrl.u32 2102212464, %v7607
  %v7617 = vor.u32 %v7615, %v7616
  %v7618 = vshll.u32 2102212464, %v7606
  %v7619 = vshrl.u32 920167782, %v7607
  %v7620 = vor.u32 %v7618, %v7619
  %v7621 = vshll.u32 920167782, %v7606
  %v7622 = vshrl.u32 1326507024, %v7607
  %v7623 = vor.u32 %v7621, %v7622
  %vm7624 = vcmp.lt.s32.totalorder %v7605, 1
  %vm7625 = vcmp.lt.s32.totalorder %v7605, 2
  %vm7626 = vcmp.lt.s32.totalorder %v7605, 3
  %vm7627 = vcmp.lt.s32.totalorder %v7605, 4
  %v7628 = vsel %vm7624, %v7608, %v7611
  %v7629 = vsel %vm7627, %v7617, 2102212464
  %v7630 = vsel %vm7626, %v7614, %v7629
  %v7631 = vsel %vm7625, %v7628, %v7630
  %v7632 = vsel %vm7624, %v7611, %v7614
  %v7633 = vsel %vm7627, %v7620, 920167782
  %v7634 = vsel %vm7626, %v7617, %v7633
  %v7635 = vsel %vm7625, %v7632, %v7634
  %v7636 = vsel %vm7624, %v7614, %v7617
  %v7637 = vsel %vm7627, %v7623, 1326507024
  %v7638 = vsel %vm7626, %v7620, %v7637
  %v7639 = vsel %vm7625, %v7636, %v7638
  %v7640 = vshll.u32 %v7600, 8
  %v7641 = vmul.u32.u64.compose %v7640, %v7639
  %v7642 = vextract.low.u32 %v7641
  %v7643 = vextract.high.u32 %v7641
  %v7644 = vmul.u32.u64.compose %v7640, %v7635
  %v7645 = vextract.low.u32 %v7644
  %v7646 = vextract.high.u32 %v7644
  %v7647 = vmul.u32 %v7640, %v7631
  %v7648 = vadd.s32 %v7643, %v7645
  %vm7649 = vc.u32 %v7643, %v7645
  %v7650 = vadd.s32 %v7646, 1
  %v7651 = vsel %vm7649, %v7650, %v7646
  %v7652 = vadd.s32 %v7647, %v7651
  %v7653 = vadd.s32 %v7652, 536870912
  %v7654 = vshrl.u32 %v7653, 30
  %v7655 = vshll.u32 %v7654, 30
  %v7656 = vsub.s32 %v7652, %v7655
  %vm7657 = vcmp.lt.s32.totalorder %v7656, 0
  %v7658 = vsub.s32 0, %v7656
  %v7659 = vsel %vm7657, %v7658, %v7656
  %v7660 = vclz %v7659
  %v7661 = vsub.s32 %v7660, 2
  %vm7662 = vcmp.gt.s32.totalorder 0, %v7661
  %v7663 = vsel %vm7662, 0, %v7661
  %v7664 = vsub.s32 32, %v7663
  %v7665 = vshll.u32 %v7656, %v7663
  %v7666 = vshrl.u32 %v7648, %v7664
  %v7667 = vor.u32 %v7665, %v7666
  %v7668 = vsub.s32 4294967266, %v7663
  %v7669 = vadd.s32 %v7668, 127
  %v7670 = vshll.u32 %v7669, 23
  %v7671 = vor.u32 4788187, %v7670
  %v7672 = vand.u32 2147483647, %v7671
  %v7674 = vcvt.s32.f32 %v7667
  %v7675 = vmul.f32 %v7674, %v7672
  %v7676 = vxor.u32 %v7675, 2147483648
  %v7677 = vsel %vm7594, %v7676, %v7675
  %v7678 = vsub.s32 4, %v7654
  %v7679 = vsel %vm7594, %v7678, %v7654
  %v7680 = vsel %vm7593, %v7061, %v7677
  %v7681 = vsel %vm7593, 0, %v7679
  %v7682 = vcosq.f32.pop %v7680
  %v7683 = vsinq.f32.pop %v7680
  %vm7684 = vweird.f32 %v7061
  %v7685 = vadd.s32 %v7681, 3
  %v7686 = vand.u32 %v7685, 3
  %vm7687 = vcmp.lt.s32.totalorder %v7686, 2
  %vm7688 = vcmp.eq.s32.totalorder %v7686, 0
  %v7689 = vxor.u32 %v7683, 2147483648
  %v7690 = vsel %vm7688, %v7682, %v7689
  %vm7691 = vcmp.eq.s32.totalorder %v7686, 2
  %v7692 = vxor.u32 %v7682, 2147483648
  %v7693 = vsel %vm7691, %v7692, %v7683
  %v7694 = vsel %vm7687, %v7690, %v7693
  %v7695 = vsel %vm7684, nan, %v7694
  %v7696 = vand.u32 2147483647, %v7062
  %vm7697 = vcmp.le.f32.partialorder %v7696, 0.7853982
  %vm7698 = vcmp.lt.s32.totalorder %v7062, 0
  %v7699 = vand.u32 %v7062, 2139095040
  %v7700 = vshrl.u32 %v7699, 23
  %v7701 = vsub.s32 %v7700, 127
  %v7702 = vand.u32 2147483647, %v7062
  %v7703 = vand.u32 %v7702, 8388607
  %v7704 = vor.u32 %v7703, 8388608
  %v7705 = vsub.s32 0, %v7704
  %v7706 = vadd.s32 %v7701, 1
  %vm7707 = vcmp.gt.s32.totalorder %v7706, 0
  %v7708 = vsel %vm7707, %v7706, 0
  %v7709 = vshrl.u32 %v7708, 5
  %v7710 = vand.u32 %v7708, 31
  %v7711 = vsub.s32 32, %v7710
  %v7712 = vshrl.u32 683565275, %v7711
  %v7713 = vshll.u32 683565275, %v7710
  %v7714 = vshrl.u32 2475754826, %v7711
  %v7715 = vor.u32 %v7713, %v7714
  %v7716 = vshll.u32 2475754826, %v7710
  %v7717 = vshrl.u32 2131351028, %v7711
  %v7718 = vor.u32 %v7716, %v7717
  %v7719 = vshll.u32 2131351028, %v7710
  %v7720 = vshrl.u32 2102212464, %v7711
  %v7721 = vor.u32 %v7719, %v7720
  %v7722 = vshll.u32 2102212464, %v7710
  %v7723 = vshrl.u32 920167782, %v7711
  %v7724 = vor.u32 %v7722, %v7723
  %v7725 = vshll.u32 920167782, %v7710
  %v7726 = vshrl.u32 1326507024, %v7711
  %v7727 = vor.u32 %v7725, %v7726
  %vm7728 = vcmp.lt.s32.totalorder %v7709, 1
  %vm7729 = vcmp.lt.s32.totalorder %v7709, 2
  %vm7730 = vcmp.lt.s32.totalorder %v7709, 3
  %vm7731 = vcmp.lt.s32.totalorder %v7709, 4
  %v7732 = vsel %vm7728, %v7712, %v7715
  %v7733 = vsel %vm7731, %v7721, 2102212464
  %v7734 = vsel %vm7730, %v7718, %v7733
  %v7735 = vsel %vm7729, %v7732, %v7734
  %v7736 = vsel %vm7728, %v7715, %v7718
  %v7737 = vsel %vm7731, %v7724, 920167782
  %v7738 = vsel %vm7730, %v7721, %v7737
  %v7739 = vsel %vm7729, %v7736, %v7738
  %v7740 = vsel %vm7728, %v7718, %v7721
  %v7741 = vsel %vm7731, %v7727, 1326507024
  %v7742 = vsel %vm7730, %v7724, %v7741
  %v7743 = vsel %vm7729, %v7740, %v7742
  %v7744 = vshll.u32 %v7704, 8
  %v7745 = vmul.u32.u64.compose %v7744, %v7743
  %v7746 = vextract.low.u32 %v7745
  %v7747 = vextract.high.u32 %v7745
  %v7748 = vmul.u32.u64.compose %v7744, %v7739
  %v7749 = vextract.low.u32 %v7748
  %v7750 = vextract.high.u32 %v7748
  %v7751 = vmul.u32 %v7744, %v7735
  %v7752 = vadd.s32 %v7747, %v7749
  %vm7753 = vc.u32 %v7747, %v7749
  %v7754 = vadd.s32 %v7750, 1
  %v7755 = vsel %vm7753, %v7754, %v7750
  %v7756 = vadd.s32 %v7751, %v7755
  %v7757 = vadd.s32 %v7756, 536870912
  %v7758 = vshrl.u32 %v7757, 30
  %v7759 = vshll.u32 %v7758, 30
  %v7760 = vsub.s32 %v7756, %v7759
  %vm7761 = vcmp.lt.s32.totalorder %v7760, 0
  %v7762 = vsub.s32 0, %v7760
  %v7763 = vsel %vm7761, %v7762, %v7760
  %v7764 = vclz %v7763
  %v7765 = vsub.s32 %v7764, 2
  %vm7766 = vcmp.gt.s32.totalorder 0, %v7765
  %v7767 = vsel %vm7766, 0, %v7765
  %v7768 = vsub.s32 32, %v7767
  %v7769 = vshll.u32 %v7760, %v7767
  %v7770 = vshrl.u32 %v7752, %v7768
  %v7771 = vor.u32 %v7769, %v7770
  %v7772 = vsub.s32 4294967266, %v7767
  %v7773 = vadd.s32 %v7772, 127
  %v7774 = vshll.u32 %v7773, 23
  %v7775 = vor.u32 4788187, %v7774
  %v7776 = vand.u32 2147483647, %v7775
  %v7778 = vcvt.s32.f32 %v7771
  %v7779 = vmul.f32 %v7778, %v7776
  %v7780 = vxor.u32 %v7779, 2147483648
  %v7781 = vsel %vm7698, %v7780, %v7779
  %v7782 = vsub.s32 4, %v7758
  %v7783 = vsel %vm7698, %v7782, %v7758
  %v7784 = vsel %vm7697, %v7062, %v7781
  %v7785 = vsel %vm7697, 0, %v7783
  %v7786 = vcosq.f32.pop %v7784
  %v7787 = vsinq.f32.pop %v7784
  %vm7788 = vweird.f32 %v7062
  %v7789 = vadd.s32 %v7785, 3
  %v7790 = vand.u32 %v7789, 3
  %vm7791 = vcmp.lt.s32.totalorder %v7790, 2
  %vm7792 = vcmp.eq.s32.totalorder %v7790, 0
  %v7793 = vxor.u32 %v7787, 2147483648
  %v7794 = vsel %vm7792, %v7786, %v7793
  %vm7795 = vcmp.eq.s32.totalorder %v7790, 2
  %v7796 = vxor.u32 %v7786, 2147483648
  %v7797 = vsel %vm7795, %v7796, %v7787
  %v7798 = vsel %vm7791, %v7794, %v7797
  %v7799 = vsel %vm7788, nan, %v7798
  %v7800 = vand.u32 2147483647, %v7063
  %vm7801 = vcmp.le.f32.partialorder %v7800, 0.7853982
  %vm7802 = vcmp.lt.s32.totalorder %v7063, 0
  %v7803 = vand.u32 %v7063, 2139095040
  %v7804 = vshrl.u32 %v7803, 23
  %v7805 = vsub.s32 %v7804, 127
  %v7806 = vand.u32 2147483647, %v7063
  %v7807 = vand.u32 %v7806, 8388607
  %v7808 = vor.u32 %v7807, 8388608
  %v7809 = vsub.s32 0, %v7808
  %v7810 = vadd.s32 %v7805, 1
  %vm7811 = vcmp.gt.s32.totalorder %v7810, 0
  %v7812 = vsel %vm7811, %v7810, 0
  %v7813 = vshrl.u32 %v7812, 5
  %v7814 = vand.u32 %v7812, 31
  %v7815 = vsub.s32 32, %v7814
  %v7816 = vshrl.u32 683565275, %v7815
  %v7817 = vshll.u32 683565275, %v7814
  %v7818 = vshrl.u32 2475754826, %v7815
  %v7819 = vor.u32 %v7817, %v7818
  %v7820 = vshll.u32 2475754826, %v7814
  %v7821 = vshrl.u32 2131351028, %v7815
  %v7822 = vor.u32 %v7820, %v7821
  %v7823 = vshll.u32 2131351028, %v7814
  %v7824 = vshrl.u32 2102212464, %v7815
  %v7825 = vor.u32 %v7823, %v7824
  %v7826 = vshll.u32 2102212464, %v7814
  %v7827 = vshrl.u32 920167782, %v7815
  %v7828 = vor.u32 %v7826, %v7827
  %v7829 = vshll.u32 920167782, %v7814
  %v7830 = vshrl.u32 1326507024, %v7815
  %v7831 = vor.u32 %v7829, %v7830
  %vm7832 = vcmp.lt.s32.totalorder %v7813, 1
  %vm7833 = vcmp.lt.s32.totalorder %v7813, 2
  %vm7834 = vcmp.lt.s32.totalorder %v7813, 3
  %vm7835 = vcmp.lt.s32.totalorder %v7813, 4
  %v7836 = vsel %vm7832, %v7816, %v7819
  %v7837 = vsel %vm7835, %v7825, 2102212464
  %v7838 = vsel %vm7834, %v7822, %v7837
  %v7839 = vsel %vm7833, %v7836, %v7838
  %v7840 = vsel %vm7832, %v7819, %v7822
  %v7841 = vsel %vm7835, %v7828, 920167782
  %v7842 = vsel %vm7834, %v7825, %v7841
  %v7843 = vsel %vm7833, %v7840, %v7842
  %v7844 = vsel %vm7832, %v7822, %v7825
  %v7845 = vsel %vm7835, %v7831, 1326507024
  %v7846 = vsel %vm7834, %v7828, %v7845
  %v7847 = vsel %vm7833, %v7844, %v7846
  %v7848 = vshll.u32 %v7808, 8
  %v7849 = vmul.u32.u64.compose %v7848, %v7847
  %v7850 = vextract.low.u32 %v7849
  %v7851 = vextract.high.u32 %v7849
  %v7852 = vmul.u32.u64.compose %v7848, %v7843
  %v7853 = vextract.low.u32 %v7852
  %v7854 = vextract.high.u32 %v7852
  %v7855 = vmul.u32 %v7848, %v7839
  %v7856 = vadd.s32 %v7851, %v7853
  %vm7857 = vc.u32 %v7851, %v7853
  %v7858 = vadd.s32 %v7854, 1
  %v7859 = vsel %vm7857, %v7858, %v7854
  %v7860 = vadd.s32 %v7855, %v7859
  %v7861 = vadd.s32 %v7860, 536870912
  %v7862 = vshrl.u32 %v7861, 30
  %v7863 = vshll.u32 %v7862, 30
  %v7864 = vsub.s32 %v7860, %v7863
  %vm7865 = vcmp.lt.s32.totalorder %v7864, 0
  %v7866 = vsub.s32 0, %v7864
  %v7867 = vsel %vm7865, %v7866, %v7864
  %v7868 = vclz %v7867
  %v7869 = vsub.s32 %v7868, 2
  %vm7870 = vcmp.gt.s32.totalorder 0, %v7869
  %v7871 = vsel %vm7870, 0, %v7869
  %v7872 = vsub.s32 32, %v7871
  %v7873 = vshll.u32 %v7864, %v7871
  %v7874 = vshrl.u32 %v7856, %v7872
  %v7875 = vor.u32 %v7873, %v7874
  %v7876 = vsub.s32 4294967266, %v7871
  %v7877 = vadd.s32 %v7876, 127
  %v7878 = vshll.u32 %v7877, 23
  %v7879 = vor.u32 4788187, %v7878
  %v7880 = vand.u32 2147483647, %v7879
  %v7882 = vcvt.s32.f32 %v7875
  %v7883 = vmul.f32 %v7882, %v7880
  %v7884 = vxor.u32 %v7883, 2147483648
  %v7885 = vsel %vm7802, %v7884, %v7883
  %v7886 = vsub.s32 4, %v7862
  %v7887 = vsel %vm7802, %v7886, %v7862
  %v7888 = vsel %vm7801, %v7063, %v7885
  %v7889 = vsel %vm7801, 0, %v7887
  %v7890 = vcosq.f32.pop %v7888
  %v7891 = vsinq.f32.pop %v7888
  %vm7892 = vweird.f32 %v7063
  %v7893 = vadd.s32 %v7889, 3
  %v7894 = vand.u32 %v7893, 3
  %vm7895 = vcmp.lt.s32.totalorder %v7894, 2
  %vm7896 = vcmp.eq.s32.totalorder %v7894, 0
  %v7897 = vxor.u32 %v7891, 2147483648
  %v7898 = vsel %vm7896, %v7890, %v7897
  %vm7899 = vcmp.eq.s32.totalorder %v7894, 2
  %v7900 = vxor.u32 %v7890, 2147483648
  %v7901 = vsel %vm7899, %v7900, %v7891
  %v7902 = vsel %vm7895, %v7898, %v7901
  %v7903 = vsel %vm7892, nan, %v7902
  %v7904 = vand.u32 2147483647, %v7064
  %vm7905 = vcmp.le.f32.partialorder %v7904, 0.7853982
  %vm7906 = vcmp.lt.s32.totalorder %v7064, 0
  %v7907 = vand.u32 %v7064, 2139095040
  %v7908 = vshrl.u32 %v7907, 23
  %v7909 = vsub.s32 %v7908, 127
  %v7910 = vand.u32 2147483647, %v7064
  %v7911 = vand.u32 %v7910, 8388607
  %v7912 = vor.u32 %v7911, 8388608
  %v7913 = vsub.s32 0, %v7912
  %v7914 = vadd.s32 %v7909, 1
  %vm7915 = vcmp.gt.s32.totalorder %v7914, 0
  %v7916 = vsel %vm7915, %v7914, 0
  %v7917 = vshrl.u32 %v7916, 5
  %v7918 = vand.u32 %v7916, 31
  %v7919 = vsub.s32 32, %v7918
  %v7920 = vshrl.u32 683565275, %v7919
  %v7921 = vshll.u32 683565275, %v7918
  %v7922 = vshrl.u32 2475754826, %v7919
  %v7923 = vor.u32 %v7921, %v7922
  %v7924 = vshll.u32 2475754826, %v7918
  %v7925 = vshrl.u32 2131351028, %v7919
  %v7926 = vor.u32 %v7924, %v7925
  %v7927 = vshll.u32 2131351028, %v7918
  %v7928 = vshrl.u32 2102212464, %v7919
  %v7929 = vor.u32 %v7927, %v7928
  %v7930 = vshll.u32 2102212464, %v7918
  %v7931 = vshrl.u32 920167782, %v7919
  %v7932 = vor.u32 %v7930, %v7931
  %v7933 = vshll.u32 920167782, %v7918
  %v7934 = vshrl.u32 1326507024, %v7919
  %v7935 = vor.u32 %v7933, %v7934
  %vm7936 = vcmp.lt.s32.totalorder %v7917, 1
  %vm7937 = vcmp.lt.s32.totalorder %v7917, 2
  %vm7938 = vcmp.lt.s32.totalorder %v7917, 3
  %vm7939 = vcmp.lt.s32.totalorder %v7917, 4
  %v7940 = vsel %vm7936, %v7920, %v7923
  %v7941 = vsel %vm7939, %v7929, 2102212464
  %v7942 = vsel %vm7938, %v7926, %v7941
  %v7943 = vsel %vm7937, %v7940, %v7942
  %v7944 = vsel %vm7936, %v7923, %v7926
  %v7945 = vsel %vm7939, %v7932, 920167782
  %v7946 = vsel %vm7938, %v7929, %v7945
  %v7947 = vsel %vm7937, %v7944, %v7946
  %v7948 = vsel %vm7936, %v7926, %v7929
  %v7949 = vsel %vm7939, %v7935, 1326507024
  %v7950 = vsel %vm7938, %v7932, %v7949
  %v7951 = vsel %vm7937, %v7948, %v7950
  %v7952 = vshll.u32 %v7912, 8
  %v7953 = vmul.u32.u64.compose %v7952, %v7951
  %v7954 = vextract.low.u32 %v7953
  %v7955 = vextract.high.u32 %v7953
  %v7956 = vmul.u32.u64.compose %v7952, %v7947
  %v7957 = vextract.low.u32 %v7956
  %v7958 = vextract.high.u32 %v7956
  %v7959 = vmul.u32 %v7952, %v7943
  %v7960 = vadd.s32 %v7955, %v7957
  %vm7961 = vc.u32 %v7955, %v7957
  %v7962 = vadd.s32 %v7958, 1
  %v7963 = vsel %vm7961, %v7962, %v7958
  %v7964 = vadd.s32 %v7959, %v7963
  %v7965 = vadd.s32 %v7964, 536870912
  %v7966 = vshrl.u32 %v7965, 30
  %v7967 = vshll.u32 %v7966, 30
  %v7968 = vsub.s32 %v7964, %v7967
  %vm7969 = vcmp.lt.s32.totalorder %v7968, 0
  %v7970 = vsub.s32 0, %v7968
  %v7971 = vsel %vm7969, %v7970, %v7968
  %v7972 = vclz %v7971
  %v7973 = vsub.s32 %v7972, 2
  %vm7974 = vcmp.gt.s32.totalorder 0, %v7973
  %v7975 = vsel %vm7974, 0, %v7973
  %v7976 = vsub.s32 32, %v7975
  %v7977 = vshll.u32 %v7968, %v7975
  %v7978 = vshrl.u32 %v7960, %v7976
  %v7979 = vor.u32 %v7977, %v7978
  %v7980 = vsub.s32 4294967266, %v7975
  %v7981 = vadd.s32 %v7980, 127
  %v7982 = vshll.u32 %v7981, 23
  %v7983 = vor.u32 4788187, %v7982
  %v7984 = vand.u32 2147483647, %v7983
  %v7986 = vcvt.s32.f32 %v7979
  %v7987 = vmul.f32 %v7986, %v7984
  %v7988 = vxor.u32 %v7987, 2147483648
  %v7989 = vsel %vm7906, %v7988, %v7987
  %v7990 = vsub.s32 4, %v7966
  %v7991 = vsel %vm7906, %v7990, %v7966
  %v7992 = vsel %vm7905, %v7064, %v7989
  %v7993 = vsel %vm7905, 0, %v7991
  %v7994 = vcosq.f32.pop %v7992
  %v7995 = vsinq.f32.pop %v7992
  %vm7996 = vweird.f32 %v7064
  %v7997 = vadd.s32 %v7993, 3
  %v7998 = vand.u32 %v7997, 3
  %vm7999 = vcmp.lt.s32.totalorder %v7998, 2
  %vm8000 = vcmp.eq.s32.totalorder %v7998, 0
  %v8001 = vxor.u32 %v7995, 2147483648
  %v8002 = vsel %vm8000, %v7994, %v8001
  %vm8003 = vcmp.eq.s32.totalorder %v7998, 2
  %v8004 = vxor.u32 %v7994, 2147483648
  %v8005 = vsel %vm8003, %v8004, %v7995
  %v8006 = vsel %vm7999, %v8002, %v8005
  %v8007 = vsel %vm7996, nan, %v8006
  %v8008 = vand.u32 2147483647, %v7065
  %vm8009 = vcmp.le.f32.partialorder %v8008, 0.7853982
  %vm8010 = vcmp.lt.s32.totalorder %v7065, 0
  %v8011 = vand.u32 %v7065, 2139095040
  %v8012 = vshrl.u32 %v8011, 23
  %v8013 = vsub.s32 %v8012, 127
  %v8014 = vand.u32 2147483647, %v7065
  %v8015 = vand.u32 %v8014, 8388607
  %v8016 = vor.u32 %v8015, 8388608
  %v8017 = vsub.s32 0, %v8016
  %v8018 = vadd.s32 %v8013, 1
  %vm8019 = vcmp.gt.s32.totalorder %v8018, 0
  %v8020 = vsel %vm8019, %v8018, 0
  %v8021 = vshrl.u32 %v8020, 5
  %v8022 = vand.u32 %v8020, 31
  %v8023 = vsub.s32 32, %v8022
  %v8024 = vshrl.u32 683565275, %v8023
  %v8025 = vshll.u32 683565275, %v8022
  %v8026 = vshrl.u32 2475754826, %v8023
  %v8027 = vor.u32 %v8025, %v8026
  %v8028 = vshll.u32 2475754826, %v8022
  %v8029 = vshrl.u32 2131351028, %v8023
  %v8030 = vor.u32 %v8028, %v8029
  %v8031 = vshll.u32 2131351028, %v8022
  %v8032 = vshrl.u32 2102212464, %v8023
  %v8033 = vor.u32 %v8031, %v8032
  %v8034 = vshll.u32 2102212464, %v8022
  %v8035 = vshrl.u32 920167782, %v8023
  %v8036 = vor.u32 %v8034, %v8035
  %v8037 = vshll.u32 920167782, %v8022
  %v8038 = vshrl.u32 1326507024, %v8023
  %v8039 = vor.u32 %v8037, %v8038
  %vm8040 = vcmp.lt.s32.totalorder %v8021, 1
  %vm8041 = vcmp.lt.s32.totalorder %v8021, 2
  %vm8042 = vcmp.lt.s32.totalorder %v8021, 3
  %vm8043 = vcmp.lt.s32.totalorder %v8021, 4
  %v8044 = vsel %vm8040, %v8024, %v8027
  %v8045 = vsel %vm8043, %v8033, 2102212464
  %v8046 = vsel %vm8042, %v8030, %v8045
  %v8047 = vsel %vm8041, %v8044, %v8046
  %v8048 = vsel %vm8040, %v8027, %v8030
  %v8049 = vsel %vm8043, %v8036, 920167782
  %v8050 = vsel %vm8042, %v8033, %v8049
  %v8051 = vsel %vm8041, %v8048, %v8050
  %v8052 = vsel %vm8040, %v8030, %v8033
  %v8053 = vsel %vm8043, %v8039, 1326507024
  %v8054 = vsel %vm8042, %v8036, %v8053
  %v8055 = vsel %vm8041, %v8052, %v8054
  %v8056 = vshll.u32 %v8016, 8
  %v8057 = vmul.u32.u64.compose %v8056, %v8055
  %v8058 = vextract.low.u32 %v8057
  %v8059 = vextract.high.u32 %v8057
  %v8060 = vmul.u32.u64.compose %v8056, %v8051
  %v8061 = vextract.low.u32 %v8060
  %v8062 = vextract.high.u32 %v8060
  %v8063 = vmul.u32 %v8056, %v8047
  %v8064 = vadd.s32 %v8059, %v8061
  %vm8065 = vc.u32 %v8059, %v8061
  %v8066 = vadd.s32 %v8062, 1
  %v8067 = vsel %vm8065, %v8066, %v8062
  %v8068 = vadd.s32 %v8063, %v8067
  %v8069 = vadd.s32 %v8068, 536870912
  %v8070 = vshrl.u32 %v8069, 30
  %v8071 = vshll.u32 %v8070, 30
  %v8072 = vsub.s32 %v8068, %v8071
  %vm8073 = vcmp.lt.s32.totalorder %v8072, 0
  %v8074 = vsub.s32 0, %v8072
  %v8075 = vsel %vm8073, %v8074, %v8072
  %v8076 = vclz %v8075
  %v8077 = vsub.s32 %v8076, 2
  %vm8078 = vcmp.gt.s32.totalorder 0, %v8077
  %v8079 = vsel %vm8078, 0, %v8077
  %v8080 = vsub.s32 32, %v8079
  %v8081 = vshll.u32 %v8072, %v8079
  %v8082 = vshrl.u32 %v8064, %v8080
  %v8083 = vor.u32 %v8081, %v8082
  %v8084 = vsub.s32 4294967266, %v8079
  %v8085 = vadd.s32 %v8084, 127
  %v8086 = vshll.u32 %v8085, 23
  %v8087 = vor.u32 4788187, %v8086
  %v8088 = vand.u32 2147483647, %v8087
  %v8090 = vcvt.s32.f32 %v8083
  %v8091 = vmul.f32 %v8090, %v8088
  %v8092 = vxor.u32 %v8091, 2147483648
  %v8093 = vsel %vm8010, %v8092, %v8091
  %v8094 = vsub.s32 4, %v8070
  %v8095 = vsel %vm8010, %v8094, %v8070
  %v8096 = vsel %vm8009, %v7065, %v8093
  %v8097 = vsel %vm8009, 0, %v8095
  %v8098 = vcosq.f32.pop %v8096
  %v8099 = vsinq.f32.pop %v8096
  %vm8100 = vweird.f32 %v7065
  %v8101 = vadd.s32 %v8097, 3
  %v8102 = vand.u32 %v8101, 3
  %vm8103 = vcmp.lt.s32.totalorder %v8102, 2
  %vm8104 = vcmp.eq.s32.totalorder %v8102, 0
  %v8105 = vxor.u32 %v8099, 2147483648
  %v8106 = vsel %vm8104, %v8098, %v8105
  %vm8107 = vcmp.eq.s32.totalorder %v8102, 2
  %v8108 = vxor.u32 %v8098, 2147483648
  %v8109 = vsel %vm8107, %v8108, %v8099
  %v8110 = vsel %vm8103, %v8106, %v8109
  %v8111 = vsel %vm8100, nan, %v8110
  %v8112 = vand.u32 2147483647, %v7066
  %vm8113 = vcmp.le.f32.partialorder %v8112, 0.7853982
  %vm8114 = vcmp.lt.s32.totalorder %v7066, 0
  %v8115 = vand.u32 %v7066, 2139095040
  %v8116 = vshrl.u32 %v8115, 23
  %v8117 = vsub.s32 %v8116, 127
  %v8118 = vand.u32 2147483647, %v7066
  %v8119 = vand.u32 %v8118, 8388607
  %v8120 = vor.u32 %v8119, 8388608
  %v8121 = vsub.s32 0, %v8120
  %v8122 = vadd.s32 %v8117, 1
  %vm8123 = vcmp.gt.s32.totalorder %v8122, 0
  %v8124 = vsel %vm8123, %v8122, 0
  %v8125 = vshrl.u32 %v8124, 5
  %v8126 = vand.u32 %v8124, 31
  %v8127 = vsub.s32 32, %v8126
  %v8128 = vshrl.u32 683565275, %v8127
  %v8129 = vshll.u32 683565275, %v8126
  %v8130 = vshrl.u32 2475754826, %v8127
  %v8131 = vor.u32 %v8129, %v8130
  %v8132 = vshll.u32 2475754826, %v8126
  %v8133 = vshrl.u32 2131351028, %v8127
  %v8134 = vor.u32 %v8132, %v8133
  %v8135 = vshll.u32 2131351028, %v8126
  %v8136 = vshrl.u32 2102212464, %v8127
  %v8137 = vor.u32 %v8135, %v8136
  %v8138 = vshll.u32 2102212464, %v8126
  %v8139 = vshrl.u32 920167782, %v8127
  %v8140 = vor.u32 %v8138, %v8139
  %v8141 = vshll.u32 920167782, %v8126
  %v8142 = vshrl.u32 1326507024, %v8127
  %v8143 = vor.u32 %v8141, %v8142
  %vm8144 = vcmp.lt.s32.totalorder %v8125, 1
  %vm8145 = vcmp.lt.s32.totalorder %v8125, 2
  %vm8146 = vcmp.lt.s32.totalorder %v8125, 3
  %vm8147 = vcmp.lt.s32.totalorder %v8125, 4
  %v8148 = vsel %vm8144, %v8128, %v8131
  %v8149 = vsel %vm8147, %v8137, 2102212464
  %v8150 = vsel %vm8146, %v8134, %v8149
  %v8151 = vsel %vm8145, %v8148, %v8150
  %v8152 = vsel %vm8144, %v8131, %v8134
  %v8153 = vsel %vm8147, %v8140, 920167782
  %v8154 = vsel %vm8146, %v8137, %v8153
  %v8155 = vsel %vm8145, %v8152, %v8154
  %v8156 = vsel %vm8144, %v8134, %v8137
  %v8157 = vsel %vm8147, %v8143, 1326507024
  %v8158 = vsel %vm8146, %v8140, %v8157
  %v8159 = vsel %vm8145, %v8156, %v8158
  %v8160 = vshll.u32 %v8120, 8
  %v8161 = vmul.u32.u64.compose %v8160, %v8159
  %v8162 = vextract.low.u32 %v8161
  %v8163 = vextract.high.u32 %v8161
  %v8164 = vmul.u32.u64.compose %v8160, %v8155
  %v8165 = vextract.low.u32 %v8164
  %v8166 = vextract.high.u32 %v8164
  %v8167 = vmul.u32 %v8160, %v8151
  %v8168 = vadd.s32 %v8163, %v8165
  %vm8169 = vc.u32 %v8163, %v8165
  %v8170 = vadd.s32 %v8166, 1
  %v8171 = vsel %vm8169, %v8170, %v8166
  %v8172 = vadd.s32 %v8167, %v8171
  %v8173 = vadd.s32 %v8172, 536870912
  %v8174 = vshrl.u32 %v8173, 30
  %v8175 = vshll.u32 %v8174, 30
  %v8176 = vsub.s32 %v8172, %v8175
  %vm8177 = vcmp.lt.s32.totalorder %v8176, 0
  %v8178 = vsub.s32 0, %v8176
  %v8179 = vsel %vm8177, %v8178, %v8176
  %v8180 = vclz %v8179
  %v8181 = vsub.s32 %v8180, 2
  %vm8182 = vcmp.gt.s32.totalorder 0, %v8181
  %v8183 = vsel %vm8182, 0, %v8181
  %v8184 = vsub.s32 32, %v8183
  %v8185 = vshll.u32 %v8176, %v8183
  %v8186 = vshrl.u32 %v8168, %v8184
  %v8187 = vor.u32 %v8185, %v8186
  %v8188 = vsub.s32 4294967266, %v8183
  %v8189 = vadd.s32 %v8188, 127
  %v8190 = vshll.u32 %v8189, 23
  %v8191 = vor.u32 4788187, %v8190
  %v8192 = vand.u32 2147483647, %v8191
  %v8194 = vcvt.s32.f32 %v8187
  %v8195 = vmul.f32 %v8194, %v8192
  %v8196 = vxor.u32 %v8195, 2147483648
  %v8197 = vsel %vm8114, %v8196, %v8195
  %v8198 = vsub.s32 4, %v8174
  %v8199 = vsel %vm8114, %v8198, %v8174
  %v8200 = vsel %vm8113, %v7066, %v8197
  %v8201 = vsel %vm8113, 0, %v8199
  %v8202 = vcosq.f32.pop %v8200
  %v8203 = vsinq.f32.pop %v8200
  %vm8204 = vweird.f32 %v7066
  %v8205 = vadd.s32 %v8201, 3
  %v8206 = vand.u32 %v8205, 3
  %vm8207 = vcmp.lt.s32.totalorder %v8206, 2
  %vm8208 = vcmp.eq.s32.totalorder %v8206, 0
  %v8209 = vxor.u32 %v8203, 2147483648
  %v8210 = vsel %vm8208, %v8202, %v8209
  %vm8211 = vcmp.eq.s32.totalorder %v8206, 2
  %v8212 = vxor.u32 %v8202, 2147483648
  %v8213 = vsel %vm8211, %v8212, %v8203
  %v8214 = vsel %vm8207, %v8210, %v8213
  %v8215 = vsel %vm8204, nan, %v8214
  %v8216 = vand.u32 2147483647, %v7067
  %vm8217 = vcmp.le.f32.partialorder %v8216, 0.7853982
  %vm8218 = vcmp.lt.s32.totalorder %v7067, 0
  %v8219 = vand.u32 %v7067, 2139095040
  %v8220 = vshrl.u32 %v8219, 23
  %v8221 = vsub.s32 %v8220, 127
  %v8222 = vand.u32 2147483647, %v7067
  %v8223 = vand.u32 %v8222, 8388607
  %v8224 = vor.u32 %v8223, 8388608
  %v8225 = vsub.s32 0, %v8224
  %v8226 = vadd.s32 %v8221, 1
  %vm8227 = vcmp.gt.s32.totalorder %v8226, 0
  %v8228 = vsel %vm8227, %v8226, 0
  %v8229 = vshrl.u32 %v8228, 5
  %v8230 = vand.u32 %v8228, 31
  %v8231 = vsub.s32 32, %v8230
  %v8232 = vshrl.u32 683565275, %v8231
  %v8233 = vshll.u32 683565275, %v8230
  %v8234 = vshrl.u32 2475754826, %v8231
  %v8235 = vor.u32 %v8233, %v8234
  %v8236 = vshll.u32 2475754826, %v8230
  %v8237 = vshrl.u32 2131351028, %v8231
  %v8238 = vor.u32 %v8236, %v8237
  %v8239 = vshll.u32 2131351028, %v8230
  %v8240 = vshrl.u32 2102212464, %v8231
  %v8241 = vor.u32 %v8239, %v8240
  %v8242 = vshll.u32 2102212464, %v8230
  %v8243 = vshrl.u32 920167782, %v8231
  %v8244 = vor.u32 %v8242, %v8243
  %v8245 = vshll.u32 920167782, %v8230
  %v8246 = vshrl.u32 1326507024, %v8231
  %v8247 = vor.u32 %v8245, %v8246
  %vm8248 = vcmp.lt.s32.totalorder %v8229, 1
  %vm8249 = vcmp.lt.s32.totalorder %v8229, 2
  %vm8250 = vcmp.lt.s32.totalorder %v8229, 3
  %vm8251 = vcmp.lt.s32.totalorder %v8229, 4
  %v8252 = vsel %vm8248, %v8232, %v8235
  %v8253 = vsel %vm8251, %v8241, 2102212464
  %v8254 = vsel %vm8250, %v8238, %v8253
  %v8255 = vsel %vm8249, %v8252, %v8254
  %v8256 = vsel %vm8248, %v8235, %v8238
  %v8257 = vsel %vm8251, %v8244, 920167782
  %v8258 = vsel %vm8250, %v8241, %v8257
  %v8259 = vsel %vm8249, %v8256, %v8258
  %v8260 = vsel %vm8248, %v8238, %v8241
  %v8261 = vsel %vm8251, %v8247, 1326507024
  %v8262 = vsel %vm8250, %v8244, %v8261
  %v8263 = vsel %vm8249, %v8260, %v8262
  %v8264 = vshll.u32 %v8224, 8
  %v8265 = vmul.u32.u64.compose %v8264, %v8263
  %v8266 = vextract.low.u32 %v8265
  %v8267 = vextract.high.u32 %v8265
  %v8268 = vmul.u32.u64.compose %v8264, %v8259
  %v8269 = vextract.low.u32 %v8268
  %v8270 = vextract.high.u32 %v8268
  %v8271 = vmul.u32 %v8264, %v8255
  %v8272 = vadd.s32 %v8267, %v8269
  %vm8273 = vc.u32 %v8267, %v8269
  %v8274 = vadd.s32 %v8270, 1
  %v8275 = vsel %vm8273, %v8274, %v8270
  %v8276 = vadd.s32 %v8271, %v8275
  %v8277 = vadd.s32 %v8276, 536870912
  %v8278 = vshrl.u32 %v8277, 30
  %v8279 = vshll.u32 %v8278, 30
  %v8280 = vsub.s32 %v8276, %v8279
  %vm8281 = vcmp.lt.s32.totalorder %v8280, 0
  %v8282 = vsub.s32 0, %v8280
  %v8283 = vsel %vm8281, %v8282, %v8280
  %v8284 = vclz %v8283
  %v8285 = vsub.s32 %v8284, 2
  %vm8286 = vcmp.gt.s32.totalorder 0, %v8285
  %v8287 = vsel %vm8286, 0, %v8285
  %v8288 = vsub.s32 32, %v8287
  %v8289 = vshll.u32 %v8280, %v8287
  %v8290 = vshrl.u32 %v8272, %v8288
  %v8291 = vor.u32 %v8289, %v8290
  %v8292 = vsub.s32 4294967266, %v8287
  %v8293 = vadd.s32 %v8292, 127
  %v8294 = vshll.u32 %v8293, 23
  %v8295 = vor.u32 4788187, %v8294
  %v8296 = vand.u32 2147483647, %v8295
  %v8298 = vcvt.s32.f32 %v8291
  %v8299 = vmul.f32 %v8298, %v8296
  %v8300 = vxor.u32 %v8299, 2147483648
  %v8301 = vsel %vm8218, %v8300, %v8299
  %v8302 = vsub.s32 4, %v8278
  %v8303 = vsel %vm8218, %v8302, %v8278
  %v8304 = vsel %vm8217, %v7067, %v8301
  %v8305 = vsel %vm8217, 0, %v8303
  %v8306 = vcosq.f32.pop %v8304
  %v8307 = vsinq.f32.pop %v8304
  %vm8308 = vweird.f32 %v7067
  %v8309 = vadd.s32 %v8305, 3
  %v8310 = vand.u32 %v8309, 3
  %vm8311 = vcmp.lt.s32.totalorder %v8310, 2
  %vm8312 = vcmp.eq.s32.totalorder %v8310, 0
  %v8313 = vxor.u32 %v8307, 2147483648
  %v8314 = vsel %vm8312, %v8306, %v8313
  %vm8315 = vcmp.eq.s32.totalorder %v8310, 2
  %v8316 = vxor.u32 %v8306, 2147483648
  %v8317 = vsel %vm8315, %v8316, %v8307
  %v8318 = vsel %vm8311, %v8314, %v8317
  %v8319 = vsel %vm8308, nan, %v8318
  %v8320 = vand.u32 2147483647, %v7068
  %vm8321 = vcmp.le.f32.partialorder %v8320, 0.7853982
  %vm8322 = vcmp.lt.s32.totalorder %v7068, 0
  %v8323 = vand.u32 %v7068, 2139095040
  %v8324 = vshrl.u32 %v8323, 23
  %v8325 = vsub.s32 %v8324, 127
  %v8326 = vand.u32 2147483647, %v7068
  %v8327 = vand.u32 %v8326, 8388607
  %v8328 = vor.u32 %v8327, 8388608
  %v8329 = vsub.s32 0, %v8328
  %v8330 = vadd.s32 %v8325, 1
  %vm8331 = vcmp.gt.s32.totalorder %v8330, 0
  %v8332 = vsel %vm8331, %v8330, 0
  %v8333 = vshrl.u32 %v8332, 5
  %v8334 = vand.u32 %v8332, 31
  %v8335 = vsub.s32 32, %v8334
  %v8336 = vshrl.u32 683565275, %v8335
  %v8337 = vshll.u32 683565275, %v8334
  %v8338 = vshrl.u32 2475754826, %v8335
  %v8339 = vor.u32 %v8337, %v8338
  %v8340 = vshll.u32 2475754826, %v8334
  %v8341 = vshrl.u32 2131351028, %v8335
  %v8342 = vor.u32 %v8340, %v8341
  %v8343 = vshll.u32 2131351028, %v8334
  %v8344 = vshrl.u32 2102212464, %v8335
  %v8345 = vor.u32 %v8343, %v8344
  %v8346 = vshll.u32 2102212464, %v8334
  %v8347 = vshrl.u32 920167782, %v8335
  %v8348 = vor.u32 %v8346, %v8347
  %v8349 = vshll.u32 920167782, %v8334
  %v8350 = vshrl.u32 1326507024, %v8335
  %v8351 = vor.u32 %v8349, %v8350
  %vm8352 = vcmp.lt.s32.totalorder %v8333, 1
  %vm8353 = vcmp.lt.s32.totalorder %v8333, 2
  %vm8354 = vcmp.lt.s32.totalorder %v8333, 3
  %vm8355 = vcmp.lt.s32.totalorder %v8333, 4
  %v8356 = vsel %vm8352, %v8336, %v8339
  %v8357 = vsel %vm8355, %v8345, 2102212464
  %v8358 = vsel %vm8354, %v8342, %v8357
  %v8359 = vsel %vm8353, %v8356, %v8358
  %v8360 = vsel %vm8352, %v8339, %v8342
  %v8361 = vsel %vm8355, %v8348, 920167782
  %v8362 = vsel %vm8354, %v8345, %v8361
  %v8363 = vsel %vm8353, %v8360, %v8362
  %v8364 = vsel %vm8352, %v8342, %v8345
  %v8365 = vsel %vm8355, %v8351, 1326507024
  %v8366 = vsel %vm8354, %v8348, %v8365
  %v8367 = vsel %vm8353, %v8364, %v8366
  %v8368 = vshll.u32 %v8328, 8
  %v8369 = vmul.u32.u64.compose %v8368, %v8367
  %v8370 = vextract.low.u32 %v8369
  %v8371 = vextract.high.u32 %v8369
  %v8372 = vmul.u32.u64.compose %v8368, %v8363
  %v8373 = vextract.low.u32 %v8372
  %v8374 = vextract.high.u32 %v8372
  %v8375 = vmul.u32 %v8368, %v8359
  %v8376 = vadd.s32 %v8371, %v8373
  %vm8377 = vc.u32 %v8371, %v8373
  %v8378 = vadd.s32 %v8374, 1
  %v8379 = vsel %vm8377, %v8378, %v8374
  %v8380 = vadd.s32 %v8375, %v8379
  %v8381 = vadd.s32 %v8380, 536870912
  %v8382 = vshrl.u32 %v8381, 30
  %v8383 = vshll.u32 %v8382, 30
  %v8384 = vsub.s32 %v8380, %v8383
  %vm8385 = vcmp.lt.s32.totalorder %v8384, 0
  %v8386 = vsub.s32 0, %v8384
  %v8387 = vsel %vm8385, %v8386, %v8384
  %v8388 = vclz %v8387
  %v8389 = vsub.s32 %v8388, 2
  %vm8390 = vcmp.gt.s32.totalorder 0, %v8389
  %v8391 = vsel %vm8390, 0, %v8389
  %v8392 = vsub.s32 32, %v8391
  %v8393 = vshll.u32 %v8384, %v8391
  %v8394 = vshrl.u32 %v8376, %v8392
  %v8395 = vor.u32 %v8393, %v8394
  %v8396 = vsub.s32 4294967266, %v8391
  %v8397 = vadd.s32 %v8396, 127
  %v8398 = vshll.u32 %v8397, 23
  %v8399 = vor.u32 4788187, %v8398
  %v8400 = vand.u32 2147483647, %v8399
  %v8402 = vcvt.s32.f32 %v8395
  %v8403 = vmul.f32 %v8402, %v8400
  %v8404 = vxor.u32 %v8403, 2147483648
  %v8405 = vsel %vm8322, %v8404, %v8403
  %v8406 = vsub.s32 4, %v8382
  %v8407 = vsel %vm8322, %v8406, %v8382
  %v8408 = vsel %vm8321, %v7068, %v8405
  %v8409 = vsel %vm8321, 0, %v8407
  %v8410 = vcosq.f32.pop %v8408
  %v8411 = vsinq.f32.pop %v8408
  %vm8412 = vweird.f32 %v7068
  %v8413 = vadd.s32 %v8409, 3
  %v8414 = vand.u32 %v8413, 3
  %vm8415 = vcmp.lt.s32.totalorder %v8414, 2
  %vm8416 = vcmp.eq.s32.totalorder %v8414, 0
  %v8417 = vxor.u32 %v8411, 2147483648
  %v8418 = vsel %vm8416, %v8410, %v8417
  %vm8419 = vcmp.eq.s32.totalorder %v8414, 2
  %v8420 = vxor.u32 %v8410, 2147483648
  %v8421 = vsel %vm8419, %v8420, %v8411
  %v8422 = vsel %vm8415, %v8418, %v8421
  %v8423 = vsel %vm8412, nan, %v8422
  %v8424 = vand.u32 2147483647, %v7069
  %vm8425 = vcmp.le.f32.partialorder %v8424, 0.7853982
  %vm8426 = vcmp.lt.s32.totalorder %v7069, 0
  %v8427 = vand.u32 %v7069, 2139095040
  %v8428 = vshrl.u32 %v8427, 23
  %v8429 = vsub.s32 %v8428, 127
  %v8430 = vand.u32 2147483647, %v7069
  %v8431 = vand.u32 %v8430, 8388607
  %v8432 = vor.u32 %v8431, 8388608
  %v8433 = vsub.s32 0, %v8432
  %v8434 = vadd.s32 %v8429, 1
  %vm8435 = vcmp.gt.s32.totalorder %v8434, 0
  %v8436 = vsel %vm8435, %v8434, 0
  %v8437 = vshrl.u32 %v8436, 5
  %v8438 = vand.u32 %v8436, 31
  %v8439 = vsub.s32 32, %v8438
  %v8440 = vshrl.u32 683565275, %v8439
  %v8441 = vshll.u32 683565275, %v8438
  %v8442 = vshrl.u32 2475754826, %v8439
  %v8443 = vor.u32 %v8441, %v8442
  %v8444 = vshll.u32 2475754826, %v8438
  %v8445 = vshrl.u32 2131351028, %v8439
  %v8446 = vor.u32 %v8444, %v8445
  %v8447 = vshll.u32 2131351028, %v8438
  %v8448 = vshrl.u32 2102212464, %v8439
  %v8449 = vor.u32 %v8447, %v8448
  %v8450 = vshll.u32 2102212464, %v8438
  %v8451 = vshrl.u32 920167782, %v8439
  %v8452 = vor.u32 %v8450, %v8451
  %v8453 = vshll.u32 920167782, %v8438
  %v8454 = vshrl.u32 1326507024, %v8439
  %v8455 = vor.u32 %v8453, %v8454
  %vm8456 = vcmp.lt.s32.totalorder %v8437, 1
  %vm8457 = vcmp.lt.s32.totalorder %v8437, 2
  %vm8458 = vcmp.lt.s32.totalorder %v8437, 3
  %vm8459 = vcmp.lt.s32.totalorder %v8437, 4
  %v8460 = vsel %vm8456, %v8440, %v8443
  %v8461 = vsel %vm8459, %v8449, 2102212464
  %v8462 = vsel %vm8458, %v8446, %v8461
  %v8463 = vsel %vm8457, %v8460, %v8462
  %v8464 = vsel %vm8456, %v8443, %v8446
  %v8465 = vsel %vm8459, %v8452, 920167782
  %v8466 = vsel %vm8458, %v8449, %v8465
  %v8467 = vsel %vm8457, %v8464, %v8466
  %v8468 = vsel %vm8456, %v8446, %v8449
  %v8469 = vsel %vm8459, %v8455, 1326507024
  %v8470 = vsel %vm8458, %v8452, %v8469
  %v8471 = vsel %vm8457, %v8468, %v8470
  %v8472 = vshll.u32 %v8432, 8
  %v8473 = vmul.u32.u64.compose %v8472, %v8471
  %v8474 = vextract.low.u32 %v8473
  %v8475 = vextract.high.u32 %v8473
  %v8476 = vmul.u32.u64.compose %v8472, %v8467
  %v8477 = vextract.low.u32 %v8476
  %v8478 = vextract.high.u32 %v8476
  %v8479 = vmul.u32 %v8472, %v8463
  %v8480 = vadd.s32 %v8475, %v8477
  %vm8481 = vc.u32 %v8475, %v8477
  %v8482 = vadd.s32 %v8478, 1
  %v8483 = vsel %vm8481, %v8482, %v8478
  %v8484 = vadd.s32 %v8479, %v8483
  %v8485 = vadd.s32 %v8484, 536870912
  %v8486 = vshrl.u32 %v8485, 30
  %v8487 = vshll.u32 %v8486, 30
  %v8488 = vsub.s32 %v8484, %v8487
  %vm8489 = vcmp.lt.s32.totalorder %v8488, 0
  %v8490 = vsub.s32 0, %v8488
  %v8491 = vsel %vm8489, %v8490, %v8488
  %v8492 = vclz %v8491
  %v8493 = vsub.s32 %v8492, 2
  %vm8494 = vcmp.gt.s32.totalorder 0, %v8493
  %v8495 = vsel %vm8494, 0, %v8493
  %v8496 = vsub.s32 32, %v8495
  %v8497 = vshll.u32 %v8488, %v8495
  %v8498 = vshrl.u32 %v8480, %v8496
  %v8499 = vor.u32 %v8497, %v8498
  %v8500 = vsub.s32 4294967266, %v8495
  %v8501 = vadd.s32 %v8500, 127
  %v8502 = vshll.u32 %v8501, 23
  %v8503 = vor.u32 4788187, %v8502
  %v8504 = vand.u32 2147483647, %v8503
  %v8506 = vcvt.s32.f32 %v8499
  %v8507 = vmul.f32 %v8506, %v8504
  %v8508 = vxor.u32 %v8507, 2147483648
  %v8509 = vsel %vm8426, %v8508, %v8507
  %v8510 = vsub.s32 4, %v8486
  %v8511 = vsel %vm8426, %v8510, %v8486
  %v8512 = vsel %vm8425, %v7069, %v8509
  %v8513 = vsel %vm8425, 0, %v8511
  %v8514 = vcosq.f32.pop %v8512
  %v8515 = vsinq.f32.pop %v8512
  %vm8516 = vweird.f32 %v7069
  %v8517 = vadd.s32 %v8513, 3
  %v8518 = vand.u32 %v8517, 3
  %vm8519 = vcmp.lt.s32.totalorder %v8518, 2
  %vm8520 = vcmp.eq.s32.totalorder %v8518, 0
  %v8521 = vxor.u32 %v8515, 2147483648
  %v8522 = vsel %vm8520, %v8514, %v8521
  %vm8523 = vcmp.eq.s32.totalorder %v8518, 2
  %v8524 = vxor.u32 %v8514, 2147483648
  %v8525 = vsel %vm8523, %v8524, %v8515
  %v8526 = vsel %vm8519, %v8522, %v8525
  %v8527 = vsel %vm8516, nan, %v8526
  %v8528 = vand.u32 2147483647, %v7070
  %vm8529 = vcmp.le.f32.partialorder %v8528, 0.7853982
  %vm8530 = vcmp.lt.s32.totalorder %v7070, 0
  %v8531 = vand.u32 %v7070, 2139095040
  %v8532 = vshrl.u32 %v8531, 23
  %v8533 = vsub.s32 %v8532, 127
  %v8534 = vand.u32 2147483647, %v7070
  %v8535 = vand.u32 %v8534, 8388607
  %v8536 = vor.u32 %v8535, 8388608
  %v8537 = vsub.s32 0, %v8536
  %v8538 = vadd.s32 %v8533, 1
  %vm8539 = vcmp.gt.s32.totalorder %v8538, 0
  %v8540 = vsel %vm8539, %v8538, 0
  %v8541 = vshrl.u32 %v8540, 5
  %v8542 = vand.u32 %v8540, 31
  %v8543 = vsub.s32 32, %v8542
  %v8544 = vshrl.u32 683565275, %v8543
  %v8545 = vshll.u32 683565275, %v8542
  %v8546 = vshrl.u32 2475754826, %v8543
  %v8547 = vor.u32 %v8545, %v8546
  %v8548 = vshll.u32 2475754826, %v8542
  %v8549 = vshrl.u32 2131351028, %v8543
  %v8550 = vor.u32 %v8548, %v8549
  %v8551 = vshll.u32 2131351028, %v8542
  %v8552 = vshrl.u32 2102212464, %v8543
  %v8553 = vor.u32 %v8551, %v8552
  %v8554 = vshll.u32 2102212464, %v8542
  %v8555 = vshrl.u32 920167782, %v8543
  %v8556 = vor.u32 %v8554, %v8555
  %v8557 = vshll.u32 920167782, %v8542
  %v8558 = vshrl.u32 1326507024, %v8543
  %v8559 = vor.u32 %v8557, %v8558
  %vm8560 = vcmp.lt.s32.totalorder %v8541, 1
  %vm8561 = vcmp.lt.s32.totalorder %v8541, 2
  %vm8562 = vcmp.lt.s32.totalorder %v8541, 3
  %vm8563 = vcmp.lt.s32.totalorder %v8541, 4
  %v8564 = vsel %vm8560, %v8544, %v8547
  %v8565 = vsel %vm8563, %v8553, 2102212464
  %v8566 = vsel %vm8562, %v8550, %v8565
  %v8567 = vsel %vm8561, %v8564, %v8566
  %v8568 = vsel %vm8560, %v8547, %v8550
  %v8569 = vsel %vm8563, %v8556, 920167782
  %v8570 = vsel %vm8562, %v8553, %v8569
  %v8571 = vsel %vm8561, %v8568, %v8570
  %v8572 = vsel %vm8560, %v8550, %v8553
  %v8573 = vsel %vm8563, %v8559, 1326507024
  %v8574 = vsel %vm8562, %v8556, %v8573
  %v8575 = vsel %vm8561, %v8572, %v8574
  %v8576 = vshll.u32 %v8536, 8
  %v8577 = vmul.u32.u64.compose %v8576, %v8575
  %v8578 = vextract.low.u32 %v8577
  %v8579 = vextract.high.u32 %v8577
  %v8580 = vmul.u32.u64.compose %v8576, %v8571
  %v8581 = vextract.low.u32 %v8580
  %v8582 = vextract.high.u32 %v8580
  %v8583 = vmul.u32 %v8576, %v8567
  %v8584 = vadd.s32 %v8579, %v8581
  %vm8585 = vc.u32 %v8579, %v8581
  %v8586 = vadd.s32 %v8582, 1
  %v8587 = vsel %vm8585, %v8586, %v8582
  %v8588 = vadd.s32 %v8583, %v8587
  %v8589 = vadd.s32 %v8588, 536870912
  %v8590 = vshrl.u32 %v8589, 30
  %v8591 = vshll.u32 %v8590, 30
  %v8592 = vsub.s32 %v8588, %v8591
  %vm8593 = vcmp.lt.s32.totalorder %v8592, 0
  %v8594 = vsub.s32 0, %v8592
  %v8595 = vsel %vm8593, %v8594, %v8592
  %v8596 = vclz %v8595
  %v8597 = vsub.s32 %v8596, 2
  %vm8598 = vcmp.gt.s32.totalorder 0, %v8597
  %v8599 = vsel %vm8598, 0, %v8597
  %v8600 = vsub.s32 32, %v8599
  %v8601 = vshll.u32 %v8592, %v8599
  %v8602 = vshrl.u32 %v8584, %v8600
  %v8603 = vor.u32 %v8601, %v8602
  %v8604 = vsub.s32 4294967266, %v8599
  %v8605 = vadd.s32 %v8604, 127
  %v8606 = vshll.u32 %v8605, 23
  %v8607 = vor.u32 4788187, %v8606
  %v8608 = vand.u32 2147483647, %v8607
  %v8610 = vcvt.s32.f32 %v8603
  %v8611 = vmul.f32 %v8610, %v8608
  %v8612 = vxor.u32 %v8611, 2147483648
  %v8613 = vsel %vm8530, %v8612, %v8611
  %v8614 = vsub.s32 4, %v8590
  %v8615 = vsel %vm8530, %v8614, %v8590
  %v8616 = vsel %vm8529, %v7070, %v8613
  %v8617 = vsel %vm8529, 0, %v8615
  %v8618 = vcosq.f32.pop %v8616
  %v8619 = vsinq.f32.pop %v8616
  %vm8620 = vweird.f32 %v7070
  %v8621 = vadd.s32 %v8617, 3
  %v8622 = vand.u32 %v8621, 3
  %vm8623 = vcmp.lt.s32.totalorder %v8622, 2
  %vm8624 = vcmp.eq.s32.totalorder %v8622, 0
  %v8625 = vxor.u32 %v8619, 2147483648
  %v8626 = vsel %vm8624, %v8618, %v8625
  %vm8627 = vcmp.eq.s32.totalorder %v8622, 2
  %v8628 = vxor.u32 %v8618, 2147483648
  %v8629 = vsel %vm8627, %v8628, %v8619
  %v8630 = vsel %vm8623, %v8626, %v8629
  %v8631 = vsel %vm8620, nan, %v8630
  %v8632 = vand.u32 2147483647, %v7071
  %vm8633 = vcmp.le.f32.partialorder %v8632, 0.7853982
  %vm8634 = vcmp.lt.s32.totalorder %v7071, 0
  %v8635 = vand.u32 %v7071, 2139095040
  %v8636 = vshrl.u32 %v8635, 23
  %v8637 = vsub.s32 %v8636, 127
  %v8638 = vand.u32 2147483647, %v7071
  %v8639 = vand.u32 %v8638, 8388607
  %v8640 = vor.u32 %v8639, 8388608
  %v8641 = vsub.s32 0, %v8640
  %v8642 = vadd.s32 %v8637, 1
  %vm8643 = vcmp.gt.s32.totalorder %v8642, 0
  %v8644 = vsel %vm8643, %v8642, 0
  %v8645 = vshrl.u32 %v8644, 5
  %v8646 = vand.u32 %v8644, 31
  %v8647 = vsub.s32 32, %v8646
  %v8648 = vshrl.u32 683565275, %v8647
  %v8649 = vshll.u32 683565275, %v8646
  %v8650 = vshrl.u32 2475754826, %v8647
  %v8651 = vor.u32 %v8649, %v8650
  %v8652 = vshll.u32 2475754826, %v8646
  %v8653 = vshrl.u32 2131351028, %v8647
  %v8654 = vor.u32 %v8652, %v8653
  %v8655 = vshll.u32 2131351028, %v8646
  %v8656 = vshrl.u32 2102212464, %v8647
  %v8657 = vor.u32 %v8655, %v8656
  %v8658 = vshll.u32 2102212464, %v8646
  %v8659 = vshrl.u32 920167782, %v8647
  %v8660 = vor.u32 %v8658, %v8659
  %v8661 = vshll.u32 920167782, %v8646
  %v8662 = vshrl.u32 1326507024, %v8647
  %v8663 = vor.u32 %v8661, %v8662
  %vm8664 = vcmp.lt.s32.totalorder %v8645, 1
  %vm8665 = vcmp.lt.s32.totalorder %v8645, 2
  %vm8666 = vcmp.lt.s32.totalorder %v8645, 3
  %vm8667 = vcmp.lt.s32.totalorder %v8645, 4
  %v8668 = vsel %vm8664, %v8648, %v8651
  %v8669 = vsel %vm8667, %v8657, 2102212464
  %v8670 = vsel %vm8666, %v8654, %v8669
  %v8671 = vsel %vm8665, %v8668, %v8670
  %v8672 = vsel %vm8664, %v8651, %v8654
  %v8673 = vsel %vm8667, %v8660, 920167782
  %v8674 = vsel %vm8666, %v8657, %v8673
  %v8675 = vsel %vm8665, %v8672, %v8674
  %v8676 = vsel %vm8664, %v8654, %v8657
  %v8677 = vsel %vm8667, %v8663, 1326507024
  %v8678 = vsel %vm8666, %v8660, %v8677
  %v8679 = vsel %vm8665, %v8676, %v8678
  %v8680 = vshll.u32 %v8640, 8
  %v8681 = vmul.u32.u64.compose %v8680, %v8679
  %v8682 = vextract.low.u32 %v8681
  %v8683 = vextract.high.u32 %v8681
  %v8684 = vmul.u32.u64.compose %v8680, %v8675
  %v8685 = vextract.low.u32 %v8684
  %v8686 = vextract.high.u32 %v8684
  %v8687 = vmul.u32 %v8680, %v8671
  %v8688 = vadd.s32 %v8683, %v8685
  %vm8689 = vc.u32 %v8683, %v8685
  %v8690 = vadd.s32 %v8686, 1
  %v8691 = vsel %vm8689, %v8690, %v8686
  %v8692 = vadd.s32 %v8687, %v8691
  %v8693 = vadd.s32 %v8692, 536870912
  %v8694 = vshrl.u32 %v8693, 30
  %v8695 = vshll.u32 %v8694, 30
  %v8696 = vsub.s32 %v8692, %v8695
  %vm8697 = vcmp.lt.s32.totalorder %v8696, 0
  %v8698 = vsub.s32 0, %v8696
  %v8699 = vsel %vm8697, %v8698, %v8696
  %v8700 = vclz %v8699
  %v8701 = vsub.s32 %v8700, 2
  %vm8702 = vcmp.gt.s32.totalorder 0, %v8701
  %v8703 = vsel %vm8702, 0, %v8701
  %v8704 = vsub.s32 32, %v8703
  %v8705 = vshll.u32 %v8696, %v8703
  %v8706 = vshrl.u32 %v8688, %v8704
  %v8707 = vor.u32 %v8705, %v8706
  %v8708 = vsub.s32 4294967266, %v8703
  %v8709 = vadd.s32 %v8708, 127
  %v8710 = vshll.u32 %v8709, 23
  %v8711 = vor.u32 4788187, %v8710
  %v8712 = vand.u32 2147483647, %v8711
  %v8714 = vcvt.s32.f32 %v8707
  %v8715 = vmul.f32 %v8714, %v8712
  %v8716 = vxor.u32 %v8715, 2147483648
  %v8717 = vsel %vm8634, %v8716, %v8715
  %v8718 = vsub.s32 4, %v8694
  %v8719 = vsel %vm8634, %v8718, %v8694
  %v8720 = vsel %vm8633, %v7071, %v8717
  %v8721 = vsel %vm8633, 0, %v8719
  %v8722 = vcosq.f32.pop %v8720
  %v8723 = vsinq.f32.pop %v8720
  %vm8724 = vweird.f32 %v7071
  %v8725 = vadd.s32 %v8721, 3
  %v8726 = vand.u32 %v8725, 3
  %vm8727 = vcmp.lt.s32.totalorder %v8726, 2
  %vm8728 = vcmp.eq.s32.totalorder %v8726, 0
  %v8729 = vxor.u32 %v8723, 2147483648
  %v8730 = vsel %vm8728, %v8722, %v8729
  %vm8731 = vcmp.eq.s32.totalorder %v8726, 2
  %v8732 = vxor.u32 %v8722, 2147483648
  %v8733 = vsel %vm8731, %v8732, %v8723
  %v8734 = vsel %vm8727, %v8730, %v8733
  %v8735 = vsel %vm8724, nan, %v8734
  %v8736 = vld [vmem:[%s5] sm:$0xff]
  %v8737 = vld [vmem:[%s5 + $0x8] sm:$0xff]
  %v8738 = vld [vmem:[%s5 + $0x10] sm:$0xff]
  %v8739 = vld [vmem:[%s5 + $0x18] sm:$0xff]
  %v8740 = vld [vmem:[%s6] sm:$0xff]
  %v8741 = vld [vmem:[%s6 + $0x8] sm:$0xff]
  %v8742 = vld [vmem:[%s6 + $0x10] sm:$0xff]
  %v8743 = vld [vmem:[%s6 + $0x18] sm:$0xff]
  %8745 = vset.pattern.permute.xlu0 0
  %8746 = vperm.xlu0 %8745, %v8740
  %v8747 = vpop.permute.xlu0 %8746
  %8750 = vset.pattern.permute.xlu0 0
  %8751 = vperm.xlu0 %8750, %v8741
  %v8752 = vpop.permute.xlu0 %8751
  %8755 = vset.pattern.permute.xlu0 0
  %8756 = vperm.xlu0 %8755, %v8742
  %v8757 = vpop.permute.xlu0 %8756
  %8760 = vset.pattern.permute.xlu0 0
  %8761 = vperm.xlu0 %8760, %v8743
  %v8762 = vpop.permute.xlu0 %8761
  %v8765 = vsel %vm3521, %v8736, 0
  %v8768 = vsel %vm3521, %v8737, 0
  %v8771 = vsel %vm3521, %v8738, 0
  %v8774 = vsel %vm3521, %v8739, 0
  %v8776 = vand.u32 %v7279, 4294901760
  %8777 = vmatprep.subr.mxu0 %v8776
  %v8778 = vand.u32 %v7175, 4294901760
  %8779 = vmatpush1.msra.mxu0 %v8778
  %v8780 = vand.u32 %v7695, 4294901760
  %8781 = vmatprep.subr.mxu0 %v8780
  %v8782 = vand.u32 %v7591, 4294901760
  %8783 = vmatpush1.msra.mxu0 %v8782
  %v8784 = vand.u32 %v8111, 4294901760
  %8785 = vmatprep.subr.mxu0 %v8784
  %v8786 = vand.u32 %v8007, 4294901760
  %8787 = vmatpush1.msra.mxu0 %v8786
  %v8788 = vand.u32 %v8527, 4294901760
  %8789 = vmatprep.subr.mxu0 %v8788
  %v8790 = vand.u32 %v8423, 4294901760
  %8791 = vmatpush1.msra.mxu0 %v8790
  %8792 = vmatprep.subr.mxu0 0.0
  %8793 = vmatpush1.msra.mxu0 0.0
  %8794 = vmatprep.subr.mxu0 0.0
  %8795 = vmatpush1.msra.mxu0 0.0
  %8796 = vmatprep.subr.mxu0 0.0
  %8797 = vmatpush1.msra.mxu0 0.0
  %8798 = vmatprep.subr.mxu0 0.0
  %8799 = vmatpush1.msra.mxu0 0.0
  %8800 = vmatprep.subr.mxu0 0.0
  %8801 = vmatpush1.msra.mxu0 0.0
  %8802 = vmatprep.subr.mxu0 0.0
  %8803 = vmatpush1.msra.mxu0 0.0
  %8804 = vmatprep.subr.mxu0 0.0
  %8805 = vmatpush1.msra.mxu0 0.0
  %8806 = vmatprep.subr.mxu0 0.0
  %8807 = vmatpush1.msra.mxu0 0.0
  %8808 = vmatprep.subr.mxu0 0.0
  %8809 = vmatpush1.msra.mxu0 0.0
  %8810 = vmatprep.subr.mxu0 0.0
  %8811 = vmatpush1.msra.mxu0 0.0
  %8812 = vmatprep.subr.mxu0 0.0
  %8813 = vmatpush1.msra.mxu0 0.0
  %8814 = vmatprep.subr.mxu0 0.0
  %8815 = vmatpush1.msra.mxu0 0.0
  %8816 = vmatprep.subr.mxu0 0.0
  %8817 = vmatpush1.msra.mxu0 0.0
  %8818 = vmatprep.subr.mxu0 0.0
  %8819 = vmatpush1.msra.mxu0 0.0
  %8820 = vmatprep.subr.mxu0 0.0
  %8821 = vmatpush1.msra.mxu0 0.0
  %8822 = vmatprep.subr.mxu0 0.0
  %8823 = vmatpush1.msra.mxu0 0.0
  %8824 = vmatprep.subr.mxu0 0.0
  %8825 = vmatpush1.msra.mxu0 0.0
  %8826 = vmatprep.subr.mxu0 0.0
  %8827 = vmatpush1.msra.mxu0 0.0
  %8828 = vmatprep.subr.mxu0 0.0
  %8829 = vmatpush1.msra.mxu0 0.0
  %8830 = vmatprep.subr.mxu0 0.0
  %8831 = vmatpush1.msra.mxu0 0.0
  %8832 = vmatprep.subr.mxu0 0.0
  %8833 = vmatpush1.msra.mxu0 0.0
  %8834 = vmatprep.subr.mxu0 0.0
  %8835 = vmatpush1.msra.mxu0 0.0
  %8836 = vmatprep.subr.mxu0 0.0
  %8837 = vmatpush1.msra.mxu0 0.0
  %8838 = vmatprep.subr.mxu0 0.0
  %8839 = vmatpush1.msra.mxu0 0.0
  %8840 = vmatprep.subr.mxu0 0.0
  %8841 = vmatpush1.msra.mxu0 0.0
  %8842 = vmatprep.subr.mxu0 0.0
  %8843 = vmatpush1.msra.mxu0 0.0
  %8844 = vmatprep.subr.mxu0 0.0
  %8845 = vmatpush1.msra.mxu0 0.0
  %8846 = vmatprep.subr.mxu0 0.0
  %8847 = vmatpush1.msra.mxu0 0.0
  %8848 = vmatprep.mubr.f32.mxu0 0.0
  %v8849 = vand.u32 %v8765, 4294901760
  %v8850 = vsub.f32 %v8765, %v8849
  %v8851 = vand.u32 %v8850, 4294901760
  %v8852 = vsub.f32 %v8850, %v8851
  %v8853 = vand.u32 %v8852, 4294901760
  %8854 = vmatmul.mubr.f32.gmra.mrb[0].mxu0 %v8853
  %v8855 = vpop.f32.mrb[0].mxu0
  %v8856 = vadd.f32 %v8747, %v8855
  %v8857 = vpop.f32.mrb[0].mxu0
  %v8858 = vadd.f32 %v8747, %v8857
  %8859 = vmatprep.mubr.f32.mxu0 0.0
  %v8860 = vand.u32 %v8768, 4294901760
  %v8861 = vsub.f32 %v8768, %v8860
  %v8862 = vand.u32 %v8861, 4294901760
  %v8863 = vsub.f32 %v8861, %v8862
  %v8864 = vand.u32 %v8863, 4294901760
  %8865 = vmatmul.mubr.f32.gmra.mrb[0].mxu0 %v8864
  %v8866 = vpop.f32.mrb[0].mxu0
  %v8867 = vadd.f32 %v8752, %v8866
  %v8868 = vpop.f32.mrb[0].mxu0
  %v8869 = vadd.f32 %v8752, %v8868
  %8870 = vmatprep.mubr.f32.mxu0 0.0
  %v8871 = vand.u32 %v8771, 4294901760
  %v8872 = vsub.f32 %v8771, %v8871
  %v8873 = vand.u32 %v8872, 4294901760
  %v8874 = vsub.f32 %v8872, %v8873
  %v8875 = vand.u32 %v8874, 4294901760
  %8876 = vmatmul.mubr.f32.gmra.mrb[0].mxu0 %v8875
  %v8877 = vpop.f32.mrb[0].mxu0
  %v8878 = vadd.f32 %v8757, %v8877
  %v8879 = vpop.f32.mrb[0].mxu0
  %v8880 = vadd.f32 %v8757, %v8879
  %8881 = vmatprep.mubr.f32.mxu0 0.0
  %v8882 = vand.u32 %v8774, 4294901760
  %v8883 = vsub.f32 %v8774, %v8882
  %v8884 = vand.u32 %v8883, 4294901760
  %v8885 = vsub.f32 %v8883, %v8884
  %v8886 = vand.u32 %v8885, 4294901760
  %8887 = vmatmul.mubr.f32.gmra.mrb[0].mxu0 %v8886
  %v8888 = vpop.f32.mrb[0].mxu0
  %v8889 = vadd.f32 %v8762, %v8888
  %v8890 = vpop.f32.mrb[0].mxu0
  %v8891 = vadd.f32 %v8762, %v8890
  %8892 = vdwg.mxu0
  %v8893 = vand.u32 %v7279, 4294901760
  %v8894 = vsub.f32 %v7279, %v8893
  %v8895 = vand.u32 %v8894, 4294901760
  %v8896 = vsub.f32 %v8894, %v8895
  %v8897 = vand.u32 %v8896, 4294901760
  %8898 = vmatprep.subr.mxu0 %v8897
  %v8899 = vand.u32 %v7175, 4294901760
  %v8900 = vsub.f32 %v7175, %v8899
  %v8901 = vand.u32 %v8900, 4294901760
  %v8902 = vsub.f32 %v8900, %v8901
  %v8903 = vand.u32 %v8902, 4294901760
  %8904 = vmatpush1.msra.mxu0 %v8903
  %v8905 = vand.u32 %v7695, 4294901760
  %v8906 = vsub.f32 %v7695, %v8905
  %v8907 = vand.u32 %v8906, 4294901760
  %v8908 = vsub.f32 %v8906, %v8907
  %v8909 = vand.u32 %v8908, 4294901760
  %8910 = vmatprep.subr.mxu0 %v8909
  %v8911 = vand.u32 %v7591, 4294901760
  %v8912 = vsub.f32 %v7591, %v8911
  %v8913 = vand.u32 %v8912, 4294901760
  %v8914 = vsub.f32 %v8912, %v8913
  %v8915 = vand.u32 %v8914, 4294901760
  %8916 = vmatpush1.msra.mxu0 %v8915
  %v8917 = vand.u32 %v8111, 4294901760
  %v8918 = vsub.f32 %v8111, %v8917
  %v8919 = vand.u32 %v8918, 4294901760
  %v8920 = vsub.f32 %v8918, %v8919
  %v8921 = vand.u32 %v8920, 4294901760
  %8922 = vmatprep.subr.mxu0 %v8921
  %v8923 = vand.u32 %v8007, 4294901760
  %v8924 = vsub.f32 %v8007, %v8923
  %v8925 = vand.u32 %v8924, 4294901760
  %v8926 = vsub.f32 %v8924, %v8925
  %v8927 = vand.u32 %v8926, 4294901760
  %8928 = vmatpush1.msra.mxu0 %v8927
  %v8929 = vand.u32 %v8527, 4294901760
  %v8930 = vsub.f32 %v8527, %v8929
  %v8931 = vand.u32 %v8930, 4294901760
  %v8932 = vsub.f32 %v8930, %v8931
  %v8933 = vand.u32 %v8932, 4294901760
  %8934 = vmatprep.subr.mxu0 %v8933
  %v8935 = vand.u32 %v8423, 4294901760
  %v8936 = vsub.f32 %v8423, %v8935
  %v8937 = vand.u32 %v8936, 4294901760
  %v8938 = vsub.f32 %v8936, %v8937
  %v8939 = vand.u32 %v8938, 4294901760
  %8940 = vmatpush1.msra.mxu0 %v8939
  %8941 = vmatprep.subr.mxu0 0.0
  %8942 = vmatpush1.msra.mxu0 0.0
  %8943 = vmatprep.subr.mxu0 0.0
  %8944 = vmatpush1.msra.mxu0 0.0
  %8945 = vmatprep.subr.mxu0 0.0
  %8946 = vmatpush1.msra.mxu0 0.0
  %8947 = vmatprep.subr.mxu0 0.0
  %8948 = vmatpush1.msra.mxu0 0.0
  %8949 = vmatprep.subr.mxu0 0.0
  %8950 = vmatpush1.msra.mxu0 0.0
  %8951 = vmatprep.subr.mxu0 0.0
  %8952 = vmatpush1.msra.mxu0 0.0
  %8953 = vmatprep.subr.mxu0 0.0
  %8954 = vmatpush1.msra.mxu0 0.0
  %8955 = vmatprep.subr.mxu0 0.0
  %8956 = vmatpush1.msra.mxu0 0.0
  %8957 = vmatprep.subr.mxu0 0.0
  %8958 = vmatpush1.msra.mxu0 0.0
  %8959 = vmatprep.subr.mxu0 0.0
  %8960 = vmatpush1.msra.mxu0 0.0
  %8961 = vmatprep.subr.mxu0 0.0
  %8962 = vmatpush1.msra.mxu0 0.0
  %8963 = vmatprep.subr.mxu0 0.0
  %8964 = vmatpush1.msra.mxu0 0.0
  %8965 = vmatprep.subr.mxu0 0.0
  %8966 = vmatpush1.msra.mxu0 0.0
  %8967 = vmatprep.subr.mxu0 0.0
  %8968 = vmatpush1.msra.mxu0 0.0
  %8969 = vmatprep.subr.mxu0 0.0
  %8970 = vmatpush1.msra.mxu0 0.0
  %8971 = vmatprep.subr.mxu0 0.0
  %8972 = vmatpush1.msra.mxu0 0.0
  %8973 = vmatprep.subr.mxu0 0.0
  %8974 = vmatpush1.msra.mxu0 0.0
  %8975 = vmatprep.subr.mxu0 0.0
  %8976 = vmatpush1.msra.mxu0 0.0
  %8977 = vmatprep.subr.mxu0 0.0
  %8978 = vmatpush1.msra.mxu0 0.0
  %8979 = vmatprep.subr.mxu0 0.0
  %8980 = vmatpush1.msra.mxu0 0.0
  %8981 = vmatprep.subr.mxu0 0.0
  %8982 = vmatpush1.msra.mxu0 0.0
  %8983 = vmatprep.subr.mxu0 0.0
  %8984 = vmatpush1.msra.mxu0 0.0
  %8985 = vmatprep.subr.mxu0 0.0
  %8986 = vmatpush1.msra.mxu0 0.0
  %8987 = vmatprep.subr.mxu0 0.0
  %8988 = vmatpush1.msra.mxu0 0.0
  %8989 = vmatprep.subr.mxu0 0.0
  %8990 = vmatpush1.msra.mxu0 0.0
  %8991 = vmatprep.subr.mxu0 0.0
  %8992 = vmatpush1.msra.mxu0 0.0
  %8993 = vmatprep.subr.mxu0 0.0
  %8994 = vmatpush1.msra.mxu0 0.0
  %8995 = vmatprep.subr.mxu0 0.0
  %8996 = vmatpush1.msra.mxu0 0.0
  %8997 = vmatprep.mubr.f32.mxu0 0.0
  %v8998 = vand.u32 %v8765, 4294901760
  %8999 = vmatmul.mubr.f32.gmra.mrb[0].mxu0 %v8998
  %v9000 = vpop.f32.mrb[0].mxu0
  %v9001 = vadd.f32 %v8856, %v9000
  %v9002 = vpop.f32.mrb[0].mxu0
  %v9003 = vadd.f32 %v8858, %v9002
  %9004 = vmatprep.mubr.f32.mxu0 0.0
  %v9005 = vand.u32 %v8768, 4294901760
  %9006 = vmatmul.mubr.f32.gmra.mrb[0].mxu0 %v9005
  %v9007 = vpop.f32.mrb[0].mxu0
  %v9008 = vadd.f32 %v8867, %v9007
  %v9009 = vpop.f32.mrb[0].mxu0
  %v9010 = vadd.f32 %v8869, %v9009
  %9011 = vmatprep.mubr.f32.mxu0 0.0
  %v9012 = vand.u32 %v8771, 4294901760
  %9013 = vmatmul.mubr.f32.gmra.mrb[0].mxu0 %v9012
  %v9014 = vpop.f32.mrb[0].mxu0
  %v9015 = vadd.f32 %v8878, %v9014
  %v9016 = vpop.f32.mrb[0].mxu0
  %v9017 = vadd.f32 %v8880, %v9016
  %9018 = vmatprep.mubr.f32.mxu0 0.0
  %v9019 = vand.u32 %v8774, 4294901760
  %9020 = vmatmul.mubr.f32.gmra.mrb[0].mxu0 %v9019
  %v9021 = vpop.f32.mrb[0].mxu0
  %v9022 = vadd.f32 %v8889, %v9021
  %v9023 = vpop.f32.mrb[0].mxu0
  %v9024 = vadd.f32 %v8891, %v9023
  %9025 = vdwg.mxu0
  %v9026 = vand.u32 %v7279, 4294901760
  %v9027 = vsub.f32 %v7279, %v9026
  %9028 = vmatprep.subr.mxu0 %v9027
  %v9029 = vand.u32 %v7175, 4294901760
  %v9030 = vsub.f32 %v7175, %v9029
  %9031 = vmatpush1.msra.mxu0 %v9030
  %v9032 = vand.u32 %v7695, 4294901760
  %v9033 = vsub.f32 %v7695, %v9032
  %9034 = vmatprep.subr.mxu0 %v9033
  %v9035 = vand.u32 %v7591, 4294901760
  %v9036 = vsub.f32 %v7591, %v9035
  %9037 = vmatpush1.msra.mxu0 %v9036
  %v9038 = vand.u32 %v8111, 4294901760
  %v9039 = vsub.f32 %v8111, %v9038
  %9040 = vmatprep.subr.mxu0 %v9039
  %v9041 = vand.u32 %v8007, 4294901760
  %v9042 = vsub.f32 %v8007, %v9041
  %9043 = vmatpush1.msra.mxu0 %v9042
  %v9044 = vand.u32 %v8527, 4294901760
  %v9045 = vsub.f32 %v8527, %v9044
  %9046 = vmatprep.subr.mxu0 %v9045
  %v9047 = vand.u32 %v8423, 4294901760
  %v9048 = vsub.f32 %v8423, %v9047
  %9049 = vmatpush1.msra.mxu0 %v9048
  %9050 = vmatprep.subr.mxu0 0.0
  %9051 = vmatpush1.msra.mxu0 0.0
  %9052 = vmatprep.subr.mxu0 0.0
  %9053 = vmatpush1.msra.mxu0 0.0
  %9054 = vmatprep.subr.mxu0 0.0
  %9055 = vmatpush1.msra.mxu0 0.0
  %9056 = vmatprep.subr.mxu0 0.0
  %9057 = vmatpush1.msra.mxu0 0.0
  %9058 = vmatprep.subr.mxu0 0.0
  %9059 = vmatpush1.msra.mxu0 0.0
  %9060 = vmatprep.subr.mxu0 0.0
  %9061 = vmatpush1.msra.mxu0 0.0
  %9062 = vmatprep.subr.mxu0 0.0
  %9063 = vmatpush1.msra.mxu0 0.0
  %9064 = vmatprep.subr.mxu0 0.0
  %9065 = vmatpush1.msra.mxu0 0.0
  %9066 = vmatprep.subr.mxu0 0.0
  %9067 = vmatpush1.msra.mxu0 0.0
  %9068 = vmatprep.subr.mxu0 0.0
  %9069 = vmatpush1.msra.mxu0 0.0
  %9070 = vmatprep.subr.mxu0 0.0
  %9071 = vmatpush1.msra.mxu0 0.0
  %9072 = vmatprep.subr.mxu0 0.0
  %9073 = vmatpush1.msra.mxu0 0.0
  %9074 = vmatprep.subr.mxu0 0.0
  %9075 = vmatpush1.msra.mxu0 0.0
  %9076 = vmatprep.subr.mxu0 0.0
  %9077 = vmatpush1.msra.mxu0 0.0
  %9078 = vmatprep.subr.mxu0 0.0
  %9079 = vmatpush1.msra.mxu0 0.0
  %9080 = vmatprep.subr.mxu0 0.0
  %9081 = vmatpush1.msra.mxu0 0.0
  %9082 = vmatprep.subr.mxu0 0.0
  %9083 = vmatpush1.msra.mxu0 0.0
  %9084 = vmatprep.subr.mxu0 0.0
  %9085 = vmatpush1.msra.mxu0 0.0
  %9086 = vmatprep.subr.mxu0 0.0
  %9087 = vmatpush1.msra.mxu0 0.0
  %9088 = vmatprep.subr.mxu0 0.0
  %9089 = vmatpush1.msra.mxu0 0.0
  %9090 = vmatprep.subr.mxu0 0.0
  %9091 = vmatpush1.msra.mxu0 0.0
  %9092 = vmatprep.subr.mxu0 0.0
  %9093 = vmatpush1.msra.mxu0 0.0
  %9094 = vmatprep.subr.mxu0 0.0
  %9095 = vmatpush1.msra.mxu0 0.0
  %9096 = vmatprep.subr.mxu0 0.0
  %9097 = vmatpush1.msra.mxu0 0.0
  %9098 = vmatprep.subr.mxu0 0.0
  %9099 = vmatpush1.msra.mxu0 0.0
  %9100 = vmatprep.subr.mxu0 0.0
  %9101 = vmatpush1.msra.mxu0 0.0
  %9102 = vmatprep.subr.mxu0 0.0
  %9103 = vmatpush1.msra.mxu0 0.0
  %9104 = vmatprep.subr.mxu0 0.0
  %9105 = vmatpush1.msra.mxu0 0.0
  %9106 = vmatprep.mubr.f32.mxu0 0.0
  %v9107 = vand.u32 %v8765, 4294901760
  %v9108 = vsub.f32 %v8765, %v9107
  %9109 = vmatmul.mubr.f32.gmra.mrb[0].mxu0 %v9108
  %v9110 = vpop.f32.mrb[0].mxu0
  %v9111 = vadd.f32 %v9001, %v9110
  %v9112 = vpop.f32.mrb[0].mxu0
  %v9113 = vadd.f32 %v9003, %v9112
  %9114 = vmatprep.mubr.f32.mxu0 0.0
  %v9115 = vand.u32 %v8768, 4294901760
  %v9116 = vsub.f32 %v8768, %v9115
  %9117 = vmatmul.mubr.f32.gmra.mrb[0].mxu0 %v9116
  %v9118 = vpop.f32.mrb[0].mxu0
  %v9119 = vadd.f32 %v9008, %v9118
  %v9120 = vpop.f32.mrb[0].mxu0
  %v9121 = vadd.f32 %v9010, %v9120
  %9122 = vmatprep.mubr.f32.mxu0 0.0
  %v9123 = vand.u32 %v8771, 4294901760
  %v9124 = vsub.f32 %v8771, %v9123
  %9125 = vmatmul.mubr.f32.gmra.mrb[0].mxu0 %v9124
  %v9126 = vpop.f32.mrb[0].mxu0
  %v9127 = vadd.f32 %v9015, %v9126
  %v9128 = vpop.f32.mrb[0].mxu0
  %v9129 = vadd.f32 %v9017, %v9128
  %9130 = vmatprep.mubr.f32.mxu0 0.0
  %v9131 = vand.u32 %v8774, 4294901760
  %v9132 = vsub.f32 %v8774, %v9131
  %9133 = vmatmul.mubr.f32.gmra.mrb[0].mxu0 %v9132
  %v9134 = vpop.f32.mrb[0].mxu0
  %v9135 = vadd.f32 %v9022, %v9134
  %v9136 = vpop.f32.mrb[0].mxu0
  %v9137 = vadd.f32 %v9024, %v9136
  %9138 = vdwg.mxu0
  %v9139 = vand.u32 %v7279, 4294901760
  %9140 = vmatprep.subr.mxu0 %v9139
  %v9141 = vand.u32 %v7175, 4294901760
  %9142 = vmatpush1.msra.mxu0 %v9141
  %v9143 = vand.u32 %v7695, 4294901760
  %9144 = vmatprep.subr.mxu0 %v9143
  %v9145 = vand.u32 %v7591, 4294901760
  %9146 = vmatpush1.msra.mxu0 %v9145
  %v9147 = vand.u32 %v8111, 4294901760
  %9148 = vmatprep.subr.mxu0 %v9147
  %v9149 = vand.u32 %v8007, 4294901760
  %9150 = vmatpush1.msra.mxu0 %v9149
  %v9151 = vand.u32 %v8527, 4294901760
  %9152 = vmatprep.subr.mxu0 %v9151
  %v9153 = vand.u32 %v8423, 4294901760
  %9154 = vmatpush1.msra.mxu0 %v9153
  %9155 = vmatprep.subr.mxu0 0.0
  %9156 = vmatpush1.msra.mxu0 0.0
  %9157 = vmatprep.subr.mxu0 0.0
  %9158 = vmatpush1.msra.mxu0 0.0
  %9159 = vmatprep.subr.mxu0 0.0
  %9160 = vmatpush1.msra.mxu0 0.0
  %9161 = vmatprep.subr.mxu0 0.0
  %9162 = vmatpush1.msra.mxu0 0.0
  %9163 = vmatprep.subr.mxu0 0.0
  %9164 = vmatpush1.msra.mxu0 0.0
  %9165 = vmatprep.subr.mxu0 0.0
  %9166 = vmatpush1.msra.mxu0 0.0
  %9167 = vmatprep.subr.mxu0 0.0
  %9168 = vmatpush1.msra.mxu0 0.0
  %9169 = vmatprep.subr.mxu0 0.0
  %9170 = vmatpush1.msra.mxu0 0.0
  %9171 = vmatprep.subr.mxu0 0.0
  %9172 = vmatpush1.msra.mxu0 0.0
  %9173 = vmatprep.subr.mxu0 0.0
  %9174 = vmatpush1.msra.mxu0 0.0
  %9175 = vmatprep.subr.mxu0 0.0
  %9176 = vmatpush1.msra.mxu0 0.0
  %9177 = vmatprep.subr.mxu0 0.0
  %9178 = vmatpush1.msra.mxu0 0.0
  %9179 = vmatprep.subr.mxu0 0.0
  %9180 = vmatpush1.msra.mxu0 0.0
  %9181 = vmatprep.subr.mxu0 0.0
  %9182 = vmatpush1.msra.mxu0 0.0
  %9183 = vmatprep.subr.mxu0 0.0
  %9184 = vmatpush1.msra.mxu0 0.0
  %9185 = vmatprep.subr.mxu0 0.0
  %9186 = vmatpush1.msra.mxu0 0.0
  %9187 = vmatprep.subr.mxu0 0.0
  %9188 = vmatpush1.msra.mxu0 0.0
  %9189 = vmatprep.subr.mxu0 0.0
  %9190 = vmatpush1.msra.mxu0 0.0
  %9191 = vmatprep.subr.mxu0 0.0
  %9192 = vmatpush1.msra.mxu0 0.0
  %9193 = vmatprep.subr.mxu0 0.0
  %9194 = vmatpush1.msra.mxu0 0.0
  %9195 = vmatprep.subr.mxu0 0.0
  %9196 = vmatpush1.msra.mxu0 0.0
  %9197 = vmatprep.subr.mxu0 0.0
  %9198 = vmatpush1.msra.mxu0 0.0
  %9199 = vmatprep.subr.mxu0 0.0
  %9200 = vmatpush1.msra.mxu0 0.0
  %9201 = vmatprep.subr.mxu0 0.0
  %9202 = vmatpush1.msra.mxu0 0.0
  %9203 = vmatprep.subr.mxu0 0.0
  %9204 = vmatpush1.msra.mxu0 0.0
  %9205 = vmatprep.subr.mxu0 0.0
  %9206 = vmatpush1.msra.mxu0 0.0
  %9207 = vmatprep.subr.mxu0 0.0
  %9208 = vmatpush1.msra.mxu0 0.0
  %9209 = vmatprep.subr.mxu0 0.0
  %9210 = vmatpush1.msra.mxu0 0.0
  %9211 = vmatprep.mubr.f32.mxu0 0.0
  %v9212 = vand.u32 %v8765, 4294901760
  %v9213 = vsub.f32 %v8765, %v9212
  %v9214 = vand.u32 %v9213, 4294901760
  %9215 = vmatmul.mubr.f32.gmra.mrb[0].mxu0 %v9214
  %v9216 = vpop.f32.mrb[0].mxu0
  %v9217 = vadd.f32 %v9111, %v9216
  %v9218 = vpop.f32.mrb[0].mxu0
  %v9219 = vadd.f32 %v9113, %v9218
  %9220 = vmatprep.mubr.f32.mxu0 0.0
  %v9221 = vand.u32 %v8768, 4294901760
  %v9222 = vsub.f32 %v8768, %v9221
  %v9223 = vand.u32 %v9222, 4294901760
  %9224 = vmatmul.mubr.f32.gmra.mrb[0].mxu0 %v9223
  %v9225 = vpop.f32.mrb[0].mxu0
  %v9226 = vadd.f32 %v9119, %v9225
  %v9227 = vpop.f32.mrb[0].mxu0
  %v9228 = vadd.f32 %v9121, %v9227
  %9229 = vmatprep.mubr.f32.mxu0 0.0
  %v9230 = vand.u32 %v8771, 4294901760
  %v9231 = vsub.f32 %v8771, %v9230
  %v9232 = vand.u32 %v9231, 4294901760
  %9233 = vmatmul.mubr.f32.gmra.mrb[0].mxu0 %v9232
  %v9234 = vpop.f32.mrb[0].mxu0
  %v9235 = vadd.f32 %v9127, %v9234
  %v9236 = vpop.f32.mrb[0].mxu0
  %v9237 = vadd.f32 %v9129, %v9236
  %9238 = vmatprep.mubr.f32.mxu0 0.0
  %v9239 = vand.u32 %v8774, 4294901760
  %v9240 = vsub.f32 %v8774, %v9239
  %v9241 = vand.u32 %v9240, 4294901760
  %9242 = vmatmul.mubr.f32.gmra.mrb[0].mxu0 %v9241
  %v9243 = vpop.f32.mrb[0].mxu0
  %v9244 = vadd.f32 %v9135, %v9243
  %v9245 = vpop.f32.mrb[0].mxu0
  %v9246 = vadd.f32 %v9137, %v9245
  %9247 = vdwg.mxu0
  %v9248 = vand.u32 %v7279, 4294901760
  %v9249 = vsub.f32 %v7279, %v9248
  %v9250 = vand.u32 %v9249, 4294901760
  %9251 = vmatprep.subr.mxu0 %v9250
  %v9252 = vand.u32 %v7175, 4294901760
  %v9253 = vsub.f32 %v7175, %v9252
  %v9254 = vand.u32 %v9253, 4294901760
  %9255 = vmatpush1.msra.mxu0 %v9254
  %v9256 = vand.u32 %v7695, 4294901760
  %v9257 = vsub.f32 %v7695, %v9256
  %v9258 = vand.u32 %v9257, 4294901760
  %9259 = vmatprep.subr.mxu0 %v9258
  %v9260 = vand.u32 %v7591, 4294901760
  %v9261 = vsub.f32 %v7591, %v9260
  %v9262 = vand.u32 %v9261, 4294901760
  %9263 = vmatpush1.msra.mxu0 %v9262
  %v9264 = vand.u32 %v8111, 4294901760
  %v9265 = vsub.f32 %v8111, %v9264
  %v9266 = vand.u32 %v9265, 4294901760
  %9267 = vmatprep.subr.mxu0 %v9266
  %v9268 = vand.u32 %v8007, 4294901760
  %v9269 = vsub.f32 %v8007, %v9268
  %v9270 = vand.u32 %v9269, 4294901760
  %9271 = vmatpush1.msra.mxu0 %v9270
  %v9272 = vand.u32 %v8527, 4294901760
  %v9273 = vsub.f32 %v8527, %v9272
  %v9274 = vand.u32 %v9273, 4294901760
  %9275 = vmatprep.subr.mxu0 %v9274
  %v9276 = vand.u32 %v8423, 4294901760
  %v9277 = vsub.f32 %v8423, %v9276
  %v9278 = vand.u32 %v9277, 4294901760
  %9279 = vmatpush1.msra.mxu0 %v9278
  %9280 = vmatprep.subr.mxu0 0.0
  %9281 = vmatpush1.msra.mxu0 0.0
  %9282 = vmatprep.subr.mxu0 0.0
  %9283 = vmatpush1.msra.mxu0 0.0
  %9284 = vmatprep.subr.mxu0 0.0
  %9285 = vmatpush1.msra.mxu0 0.0
  %9286 = vmatprep.subr.mxu0 0.0
  %9287 = vmatpush1.msra.mxu0 0.0
  %9288 = vmatprep.subr.mxu0 0.0
  %9289 = vmatpush1.msra.mxu0 0.0
  %9290 = vmatprep.subr.mxu0 0.0
  %9291 = vmatpush1.msra.mxu0 0.0
  %9292 = vmatprep.subr.mxu0 0.0
  %9293 = vmatpush1.msra.mxu0 0.0
  %9294 = vmatprep.subr.mxu0 0.0
  %9295 = vmatpush1.msra.mxu0 0.0
  %9296 = vmatprep.subr.mxu0 0.0
  %9297 = vmatpush1.msra.mxu0 0.0
  %9298 = vmatprep.subr.mxu0 0.0
  %9299 = vmatpush1.msra.mxu0 0.0
  %9300 = vmatprep.subr.mxu0 0.0
  %9301 = vmatpush1.msra.mxu0 0.0
  %9302 = vmatprep.subr.mxu0 0.0
  %9303 = vmatpush1.msra.mxu0 0.0
  %9304 = vmatprep.subr.mxu0 0.0
  %9305 = vmatpush1.msra.mxu0 0.0
  %9306 = vmatprep.subr.mxu0 0.0
  %9307 = vmatpush1.msra.mxu0 0.0
  %9308 = vmatprep.subr.mxu0 0.0
  %9309 = vmatpush1.msra.mxu0 0.0
  %9310 = vmatprep.subr.mxu0 0.0
  %9311 = vmatpush1.msra.mxu0 0.0
  %9312 = vmatprep.subr.mxu0 0.0
  %9313 = vmatpush1.msra.mxu0 0.0
  %9314 = vmatprep.subr.mxu0 0.0
  %9315 = vmatpush1.msra.mxu0 0.0
  %9316 = vmatprep.subr.mxu0 0.0
  %9317 = vmatpush1.msra.mxu0 0.0
  %9318 = vmatprep.subr.mxu0 0.0
  %9319 = vmatpush1.msra.mxu0 0.0
  %9320 = vmatprep.subr.mxu0 0.0
  %9321 = vmatpush1.msra.mxu0 0.0
  %9322 = vmatprep.subr.mxu0 0.0
  %9323 = vmatpush1.msra.mxu0 0.0
  %9324 = vmatprep.subr.mxu0 0.0
  %9325 = vmatpush1.msra.mxu0 0.0
  %9326 = vmatprep.subr.mxu0 0.0
  %9327 = vmatpush1.msra.mxu0 0.0
  %9328 = vmatprep.subr.mxu0 0.0
  %9329 = vmatpush1.msra.mxu0 0.0
  %9330 = vmatprep.subr.mxu0 0.0
  %9331 = vmatpush1.msra.mxu0 0.0
  %9332 = vmatprep.subr.mxu0 0.0
  %9333 = vmatpush1.msra.mxu0 0.0
  %9334 = vmatprep.subr.mxu0 0.0
  %9335 = vmatpush1.msra.mxu0 0.0
  %9336 = vmatprep.mubr.f32.mxu0 0.0
  %v9337 = vand.u32 %v8765, 4294901760
  %9338 = vmatmul.mubr.f32.gmra.mrb[0].mxu0 %v9337
  %v9339 = vpop.f32.mrb[0].mxu0
  %v9340 = vadd.f32 %v9217, %v9339
  %v9341 = vpop.f32.mrb[0].mxu0
  %v9342 = vadd.f32 %v9219, %v9341
  %9343 = vmatprep.mubr.f32.mxu0 0.0
  %v9344 = vand.u32 %v8768, 4294901760
  %9345 = vmatmul.mubr.f32.gmra.mrb[0].mxu0 %v9344
  %v9346 = vpop.f32.mrb[0].mxu0
  %v9347 = vadd.f32 %v9226, %v9346
  %v9348 = vpop.f32.mrb[0].mxu0
  %v9349 = vadd.f32 %v9228, %v9348
  %9350 = vmatprep.mubr.f32.mxu0 0.0
  %v9351 = vand.u32 %v8771, 4294901760
  %9352 = vmatmul.mubr.f32.gmra.mrb[0].mxu0 %v9351
  %v9353 = vpop.f32.mrb[0].mxu0
  %v9354 = vadd.f32 %v9235, %v9353
  %v9355 = vpop.f32.mrb[0].mxu0
  %v9356 = vadd.f32 %v9237, %v9355
  %9357 = vmatprep.mubr.f32.mxu0 0.0
  %v9358 = vand.u32 %v8774, 4294901760
  %9359 = vmatmul.mubr.f32.gmra.mrb[0].mxu0 %v9358
  %v9360 = vpop.f32.mrb[0].mxu0
  %v9361 = vadd.f32 %v9244, %v9360
  %v9362 = vpop.f32.mrb[0].mxu0
  %v9363 = vadd.f32 %v9246, %v9362
  %9364 = vdwg.mxu0
  %v9365 = vand.u32 %v7279, 4294901760
  %9366 = vmatprep.subr.mxu0 %v9365
  %v9367 = vand.u32 %v7175, 4294901760
  %9368 = vmatpush1.msra.mxu0 %v9367
  %v9369 = vand.u32 %v7695, 4294901760
  %9370 = vmatprep.subr.mxu0 %v9369
  %v9371 = vand.u32 %v7591, 4294901760
  %9372 = vmatpush1.msra.mxu0 %v9371
  %v9373 = vand.u32 %v8111, 4294901760
  %9374 = vmatprep.subr.mxu0 %v9373
  %v9375 = vand.u32 %v8007, 4294901760
  %9376 = vmatpush1.msra.mxu0 %v9375
  %v9377 = vand.u32 %v8527, 4294901760
  %9378 = vmatprep.subr.mxu0 %v9377
  %v9379 = vand.u32 %v8423, 4294901760
  %9380 = vmatpush1.msra.mxu0 %v9379
  %9381 = vmatprep.subr.mxu0 0.0
  %9382 = vmatpush1.msra.mxu0 0.0
  %9383 = vmatprep.subr.mxu0 0.0
  %9384 = vmatpush1.msra.mxu0 0.0
  %9385 = vmatprep.subr.mxu0 0.0
  %9386 = vmatpush1.msra.mxu0 0.0
  %9387 = vmatprep.subr.mxu0 0.0
  %9388 = vmatpush1.msra.mxu0 0.0
  %9389 = vmatprep.subr.mxu0 0.0
  %9390 = vmatpush1.msra.mxu0 0.0
  %9391 = vmatprep.subr.mxu0 0.0
  %9392 = vmatpush1.msra.mxu0 0.0
  %9393 = vmatprep.subr.mxu0 0.0
  %9394 = vmatpush1.msra.mxu0 0.0
  %9395 = vmatprep.subr.mxu0 0.0
  %9396 = vmatpush1.msra.mxu0 0.0
  %9397 = vmatprep.subr.mxu0 0.0
  %9398 = vmatpush1.msra.mxu0 0.0
  %9399 = vmatprep.subr.mxu0 0.0
  %9400 = vmatpush1.msra.mxu0 0.0
  %9401 = vmatprep.subr.mxu0 0.0
  %9402 = vmatpush1.msra.mxu0 0.0
  %9403 = vmatprep.subr.mxu0 0.0
  %9404 = vmatpush1.msra.mxu0 0.0
  %9405 = vmatprep.subr.mxu0 0.0
  %9406 = vmatpush1.msra.mxu0 0.0
  %9407 = vmatprep.subr.mxu0 0.0
  %9408 = vmatpush1.msra.mxu0 0.0
  %9409 = vmatprep.subr.mxu0 0.0
  %9410 = vmatpush1.msra.mxu0 0.0
  %9411 = vmatprep.subr.mxu0 0.0
  %9412 = vmatpush1.msra.mxu0 0.0
  %9413 = vmatprep.subr.mxu0 0.0
  %9414 = vmatpush1.msra.mxu0 0.0
  %9415 = vmatprep.subr.mxu0 0.0
  %9416 = vmatpush1.msra.mxu0 0.0
  %9417 = vmatprep.subr.mxu0 0.0
  %9418 = vmatpush1.msra.mxu0 0.0
  %9419 = vmatprep.subr.mxu0 0.0
  %9420 = vmatpush1.msra.mxu0 0.0
  %9421 = vmatprep.subr.mxu0 0.0
  %9422 = vmatpush1.msra.mxu0 0.0
  %9423 = vmatprep.subr.mxu0 0.0
  %9424 = vmatpush1.msra.mxu0 0.0
  %9425 = vmatprep.subr.mxu0 0.0
  %9426 = vmatpush1.msra.mxu0 0.0
  %9427 = vmatprep.subr.mxu0 0.0
  %9428 = vmatpush1.msra.mxu0 0.0
  %9429 = vmatprep.subr.mxu0 0.0
  %9430 = vmatpush1.msra.mxu0 0.0
  %9431 = vmatprep.subr.mxu0 0.0
  %9432 = vmatpush1.msra.mxu0 0.0
  %9433 = vmatprep.subr.mxu0 0.0
  %9434 = vmatpush1.msra.mxu0 0.0
  %9435 = vmatprep.subr.mxu0 0.0
  %9436 = vmatpush1.msra.mxu0 0.0
  %9437 = vmatprep.mubr.f32.mxu0 0.0
  %v9438 = vand.u32 %v8765, 4294901760
  %9439 = vmatmul.mubr.f32.gmra.mrb[0].mxu0 %v9438
  %v9440 = vpop.f32.mrb[0].mxu0
  %v9441 = vadd.f32 %v9340, %v9440
  %v9442 = vpop.f32.mrb[0].mxu0
  %v9443 = vadd.f32 %v9342, %v9442
  %9444 = vmatprep.mubr.f32.mxu0 0.0
  %v9445 = vand.u32 %v8768, 4294901760
  %9446 = vmatmul.mubr.f32.gmra.mrb[0].mxu0 %v9445
  %v9447 = vpop.f32.mrb[0].mxu0
  %v9448 = vadd.f32 %v9347, %v9447
  %v9449 = vpop.f32.mrb[0].mxu0
  %v9450 = vadd.f32 %v9349, %v9449
  %9451 = vmatprep.mubr.f32.mxu0 0.0
  %v9452 = vand.u32 %v8771, 4294901760
  %9453 = vmatmul.mubr.f32.gmra.mrb[0].mxu0 %v9452
  %v9454 = vpop.f32.mrb[0].mxu0
  %v9455 = vadd.f32 %v9354, %v9454
  %v9456 = vpop.f32.mrb[0].mxu0
  %v9457 = vadd.f32 %v9356, %v9456
  %9458 = vmatprep.mubr.f32.mxu0 0.0
  %v9459 = vand.u32 %v8774, 4294901760
  %9460 = vmatmul.mubr.f32.gmra.mrb[0].mxu0 %v9459
  %v9461 = vpop.f32.mrb[0].mxu0
  %v9462 = vadd.f32 %v9361, %v9461
  %v9463 = vpop.f32.mrb[0].mxu0
  %v9464 = vadd.f32 %v9363, %v9463
  %9465 = vdwg.mxu0
  %v9466 = vand.u32 %v7487, 4294901760
  %9467 = vmatprep.subr.mxu0 %v9466
  %v9468 = vand.u32 %v7383, 4294901760
  %9469 = vmatpush1.msra.mxu0 %v9468
  %v9470 = vand.u32 %v7903, 4294901760
  %9471 = vmatprep.subr.mxu0 %v9470
  %v9472 = vand.u32 %v7799, 4294901760
  %9473 = vmatpush1.msra.mxu0 %v9472
  %v9474 = vand.u32 %v8319, 4294901760
  %9475 = vmatprep.subr.mxu0 %v9474
  %v9476 = vand.u32 %v8215, 4294901760
  %9477 = vmatpush1.msra.mxu0 %v9476
  %v9478 = vand.u32 %v8735, 4294901760
  %9479 = vmatprep.subr.mxu0 %v9478
  %v9480 = vand.u32 %v8631, 4294901760
  %9481 = vmatpush1.msra.mxu0 %v9480
  %9482 = vmatprep.subr.mxu0 0.0
  %9483 = vmatpush1.msra.mxu0 0.0
  %9484 = vmatprep.subr.mxu0 0.0
  %9485 = vmatpush1.msra.mxu0 0.0
  %9486 = vmatprep.subr.mxu0 0.0
  %9487 = vmatpush1.msra.mxu0 0.0
  %9488 = vmatprep.subr.mxu0 0.0
  %9489 = vmatpush1.msra.mxu0 0.0
  %9490 = vmatprep.subr.mxu0 0.0
  %9491 = vmatpush1.msra.mxu0 0.0
  %9492 = vmatprep.subr.mxu0 0.0
  %9493 = vmatpush1.msra.mxu0 0.0
  %9494 = vmatprep.subr.mxu0 0.0
  %9495 = vmatpush1.msra.mxu0 0.0
  %9496 = vmatprep.subr.mxu0 0.0
  %9497 = vmatpush1.msra.mxu0 0.0
  %9498 = vmatprep.subr.mxu0 0.0
  %9499 = vmatpush1.msra.mxu0 0.0
  %9500 = vmatprep.subr.mxu0 0.0
  %9501 = vmatpush1.msra.mxu0 0.0
  %9502 = vmatprep.subr.mxu0 0.0
  %9503 = vmatpush1.msra.mxu0 0.0
  %9504 = vmatprep.subr.mxu0 0.0
  %9505 = vmatpush1.msra.mxu0 0.0
  %9506 = vmatprep.subr.mxu0 0.0
  %9507 = vmatpush1.msra.mxu0 0.0
  %9508 = vmatprep.subr.mxu0 0.0
  %9509 = vmatpush1.msra.mxu0 0.0
  %9510 = vmatprep.subr.mxu0 0.0
  %9511 = vmatpush1.msra.mxu0 0.0
  %9512 = vmatprep.subr.mxu0 0.0
  %9513 = vmatpush1.msra.mxu0 0.0
  %9514 = vmatprep.subr.mxu0 0.0
  %9515 = vmatpush1.msra.mxu0 0.0
  %9516 = vmatprep.subr.mxu0 0.0
  %9517 = vmatpush1.msra.mxu0 0.0
  %9518 = vmatprep.subr.mxu0 0.0
  %9519 = vmatpush1.msra.mxu0 0.0
  %9520 = vmatprep.subr.mxu0 0.0
  %9521 = vmatpush1.msra.mxu0 0.0
  %9522 = vmatprep.subr.mxu0 0.0
  %9523 = vmatpush1.msra.mxu0 0.0
  %9524 = vmatprep.subr.mxu0 0.0
  %9525 = vmatpush1.msra.mxu0 0.0
  %9526 = vmatprep.subr.mxu0 0.0
  %9527 = vmatpush1.msra.mxu0 0.0
  %9528 = vmatprep.subr.mxu0 0.0
  %9529 = vmatpush1.msra.mxu0 0.0
  %9530 = vmatprep.subr.mxu0 0.0
  %9531 = vmatpush1.msra.mxu0 0.0
  %9532 = vmatprep.subr.mxu0 0.0
  %9533 = vmatpush1.msra.mxu0 0.0
  %9534 = vmatprep.subr.mxu0 0.0
  %9535 = vmatpush1.msra.mxu0 0.0
  %9536 = vmatprep.subr.mxu0 0.0
  %9537 = vmatpush1.msra.mxu0 0.0
  %9538 = vmatprep.mubr.f32.mxu0 0.0
  %v9539 = vand.u32 %v8765, 4294901760
  %v9540 = vsub.f32 %v8765, %v9539
  %v9541 = vand.u32 %v9540, 4294901760
  %v9542 = vsub.f32 %v9540, %v9541
  %v9543 = vand.u32 %v9542, 4294901760
  %9544 = vmatmul.mubr.f32.gmra.mrb[0].mxu0 %v9543
  %v9545 = vpop.f32.mrb[0].mxu0
  %v9546 = vadd.f32 %v8747, %v9545
  %v9547 = vpop.f32.mrb[0].mxu0
  %v9548 = vadd.f32 %v8747, %v9547
  %9549 = vmatprep.mubr.f32.mxu0 0.0
  %v9550 = vand.u32 %v8768, 4294901760
  %v9551 = vsub.f32 %v8768, %v9550
  %v9552 = vand.u32 %v9551, 4294901760
  %v9553 = vsub.f32 %v9551, %v9552
  %v9554 = vand.u32 %v9553, 4294901760
  %9555 = vmatmul.mubr.f32.gmra.mrb[0].mxu0 %v9554
  %v9556 = vpop.f32.mrb[0].mxu0
  %v9557 = vadd.f32 %v8752, %v9556
  %v9558 = vpop.f32.mrb[0].mxu0
  %v9559 = vadd.f32 %v8752, %v9558
  %9560 = vmatprep.mubr.f32.mxu0 0.0
  %v9561 = vand.u32 %v8771, 4294901760
  %v9562 = vsub.f32 %v8771, %v9561
  %v9563 = vand.u32 %v9562, 4294901760
  %v9564 = vsub.f32 %v9562, %v9563
  %v9565 = vand.u32 %v9564, 4294901760
  %9566 = vmatmul.mubr.f32.gmra.mrb[0].mxu0 %v9565
  %v9567 = vpop.f32.mrb[0].mxu0
  %v9568 = vadd.f32 %v8757, %v9567
  %v9569 = vpop.f32.mrb[0].mxu0
  %v9570 = vadd.f32 %v8757, %v9569
  %9571 = vmatprep.mubr.f32.mxu0 0.0
  %v9572 = vand.u32 %v8774, 4294901760
  %v9573 = vsub.f32 %v8774, %v9572
  %v9574 = vand.u32 %v9573, 4294901760
  %v9575 = vsub.f32 %v9573, %v9574
  %v9576 = vand.u32 %v9575, 4294901760
  %9577 = vmatmul.mubr.f32.gmra.mrb[0].mxu0 %v9576
  %v9578 = vpop.f32.mrb[0].mxu0
  %v9579 = vadd.f32 %v8762, %v9578
  %v9580 = vpop.f32.mrb[0].mxu0
  %v9581 = vadd.f32 %v8762, %v9580
  %9582 = vdwg.mxu0
  %v9583 = vand.u32 %v7487, 4294901760
  %v9584 = vsub.f32 %v7487, %v9583
  %v9585 = vand.u32 %v9584, 4294901760
  %v9586 = vsub.f32 %v9584, %v9585
  %v9587 = vand.u32 %v9586, 4294901760
  %9588 = vmatprep.subr.mxu0 %v9587
  %v9589 = vand.u32 %v7383, 4294901760
  %v9590 = vsub.f32 %v7383, %v9589
  %v9591 = vand.u32 %v9590, 4294901760
  %v9592 = vsub.f32 %v9590, %v9591
  %v9593 = vand.u32 %v9592, 4294901760
  %9594 = vmatpush1.msra.mxu0 %v9593
  %v9595 = vand.u32 %v7903, 4294901760
  %v9596 = vsub.f32 %v7903, %v9595
  %v9597 = vand.u32 %v9596, 4294901760
  %v9598 = vsub.f32 %v9596, %v9597
  %v9599 = vand.u32 %v9598, 4294901760
  %9600 = vmatprep.subr.mxu0 %v9599
  %v9601 = vand.u32 %v7799, 4294901760
  %v9602 = vsub.f32 %v7799, %v9601
  %v9603 = vand.u32 %v9602, 4294901760
  %v9604 = vsub.f32 %v9602, %v9603
  %v9605 = vand.u32 %v9604, 4294901760
  %9606 = vmatpush1.msra.mxu0 %v9605
  %v9607 = vand.u32 %v8319, 4294901760
  %v9608 = vsub.f32 %v8319, %v9607
  %v9609 = vand.u32 %v9608, 4294901760
  %v9610 = vsub.f32 %v9608, %v9609
  %v9611 = vand.u32 %v9610, 4294901760
  %9612 = vmatprep.subr.mxu0 %v9611
  %v9613 = vand.u32 %v8215, 4294901760
  %v9614 = vsub.f32 %v8215, %v9613
  %v9615 = vand.u32 %v9614, 4294901760
  %v9616 = vsub.f32 %v9614, %v9615
  %v9617 = vand.u32 %v9616, 4294901760
  %9618 = vmatpush1.msra.mxu0 %v9617
  %v9619 = vand.u32 %v8735, 4294901760
  %v9620 = vsub.f32 %v8735, %v9619
  %v9621 = vand.u32 %v9620, 4294901760
  %v9622 = vsub.f32 %v9620, %v9621
  %v9623 = vand.u32 %v9622, 4294901760
  %9624 = vmatprep.subr.mxu0 %v9623
  %v9625 = vand.u32 %v8631, 4294901760
  %v9626 = vsub.f32 %v8631, %v9625
  %v9627 = vand.u32 %v9626, 4294901760
  %v9628 = vsub.f32 %v9626, %v9627
  %v9629 = vand.u32 %v9628, 4294901760
  %9630 = vmatpush1.msra.mxu0 %v9629
  %9631 = vmatprep.subr.mxu0 0.0
  %9632 = vmatpush1.msra.mxu0 0.0
  %9633 = vmatprep.subr.mxu0 0.0
  %9634 = vmatpush1.msra.mxu0 0.0
  %9635 = vmatprep.subr.mxu0 0.0
  %9636 = vmatpush1.msra.mxu0 0.0
  %9637 = vmatprep.subr.mxu0 0.0
  %9638 = vmatpush1.msra.mxu0 0.0
  %9639 = vmatprep.subr.mxu0 0.0
  %9640 = vmatpush1.msra.mxu0 0.0
  %9641 = vmatprep.subr.mxu0 0.0
  %9642 = vmatpush1.msra.mxu0 0.0
  %9643 = vmatprep.subr.mxu0 0.0
  %9644 = vmatpush1.msra.mxu0 0.0
  %9645 = vmatprep.subr.mxu0 0.0
  %9646 = vmatpush1.msra.mxu0 0.0
  %9647 = vmatprep.subr.mxu0 0.0
  %9648 = vmatpush1.msra.mxu0 0.0
  %9649 = vmatprep.subr.mxu0 0.0
  %9650 = vmatpush1.msra.mxu0 0.0
  %9651 = vmatprep.subr.mxu0 0.0
  %9652 = vmatpush1.msra.mxu0 0.0
  %9653 = vmatprep.subr.mxu0 0.0
  %9654 = vmatpush1.msra.mxu0 0.0
  %9655 = vmatprep.subr.mxu0 0.0
  %9656 = vmatpush1.msra.mxu0 0.0
  %9657 = vmatprep.subr.mxu0 0.0
  %9658 = vmatpush1.msra.mxu0 0.0
  %9659 = vmatprep.subr.mxu0 0.0
  %9660 = vmatpush1.msra.mxu0 0.0
  %9661 = vmatprep.subr.mxu0 0.0
  %9662 = vmatpush1.msra.mxu0 0.0
  %9663 = vmatprep.subr.mxu0 0.0
  %9664 = vmatpush1.msra.mxu0 0.0
  %9665 = vmatprep.subr.mxu0 0.0
  %9666 = vmatpush1.msra.mxu0 0.0
  %9667 = vmatprep.subr.mxu0 0.0
  %9668 = vmatpush1.msra.mxu0 0.0
  %9669 = vmatprep.subr.mxu0 0.0
  %9670 = vmatpush1.msra.mxu0 0.0
  %9671 = vmatprep.subr.mxu0 0.0
  %9672 = vmatpush1.msra.mxu0 0.0
  %9673 = vmatprep.subr.mxu0 0.0
  %9674 = vmatpush1.msra.mxu0 0.0
  %9675 = vmatprep.subr.mxu0 0.0
  %9676 = vmatpush1.msra.mxu0 0.0
  %9677 = vmatprep.subr.mxu0 0.0
  %9678 = vmatpush1.msra.mxu0 0.0
  %9679 = vmatprep.subr.mxu0 0.0
  %9680 = vmatpush1.msra.mxu0 0.0
  %9681 = vmatprep.subr.mxu0 0.0
  %9682 = vmatpush1.msra.mxu0 0.0
  %9683 = vmatprep.subr.mxu0 0.0
  %9684 = vmatpush1.msra.mxu0 0.0
  %9685 = vmatprep.subr.mxu0 0.0
  %9686 = vmatpush1.msra.mxu0 0.0
  %9687 = vmatprep.mubr.f32.mxu0 0.0
  %v9688 = vand.u32 %v8765, 4294901760
  %9689 = vmatmul.mubr.f32.gmra.mrb[0].mxu0 %v9688
  %v9690 = vpop.f32.mrb[0].mxu0
  %v9691 = vadd.f32 %v9546, %v9690
  %v9692 = vpop.f32.mrb[0].mxu0
  %v9693 = vadd.f32 %v9548, %v9692
  %9694 = vmatprep.mubr.f32.mxu0 0.0
  %v9695 = vand.u32 %v8768, 4294901760
  %9696 = vmatmul.mubr.f32.gmra.mrb[0].mxu0 %v9695
  %v9697 = vpop.f32.mrb[0].mxu0
  %v9698 = vadd.f32 %v9557, %v9697
  %v9699 = vpop.f32.mrb[0].mxu0
  %v9700 = vadd.f32 %v9559, %v9699
  %9701 = vmatprep.mubr.f32.mxu0 0.0
  %v9702 = vand.u32 %v8771, 4294901760
  %9703 = vmatmul.mubr.f32.gmra.mrb[0].mxu0 %v9702
  %v9704 = vpop.f32.mrb[0].mxu0
  %v9705 = vadd.f32 %v9568, %v9704
  %v9706 = vpop.f32.mrb[0].mxu0
  %v9707 = vadd.f32 %v9570, %v9706
  %9708 = vmatprep.mubr.f32.mxu0 0.0
  %v9709 = vand.u32 %v8774, 4294901760
  %9710 = vmatmul.mubr.f32.gmra.mrb[0].mxu0 %v9709
  %v9711 = vpop.f32.mrb[0].mxu0
  %v9712 = vadd.f32 %v9579, %v9711
  %v9713 = vpop.f32.mrb[0].mxu0
  %v9714 = vadd.f32 %v9581, %v9713
  %9715 = vdwg.mxu0
  %v9716 = vand.u32 %v7487, 4294901760
  %v9717 = vsub.f32 %v7487, %v9716
  %9718 = vmatprep.subr.mxu0 %v9717
  %v9719 = vand.u32 %v7383, 4294901760
  %v9720 = vsub.f32 %v7383, %v9719
  %9721 = vmatpush1.msra.mxu0 %v9720
  %v9722 = vand.u32 %v7903, 4294901760
  %v9723 = vsub.f32 %v7903, %v9722
  %9724 = vmatprep.subr.mxu0 %v9723
  %v9725 = vand.u32 %v7799, 4294901760
  %v9726 = vsub.f32 %v7799, %v9725
  %9727 = vmatpush1.msra.mxu0 %v9726
  %v9728 = vand.u32 %v8319, 4294901760
  %v9729 = vsub.f32 %v8319, %v9728
  %9730 = vmatprep.subr.mxu0 %v9729
  %v9731 = vand.u32 %v8215, 4294901760
  %v9732 = vsub.f32 %v8215, %v9731
  %9733 = vmatpush1.msra.mxu0 %v9732
  %v9734 = vand.u32 %v8735, 4294901760
  %v9735 = vsub.f32 %v8735, %v9734
  %9736 = vmatprep.subr.mxu0 %v9735
  %v9737 = vand.u32 %v8631, 4294901760
  %v9738 = vsub.f32 %v8631, %v9737
  %9739 = vmatpush1.msra.mxu0 %v9738
  %9740 = vmatprep.subr.mxu0 0.0
  %9741 = vmatpush1.msra.mxu0 0.0
  %9742 = vmatprep.subr.mxu0 0.0
  %9743 = vmatpush1.msra.mxu0 0.0
  %9744 = vmatprep.subr.mxu0 0.0
  %9745 = vmatpush1.msra.mxu0 0.0
  %9746 = vmatprep.subr.mxu0 0.0
  %9747 = vmatpush1.msra.mxu0 0.0
  %9748 = vmatprep.subr.mxu0 0.0
  %9749 = vmatpush1.msra.mxu0 0.0
  %9750 = vmatprep.subr.mxu0 0.0
  %9751 = vmatpush1.msra.mxu0 0.0
  %9752 = vmatprep.subr.mxu0 0.0
  %9753 = vmatpush1.msra.mxu0 0.0
  %9754 = vmatprep.subr.mxu0 0.0
  %9755 = vmatpush1.msra.mxu0 0.0
  %9756 = vmatprep.subr.mxu0 0.0
  %9757 = vmatpush1.msra.mxu0 0.0
  %9758 = vmatprep.subr.mxu0 0.0
  %9759 = vmatpush1.msra.mxu0 0.0
  %9760 = vmatprep.subr.mxu0 0.0
  %9761 = vmatpush1.msra.mxu0 0.0
  %9762 = vmatprep.subr.mxu0 0.0
  %9763 = vmatpush1.msra.mxu0 0.0
  %9764 = vmatprep.subr.mxu0 0.0
  %9765 = vmatpush1.msra.mxu0 0.0
  %9766 = vmatprep.subr.mxu0 0.0
  %9767 = vmatpush1.msra.mxu0 0.0
  %9768 = vmatprep.subr.mxu0 0.0
  %9769 = vmatpush1.msra.mxu0 0.0
  %9770 = vmatprep.subr.mxu0 0.0
  %9771 = vmatpush1.msra.mxu0 0.0
  %9772 = vmatprep.subr.mxu0 0.0
  %9773 = vmatpush1.msra.mxu0 0.0
  %9774 = vmatprep.subr.mxu0 0.0
  %9775 = vmatpush1.msra.mxu0 0.0
  %9776 = vmatprep.subr.mxu0 0.0
  %9777 = vmatpush1.msra.mxu0 0.0
  %9778 = vmatprep.subr.mxu0 0.0
  %9779 = vmatpush1.msra.mxu0 0.0
  %9780 = vmatprep.subr.mxu0 0.0
  %9781 = vmatpush1.msra.mxu0 0.0
  %9782 = vmatprep.subr.mxu0 0.0
  %9783 = vmatpush1.msra.mxu0 0.0
  %9784 = vmatprep.subr.mxu0 0.0
  %9785 = vmatpush1.msra.mxu0 0.0
  %9786 = vmatprep.subr.mxu0 0.0
  %9787 = vmatpush1.msra.mxu0 0.0
  %9788 = vmatprep.subr.mxu0 0.0
  %9789 = vmatpush1.msra.mxu0 0.0
  %9790 = vmatprep.subr.mxu0 0.0
  %9791 = vmatpush1.msra.mxu0 0.0
  %9792 = vmatprep.subr.mxu0 0.0
  %9793 = vmatpush1.msra.mxu0 0.0
  %9794 = vmatprep.subr.mxu0 0.0
  %9795 = vmatpush1.msra.mxu0 0.0
  %9796 = vmatprep.mubr.f32.mxu0 0.0
  %v9797 = vand.u32 %v8765, 4294901760
  %v9798 = vsub.f32 %v8765, %v9797
  %9799 = vmatmul.mubr.f32.gmra.mrb[0].mxu0 %v9798
  %v9800 = vpop.f32.mrb[0].mxu0
  %v9801 = vadd.f32 %v9691, %v9800
  %v9802 = vpop.f32.mrb[0].mxu0
  %v9803 = vadd.f32 %v9693, %v9802
  %9804 = vmatprep.mubr.f32.mxu0 0.0
  %v9805 = vand.u32 %v8768, 4294901760
  %v9806 = vsub.f32 %v8768, %v9805
  %9807 = vmatmul.mubr.f32.gmra.mrb[0].mxu0 %v9806
  %v9808 = vpop.f32.mrb[0].mxu0
  %v9809 = vadd.f32 %v9698, %v9808
  %v9810 = vpop.f32.mrb[0].mxu0
  %v9811 = vadd.f32 %v9700, %v9810
  %9812 = vmatprep.mubr.f32.mxu0 0.0
  %v9813 = vand.u32 %v8771, 4294901760
  %v9814 = vsub.f32 %v8771, %v9813
  %9815 = vmatmul.mubr.f32.gmra.mrb[0].mxu0 %v9814
  %v9816 = vpop.f32.mrb[0].mxu0
  %v9817 = vadd.f32 %v9705, %v9816
  %v9818 = vpop.f32.mrb[0].mxu0
  %v9819 = vadd.f32 %v9707, %v9818
  %9820 = vmatprep.mubr.f32.mxu0 0.0
  %v9821 = vand.u32 %v8774, 4294901760
  %v9822 = vsub.f32 %v8774, %v9821
  %9823 = vmatmul.mubr.f32.gmra.mrb[0].mxu0 %v9822
  %v9824 = vpop.f32.mrb[0].mxu0
  %v9825 = vadd.f32 %v9712, %v9824
  %v9826 = vpop.f32.mrb[0].mxu0
  %v9827 = vadd.f32 %v9714, %v9826
  %9828 = vdwg.mxu0
  %v9829 = vand.u32 %v7487, 4294901760
  %9830 = vmatprep.subr.mxu0 %v9829
  %v9831 = vand.u32 %v7383, 4294901760
  %9832 = vmatpush1.msra.mxu0 %v9831
  %v9833 = vand.u32 %v7903, 4294901760
  %9834 = vmatprep.subr.mxu0 %v9833
  %v9835 = vand.u32 %v7799, 4294901760
  %9836 = vmatpush1.msra.mxu0 %v9835
  %v9837 = vand.u32 %v8319, 4294901760
  %9838 = vmatprep.subr.mxu0 %v9837
  %v9839 = vand.u32 %v8215, 4294901760
  %9840 = vmatpush1.msra.mxu0 %v9839
  %v9841 = vand.u32 %v8735, 4294901760
  %9842 = vmatprep.subr.mxu0 %v9841
  %v9843 = vand.u32 %v8631, 4294901760
  %9844 = vmatpush1.msra.mxu0 %v9843
  %9845 = vmatprep.subr.mxu0 0.0
  %9846 = vmatpush1.msra.mxu0 0.0
  %9847 = vmatprep.subr.mxu0 0.0
  %9848 = vmatpush1.msra.mxu0 0.0
  %9849 = vmatprep.subr.mxu0 0.0
  %9850 = vmatpush1.msra.mxu0 0.0
  %9851 = vmatprep.subr.mxu0 0.0
  %9852 = vmatpush1.msra.mxu0 0.0
  %9853 = vmatprep.subr.mxu0 0.0
  %9854 = vmatpush1.msra.mxu0 0.0
  %9855 = vmatprep.subr.mxu0 0.0
  %9856 = vmatpush1.msra.mxu0 0.0
  %9857 = vmatprep.subr.mxu0 0.0
  %9858 = vmatpush1.msra.mxu0 0.0
  %9859 = vmatprep.subr.mxu0 0.0
  %9860 = vmatpush1.msra.mxu0 0.0
  %9861 = vmatprep.subr.mxu0 0.0
  %9862 = vmatpush1.msra.mxu0 0.0
  %9863 = vmatprep.subr.mxu0 0.0
  %9864 = vmatpush1.msra.mxu0 0.0
  %9865 = vmatprep.subr.mxu0 0.0
  %9866 = vmatpush1.msra.mxu0 0.0
  %9867 = vmatprep.subr.mxu0 0.0
  %9868 = vmatpush1.msra.mxu0 0.0
  %9869 = vmatprep.subr.mxu0 0.0
  %9870 = vmatpush1.msra.mxu0 0.0
  %9871 = vmatprep.subr.mxu0 0.0
  %9872 = vmatpush1.msra.mxu0 0.0
  %9873 = vmatprep.subr.mxu0 0.0
  %9874 = vmatpush1.msra.mxu0 0.0
  %9875 = vmatprep.subr.mxu0 0.0
  %9876 = vmatpush1.msra.mxu0 0.0
  %9877 = vmatprep.subr.mxu0 0.0
  %9878 = vmatpush1.msra.mxu0 0.0
  %9879 = vmatprep.subr.mxu0 0.0
  %9880 = vmatpush1.msra.mxu0 0.0
  %9881 = vmatprep.subr.mxu0 0.0
  %9882 = vmatpush1.msra.mxu0 0.0
  %9883 = vmatprep.subr.mxu0 0.0
  %9884 = vmatpush1.msra.mxu0 0.0
  %9885 = vmatprep.subr.mxu0 0.0
  %9886 = vmatpush1.msra.mxu0 0.0
  %9887 = vmatprep.subr.mxu0 0.0
  %9888 = vmatpush1.msra.mxu0 0.0
  %9889 = vmatprep.subr.mxu0 0.0
  %9890 = vmatpush1.msra.mxu0 0.0
  %9891 = vmatprep.subr.mxu0 0.0
  %9892 = vmatpush1.msra.mxu0 0.0
  %9893 = vmatprep.subr.mxu0 0.0
  %9894 = vmatpush1.msra.mxu0 0.0
  %9895 = vmatprep.subr.mxu0 0.0
  %9896 = vmatpush1.msra.mxu0 0.0
  %9897 = vmatprep.subr.mxu0 0.0
  %9898 = vmatpush1.msra.mxu0 0.0
  %9899 = vmatprep.subr.mxu0 0.0
  %9900 = vmatpush1.msra.mxu0 0.0
  %9901 = vmatprep.mubr.f32.mxu0 0.0
  %v9902 = vand.u32 %v8765, 4294901760
  %v9903 = vsub.f32 %v8765, %v9902
  %v9904 = vand.u32 %v9903, 4294901760
  %9905 = vmatmul.mubr.f32.gmra.mrb[0].mxu0 %v9904
  %v9906 = vpop.f32.mrb[0].mxu0
  %v9907 = vadd.f32 %v9801, %v9906
  %v9908 = vpop.f32.mrb[0].mxu0
  %v9909 = vadd.f32 %v9803, %v9908
  %9910 = vmatprep.mubr.f32.mxu0 0.0
  %v9911 = vand.u32 %v8768, 4294901760
  %v9912 = vsub.f32 %v8768, %v9911
  %v9913 = vand.u32 %v9912, 4294901760
  %9914 = vmatmul.mubr.f32.gmra.mrb[0].mxu0 %v9913
  %v9915 = vpop.f32.mrb[0].mxu0
  %v9916 = vadd.f32 %v9809, %v9915
  %v9917 = vpop.f32.mrb[0].mxu0
  %v9918 = vadd.f32 %v9811, %v9917
  %9919 = vmatprep.mubr.f32.mxu0 0.0
  %v9920 = vand.u32 %v8771, 4294901760
  %v9921 = vsub.f32 %v8771, %v9920
  %v9922 = vand.u32 %v9921, 4294901760
  %9923 = vmatmul.mubr.f32.gmra.mrb[0].mxu0 %v9922
  %v9924 = vpop.f32.mrb[0].mxu0
  %v9925 = vadd.f32 %v9817, %v9924
  %v9926 = vpop.f32.mrb[0].mxu0
  %v9927 = vadd.f32 %v9819, %v9926
  %9928 = vmatprep.mubr.f32.mxu0 0.0
  %v9929 = vand.u32 %v8774, 4294901760
  %v9930 = vsub.f32 %v8774, %v9929
  %v9931 = vand.u32 %v9930, 4294901760
  %9932 = vmatmul.mubr.f32.gmra.mrb[0].mxu0 %v9931
  %v9933 = vpop.f32.mrb[0].mxu0
  %v9934 = vadd.f32 %v9825, %v9933
  %v9935 = vpop.f32.mrb[0].mxu0
  %v9936 = vadd.f32 %v9827, %v9935
  %9937 = vdwg.mxu0
  %v9938 = vand.u32 %v7487, 4294901760
  %v9939 = vsub.f32 %v7487, %v9938
  %v9940 = vand.u32 %v9939, 4294901760
  %9941 = vmatprep.subr.mxu0 %v9940
  %v9942 = vand.u32 %v7383, 4294901760
  %v9943 = vsub.f32 %v7383, %v9942
  %v9944 = vand.u32 %v9943, 4294901760
  %9945 = vmatpush1.msra.mxu0 %v9944
  %v9946 = vand.u32 %v7903, 4294901760
  %v9947 = vsub.f32 %v7903, %v9946
  %v9948 = vand.u32 %v9947, 4294901760
  %9949 = vmatprep.subr.mxu0 %v9948
  %v9950 = vand.u32 %v7799, 4294901760
  %v9951 = vsub.f32 %v7799, %v9950
  %v9952 = vand.u32 %v9951, 4294901760
  %9953 = vmatpush1.msra.mxu0 %v9952
  %v9954 = vand.u32 %v8319, 4294901760
  %v9955 = vsub.f32 %v8319, %v9954
  %v9956 = vand.u32 %v9955, 4294901760
  %9957 = vmatprep.subr.mxu0 %v9956
  %v9958 = vand.u32 %v8215, 4294901760
  %v9959 = vsub.f32 %v8215, %v9958
  %v9960 = vand.u32 %v9959, 4294901760
  %9961 = vmatpush1.msra.mxu0 %v9960
  %v9962 = vand.u32 %v8735, 4294901760
  %v9963 = vsub.f32 %v8735, %v9962
  %v9964 = vand.u32 %v9963, 4294901760
  %9965 = vmatprep.subr.mxu0 %v9964
  %v9966 = vand.u32 %v8631, 4294901760
  %v9967 = vsub.f32 %v8631, %v9966
  %v9968 = vand.u32 %v9967, 4294901760
  %9969 = vmatpush1.msra.mxu0 %v9968
  %9970 = vmatprep.subr.mxu0 0.0
  %9971 = vmatpush1.msra.mxu0 0.0
  %9972 = vmatprep.subr.mxu0 0.0
  %9973 = vmatpush1.msra.mxu0 0.0
  %9974 = vmatprep.subr.mxu0 0.0
  %9975 = vmatpush1.msra.mxu0 0.0
  %9976 = vmatprep.subr.mxu0 0.0
  %9977 = vmatpush1.msra.mxu0 0.0
  %9978 = vmatprep.subr.mxu0 0.0
  %9979 = vmatpush1.msra.mxu0 0.0
  %9980 = vmatprep.subr.mxu0 0.0
  %9981 = vmatpush1.msra.mxu0 0.0
  %9982 = vmatprep.subr.mxu0 0.0
  %9983 = vmatpush1.msra.mxu0 0.0
  %9984 = vmatprep.subr.mxu0 0.0
  %9985 = vmatpush1.msra.mxu0 0.0
  %9986 = vmatprep.subr.mxu0 0.0
  %9987 = vmatpush1.msra.mxu0 0.0
  %9988 = vmatprep.subr.mxu0 0.0
  %9989 = vmatpush1.msra.mxu0 0.0
  %9990 = vmatprep.subr.mxu0 0.0
  %9991 = vmatpush1.msra.mxu0 0.0
  %9992 = vmatprep.subr.mxu0 0.0
  %9993 = vmatpush1.msra.mxu0 0.0
  %9994 = vmatprep.subr.mxu0 0.0
  %9995 = vmatpush1.msra.mxu0 0.0
  %9996 = vmatprep.subr.mxu0 0.0
  %9997 = vmatpush1.msra.mxu0 0.0
  %9998 = vmatprep.subr.mxu0 0.0
  %9999 = vmatpush1.msra.mxu0 0.0
  %10000 = vmatprep.subr.mxu0 0.0
  %10001 = vmatpush1.msra.mxu0 0.0
  %10002 = vmatprep.subr.mxu0 0.0
  %10003 = vmatpush1.msra.mxu0 0.0
  %10004 = vmatprep.subr.mxu0 0.0
  %10005 = vmatpush1.msra.mxu0 0.0
  %10006 = vmatprep.subr.mxu0 0.0
  %10007 = vmatpush1.msra.mxu0 0.0
  %10008 = vmatprep.subr.mxu0 0.0
  %10009 = vmatpush1.msra.mxu0 0.0
  %10010 = vmatprep.subr.mxu0 0.0
  %10011 = vmatpush1.msra.mxu0 0.0
  %10012 = vmatprep.subr.mxu0 0.0
  %10013 = vmatpush1.msra.mxu0 0.0
  %10014 = vmatprep.subr.mxu0 0.0
  %10015 = vmatpush1.msra.mxu0 0.0
  %10016 = vmatprep.subr.mxu0 0.0
  %10017 = vmatpush1.msra.mxu0 0.0
  %10018 = vmatprep.subr.mxu0 0.0
  %10019 = vmatpush1.msra.mxu0 0.0
  %10020 = vmatprep.subr.mxu0 0.0
  %10021 = vmatpush1.msra.mxu0 0.0
  %10022 = vmatprep.subr.mxu0 0.0
  %10023 = vmatpush1.msra.mxu0 0.0
  %10024 = vmatprep.subr.mxu0 0.0
  %10025 = vmatpush1.msra.mxu0 0.0
  %10026 = vmatprep.mubr.f32.mxu0 0.0
  %v10027 = vand.u32 %v8765, 4294901760
  %10028 = vmatmul.mubr.f32.gmra.mrb[0].mxu0 %v10027
  %v10029 = vpop.f32.mrb[0].mxu0
  %v10030 = vadd.f32 %v9907, %v10029
  %v10031 = vpop.f32.mrb[0].mxu0
  %v10032 = vadd.f32 %v9909, %v10031
  %10033 = vmatprep.mubr.f32.mxu0 0.0
  %v10034 = vand.u32 %v8768, 4294901760
  %10035 = vmatmul.mubr.f32.gmra.mrb[0].mxu0 %v10034
  %v10036 = vpop.f32.mrb[0].mxu0
  %v10037 = vadd.f32 %v9916, %v10036
  %v10038 = vpop.f32.mrb[0].mxu0
  %v10039 = vadd.f32 %v9918, %v10038
  %10040 = vmatprep.mubr.f32.mxu0 0.0
  %v10041 = vand.u32 %v8771, 4294901760
  %10042 = vmatmul.mubr.f32.gmra.mrb[0].mxu0 %v10041
  %v10043 = vpop.f32.mrb[0].mxu0
  %v10044 = vadd.f32 %v9925, %v10043
  %v10045 = vpop.f32.mrb[0].mxu0
  %v10046 = vadd.f32 %v9927, %v10045
  %10047 = vmatprep.mubr.f32.mxu0 0.0
  %v10048 = vand.u32 %v8774, 4294901760
  %10049 = vmatmul.mubr.f32.gmra.mrb[0].mxu0 %v10048
  %v10050 = vpop.f32.mrb[0].mxu0
  %v10051 = vadd.f32 %v9934, %v10050
  %v10052 = vpop.f32.mrb[0].mxu0
  %v10053 = vadd.f32 %v9936, %v10052
  %10054 = vdwg.mxu0
  %v10055 = vand.u32 %v7487, 4294901760
  %10056 = vmatprep.subr.mxu0 %v10055
  %v10057 = vand.u32 %v7383, 4294901760
  %10058 = vmatpush1.msra.mxu0 %v10057
  %v10059 = vand.u32 %v7903, 4294901760
  %10060 = vmatprep.subr.mxu0 %v10059
  %v10061 = vand.u32 %v7799, 4294901760
  %10062 = vmatpush1.msra.mxu0 %v10061
  %v10063 = vand.u32 %v8319, 4294901760
  %10064 = vmatprep.subr.mxu0 %v10063
  %v10065 = vand.u32 %v8215, 4294901760
  %10066 = vmatpush1.msra.mxu0 %v10065
  %v10067 = vand.u32 %v8735, 4294901760
  %10068 = vmatprep.subr.mxu0 %v10067
  %v10069 = vand.u32 %v8631, 4294901760
  %10070 = vmatpush1.msra.mxu0 %v10069
  %10071 = vmatprep.subr.mxu0 0.0
  %10072 = vmatpush1.msra.mxu0 0.0
  %10073 = vmatprep.subr.mxu0 0.0
  %10074 = vmatpush1.msra.mxu0 0.0
  %10075 = vmatprep.subr.mxu0 0.0
  %10076 = vmatpush1.msra.mxu0 0.0
  %10077 = vmatprep.subr.mxu0 0.0
  %10078 = vmatpush1.msra.mxu0 0.0
  %10079 = vmatprep.subr.mxu0 0.0
  %10080 = vmatpush1.msra.mxu0 0.0
  %10081 = vmatprep.subr.mxu0 0.0
  %10082 = vmatpush1.msra.mxu0 0.0
  %10083 = vmatprep.subr.mxu0 0.0
  %10084 = vmatpush1.msra.mxu0 0.0
  %10085 = vmatprep.subr.mxu0 0.0
  %10086 = vmatpush1.msra.mxu0 0.0
  %10087 = vmatprep.subr.mxu0 0.0
  %10088 = vmatpush1.msra.mxu0 0.0
  %10089 = vmatprep.subr.mxu0 0.0
  %10090 = vmatpush1.msra.mxu0 0.0
  %10091 = vmatprep.subr.mxu0 0.0
  %10092 = vmatpush1.msra.mxu0 0.0
  %10093 = vmatprep.subr.mxu0 0.0
  %10094 = vmatpush1.msra.mxu0 0.0
  %10095 = vmatprep.subr.mxu0 0.0
  %10096 = vmatpush1.msra.mxu0 0.0
  %10097 = vmatprep.subr.mxu0 0.0
  %10098 = vmatpush1.msra.mxu0 0.0
  %10099 = vmatprep.subr.mxu0 0.0
  %10100 = vmatpush1.msra.mxu0 0.0
  %10101 = vmatprep.subr.mxu0 0.0
  %10102 = vmatpush1.msra.mxu0 0.0
  %10103 = vmatprep.subr.mxu0 0.0
  %10104 = vmatpush1.msra.mxu0 0.0
  %10105 = vmatprep.subr.mxu0 0.0
  %10106 = vmatpush1.msra.mxu0 0.0
  %10107 = vmatprep.subr.mxu0 0.0
  %10108 = vmatpush1.msra.mxu0 0.0
  %10109 = vmatprep.subr.mxu0 0.0
  %10110 = vmatpush1.msra.mxu0 0.0
  %10111 = vmatprep.subr.mxu0 0.0
  %10112 = vmatpush1.msra.mxu0 0.0
  %10113 = vmatprep.subr.mxu0 0.0
  %10114 = vmatpush1.msra.mxu0 0.0
  %10115 = vmatprep.subr.mxu0 0.0
  %10116 = vmatpush1.msra.mxu0 0.0
  %10117 = vmatprep.subr.mxu0 0.0
  %10118 = vmatpush1.msra.mxu0 0.0
  %10119 = vmatprep.subr.mxu0 0.0
  %10120 = vmatpush1.msra.mxu0 0.0
  %10121 = vmatprep.subr.mxu0 0.0
  %10122 = vmatpush1.msra.mxu0 0.0
  %10123 = vmatprep.subr.mxu0 0.0
  %10124 = vmatpush1.msra.mxu0 0.0
  %10125 = vmatprep.subr.mxu0 0.0
  %10126 = vmatpush1.msra.mxu0 0.0
  %10127 = vmatprep.mubr.f32.mxu0 0.0
  %v10128 = vand.u32 %v8765, 4294901760
  %10129 = vmatmul.mubr.f32.gmra.mrb[0].mxu0 %v10128
  %v10130 = vpop.f32.mrb[0].mxu0
  %v10131 = vadd.f32 %v10030, %v10130
  %v10132 = vpop.f32.mrb[0].mxu0
  %v10133 = vadd.f32 %v10032, %v10132
  %10134 = vmatprep.mubr.f32.mxu0 0.0
  %v10135 = vand.u32 %v8768, 4294901760
  %10136 = vmatmul.mubr.f32.gmra.mrb[0].mxu0 %v10135
  %v10137 = vpop.f32.mrb[0].mxu0
  %v10138 = vadd.f32 %v10037, %v10137
  %v10139 = vpop.f32.mrb[0].mxu0
  %v10140 = vadd.f32 %v10039, %v10139
  %10141 = vmatprep.mubr.f32.mxu0 0.0
  %v10142 = vand.u32 %v8771, 4294901760
  %10143 = vmatmul.mubr.f32.gmra.mrb[0].mxu0 %v10142
  %v10144 = vpop.f32.mrb[0].mxu0
  %v10145 = vadd.f32 %v10044, %v10144
  %v10146 = vpop.f32.mrb[0].mxu0
  %v10147 = vadd.f32 %v10046, %v10146
  %10148 = vmatprep.mubr.f32.mxu0 0.0
  %v10149 = vand.u32 %v8774, 4294901760
  %10150 = vmatmul.mubr.f32.gmra.mrb[0].mxu0 %v10149
  %v10151 = vpop.f32.mrb[0].mxu0
  %v10152 = vadd.f32 %v10051, %v10151
  %v10153 = vpop.f32.mrb[0].mxu0
  %v10154 = vadd.f32 %v10053, %v10153
  %10155 = vdwg.mxu0
  %v10156 = vand.u32 2147483647, %v9441
  %vm10157 = vcmp.le.f32.partialorder %v10156, 0.7853982
  %vm10158 = vcmp.lt.s32.totalorder %v9441, 0
  %v10159 = vand.u32 %v9441, 2139095040
  %v10160 = vshrl.u32 %v10159, 23
  %v10161 = vsub.s32 %v10160, 127
  %v10162 = vand.u32 2147483647, %v9441
  %v10163 = vand.u32 %v10162, 8388607
  %v10164 = vor.u32 %v10163, 8388608
  %v10165 = vsub.s32 0, %v10164
  %v10166 = vadd.s32 %v10161, 1
  %vm10167 = vcmp.gt.s32.totalorder %v10166, 0
  %v10168 = vsel %vm10167, %v10166, 0
  %v10169 = vshrl.u32 %v10168, 5
  %v10170 = vand.u32 %v10168, 31
  %v10171 = vsub.s32 32, %v10170
  %v10172 = vshrl.u32 683565275, %v10171
  %v10173 = vshll.u32 683565275, %v10170
  %v10174 = vshrl.u32 2475754826, %v10171
  %v10175 = vor.u32 %v10173, %v10174
  %v10176 = vshll.u32 2475754826, %v10170
  %v10177 = vshrl.u32 2131351028, %v10171
  %v10178 = vor.u32 %v10176, %v10177
  %v10179 = vshll.u32 2131351028, %v10170
  %v10180 = vshrl.u32 2102212464, %v10171
  %v10181 = vor.u32 %v10179, %v10180
  %v10182 = vshll.u32 2102212464, %v10170
  %v10183 = vshrl.u32 920167782, %v10171
  %v10184 = vor.u32 %v10182, %v10183
  %v10185 = vshll.u32 920167782, %v10170
  %v10186 = vshrl.u32 1326507024, %v10171
  %v10187 = vor.u32 %v10185, %v10186
  %vm10188 = vcmp.lt.s32.totalorder %v10169, 1
  %vm10189 = vcmp.lt.s32.totalorder %v10169, 2
  %vm10190 = vcmp.lt.s32.totalorder %v10169, 3
  %vm10191 = vcmp.lt.s32.totalorder %v10169, 4
  %v10192 = vsel %vm10188, %v10172, %v10175
  %v10193 = vsel %vm10191, %v10181, 2102212464
  %v10194 = vsel %vm10190, %v10178, %v10193
  %v10195 = vsel %vm10189, %v10192, %v10194
  %v10196 = vsel %vm10188, %v10175, %v10178
  %v10197 = vsel %vm10191, %v10184, 920167782
  %v10198 = vsel %vm10190, %v10181, %v10197
  %v10199 = vsel %vm10189, %v10196, %v10198
  %v10200 = vsel %vm10188, %v10178, %v10181
  %v10201 = vsel %vm10191, %v10187, 1326507024
  %v10202 = vsel %vm10190, %v10184, %v10201
  %v10203 = vsel %vm10189, %v10200, %v10202
  %v10204 = vshll.u32 %v10164, 8
  %v10205 = vmul.u32.u64.compose %v10204, %v10203
  %v10206 = vextract.low.u32 %v10205
  %v10207 = vextract.high.u32 %v10205
  %v10208 = vmul.u32.u64.compose %v10204, %v10199
  %v10209 = vextract.low.u32 %v10208
  %v10210 = vextract.high.u32 %v10208
  %v10211 = vmul.u32 %v10204, %v10195
  %v10212 = vadd.s32 %v10207, %v10209
  %vm10213 = vc.u32 %v10207, %v10209
  %v10214 = vadd.s32 %v10210, 1
  %v10215 = vsel %vm10213, %v10214, %v10210
  %v10216 = vadd.s32 %v10211, %v10215
  %v10217 = vadd.s32 %v10216, 536870912
  %v10218 = vshrl.u32 %v10217, 30
  %v10219 = vshll.u32 %v10218, 30
  %v10220 = vsub.s32 %v10216, %v10219
  %vm10221 = vcmp.lt.s32.totalorder %v10220, 0
  %v10222 = vsub.s32 0, %v10220
  %v10223 = vsel %vm10221, %v10222, %v10220
  %v10224 = vclz %v10223
  %v10225 = vsub.s32 %v10224, 2
  %vm10226 = vcmp.gt.s32.totalorder 0, %v10225
  %v10227 = vsel %vm10226, 0, %v10225
  %v10228 = vsub.s32 32, %v10227
  %v10229 = vshll.u32 %v10220, %v10227
  %v10230 = vshrl.u32 %v10212, %v10228
  %v10231 = vor.u32 %v10229, %v10230
  %v10232 = vsub.s32 4294967266, %v10227
  %v10233 = vadd.s32 %v10232, 127
  %v10234 = vshll.u32 %v10233, 23
  %v10235 = vor.u32 4788187, %v10234
  %v10236 = vand.u32 2147483647, %v10235
  %v10238 = vcvt.s32.f32 %v10231
  %v10239 = vmul.f32 %v10238, %v10236
  %v10240 = vxor.u32 %v10239, 2147483648
  %v10241 = vsel %vm10158, %v10240, %v10239
  %v10242 = vsub.s32 4, %v10218
  %v10243 = vsel %vm10158, %v10242, %v10218
  %v10244 = vsel %vm10157, %v9441, %v10241
  %v10245 = vsel %vm10157, 0, %v10243
  %v10246 = vcosq.f32.pop %v10244
  %v10247 = vsinq.f32.pop %v10244
  %vm10248 = vweird.f32 %v9441
  %v10249 = vadd.s32 %v10245, 3
  %v10250 = vand.u32 %v10249, 3
  %vm10251 = vcmp.lt.s32.totalorder %v10250, 2
  %vm10252 = vcmp.eq.s32.totalorder %v10250, 0
  %v10253 = vxor.u32 %v10247, 2147483648
  %v10254 = vsel %vm10252, %v10246, %v10253
  %vm10255 = vcmp.eq.s32.totalorder %v10250, 2
  %v10256 = vxor.u32 %v10246, 2147483648
  %v10257 = vsel %vm10255, %v10256, %v10247
  %v10258 = vsel %vm10251, %v10254, %v10257
  %v10259 = vsel %vm10248, nan, %v10258
  %v10260 = vand.u32 2147483647, %v9443
  %vm10261 = vcmp.le.f32.partialorder %v10260, 0.7853982
  %vm10262 = vcmp.lt.s32.totalorder %v9443, 0
  %v10263 = vand.u32 %v9443, 2139095040
  %v10264 = vshrl.u32 %v10263, 23
  %v10265 = vsub.s32 %v10264, 127
  %v10266 = vand.u32 2147483647, %v9443
  %v10267 = vand.u32 %v10266, 8388607
  %v10268 = vor.u32 %v10267, 8388608
  %v10269 = vsub.s32 0, %v10268
  %v10270 = vadd.s32 %v10265, 1
  %vm10271 = vcmp.gt.s32.totalorder %v10270, 0
  %v10272 = vsel %vm10271, %v10270, 0
  %v10273 = vshrl.u32 %v10272, 5
  %v10274 = vand.u32 %v10272, 31
  %v10275 = vsub.s32 32, %v10274
  %v10276 = vshrl.u32 683565275, %v10275
  %v10277 = vshll.u32 683565275, %v10274
  %v10278 = vshrl.u32 2475754826, %v10275
  %v10279 = vor.u32 %v10277, %v10278
  %v10280 = vshll.u32 2475754826, %v10274
  %v10281 = vshrl.u32 2131351028, %v10275
  %v10282 = vor.u32 %v10280, %v10281
  %v10283 = vshll.u32 2131351028, %v10274
  %v10284 = vshrl.u32 2102212464, %v10275
  %v10285 = vor.u32 %v10283, %v10284
  %v10286 = vshll.u32 2102212464, %v10274
  %v10287 = vshrl.u32 920167782, %v10275
  %v10288 = vor.u32 %v10286, %v10287
  %v10289 = vshll.u32 920167782, %v10274
  %v10290 = vshrl.u32 1326507024, %v10275
  %v10291 = vor.u32 %v10289, %v10290
  %vm10292 = vcmp.lt.s32.totalorder %v10273, 1
  %vm10293 = vcmp.lt.s32.totalorder %v10273, 2
  %vm10294 = vcmp.lt.s32.totalorder %v10273, 3
  %vm10295 = vcmp.lt.s32.totalorder %v10273, 4
  %v10296 = vsel %vm10292, %v10276, %v10279
  %v10297 = vsel %vm10295, %v10285, 2102212464
  %v10298 = vsel %vm10294, %v10282, %v10297
  %v10299 = vsel %vm10293, %v10296, %v10298
  %v10300 = vsel %vm10292, %v10279, %v10282
  %v10301 = vsel %vm10295, %v10288, 920167782
  %v10302 = vsel %vm10294, %v10285, %v10301
  %v10303 = vsel %vm10293, %v10300, %v10302
  %v10304 = vsel %vm10292, %v10282, %v10285
  %v10305 = vsel %vm10295, %v10291, 1326507024
  %v10306 = vsel %vm10294, %v10288, %v10305
  %v10307 = vsel %vm10293, %v10304, %v10306
  %v10308 = vshll.u32 %v10268, 8
  %v10309 = vmul.u32.u64.compose %v10308, %v10307
  %v10310 = vextract.low.u32 %v10309
  %v10311 = vextract.high.u32 %v10309
  %v10312 = vmul.u32.u64.compose %v10308, %v10303
  %v10313 = vextract.low.u32 %v10312
  %v10314 = vextract.high.u32 %v10312
  %v10315 = vmul.u32 %v10308, %v10299
  %v10316 = vadd.s32 %v10311, %v10313
  %vm10317 = vc.u32 %v10311, %v10313
  %v10318 = vadd.s32 %v10314, 1
  %v10319 = vsel %vm10317, %v10318, %v10314
  %v10320 = vadd.s32 %v10315, %v10319
  %v10321 = vadd.s32 %v10320, 536870912
  %v10322 = vshrl.u32 %v10321, 30
  %v10323 = vshll.u32 %v10322, 30
  %v10324 = vsub.s32 %v10320, %v10323
  %vm10325 = vcmp.lt.s32.totalorder %v10324, 0
  %v10326 = vsub.s32 0, %v10324
  %v10327 = vsel %vm10325, %v10326, %v10324
  %v10328 = vclz %v10327
  %v10329 = vsub.s32 %v10328, 2
  %vm10330 = vcmp.gt.s32.totalorder 0, %v10329
  %v10331 = vsel %vm10330, 0, %v10329
  %v10332 = vsub.s32 32, %v10331
  %v10333 = vshll.u32 %v10324, %v10331
  %v10334 = vshrl.u32 %v10316, %v10332
  %v10335 = vor.u32 %v10333, %v10334
  %v10336 = vsub.s32 4294967266, %v10331
  %v10337 = vadd.s32 %v10336, 127
  %v10338 = vshll.u32 %v10337, 23
  %v10339 = vor.u32 4788187, %v10338
  %v10340 = vand.u32 2147483647, %v10339
  %v10342 = vcvt.s32.f32 %v10335
  %v10343 = vmul.f32 %v10342, %v10340
  %v10344 = vxor.u32 %v10343, 2147483648
  %v10345 = vsel %vm10262, %v10344, %v10343
  %v10346 = vsub.s32 4, %v10322
  %v10347 = vsel %vm10262, %v10346, %v10322
  %v10348 = vsel %vm10261, %v9443, %v10345
  %v10349 = vsel %vm10261, 0, %v10347
  %v10350 = vcosq.f32.pop %v10348
  %v10351 = vsinq.f32.pop %v10348
  %vm10352 = vweird.f32 %v9443
  %v10353 = vadd.s32 %v10349, 3
  %v10354 = vand.u32 %v10353, 3
  %vm10355 = vcmp.lt.s32.totalorder %v10354, 2
  %vm10356 = vcmp.eq.s32.totalorder %v10354, 0
  %v10357 = vxor.u32 %v10351, 2147483648
  %v10358 = vsel %vm10356, %v10350, %v10357
  %vm10359 = vcmp.eq.s32.totalorder %v10354, 2
  %v10360 = vxor.u32 %v10350, 2147483648
  %v10361 = vsel %vm10359, %v10360, %v10351
  %v10362 = vsel %vm10355, %v10358, %v10361
  %v10363 = vsel %vm10352, nan, %v10362
  %v10364 = vand.u32 2147483647, %v10131
  %vm10365 = vcmp.le.f32.partialorder %v10364, 0.7853982
  %vm10366 = vcmp.lt.s32.totalorder %v10131, 0
  %v10367 = vand.u32 %v10131, 2139095040
  %v10368 = vshrl.u32 %v10367, 23
  %v10369 = vsub.s32 %v10368, 127
  %v10370 = vand.u32 2147483647, %v10131
  %v10371 = vand.u32 %v10370, 8388607
  %v10372 = vor.u32 %v10371, 8388608
  %v10373 = vsub.s32 0, %v10372
  %v10374 = vadd.s32 %v10369, 1
  %vm10375 = vcmp.gt.s32.totalorder %v10374, 0
  %v10376 = vsel %vm10375, %v10374, 0
  %v10377 = vshrl.u32 %v10376, 5
  %v10378 = vand.u32 %v10376, 31
  %v10379 = vsub.s32 32, %v10378
  %v10380 = vshrl.u32 683565275, %v10379
  %v10381 = vshll.u32 683565275, %v10378
  %v10382 = vshrl.u32 2475754826, %v10379
  %v10383 = vor.u32 %v10381, %v10382
  %v10384 = vshll.u32 2475754826, %v10378
  %v10385 = vshrl.u32 2131351028, %v10379
  %v10386 = vor.u32 %v10384, %v10385
  %v10387 = vshll.u32 2131351028, %v10378
  %v10388 = vshrl.u32 2102212464, %v10379
  %v10389 = vor.u32 %v10387, %v10388
  %v10390 = vshll.u32 2102212464, %v10378
  %v10391 = vshrl.u32 920167782, %v10379
  %v10392 = vor.u32 %v10390, %v10391
  %v10393 = vshll.u32 920167782, %v10378
  %v10394 = vshrl.u32 1326507024, %v10379
  %v10395 = vor.u32 %v10393, %v10394
  %vm10396 = vcmp.lt.s32.totalorder %v10377, 1
  %vm10397 = vcmp.lt.s32.totalorder %v10377, 2
  %vm10398 = vcmp.lt.s32.totalorder %v10377, 3
  %vm10399 = vcmp.lt.s32.totalorder %v10377, 4
  %v10400 = vsel %vm10396, %v10380, %v10383
  %v10401 = vsel %vm10399, %v10389, 2102212464
  %v10402 = vsel %vm10398, %v10386, %v10401
  %v10403 = vsel %vm10397, %v10400, %v10402
  %v10404 = vsel %vm10396, %v10383, %v10386
  %v10405 = vsel %vm10399, %v10392, 920167782
  %v10406 = vsel %vm10398, %v10389, %v10405
  %v10407 = vsel %vm10397, %v10404, %v10406
  %v10408 = vsel %vm10396, %v10386, %v10389
  %v10409 = vsel %vm10399, %v10395, 1326507024
  %v10410 = vsel %vm10398, %v10392, %v10409
  %v10411 = vsel %vm10397, %v10408, %v10410
  %v10412 = vshll.u32 %v10372, 8
  %v10413 = vmul.u32.u64.compose %v10412, %v10411
  %v10414 = vextract.low.u32 %v10413
  %v10415 = vextract.high.u32 %v10413
  %v10416 = vmul.u32.u64.compose %v10412, %v10407
  %v10417 = vextract.low.u32 %v10416
  %v10418 = vextract.high.u32 %v10416
  %v10419 = vmul.u32 %v10412, %v10403
  %v10420 = vadd.s32 %v10415, %v10417
  %vm10421 = vc.u32 %v10415, %v10417
  %v10422 = vadd.s32 %v10418, 1
  %v10423 = vsel %vm10421, %v10422, %v10418
  %v10424 = vadd.s32 %v10419, %v10423
  %v10425 = vadd.s32 %v10424, 536870912
  %v10426 = vshrl.u32 %v10425, 30
  %v10427 = vshll.u32 %v10426, 30
  %v10428 = vsub.s32 %v10424, %v10427
  %vm10429 = vcmp.lt.s32.totalorder %v10428, 0
  %v10430 = vsub.s32 0, %v10428
  %v10431 = vsel %vm10429, %v10430, %v10428
  %v10432 = vclz %v10431
  %v10433 = vsub.s32 %v10432, 2
  %vm10434 = vcmp.gt.s32.totalorder 0, %v10433
  %v10435 = vsel %vm10434, 0, %v10433
  %v10436 = vsub.s32 32, %v10435
  %v10437 = vshll.u32 %v10428, %v10435
  %v10438 = vshrl.u32 %v10420, %v10436
  %v10439 = vor.u32 %v10437, %v10438
  %v10440 = vsub.s32 4294967266, %v10435
  %v10441 = vadd.s32 %v10440, 127
  %v10442 = vshll.u32 %v10441, 23
  %v10443 = vor.u32 4788187, %v10442
  %v10444 = vand.u32 2147483647, %v10443
  %v10446 = vcvt.s32.f32 %v10439
  %v10447 = vmul.f32 %v10446, %v10444
  %v10448 = vxor.u32 %v10447, 2147483648
  %v10449 = vsel %vm10366, %v10448, %v10447
  %v10450 = vsub.s32 4, %v10426
  %v10451 = vsel %vm10366, %v10450, %v10426
  %v10452 = vsel %vm10365, %v10131, %v10449
  %v10453 = vsel %vm10365, 0, %v10451
  %v10454 = vcosq.f32.pop %v10452
  %v10455 = vsinq.f32.pop %v10452
  %vm10456 = vweird.f32 %v10131
  %v10457 = vadd.s32 %v10453, 3
  %v10458 = vand.u32 %v10457, 3
  %vm10459 = vcmp.lt.s32.totalorder %v10458, 2
  %vm10460 = vcmp.eq.s32.totalorder %v10458, 0
  %v10461 = vxor.u32 %v10455, 2147483648
  %v10462 = vsel %vm10460, %v10454, %v10461
  %vm10463 = vcmp.eq.s32.totalorder %v10458, 2
  %v10464 = vxor.u32 %v10454, 2147483648
  %v10465 = vsel %vm10463, %v10464, %v10455
  %v10466 = vsel %vm10459, %v10462, %v10465
  %v10467 = vsel %vm10456, nan, %v10466
  %v10468 = vand.u32 2147483647, %v10133
  %vm10469 = vcmp.le.f32.partialorder %v10468, 0.7853982
  %vm10470 = vcmp.lt.s32.totalorder %v10133, 0
  %v10471 = vand.u32 %v10133, 2139095040
  %v10472 = vshrl.u32 %v10471, 23
  %v10473 = vsub.s32 %v10472, 127
  %v10474 = vand.u32 2147483647, %v10133
  %v10475 = vand.u32 %v10474, 8388607
  %v10476 = vor.u32 %v10475, 8388608
  %v10477 = vsub.s32 0, %v10476
  %v10478 = vadd.s32 %v10473, 1
  %vm10479 = vcmp.gt.s32.totalorder %v10478, 0
  %v10480 = vsel %vm10479, %v10478, 0
  %v10481 = vshrl.u32 %v10480, 5
  %v10482 = vand.u32 %v10480, 31
  %v10483 = vsub.s32 32, %v10482
  %v10484 = vshrl.u32 683565275, %v10483
  %v10485 = vshll.u32 683565275, %v10482
  %v10486 = vshrl.u32 2475754826, %v10483
  %v10487 = vor.u32 %v10485, %v10486
  %v10488 = vshll.u32 2475754826, %v10482
  %v10489 = vshrl.u32 2131351028, %v10483
  %v10490 = vor.u32 %v10488, %v10489
  %v10491 = vshll.u32 2131351028, %v10482
  %v10492 = vshrl.u32 2102212464, %v10483
  %v10493 = vor.u32 %v10491, %v10492
  %v10494 = vshll.u32 2102212464, %v10482
  %v10495 = vshrl.u32 920167782, %v10483
  %v10496 = vor.u32 %v10494, %v10495
  %v10497 = vshll.u32 920167782, %v10482
  %v10498 = vshrl.u32 1326507024, %v10483
  %v10499 = vor.u32 %v10497, %v10498
  %vm10500 = vcmp.lt.s32.totalorder %v10481, 1
  %vm10501 = vcmp.lt.s32.totalorder %v10481, 2
  %vm10502 = vcmp.lt.s32.totalorder %v10481, 3
  %vm10503 = vcmp.lt.s32.totalorder %v10481, 4
  %v10504 = vsel %vm10500, %v10484, %v10487
  %v10505 = vsel %vm10503, %v10493, 2102212464
  %v10506 = vsel %vm10502, %v10490, %v10505
  %v10507 = vsel %vm10501, %v10504, %v10506
  %v10508 = vsel %vm10500, %v10487, %v10490
  %v10509 = vsel %vm10503, %v10496, 920167782
  %v10510 = vsel %vm10502, %v10493, %v10509
  %v10511 = vsel %vm10501, %v10508, %v10510
  %v10512 = vsel %vm10500, %v10490, %v10493
  %v10513 = vsel %vm10503, %v10499, 1326507024
  %v10514 = vsel %vm10502, %v10496, %v10513
  %v10515 = vsel %vm10501, %v10512, %v10514
  %v10516 = vshll.u32 %v10476, 8
  %v10517 = vmul.u32.u64.compose %v10516, %v10515
  %v10518 = vextract.low.u32 %v10517
  %v10519 = vextract.high.u32 %v10517
  %v10520 = vmul.u32.u64.compose %v10516, %v10511
  %v10521 = vextract.low.u32 %v10520
  %v10522 = vextract.high.u32 %v10520
  %v10523 = vmul.u32 %v10516, %v10507
  %v10524 = vadd.s32 %v10519, %v10521
  %vm10525 = vc.u32 %v10519, %v10521
  %v10526 = vadd.s32 %v10522, 1
  %v10527 = vsel %vm10525, %v10526, %v10522
  %v10528 = vadd.s32 %v10523, %v10527
  %v10529 = vadd.s32 %v10528, 536870912
  %v10530 = vshrl.u32 %v10529, 30
  %v10531 = vshll.u32 %v10530, 30
  %v10532 = vsub.s32 %v10528, %v10531
  %vm10533 = vcmp.lt.s32.totalorder %v10532, 0
  %v10534 = vsub.s32 0, %v10532
  %v10535 = vsel %vm10533, %v10534, %v10532
  %v10536 = vclz %v10535
  %v10537 = vsub.s32 %v10536, 2
  %vm10538 = vcmp.gt.s32.totalorder 0, %v10537
  %v10539 = vsel %vm10538, 0, %v10537
  %v10540 = vsub.s32 32, %v10539
  %v10541 = vshll.u32 %v10532, %v10539
  %v10542 = vshrl.u32 %v10524, %v10540
  %v10543 = vor.u32 %v10541, %v10542
  %v10544 = vsub.s32 4294967266, %v10539
  %v10545 = vadd.s32 %v10544, 127
  %v10546 = vshll.u32 %v10545, 23
  %v10547 = vor.u32 4788187, %v10546
  %v10548 = vand.u32 2147483647, %v10547
  %v10550 = vcvt.s32.f32 %v10543
  %v10551 = vmul.f32 %v10550, %v10548
  %v10552 = vxor.u32 %v10551, 2147483648
  %v10553 = vsel %vm10470, %v10552, %v10551
  %v10554 = vsub.s32 4, %v10530
  %v10555 = vsel %vm10470, %v10554, %v10530
  %v10556 = vsel %vm10469, %v10133, %v10553
  %v10557 = vsel %vm10469, 0, %v10555
  %v10558 = vcosq.f32.pop %v10556
  %v10559 = vsinq.f32.pop %v10556
  %vm10560 = vweird.f32 %v10133
  %v10561 = vadd.s32 %v10557, 3
  %v10562 = vand.u32 %v10561, 3
  %vm10563 = vcmp.lt.s32.totalorder %v10562, 2
  %vm10564 = vcmp.eq.s32.totalorder %v10562, 0
  %v10565 = vxor.u32 %v10559, 2147483648
  %v10566 = vsel %vm10564, %v10558, %v10565
  %vm10567 = vcmp.eq.s32.totalorder %v10562, 2
  %v10568 = vxor.u32 %v10558, 2147483648
  %v10569 = vsel %vm10567, %v10568, %v10559
  %v10570 = vsel %vm10563, %v10566, %v10569
  %v10571 = vsel %vm10560, nan, %v10570
  %v10572 = vand.u32 2147483647, %v9448
  %vm10573 = vcmp.le.f32.partialorder %v10572, 0.7853982
  %vm10574 = vcmp.lt.s32.totalorder %v9448, 0
  %v10575 = vand.u32 %v9448, 2139095040
  %v10576 = vshrl.u32 %v10575, 23
  %v10577 = vsub.s32 %v10576, 127
  %v10578 = vand.u32 2147483647, %v9448
  %v10579 = vand.u32 %v10578, 8388607
  %v10580 = vor.u32 %v10579, 8388608
  %v10581 = vsub.s32 0, %v10580
  %v10582 = vadd.s32 %v10577, 1
  %vm10583 = vcmp.gt.s32.totalorder %v10582, 0
  %v10584 = vsel %vm10583, %v10582, 0
  %v10585 = vshrl.u32 %v10584, 5
  %v10586 = vand.u32 %v10584, 31
  %v10587 = vsub.s32 32, %v10586
  %v10588 = vshrl.u32 683565275, %v10587
  %v10589 = vshll.u32 683565275, %v10586
  %v10590 = vshrl.u32 2475754826, %v10587
  %v10591 = vor.u32 %v10589, %v10590
  %v10592 = vshll.u32 2475754826, %v10586
  %v10593 = vshrl.u32 2131351028, %v10587
  %v10594 = vor.u32 %v10592, %v10593
  %v10595 = vshll.u32 2131351028, %v10586
  %v10596 = vshrl.u32 2102212464, %v10587
  %v10597 = vor.u32 %v10595, %v10596
  %v10598 = vshll.u32 2102212464, %v10586
  %v10599 = vshrl.u32 920167782, %v10587
  %v10600 = vor.u32 %v10598, %v10599
  %v10601 = vshll.u32 920167782, %v10586
  %v10602 = vshrl.u32 1326507024, %v10587
  %v10603 = vor.u32 %v10601, %v10602
  %vm10604 = vcmp.lt.s32.totalorder %v10585, 1
  %vm10605 = vcmp.lt.s32.totalorder %v10585, 2
  %vm10606 = vcmp.lt.s32.totalorder %v10585, 3
  %vm10607 = vcmp.lt.s32.totalorder %v10585, 4
  %v10608 = vsel %vm10604, %v10588, %v10591
  %v10609 = vsel %vm10607, %v10597, 2102212464
  %v10610 = vsel %vm10606, %v10594, %v10609
  %v10611 = vsel %vm10605, %v10608, %v10610
  %v10612 = vsel %vm10604, %v10591, %v10594
  %v10613 = vsel %vm10607, %v10600, 920167782
  %v10614 = vsel %vm10606, %v10597, %v10613
  %v10615 = vsel %vm10605, %v10612, %v10614
  %v10616 = vsel %vm10604, %v10594, %v10597
  %v10617 = vsel %vm10607, %v10603, 1326507024
  %v10618 = vsel %vm10606, %v10600, %v10617
  %v10619 = vsel %vm10605, %v10616, %v10618
  %v10620 = vshll.u32 %v10580, 8
  %v10621 = vmul.u32.u64.compose %v10620, %v10619
  %v10622 = vextract.low.u32 %v10621
  %v10623 = vextract.high.u32 %v10621
  %v10624 = vmul.u32.u64.compose %v10620, %v10615
  %v10625 = vextract.low.u32 %v10624
  %v10626 = vextract.high.u32 %v10624
  %v10627 = vmul.u32 %v10620, %v10611
  %v10628 = vadd.s32 %v10623, %v10625
  %vm10629 = vc.u32 %v10623, %v10625
  %v10630 = vadd.s32 %v10626, 1
  %v10631 = vsel %vm10629, %v10630, %v10626
  %v10632 = vadd.s32 %v10627, %v10631
  %v10633 = vadd.s32 %v10632, 536870912
  %v10634 = vshrl.u32 %v10633, 30
  %v10635 = vshll.u32 %v10634, 30
  %v10636 = vsub.s32 %v10632, %v10635
  %vm10637 = vcmp.lt.s32.totalorder %v10636, 0
  %v10638 = vsub.s32 0, %v10636
  %v10639 = vsel %vm10637, %v10638, %v10636
  %v10640 = vclz %v10639
  %v10641 = vsub.s32 %v10640, 2
  %vm10642 = vcmp.gt.s32.totalorder 0, %v10641
  %v10643 = vsel %vm10642, 0, %v10641
  %v10644 = vsub.s32 32, %v10643
  %v10645 = vshll.u32 %v10636, %v10643
  %v10646 = vshrl.u32 %v10628, %v10644
  %v10647 = vor.u32 %v10645, %v10646
  %v10648 = vsub.s32 4294967266, %v10643
  %v10649 = vadd.s32 %v10648, 127
  %v10650 = vshll.u32 %v10649, 23
  %v10651 = vor.u32 4788187, %v10650
  %v10652 = vand.u32 2147483647, %v10651
  %v10654 = vcvt.s32.f32 %v10647
  %v10655 = vmul.f32 %v10654, %v10652
  %v10656 = vxor.u32 %v10655, 2147483648
  %v10657 = vsel %vm10574, %v10656, %v10655
  %v10658 = vsub.s32 4, %v10634
  %v10659 = vsel %vm10574, %v10658, %v10634
  %v10660 = vsel %vm10573, %v9448, %v10657
  %v10661 = vsel %vm10573, 0, %v10659
  %v10662 = vcosq.f32.pop %v10660
  %v10663 = vsinq.f32.pop %v10660
  %vm10664 = vweird.f32 %v9448
  %v10665 = vadd.s32 %v10661, 3
  %v10666 = vand.u32 %v10665, 3
  %vm10667 = vcmp.lt.s32.totalorder %v10666, 2
  %vm10668 = vcmp.eq.s32.totalorder %v10666, 0
  %v10669 = vxor.u32 %v10663, 2147483648
  %v10670 = vsel %vm10668, %v10662, %v10669
  %vm10671 = vcmp.eq.s32.totalorder %v10666, 2
  %v10672 = vxor.u32 %v10662, 2147483648
  %v10673 = vsel %vm10671, %v10672, %v10663
  %v10674 = vsel %vm10667, %v10670, %v10673
  %v10675 = vsel %vm10664, nan, %v10674
  %v10676 = vand.u32 2147483647, %v9450
  %vm10677 = vcmp.le.f32.partialorder %v10676, 0.7853982
  %vm10678 = vcmp.lt.s32.totalorder %v9450, 0
  %v10679 = vand.u32 %v9450, 2139095040
  %v10680 = vshrl.u32 %v10679, 23
  %v10681 = vsub.s32 %v10680, 127
  %v10682 = vand.u32 2147483647, %v9450
  %v10683 = vand.u32 %v10682, 8388607
  %v10684 = vor.u32 %v10683, 8388608
  %v10685 = vsub.s32 0, %v10684
  %v10686 = vadd.s32 %v10681, 1
  %vm10687 = vcmp.gt.s32.totalorder %v10686, 0
  %v10688 = vsel %vm10687, %v10686, 0
  %v10689 = vshrl.u32 %v10688, 5
  %v10690 = vand.u32 %v10688, 31
  %v10691 = vsub.s32 32, %v10690
  %v10692 = vshrl.u32 683565275, %v10691
  %v10693 = vshll.u32 683565275, %v10690
  %v10694 = vshrl.u32 2475754826, %v10691
  %v10695 = vor.u32 %v10693, %v10694
  %v10696 = vshll.u32 2475754826, %v10690
  %v10697 = vshrl.u32 2131351028, %v10691
  %v10698 = vor.u32 %v10696, %v10697
  %v10699 = vshll.u32 2131351028, %v10690
  %v10700 = vshrl.u32 2102212464, %v10691
  %v10701 = vor.u32 %v10699, %v10700
  %v10702 = vshll.u32 2102212464, %v10690
  %v10703 = vshrl.u32 920167782, %v10691
  %v10704 = vor.u32 %v10702, %v10703
  %v10705 = vshll.u32 920167782, %v10690
  %v10706 = vshrl.u32 1326507024, %v10691
  %v10707 = vor.u32 %v10705, %v10706
  %vm10708 = vcmp.lt.s32.totalorder %v10689, 1
  %vm10709 = vcmp.lt.s32.totalorder %v10689, 2
  %vm10710 = vcmp.lt.s32.totalorder %v10689, 3
  %vm10711 = vcmp.lt.s32.totalorder %v10689, 4
  %v10712 = vsel %vm10708, %v10692, %v10695
  %v10713 = vsel %vm10711, %v10701, 2102212464
  %v10714 = vsel %vm10710, %v10698, %v10713
  %v10715 = vsel %vm10709, %v10712, %v10714
  %v10716 = vsel %vm10708, %v10695, %v10698
  %v10717 = vsel %vm10711, %v10704, 920167782
  %v10718 = vsel %vm10710, %v10701, %v10717
  %v10719 = vsel %vm10709, %v10716, %v10718
  %v10720 = vsel %vm10708, %v10698, %v10701
  %v10721 = vsel %vm10711, %v10707, 1326507024
  %v10722 = vsel %vm10710, %v10704, %v10721
  %v10723 = vsel %vm10709, %v10720, %v10722
  %v10724 = vshll.u32 %v10684, 8
  %v10725 = vmul.u32.u64.compose %v10724, %v10723
  %v10726 = vextract.low.u32 %v10725
  %v10727 = vextract.high.u32 %v10725
  %v10728 = vmul.u32.u64.compose %v10724, %v10719
  %v10729 = vextract.low.u32 %v10728
  %v10730 = vextract.high.u32 %v10728
  %v10731 = vmul.u32 %v10724, %v10715
  %v10732 = vadd.s32 %v10727, %v10729
  %vm10733 = vc.u32 %v10727, %v10729
  %v10734 = vadd.s32 %v10730, 1
  %v10735 = vsel %vm10733, %v10734, %v10730
  %v10736 = vadd.s32 %v10731, %v10735
  %v10737 = vadd.s32 %v10736, 536870912
  %v10738 = vshrl.u32 %v10737, 30
  %v10739 = vshll.u32 %v10738, 30
  %v10740 = vsub.s32 %v10736, %v10739
  %vm10741 = vcmp.lt.s32.totalorder %v10740, 0
  %v10742 = vsub.s32 0, %v10740
  %v10743 = vsel %vm10741, %v10742, %v10740
  %v10744 = vclz %v10743
  %v10745 = vsub.s32 %v10744, 2
  %vm10746 = vcmp.gt.s32.totalorder 0, %v10745
  %v10747 = vsel %vm10746, 0, %v10745
  %v10748 = vsub.s32 32, %v10747
  %v10749 = vshll.u32 %v10740, %v10747
  %v10750 = vshrl.u32 %v10732, %v10748
  %v10751 = vor.u32 %v10749, %v10750
  %v10752 = vsub.s32 4294967266, %v10747
  %v10753 = vadd.s32 %v10752, 127
  %v10754 = vshll.u32 %v10753, 23
  %v10755 = vor.u32 4788187, %v10754
  %v10756 = vand.u32 2147483647, %v10755
  %v10758 = vcvt.s32.f32 %v10751
  %v10759 = vmul.f32 %v10758, %v10756
  %v10760 = vxor.u32 %v10759, 2147483648
  %v10761 = vsel %vm10678, %v10760, %v10759
  %v10762 = vsub.s32 4, %v10738
  %v10763 = vsel %vm10678, %v10762, %v10738
  %v10764 = vsel %vm10677, %v9450, %v10761
  %v10765 = vsel %vm10677, 0, %v10763
  %v10766 = vcosq.f32.pop %v10764
  %v10767 = vsinq.f32.pop %v10764
  %vm10768 = vweird.f32 %v9450
  %v10769 = vadd.s32 %v10765, 3
  %v10770 = vand.u32 %v10769, 3
  %vm10771 = vcmp.lt.s32.totalorder %v10770, 2
  %vm10772 = vcmp.eq.s32.totalorder %v10770, 0
  %v10773 = vxor.u32 %v10767, 2147483648
  %v10774 = vsel %vm10772, %v10766, %v10773
  %vm10775 = vcmp.eq.s32.totalorder %v10770, 2
  %v10776 = vxor.u32 %v10766, 2147483648
  %v10777 = vsel %vm10775, %v10776, %v10767
  %v10778 = vsel %vm10771, %v10774, %v10777
  %v10779 = vsel %vm10768, nan, %v10778
  %v10780 = vand.u32 2147483647, %v10138
  %vm10781 = vcmp.le.f32.partialorder %v10780, 0.7853982
  %vm10782 = vcmp.lt.s32.totalorder %v10138, 0
  %v10783 = vand.u32 %v10138, 2139095040
  %v10784 = vshrl.u32 %v10783, 23
  %v10785 = vsub.s32 %v10784, 127
  %v10786 = vand.u32 2147483647, %v10138
  %v10787 = vand.u32 %v10786, 8388607
  %v10788 = vor.u32 %v10787, 8388608
  %v10789 = vsub.s32 0, %v10788
  %v10790 = vadd.s32 %v10785, 1
  %vm10791 = vcmp.gt.s32.totalorder %v10790, 0
  %v10792 = vsel %vm10791, %v10790, 0
  %v10793 = vshrl.u32 %v10792, 5
  %v10794 = vand.u32 %v10792, 31
  %v10795 = vsub.s32 32, %v10794
  %v10796 = vshrl.u32 683565275, %v10795
  %v10797 = vshll.u32 683565275, %v10794
  %v10798 = vshrl.u32 2475754826, %v10795
  %v10799 = vor.u32 %v10797, %v10798
  %v10800 = vshll.u32 2475754826, %v10794
  %v10801 = vshrl.u32 2131351028, %v10795
  %v10802 = vor.u32 %v10800, %v10801
  %v10803 = vshll.u32 2131351028, %v10794
  %v10804 = vshrl.u32 2102212464, %v10795
  %v10805 = vor.u32 %v10803, %v10804
  %v10806 = vshll.u32 2102212464, %v10794
  %v10807 = vshrl.u32 920167782, %v10795
  %v10808 = vor.u32 %v10806, %v10807
  %v10809 = vshll.u32 920167782, %v10794
  %v10810 = vshrl.u32 1326507024, %v10795
  %v10811 = vor.u32 %v10809, %v10810
  %vm10812 = vcmp.lt.s32.totalorder %v10793, 1
  %vm10813 = vcmp.lt.s32.totalorder %v10793, 2
  %vm10814 = vcmp.lt.s32.totalorder %v10793, 3
  %vm10815 = vcmp.lt.s32.totalorder %v10793, 4
  %v10816 = vsel %vm10812, %v10796, %v10799
  %v10817 = vsel %vm10815, %v10805, 2102212464
  %v10818 = vsel %vm10814, %v10802, %v10817
  %v10819 = vsel %vm10813, %v10816, %v10818
  %v10820 = vsel %vm10812, %v10799, %v10802
  %v10821 = vsel %vm10815, %v10808, 920167782
  %v10822 = vsel %vm10814, %v10805, %v10821
  %v10823 = vsel %vm10813, %v10820, %v10822
  %v10824 = vsel %vm10812, %v10802, %v10805
  %v10825 = vsel %vm10815, %v10811, 1326507024
  %v10826 = vsel %vm10814, %v10808, %v10825
  %v10827 = vsel %vm10813, %v10824, %v10826
  %v10828 = vshll.u32 %v10788, 8
  %v10829 = vmul.u32.u64.compose %v10828, %v10827
  %v10830 = vextract.low.u32 %v10829
  %v10831 = vextract.high.u32 %v10829
  %v10832 = vmul.u32.u64.compose %v10828, %v10823
  %v10833 = vextract.low.u32 %v10832
  %v10834 = vextract.high.u32 %v10832
  %v10835 = vmul.u32 %v10828, %v10819
  %v10836 = vadd.s32 %v10831, %v10833
  %vm10837 = vc.u32 %v10831, %v10833
  %v10838 = vadd.s32 %v10834, 1
  %v10839 = vsel %vm10837, %v10838, %v10834
  %v10840 = vadd.s32 %v10835, %v10839
  %v10841 = vadd.s32 %v10840, 536870912
  %v10842 = vshrl.u32 %v10841, 30
  %v10843 = vshll.u32 %v10842, 30
  %v10844 = vsub.s32 %v10840, %v10843
  %vm10845 = vcmp.lt.s32.totalorder %v10844, 0
  %v10846 = vsub.s32 0, %v10844
  %v10847 = vsel %vm10845, %v10846, %v10844
  %v10848 = vclz %v10847
  %v10849 = vsub.s32 %v10848, 2
  %vm10850 = vcmp.gt.s32.totalorder 0, %v10849
  %v10851 = vsel %vm10850, 0, %v10849
  %v10852 = vsub.s32 32, %v10851
  %v10853 = vshll.u32 %v10844, %v10851
  %v10854 = vshrl.u32 %v10836, %v10852
  %v10855 = vor.u32 %v10853, %v10854
  %v10856 = vsub.s32 4294967266, %v10851
  %v10857 = vadd.s32 %v10856, 127
  %v10858 = vshll.u32 %v10857, 23
  %v10859 = vor.u32 4788187, %v10858
  %v10860 = vand.u32 2147483647, %v10859
  %v10862 = vcvt.s32.f32 %v10855
  %v10863 = vmul.f32 %v10862, %v10860
  %v10864 = vxor.u32 %v10863, 2147483648
  %v10865 = vsel %vm10782, %v10864, %v10863
  %v10866 = vsub.s32 4, %v10842
  %v10867 = vsel %vm10782, %v10866, %v10842
  %v10868 = vsel %vm10781, %v10138, %v10865
  %v10869 = vsel %vm10781, 0, %v10867
  %v10870 = vcosq.f32.pop %v10868
  %v10871 = vsinq.f32.pop %v10868
  %vm10872 = vweird.f32 %v10138
  %v10873 = vadd.s32 %v10869, 3
  %v10874 = vand.u32 %v10873, 3
  %vm10875 = vcmp.lt.s32.totalorder %v10874, 2
  %vm10876 = vcmp.eq.s32.totalorder %v10874, 0
  %v10877 = vxor.u32 %v10871, 2147483648
  %v10878 = vsel %vm10876, %v10870, %v10877
  %vm10879 = vcmp.eq.s32.totalorder %v10874, 2
  %v10880 = vxor.u32 %v10870, 2147483648
  %v10881 = vsel %vm10879, %v10880, %v10871
  %v10882 = vsel %vm10875, %v10878, %v10881
  %v10883 = vsel %vm10872, nan, %v10882
  %v10884 = vand.u32 2147483647, %v10140
  %vm10885 = vcmp.le.f32.partialorder %v10884, 0.7853982
  %vm10886 = vcmp.lt.s32.totalorder %v10140, 0
  %v10887 = vand.u32 %v10140, 2139095040
  %v10888 = vshrl.u32 %v10887, 23
  %v10889 = vsub.s32 %v10888, 127
  %v10890 = vand.u32 2147483647, %v10140
  %v10891 = vand.u32 %v10890, 8388607
  %v10892 = vor.u32 %v10891, 8388608
  %v10893 = vsub.s32 0, %v10892
  %v10894 = vadd.s32 %v10889, 1
  %vm10895 = vcmp.gt.s32.totalorder %v10894, 0
  %v10896 = vsel %vm10895, %v10894, 0
  %v10897 = vshrl.u32 %v10896, 5
  %v10898 = vand.u32 %v10896, 31
  %v10899 = vsub.s32 32, %v10898
  %v10900 = vshrl.u32 683565275, %v10899
  %v10901 = vshll.u32 683565275, %v10898
  %v10902 = vshrl.u32 2475754826, %v10899
  %v10903 = vor.u32 %v10901, %v10902
  %v10904 = vshll.u32 2475754826, %v10898
  %v10905 = vshrl.u32 2131351028, %v10899
  %v10906 = vor.u32 %v10904, %v10905
  %v10907 = vshll.u32 2131351028, %v10898
  %v10908 = vshrl.u32 2102212464, %v10899
  %v10909 = vor.u32 %v10907, %v10908
  %v10910 = vshll.u32 2102212464, %v10898
  %v10911 = vshrl.u32 920167782, %v10899
  %v10912 = vor.u32 %v10910, %v10911
  %v10913 = vshll.u32 920167782, %v10898
  %v10914 = vshrl.u32 1326507024, %v10899
  %v10915 = vor.u32 %v10913, %v10914
  %vm10916 = vcmp.lt.s32.totalorder %v10897, 1
  %vm10917 = vcmp.lt.s32.totalorder %v10897, 2
  %vm10918 = vcmp.lt.s32.totalorder %v10897, 3
  %vm10919 = vcmp.lt.s32.totalorder %v10897, 4
  %v10920 = vsel %vm10916, %v10900, %v10903
  %v10921 = vsel %vm10919, %v10909, 2102212464
  %v10922 = vsel %vm10918, %v10906, %v10921
  %v10923 = vsel %vm10917, %v10920, %v10922
  %v10924 = vsel %vm10916, %v10903, %v10906
  %v10925 = vsel %vm10919, %v10912, 920167782
  %v10926 = vsel %vm10918, %v10909, %v10925
  %v10927 = vsel %vm10917, %v10924, %v10926
  %v10928 = vsel %vm10916, %v10906, %v10909
  %v10929 = vsel %vm10919, %v10915, 1326507024
  %v10930 = vsel %vm10918, %v10912, %v10929
  %v10931 = vsel %vm10917, %v10928, %v10930
  %v10932 = vshll.u32 %v10892, 8
  %v10933 = vmul.u32.u64.compose %v10932, %v10931
  %v10934 = vextract.low.u32 %v10933
  %v10935 = vextract.high.u32 %v10933
  %v10936 = vmul.u32.u64.compose %v10932, %v10927
  %v10937 = vextract.low.u32 %v10936
  %v10938 = vextract.high.u32 %v10936
  %v10939 = vmul.u32 %v10932, %v10923
  %v10940 = vadd.s32 %v10935, %v10937
  %vm10941 = vc.u32 %v10935, %v10937
  %v10942 = vadd.s32 %v10938, 1
  %v10943 = vsel %vm10941, %v10942, %v10938
  %v10944 = vadd.s32 %v10939, %v10943
  %v10945 = vadd.s32 %v10944, 536870912
  %v10946 = vshrl.u32 %v10945, 30
  %v10947 = vshll.u32 %v10946, 30
  %v10948 = vsub.s32 %v10944, %v10947
  %vm10949 = vcmp.lt.s32.totalorder %v10948, 0
  %v10950 = vsub.s32 0, %v10948
  %v10951 = vsel %vm10949, %v10950, %v10948
  %v10952 = vclz %v10951
  %v10953 = vsub.s32 %v10952, 2
  %vm10954 = vcmp.gt.s32.totalorder 0, %v10953
  %v10955 = vsel %vm10954, 0, %v10953
  %v10956 = vsub.s32 32, %v10955
  %v10957 = vshll.u32 %v10948, %v10955
  %v10958 = vshrl.u32 %v10940, %v10956
  %v10959 = vor.u32 %v10957, %v10958
  %v10960 = vsub.s32 4294967266, %v10955
  %v10961 = vadd.s32 %v10960, 127
  %v10962 = vshll.u32 %v10961, 23
  %v10963 = vor.u32 4788187, %v10962
  %v10964 = vand.u32 2147483647, %v10963
  %v10966 = vcvt.s32.f32 %v10959
  %v10967 = vmul.f32 %v10966, %v10964
  %v10968 = vxor.u32 %v10967, 2147483648
  %v10969 = vsel %vm10886, %v10968, %v10967
  %v10970 = vsub.s32 4, %v10946
  %v10971 = vsel %vm10886, %v10970, %v10946
  %v10972 = vsel %vm10885, %v10140, %v10969
  %v10973 = vsel %vm10885, 0, %v10971
  %v10974 = vcosq.f32.pop %v10972
  %v10975 = vsinq.f32.pop %v10972
  %vm10976 = vweird.f32 %v10140
  %v10977 = vadd.s32 %v10973, 3
  %v10978 = vand.u32 %v10977, 3
  %vm10979 = vcmp.lt.s32.totalorder %v10978, 2
  %vm10980 = vcmp.eq.s32.totalorder %v10978, 0
  %v10981 = vxor.u32 %v10975, 2147483648
  %v10982 = vsel %vm10980, %v10974, %v10981
  %vm10983 = vcmp.eq.s32.totalorder %v10978, 2
  %v10984 = vxor.u32 %v10974, 2147483648
  %v10985 = vsel %vm10983, %v10984, %v10975
  %v10986 = vsel %vm10979, %v10982, %v10985
  %v10987 = vsel %vm10976, nan, %v10986
  %v10988 = vand.u32 2147483647, %v9455
  %vm10989 = vcmp.le.f32.partialorder %v10988, 0.7853982
  %vm10990 = vcmp.lt.s32.totalorder %v9455, 0
  %v10991 = vand.u32 %v9455, 2139095040
  %v10992 = vshrl.u32 %v10991, 23
  %v10993 = vsub.s32 %v10992, 127
  %v10994 = vand.u32 2147483647, %v9455
  %v10995 = vand.u32 %v10994, 8388607
  %v10996 = vor.u32 %v10995, 8388608
  %v10997 = vsub.s32 0, %v10996
  %v10998 = vadd.s32 %v10993, 1
  %vm10999 = vcmp.gt.s32.totalorder %v10998, 0
  %v11000 = vsel %vm10999, %v10998, 0
  %v11001 = vshrl.u32 %v11000, 5
  %v11002 = vand.u32 %v11000, 31
  %v11003 = vsub.s32 32, %v11002
  %v11004 = vshrl.u32 683565275, %v11003
  %v11005 = vshll.u32 683565275, %v11002
  %v11006 = vshrl.u32 2475754826, %v11003
  %v11007 = vor.u32 %v11005, %v11006
  %v11008 = vshll.u32 2475754826, %v11002
  %v11009 = vshrl.u32 2131351028, %v11003
  %v11010 = vor.u32 %v11008, %v11009
  %v11011 = vshll.u32 2131351028, %v11002
  %v11012 = vshrl.u32 2102212464, %v11003
  %v11013 = vor.u32 %v11011, %v11012
  %v11014 = vshll.u32 2102212464, %v11002
  %v11015 = vshrl.u32 920167782, %v11003
  %v11016 = vor.u32 %v11014, %v11015
  %v11017 = vshll.u32 920167782, %v11002
  %v11018 = vshrl.u32 1326507024, %v11003
  %v11019 = vor.u32 %v11017, %v11018
  %vm11020 = vcmp.lt.s32.totalorder %v11001, 1
  %vm11021 = vcmp.lt.s32.totalorder %v11001, 2
  %vm11022 = vcmp.lt.s32.totalorder %v11001, 3
  %vm11023 = vcmp.lt.s32.totalorder %v11001, 4
  %v11024 = vsel %vm11020, %v11004, %v11007
  %v11025 = vsel %vm11023, %v11013, 2102212464
  %v11026 = vsel %vm11022, %v11010, %v11025
  %v11027 = vsel %vm11021, %v11024, %v11026
  %v11028 = vsel %vm11020, %v11007, %v11010
  %v11029 = vsel %vm11023, %v11016, 920167782
  %v11030 = vsel %vm11022, %v11013, %v11029
  %v11031 = vsel %vm11021, %v11028, %v11030
  %v11032 = vsel %vm11020, %v11010, %v11013
  %v11033 = vsel %vm11023, %v11019, 1326507024
  %v11034 = vsel %vm11022, %v11016, %v11033
  %v11035 = vsel %vm11021, %v11032, %v11034
  %v11036 = vshll.u32 %v10996, 8
  %v11037 = vmul.u32.u64.compose %v11036, %v11035
  %v11038 = vextract.low.u32 %v11037
  %v11039 = vextract.high.u32 %v11037
  %v11040 = vmul.u32.u64.compose %v11036, %v11031
  %v11041 = vextract.low.u32 %v11040
  %v11042 = vextract.high.u32 %v11040
  %v11043 = vmul.u32 %v11036, %v11027
  %v11044 = vadd.s32 %v11039, %v11041
  %vm11045 = vc.u32 %v11039, %v11041
  %v11046 = vadd.s32 %v11042, 1
  %v11047 = vsel %vm11045, %v11046, %v11042
  %v11048 = vadd.s32 %v11043, %v11047
  %v11049 = vadd.s32 %v11048, 536870912
  %v11050 = vshrl.u32 %v11049, 30
  %v11051 = vshll.u32 %v11050, 30
  %v11052 = vsub.s32 %v11048, %v11051
  %vm11053 = vcmp.lt.s32.totalorder %v11052, 0
  %v11054 = vsub.s32 0, %v11052
  %v11055 = vsel %vm11053, %v11054, %v11052
  %v11056 = vclz %v11055
  %v11057 = vsub.s32 %v11056, 2
  %vm11058 = vcmp.gt.s32.totalorder 0, %v11057
  %v11059 = vsel %vm11058, 0, %v11057
  %v11060 = vsub.s32 32, %v11059
  %v11061 = vshll.u32 %v11052, %v11059
  %v11062 = vshrl.u32 %v11044, %v11060
  %v11063 = vor.u32 %v11061, %v11062
  %v11064 = vsub.s32 4294967266, %v11059
  %v11065 = vadd.s32 %v11064, 127
  %v11066 = vshll.u32 %v11065, 23
  %v11067 = vor.u32 4788187, %v11066
  %v11068 = vand.u32 2147483647, %v11067
  %v11070 = vcvt.s32.f32 %v11063
  %v11071 = vmul.f32 %v11070, %v11068
  %v11072 = vxor.u32 %v11071, 2147483648
  %v11073 = vsel %vm10990, %v11072, %v11071
  %v11074 = vsub.s32 4, %v11050
  %v11075 = vsel %vm10990, %v11074, %v11050
  %v11076 = vsel %vm10989, %v9455, %v11073
  %v11077 = vsel %vm10989, 0, %v11075
  %v11078 = vcosq.f32.pop %v11076
  %v11079 = vsinq.f32.pop %v11076
  %vm11080 = vweird.f32 %v9455
  %v11081 = vadd.s32 %v11077, 3
  %v11082 = vand.u32 %v11081, 3
  %vm11083 = vcmp.lt.s32.totalorder %v11082, 2
  %vm11084 = vcmp.eq.s32.totalorder %v11082, 0
  %v11085 = vxor.u32 %v11079, 2147483648
  %v11086 = vsel %vm11084, %v11078, %v11085
  %vm11087 = vcmp.eq.s32.totalorder %v11082, 2
  %v11088 = vxor.u32 %v11078, 2147483648
  %v11089 = vsel %vm11087, %v11088, %v11079
  %v11090 = vsel %vm11083, %v11086, %v11089
  %v11091 = vsel %vm11080, nan, %v11090
  %v11092 = vand.u32 2147483647, %v9457
  %vm11093 = vcmp.le.f32.partialorder %v11092, 0.7853982
  %vm11094 = vcmp.lt.s32.totalorder %v9457, 0
  %v11095 = vand.u32 %v9457, 2139095040
  %v11096 = vshrl.u32 %v11095, 23
  %v11097 = vsub.s32 %v11096, 127
  %v11098 = vand.u32 2147483647, %v9457
  %v11099 = vand.u32 %v11098, 8388607
  %v11100 = vor.u32 %v11099, 8388608
  %v11101 = vsub.s32 0, %v11100
  %v11102 = vadd.s32 %v11097, 1
  %vm11103 = vcmp.gt.s32.totalorder %v11102, 0
  %v11104 = vsel %vm11103, %v11102, 0
  %v11105 = vshrl.u32 %v11104, 5
  %v11106 = vand.u32 %v11104, 31
  %v11107 = vsub.s32 32, %v11106
  %v11108 = vshrl.u32 683565275, %v11107
  %v11109 = vshll.u32 683565275, %v11106
  %v11110 = vshrl.u32 2475754826, %v11107
  %v11111 = vor.u32 %v11109, %v11110
  %v11112 = vshll.u32 2475754826, %v11106
  %v11113 = vshrl.u32 2131351028, %v11107
  %v11114 = vor.u32 %v11112, %v11113
  %v11115 = vshll.u32 2131351028, %v11106
  %v11116 = vshrl.u32 2102212464, %v11107
  %v11117 = vor.u32 %v11115, %v11116
  %v11118 = vshll.u32 2102212464, %v11106
  %v11119 = vshrl.u32 920167782, %v11107
  %v11120 = vor.u32 %v11118, %v11119
  %v11121 = vshll.u32 920167782, %v11106
  %v11122 = vshrl.u32 1326507024, %v11107
  %v11123 = vor.u32 %v11121, %v11122
  %vm11124 = vcmp.lt.s32.totalorder %v11105, 1
  %vm11125 = vcmp.lt.s32.totalorder %v11105, 2
  %vm11126 = vcmp.lt.s32.totalorder %v11105, 3
  %vm11127 = vcmp.lt.s32.totalorder %v11105, 4
  %v11128 = vsel %vm11124, %v11108, %v11111
  %v11129 = vsel %vm11127, %v11117, 2102212464
  %v11130 = vsel %vm11126, %v11114, %v11129
  %v11131 = vsel %vm11125, %v11128, %v11130
  %v11132 = vsel %vm11124, %v11111, %v11114
  %v11133 = vsel %vm11127, %v11120, 920167782
  %v11134 = vsel %vm11126, %v11117, %v11133
  %v11135 = vsel %vm11125, %v11132, %v11134
  %v11136 = vsel %vm11124, %v11114, %v11117
  %v11137 = vsel %vm11127, %v11123, 1326507024
  %v11138 = vsel %vm11126, %v11120, %v11137
  %v11139 = vsel %vm11125, %v11136, %v11138
  %v11140 = vshll.u32 %v11100, 8
  %v11141 = vmul.u32.u64.compose %v11140, %v11139
  %v11142 = vextract.low.u32 %v11141
  %v11143 = vextract.high.u32 %v11141
  %v11144 = vmul.u32.u64.compose %v11140, %v11135
  %v11145 = vextract.low.u32 %v11144
  %v11146 = vextract.high.u32 %v11144
  %v11147 = vmul.u32 %v11140, %v11131
  %v11148 = vadd.s32 %v11143, %v11145
  %vm11149 = vc.u32 %v11143, %v11145
  %v11150 = vadd.s32 %v11146, 1
  %v11151 = vsel %vm11149, %v11150, %v11146
  %v11152 = vadd.s32 %v11147, %v11151
  %v11153 = vadd.s32 %v11152, 536870912
  %v11154 = vshrl.u32 %v11153, 30
  %v11155 = vshll.u32 %v11154, 30
  %v11156 = vsub.s32 %v11152, %v11155
  %vm11157 = vcmp.lt.s32.totalorder %v11156, 0
  %v11158 = vsub.s32 0, %v11156
  %v11159 = vsel %vm11157, %v11158, %v11156
  %v11160 = vclz %v11159
  %v11161 = vsub.s32 %v11160, 2
  %vm11162 = vcmp.gt.s32.totalorder 0, %v11161
  %v11163 = vsel %vm11162, 0, %v11161
  %v11164 = vsub.s32 32, %v11163
  %v11165 = vshll.u32 %v11156, %v11163
  %v11166 = vshrl.u32 %v11148, %v11164
  %v11167 = vor.u32 %v11165, %v11166
  %v11168 = vsub.s32 4294967266, %v11163
  %v11169 = vadd.s32 %v11168, 127
  %v11170 = vshll.u32 %v11169, 23
  %v11171 = vor.u32 4788187, %v11170
  %v11172 = vand.u32 2147483647, %v11171
  %v11174 = vcvt.s32.f32 %v11167
  %v11175 = vmul.f32 %v11174, %v11172
  %v11176 = vxor.u32 %v11175, 2147483648
  %v11177 = vsel %vm11094, %v11176, %v11175
  %v11178 = vsub.s32 4, %v11154
  %v11179 = vsel %vm11094, %v11178, %v11154
  %v11180 = vsel %vm11093, %v9457, %v11177
  %v11181 = vsel %vm11093, 0, %v11179
  %v11182 = vcosq.f32.pop %v11180
  %v11183 = vsinq.f32.pop %v11180
  %vm11184 = vweird.f32 %v9457
  %v11185 = vadd.s32 %v11181, 3
  %v11186 = vand.u32 %v11185, 3
  %vm11187 = vcmp.lt.s32.totalorder %v11186, 2
  %vm11188 = vcmp.eq.s32.totalorder %v11186, 0
  %v11189 = vxor.u32 %v11183, 2147483648
  %v11190 = vsel %vm11188, %v11182, %v11189
  %vm11191 = vcmp.eq.s32.totalorder %v11186, 2
  %v11192 = vxor.u32 %v11182, 2147483648
  %v11193 = vsel %vm11191, %v11192, %v11183
  %v11194 = vsel %vm11187, %v11190, %v11193
  %v11195 = vsel %vm11184, nan, %v11194
  %v11196 = vand.u32 2147483647, %v10145
  %vm11197 = vcmp.le.f32.partialorder %v11196, 0.7853982
  %vm11198 = vcmp.lt.s32.totalorder %v10145, 0
  %v11199 = vand.u32 %v10145, 2139095040
  %v11200 = vshrl.u32 %v11199, 23
  %v11201 = vsub.s32 %v11200, 127
  %v11202 = vand.u32 2147483647, %v10145
  %v11203 = vand.u32 %v11202, 8388607
  %v11204 = vor.u32 %v11203, 8388608
  %v11205 = vsub.s32 0, %v11204
  %v11206 = vadd.s32 %v11201, 1
  %vm11207 = vcmp.gt.s32.totalorder %v11206, 0
  %v11208 = vsel %vm11207, %v11206, 0
  %v11209 = vshrl.u32 %v11208, 5
  %v11210 = vand.u32 %v11208, 31
  %v11211 = vsub.s32 32, %v11210
  %v11212 = vshrl.u32 683565275, %v11211
  %v11213 = vshll.u32 683565275, %v11210
  %v11214 = vshrl.u32 2475754826, %v11211
  %v11215 = vor.u32 %v11213, %v11214
  %v11216 = vshll.u32 2475754826, %v11210
  %v11217 = vshrl.u32 2131351028, %v11211
  %v11218 = vor.u32 %v11216, %v11217
  %v11219 = vshll.u32 2131351028, %v11210
  %v11220 = vshrl.u32 2102212464, %v11211
  %v11221 = vor.u32 %v11219, %v11220
  %v11222 = vshll.u32 2102212464, %v11210
  %v11223 = vshrl.u32 920167782, %v11211
  %v11224 = vor.u32 %v11222, %v11223
  %v11225 = vshll.u32 920167782, %v11210
  %v11226 = vshrl.u32 1326507024, %v11211
  %v11227 = vor.u32 %v11225, %v11226
  %vm11228 = vcmp.lt.s32.totalorder %v11209, 1
  %vm11229 = vcmp.lt.s32.totalorder %v11209, 2
  %vm11230 = vcmp.lt.s32.totalorder %v11209, 3
  %vm11231 = vcmp.lt.s32.totalorder %v11209, 4
  %v11232 = vsel %vm11228, %v11212, %v11215
  %v11233 = vsel %vm11231, %v11221, 2102212464
  %v11234 = vsel %vm11230, %v11218, %v11233
  %v11235 = vsel %vm11229, %v11232, %v11234
  %v11236 = vsel %vm11228, %v11215, %v11218
  %v11237 = vsel %vm11231, %v11224, 920167782
  %v11238 = vsel %vm11230, %v11221, %v11237
  %v11239 = vsel %vm11229, %v11236, %v11238
  %v11240 = vsel %vm11228, %v11218, %v11221
  %v11241 = vsel %vm11231, %v11227, 1326507024
  %v11242 = vsel %vm11230, %v11224, %v11241
  %v11243 = vsel %vm11229, %v11240, %v11242
  %v11244 = vshll.u32 %v11204, 8
  %v11245 = vmul.u32.u64.compose %v11244, %v11243
  %v11246 = vextract.low.u32 %v11245
  %v11247 = vextract.high.u32 %v11245
  %v11248 = vmul.u32.u64.compose %v11244, %v11239
  %v11249 = vextract.low.u32 %v11248
  %v11250 = vextract.high.u32 %v11248
  %v11251 = vmul.u32 %v11244, %v11235
  %v11252 = vadd.s32 %v11247, %v11249
  %vm11253 = vc.u32 %v11247, %v11249
  %v11254 = vadd.s32 %v11250, 1
  %v11255 = vsel %vm11253, %v11254, %v11250
  %v11256 = vadd.s32 %v11251, %v11255
  %v11257 = vadd.s32 %v11256, 536870912
  %v11258 = vshrl.u32 %v11257, 30
  %v11259 = vshll.u32 %v11258, 30
  %v11260 = vsub.s32 %v11256, %v11259
  %vm11261 = vcmp.lt.s32.totalorder %v11260, 0
  %v11262 = vsub.s32 0, %v11260
  %v11263 = vsel %vm11261, %v11262, %v11260
  %v11264 = vclz %v11263
  %v11265 = vsub.s32 %v11264, 2
  %vm11266 = vcmp.gt.s32.totalorder 0, %v11265
  %v11267 = vsel %vm11266, 0, %v11265
  %v11268 = vsub.s32 32, %v11267
  %v11269 = vshll.u32 %v11260, %v11267
  %v11270 = vshrl.u32 %v11252, %v11268
  %v11271 = vor.u32 %v11269, %v11270
  %v11272 = vsub.s32 4294967266, %v11267
  %v11273 = vadd.s32 %v11272, 127
  %v11274 = vshll.u32 %v11273, 23
  %v11275 = vor.u32 4788187, %v11274
  %v11276 = vand.u32 2147483647, %v11275
  %v11278 = vcvt.s32.f32 %v11271
  %v11279 = vmul.f32 %v11278, %v11276
  %v11280 = vxor.u32 %v11279, 2147483648
  %v11281 = vsel %vm11198, %v11280, %v11279
  %v11282 = vsub.s32 4, %v11258
  %v11283 = vsel %vm11198, %v11282, %v11258
  %v11284 = vsel %vm11197, %v10145, %v11281
  %v11285 = vsel %vm11197, 0, %v11283
  %v11286 = vcosq.f32.pop %v11284
  %v11287 = vsinq.f32.pop %v11284
  %vm11288 = vweird.f32 %v10145
  %v11289 = vadd.s32 %v11285, 3
  %v11290 = vand.u32 %v11289, 3
  %vm11291 = vcmp.lt.s32.totalorder %v11290, 2
  %vm11292 = vcmp.eq.s32.totalorder %v11290, 0
  %v11293 = vxor.u32 %v11287, 2147483648
  %v11294 = vsel %vm11292, %v11286, %v11293
  %vm11295 = vcmp.eq.s32.totalorder %v11290, 2
  %v11296 = vxor.u32 %v11286, 2147483648
  %v11297 = vsel %vm11295, %v11296, %v11287
  %v11298 = vsel %vm11291, %v11294, %v11297
  %v11299 = vsel %vm11288, nan, %v11298
  %v11300 = vand.u32 2147483647, %v10147
  %vm11301 = vcmp.le.f32.partialorder %v11300, 0.7853982
  %vm11302 = vcmp.lt.s32.totalorder %v10147, 0
  %v11303 = vand.u32 %v10147, 2139095040
  %v11304 = vshrl.u32 %v11303, 23
  %v11305 = vsub.s32 %v11304, 127
  %v11306 = vand.u32 2147483647, %v10147
  %v11307 = vand.u32 %v11306, 8388607
  %v11308 = vor.u32 %v11307, 8388608
  %v11309 = vsub.s32 0, %v11308
  %v11310 = vadd.s32 %v11305, 1
  %vm11311 = vcmp.gt.s32.totalorder %v11310, 0
  %v11312 = vsel %vm11311, %v11310, 0
  %v11313 = vshrl.u32 %v11312, 5
  %v11314 = vand.u32 %v11312, 31
  %v11315 = vsub.s32 32, %v11314
  %v11316 = vshrl.u32 683565275, %v11315
  %v11317 = vshll.u32 683565275, %v11314
  %v11318 = vshrl.u32 2475754826, %v11315
  %v11319 = vor.u32 %v11317, %v11318
  %v11320 = vshll.u32 2475754826, %v11314
  %v11321 = vshrl.u32 2131351028, %v11315
  %v11322 = vor.u32 %v11320, %v11321
  %v11323 = vshll.u32 2131351028, %v11314
  %v11324 = vshrl.u32 2102212464, %v11315
  %v11325 = vor.u32 %v11323, %v11324
  %v11326 = vshll.u32 2102212464, %v11314
  %v11327 = vshrl.u32 920167782, %v11315
  %v11328 = vor.u32 %v11326, %v11327
  %v11329 = vshll.u32 920167782, %v11314
  %v11330 = vshrl.u32 1326507024, %v11315
  %v11331 = vor.u32 %v11329, %v11330
  %vm11332 = vcmp.lt.s32.totalorder %v11313, 1
  %vm11333 = vcmp.lt.s32.totalorder %v11313, 2
  %vm11334 = vcmp.lt.s32.totalorder %v11313, 3
  %vm11335 = vcmp.lt.s32.totalorder %v11313, 4
  %v11336 = vsel %vm11332, %v11316, %v11319
  %v11337 = vsel %vm11335, %v11325, 2102212464
  %v11338 = vsel %vm11334, %v11322, %v11337
  %v11339 = vsel %vm11333, %v11336, %v11338
  %v11340 = vsel %vm11332, %v11319, %v11322
  %v11341 = vsel %vm11335, %v11328, 920167782
  %v11342 = vsel %vm11334, %v11325, %v11341
  %v11343 = vsel %vm11333, %v11340, %v11342
  %v11344 = vsel %vm11332, %v11322, %v11325
  %v11345 = vsel %vm11335, %v11331, 1326507024
  %v11346 = vsel %vm11334, %v11328, %v11345
  %v11347 = vsel %vm11333, %v11344, %v11346
  %v11348 = vshll.u32 %v11308, 8
  %v11349 = vmul.u32.u64.compose %v11348, %v11347
  %v11350 = vextract.low.u32 %v11349
  %v11351 = vextract.high.u32 %v11349
  %v11352 = vmul.u32.u64.compose %v11348, %v11343
  %v11353 = vextract.low.u32 %v11352
  %v11354 = vextract.high.u32 %v11352
  %v11355 = vmul.u32 %v11348, %v11339
  %v11356 = vadd.s32 %v11351, %v11353
  %vm11357 = vc.u32 %v11351, %v11353
  %v11358 = vadd.s32 %v11354, 1
  %v11359 = vsel %vm11357, %v11358, %v11354
  %v11360 = vadd.s32 %v11355, %v11359
  %v11361 = vadd.s32 %v11360, 536870912
  %v11362 = vshrl.u32 %v11361, 30
  %v11363 = vshll.u32 %v11362, 30
  %v11364 = vsub.s32 %v11360, %v11363
  %vm11365 = vcmp.lt.s32.totalorder %v11364, 0
  %v11366 = vsub.s32 0, %v11364
  %v11367 = vsel %vm11365, %v11366, %v11364
  %v11368 = vclz %v11367
  %v11369 = vsub.s32 %v11368, 2
  %vm11370 = vcmp.gt.s32.totalorder 0, %v11369
  %v11371 = vsel %vm11370, 0, %v11369
  %v11372 = vsub.s32 32, %v11371
  %v11373 = vshll.u32 %v11364, %v11371
  %v11374 = vshrl.u32 %v11356, %v11372
  %v11375 = vor.u32 %v11373, %v11374
  %v11376 = vsub.s32 4294967266, %v11371
  %v11377 = vadd.s32 %v11376, 127
  %v11378 = vshll.u32 %v11377, 23
  %v11379 = vor.u32 4788187, %v11378
  %v11380 = vand.u32 2147483647, %v11379
  %v11382 = vcvt.s32.f32 %v11375
  %v11383 = vmul.f32 %v11382, %v11380
  %v11384 = vxor.u32 %v11383, 2147483648
  %v11385 = vsel %vm11302, %v11384, %v11383
  %v11386 = vsub.s32 4, %v11362
  %v11387 = vsel %vm11302, %v11386, %v11362
  %v11388 = vsel %vm11301, %v10147, %v11385
  %v11389 = vsel %vm11301, 0, %v11387
  %v11390 = vcosq.f32.pop %v11388
  %v11391 = vsinq.f32.pop %v11388
  %vm11392 = vweird.f32 %v10147
  %v11393 = vadd.s32 %v11389, 3
  %v11394 = vand.u32 %v11393, 3
  %vm11395 = vcmp.lt.s32.totalorder %v11394, 2
  %vm11396 = vcmp.eq.s32.totalorder %v11394, 0
  %v11397 = vxor.u32 %v11391, 2147483648
  %v11398 = vsel %vm11396, %v11390, %v11397
  %vm11399 = vcmp.eq.s32.totalorder %v11394, 2
  %v11400 = vxor.u32 %v11390, 2147483648
  %v11401 = vsel %vm11399, %v11400, %v11391
  %v11402 = vsel %vm11395, %v11398, %v11401
  %v11403 = vsel %vm11392, nan, %v11402
  %v11404 = vand.u32 2147483647, %v9462
  %vm11405 = vcmp.le.f32.partialorder %v11404, 0.7853982
  %vm11406 = vcmp.lt.s32.totalorder %v9462, 0
  %v11407 = vand.u32 %v9462, 2139095040
  %v11408 = vshrl.u32 %v11407, 23
  %v11409 = vsub.s32 %v11408, 127
  %v11410 = vand.u32 2147483647, %v9462
  %v11411 = vand.u32 %v11410, 8388607
  %v11412 = vor.u32 %v11411, 8388608
  %v11413 = vsub.s32 0, %v11412
  %v11414 = vadd.s32 %v11409, 1
  %vm11415 = vcmp.gt.s32.totalorder %v11414, 0
  %v11416 = vsel %vm11415, %v11414, 0
  %v11417 = vshrl.u32 %v11416, 5
  %v11418 = vand.u32 %v11416, 31
  %v11419 = vsub.s32 32, %v11418
  %v11420 = vshrl.u32 683565275, %v11419
  %v11421 = vshll.u32 683565275, %v11418
  %v11422 = vshrl.u32 2475754826, %v11419
  %v11423 = vor.u32 %v11421, %v11422
  %v11424 = vshll.u32 2475754826, %v11418
  %v11425 = vshrl.u32 2131351028, %v11419
  %v11426 = vor.u32 %v11424, %v11425
  %v11427 = vshll.u32 2131351028, %v11418
  %v11428 = vshrl.u32 2102212464, %v11419
  %v11429 = vor.u32 %v11427, %v11428
  %v11430 = vshll.u32 2102212464, %v11418
  %v11431 = vshrl.u32 920167782, %v11419
  %v11432 = vor.u32 %v11430, %v11431
  %v11433 = vshll.u32 920167782, %v11418
  %v11434 = vshrl.u32 1326507024, %v11419
  %v11435 = vor.u32 %v11433, %v11434
  %vm11436 = vcmp.lt.s32.totalorder %v11417, 1
  %vm11437 = vcmp.lt.s32.totalorder %v11417, 2
  %vm11438 = vcmp.lt.s32.totalorder %v11417, 3
  %vm11439 = vcmp.lt.s32.totalorder %v11417, 4
  %v11440 = vsel %vm11436, %v11420, %v11423
  %v11441 = vsel %vm11439, %v11429, 2102212464
  %v11442 = vsel %vm11438, %v11426, %v11441
  %v11443 = vsel %vm11437, %v11440, %v11442
  %v11444 = vsel %vm11436, %v11423, %v11426
  %v11445 = vsel %vm11439, %v11432, 920167782
  %v11446 = vsel %vm11438, %v11429, %v11445
  %v11447 = vsel %vm11437, %v11444, %v11446
  %v11448 = vsel %vm11436, %v11426, %v11429
  %v11449 = vsel %vm11439, %v11435, 1326507024
  %v11450 = vsel %vm11438, %v11432, %v11449
  %v11451 = vsel %vm11437, %v11448, %v11450
  %v11452 = vshll.u32 %v11412, 8
  %v11453 = vmul.u32.u64.compose %v11452, %v11451
  %v11454 = vextract.low.u32 %v11453
  %v11455 = vextract.high.u32 %v11453
  %v11456 = vmul.u32.u64.compose %v11452, %v11447
  %v11457 = vextract.low.u32 %v11456
  %v11458 = vextract.high.u32 %v11456
  %v11459 = vmul.u32 %v11452, %v11443
  %v11460 = vadd.s32 %v11455, %v11457
  %vm11461 = vc.u32 %v11455, %v11457
  %v11462 = vadd.s32 %v11458, 1
  %v11463 = vsel %vm11461, %v11462, %v11458
  %v11464 = vadd.s32 %v11459, %v11463
  %v11465 = vadd.s32 %v11464, 536870912
  %v11466 = vshrl.u32 %v11465, 30
  %v11467 = vshll.u32 %v11466, 30
  %v11468 = vsub.s32 %v11464, %v11467
  %vm11469 = vcmp.lt.s32.totalorder %v11468, 0
  %v11470 = vsub.s32 0, %v11468
  %v11471 = vsel %vm11469, %v11470, %v11468
  %v11472 = vclz %v11471
  %v11473 = vsub.s32 %v11472, 2
  %vm11474 = vcmp.gt.s32.totalorder 0, %v11473
  %v11475 = vsel %vm11474, 0, %v11473
  %v11476 = vsub.s32 32, %v11475
  %v11477 = vshll.u32 %v11468, %v11475
  %v11478 = vshrl.u32 %v11460, %v11476
  %v11479 = vor.u32 %v11477, %v11478
  %v11480 = vsub.s32 4294967266, %v11475
  %v11481 = vadd.s32 %v11480, 127
  %v11482 = vshll.u32 %v11481, 23
  %v11483 = vor.u32 4788187, %v11482
  %v11484 = vand.u32 2147483647, %v11483
  %v11486 = vcvt.s32.f32 %v11479
  %v11487 = vmul.f32 %v11486, %v11484
  %v11488 = vxor.u32 %v11487, 2147483648
  %v11489 = vsel %vm11406, %v11488, %v11487
  %v11490 = vsub.s32 4, %v11466
  %v11491 = vsel %vm11406, %v11490, %v11466
  %v11492 = vsel %vm11405, %v9462, %v11489
  %v11493 = vsel %vm11405, 0, %v11491
  %v11494 = vcosq.f32.pop %v11492
  %v11495 = vsinq.f32.pop %v11492
  %vm11496 = vweird.f32 %v9462
  %v11497 = vadd.s32 %v11493, 3
  %v11498 = vand.u32 %v11497, 3
  %vm11499 = vcmp.lt.s32.totalorder %v11498, 2
  %vm11500 = vcmp.eq.s32.totalorder %v11498, 0
  %v11501 = vxor.u32 %v11495, 2147483648
  %v11502 = vsel %vm11500, %v11494, %v11501
  %vm11503 = vcmp.eq.s32.totalorder %v11498, 2
  %v11504 = vxor.u32 %v11494, 2147483648
  %v11505 = vsel %vm11503, %v11504, %v11495
  %v11506 = vsel %vm11499, %v11502, %v11505
  %v11507 = vsel %vm11496, nan, %v11506
  %v11508 = vand.u32 2147483647, %v9464
  %vm11509 = vcmp.le.f32.partialorder %v11508, 0.7853982
  %vm11510 = vcmp.lt.s32.totalorder %v9464, 0
  %v11511 = vand.u32 %v9464, 2139095040
  %v11512 = vshrl.u32 %v11511, 23
  %v11513 = vsub.s32 %v11512, 127
  %v11514 = vand.u32 2147483647, %v9464
  %v11515 = vand.u32 %v11514, 8388607
  %v11516 = vor.u32 %v11515, 8388608
  %v11517 = vsub.s32 0, %v11516
  %v11518 = vadd.s32 %v11513, 1
  %vm11519 = vcmp.gt.s32.totalorder %v11518, 0
  %v11520 = vsel %vm11519, %v11518, 0
  %v11521 = vshrl.u32 %v11520, 5
  %v11522 = vand.u32 %v11520, 31
  %v11523 = vsub.s32 32, %v11522
  %v11524 = vshrl.u32 683565275, %v11523
  %v11525 = vshll.u32 683565275, %v11522
  %v11526 = vshrl.u32 2475754826, %v11523
  %v11527 = vor.u32 %v11525, %v11526
  %v11528 = vshll.u32 2475754826, %v11522
  %v11529 = vshrl.u32 2131351028, %v11523
  %v11530 = vor.u32 %v11528, %v11529
  %v11531 = vshll.u32 2131351028, %v11522
  %v11532 = vshrl.u32 2102212464, %v11523
  %v11533 = vor.u32 %v11531, %v11532
  %v11534 = vshll.u32 2102212464, %v11522
  %v11535 = vshrl.u32 920167782, %v11523
  %v11536 = vor.u32 %v11534, %v11535
  %v11537 = vshll.u32 920167782, %v11522
  %v11538 = vshrl.u32 1326507024, %v11523
  %v11539 = vor.u32 %v11537, %v11538
  %vm11540 = vcmp.lt.s32.totalorder %v11521, 1
  %vm11541 = vcmp.lt.s32.totalorder %v11521, 2
  %vm11542 = vcmp.lt.s32.totalorder %v11521, 3
  %vm11543 = vcmp.lt.s32.totalorder %v11521, 4
  %v11544 = vsel %vm11540, %v11524, %v11527
  %v11545 = vsel %vm11543, %v11533, 2102212464
  %v11546 = vsel %vm11542, %v11530, %v11545
  %v11547 = vsel %vm11541, %v11544, %v11546
  %v11548 = vsel %vm11540, %v11527, %v11530
  %v11549 = vsel %vm11543, %v11536, 920167782
  %v11550 = vsel %vm11542, %v11533, %v11549
  %v11551 = vsel %vm11541, %v11548, %v11550
  %v11552 = vsel %vm11540, %v11530, %v11533
  %v11553 = vsel %vm11543, %v11539, 1326507024
  %v11554 = vsel %vm11542, %v11536, %v11553
  %v11555 = vsel %vm11541, %v11552, %v11554
  %v11556 = vshll.u32 %v11516, 8
  %v11557 = vmul.u32.u64.compose %v11556, %v11555
  %v11558 = vextract.low.u32 %v11557
  %v11559 = vextract.high.u32 %v11557
  %v11560 = vmul.u32.u64.compose %v11556, %v11551
  %v11561 = vextract.low.u32 %v11560
  %v11562 = vextract.high.u32 %v11560
  %v11563 = vmul.u32 %v11556, %v11547
  %v11564 = vadd.s32 %v11559, %v11561
  %vm11565 = vc.u32 %v11559, %v11561
  %v11566 = vadd.s32 %v11562, 1
  %v11567 = vsel %vm11565, %v11566, %v11562
  %v11568 = vadd.s32 %v11563, %v11567
  %v11569 = vadd.s32 %v11568, 536870912
  %v11570 = vshrl.u32 %v11569, 30
  %v11571 = vshll.u32 %v11570, 30
  %v11572 = vsub.s32 %v11568, %v11571
  %vm11573 = vcmp.lt.s32.totalorder %v11572, 0
  %v11574 = vsub.s32 0, %v11572
  %v11575 = vsel %vm11573, %v11574, %v11572
  %v11576 = vclz %v11575
  %v11577 = vsub.s32 %v11576, 2
  %vm11578 = vcmp.gt.s32.totalorder 0, %v11577
  %v11579 = vsel %vm11578, 0, %v11577
  %v11580 = vsub.s32 32, %v11579
  %v11581 = vshll.u32 %v11572, %v11579
  %v11582 = vshrl.u32 %v11564, %v11580
  %v11583 = vor.u32 %v11581, %v11582
  %v11584 = vsub.s32 4294967266, %v11579
  %v11585 = vadd.s32 %v11584, 127
  %v11586 = vshll.u32 %v11585, 23
  %v11587 = vor.u32 4788187, %v11586
  %v11588 = vand.u32 2147483647, %v11587
  %v11590 = vcvt.s32.f32 %v11583
  %v11591 = vmul.f32 %v11590, %v11588
  %v11592 = vxor.u32 %v11591, 2147483648
  %v11593 = vsel %vm11510, %v11592, %v11591
  %v11594 = vsub.s32 4, %v11570
  %v11595 = vsel %vm11510, %v11594, %v11570
  %v11596 = vsel %vm11509, %v9464, %v11593
  %v11597 = vsel %vm11509, 0, %v11595
  %v11598 = vcosq.f32.pop %v11596
  %v11599 = vsinq.f32.pop %v11596
  %vm11600 = vweird.f32 %v9464
  %v11601 = vadd.s32 %v11597, 3
  %v11602 = vand.u32 %v11601, 3
  %vm11603 = vcmp.lt.s32.totalorder %v11602, 2
  %vm11604 = vcmp.eq.s32.totalorder %v11602, 0
  %v11605 = vxor.u32 %v11599, 2147483648
  %v11606 = vsel %vm11604, %v11598, %v11605
  %vm11607 = vcmp.eq.s32.totalorder %v11602, 2
  %v11608 = vxor.u32 %v11598, 2147483648
  %v11609 = vsel %vm11607, %v11608, %v11599
  %v11610 = vsel %vm11603, %v11606, %v11609
  %v11611 = vsel %vm11600, nan, %v11610
  %v11612 = vand.u32 2147483647, %v10152
  %vm11613 = vcmp.le.f32.partialorder %v11612, 0.7853982
  %vm11614 = vcmp.lt.s32.totalorder %v10152, 0
  %v11615 = vand.u32 %v10152, 2139095040
  %v11616 = vshrl.u32 %v11615, 23
  %v11617 = vsub.s32 %v11616, 127
  %v11618 = vand.u32 2147483647, %v10152
  %v11619 = vand.u32 %v11618, 8388607
  %v11620 = vor.u32 %v11619, 8388608
  %v11621 = vsub.s32 0, %v11620
  %v11622 = vadd.s32 %v11617, 1
  %vm11623 = vcmp.gt.s32.totalorder %v11622, 0
  %v11624 = vsel %vm11623, %v11622, 0
  %v11625 = vshrl.u32 %v11624, 5
  %v11626 = vand.u32 %v11624, 31
  %v11627 = vsub.s32 32, %v11626
  %v11628 = vshrl.u32 683565275, %v11627
  %v11629 = vshll.u32 683565275, %v11626
  %v11630 = vshrl.u32 2475754826, %v11627
  %v11631 = vor.u32 %v11629, %v11630
  %v11632 = vshll.u32 2475754826, %v11626
  %v11633 = vshrl.u32 2131351028, %v11627
  %v11634 = vor.u32 %v11632, %v11633
  %v11635 = vshll.u32 2131351028, %v11626
  %v11636 = vshrl.u32 2102212464, %v11627
  %v11637 = vor.u32 %v11635, %v11636
  %v11638 = vshll.u32 2102212464, %v11626
  %v11639 = vshrl.u32 920167782, %v11627
  %v11640 = vor.u32 %v11638, %v11639
  %v11641 = vshll.u32 920167782, %v11626
  %v11642 = vshrl.u32 1326507024, %v11627
  %v11643 = vor.u32 %v11641, %v11642
  %vm11644 = vcmp.lt.s32.totalorder %v11625, 1
  %vm11645 = vcmp.lt.s32.totalorder %v11625, 2
  %vm11646 = vcmp.lt.s32.totalorder %v11625, 3
  %vm11647 = vcmp.lt.s32.totalorder %v11625, 4
  %v11648 = vsel %vm11644, %v11628, %v11631
  %v11649 = vsel %vm11647, %v11637, 2102212464
  %v11650 = vsel %vm11646, %v11634, %v11649
  %v11651 = vsel %vm11645, %v11648, %v11650
  %v11652 = vsel %vm11644, %v11631, %v11634
  %v11653 = vsel %vm11647, %v11640, 920167782
  %v11654 = vsel %vm11646, %v11637, %v11653
  %v11655 = vsel %vm11645, %v11652, %v11654
  %v11656 = vsel %vm11644, %v11634, %v11637
  %v11657 = vsel %vm11647, %v11643, 1326507024
  %v11658 = vsel %vm11646, %v11640, %v11657
  %v11659 = vsel %vm11645, %v11656, %v11658
  %v11660 = vshll.u32 %v11620, 8
  %v11661 = vmul.u32.u64.compose %v11660, %v11659
  %v11662 = vextract.low.u32 %v11661
  %v11663 = vextract.high.u32 %v11661
  %v11664 = vmul.u32.u64.compose %v11660, %v11655
  %v11665 = vextract.low.u32 %v11664
  %v11666 = vextract.high.u32 %v11664
  %v11667 = vmul.u32 %v11660, %v11651
  %v11668 = vadd.s32 %v11663, %v11665
  %vm11669 = vc.u32 %v11663, %v11665
  %v11670 = vadd.s32 %v11666, 1
  %v11671 = vsel %vm11669, %v11670, %v11666
  %v11672 = vadd.s32 %v11667, %v11671
  %v11673 = vadd.s32 %v11672, 536870912
  %v11674 = vshrl.u32 %v11673, 30
  %v11675 = vshll.u32 %v11674, 30
  %v11676 = vsub.s32 %v11672, %v11675
  %vm11677 = vcmp.lt.s32.totalorder %v11676, 0
  %v11678 = vsub.s32 0, %v11676
  %v11679 = vsel %vm11677, %v11678, %v11676
  %v11680 = vclz %v11679
  %v11681 = vsub.s32 %v11680, 2
  %vm11682 = vcmp.gt.s32.totalorder 0, %v11681
  %v11683 = vsel %vm11682, 0, %v11681
  %v11684 = vsub.s32 32, %v11683
  %v11685 = vshll.u32 %v11676, %v11683
  %v11686 = vshrl.u32 %v11668, %v11684
  %v11687 = vor.u32 %v11685, %v11686
  %v11688 = vsub.s32 4294967266, %v11683
  %v11689 = vadd.s32 %v11688, 127
  %v11690 = vshll.u32 %v11689, 23
  %v11691 = vor.u32 4788187, %v11690
  %v11692 = vand.u32 2147483647, %v11691
  %v11694 = vcvt.s32.f32 %v11687
  %v11695 = vmul.f32 %v11694, %v11692
  %v11696 = vxor.u32 %v11695, 2147483648
  %v11697 = vsel %vm11614, %v11696, %v11695
  %v11698 = vsub.s32 4, %v11674
  %v11699 = vsel %vm11614, %v11698, %v11674
  %v11700 = vsel %vm11613, %v10152, %v11697
  %v11701 = vsel %vm11613, 0, %v11699
  %v11702 = vcosq.f32.pop %v11700
  %v11703 = vsinq.f32.pop %v11700
  %vm11704 = vweird.f32 %v10152
  %v11705 = vadd.s32 %v11701, 3
  %v11706 = vand.u32 %v11705, 3
  %vm11707 = vcmp.lt.s32.totalorder %v11706, 2
  %vm11708 = vcmp.eq.s32.totalorder %v11706, 0
  %v11709 = vxor.u32 %v11703, 2147483648
  %v11710 = vsel %vm11708, %v11702, %v11709
  %vm11711 = vcmp.eq.s32.totalorder %v11706, 2
  %v11712 = vxor.u32 %v11702, 2147483648
  %v11713 = vsel %vm11711, %v11712, %v11703
  %v11714 = vsel %vm11707, %v11710, %v11713
  %v11715 = vsel %vm11704, nan, %v11714
  %v11716 = vand.u32 2147483647, %v10154
  %vm11717 = vcmp.le.f32.partialorder %v11716, 0.7853982
  %vm11718 = vcmp.lt.s32.totalorder %v10154, 0
  %v11719 = vand.u32 %v10154, 2139095040
  %v11720 = vshrl.u32 %v11719, 23
  %v11721 = vsub.s32 %v11720, 127
  %v11722 = vand.u32 2147483647, %v10154
  %v11723 = vand.u32 %v11722, 8388607
  %v11724 = vor.u32 %v11723, 8388608
  %v11725 = vsub.s32 0, %v11724
  %v11726 = vadd.s32 %v11721, 1
  %vm11727 = vcmp.gt.s32.totalorder %v11726, 0
  %v11728 = vsel %vm11727, %v11726, 0
  %v11729 = vshrl.u32 %v11728, 5
  %v11730 = vand.u32 %v11728, 31
  %v11731 = vsub.s32 32, %v11730
  %v11732 = vshrl.u32 683565275, %v11731
  %v11733 = vshll.u32 683565275, %v11730
  %v11734 = vshrl.u32 2475754826, %v11731
  %v11735 = vor.u32 %v11733, %v11734
  %v11736 = vshll.u32 2475754826, %v11730
  %v11737 = vshrl.u32 2131351028, %v11731
  %v11738 = vor.u32 %v11736, %v11737
  %v11739 = vshll.u32 2131351028, %v11730
  %v11740 = vshrl.u32 2102212464, %v11731
  %v11741 = vor.u32 %v11739, %v11740
  %v11742 = vshll.u32 2102212464, %v11730
  %v11743 = vshrl.u32 920167782, %v11731
  %v11744 = vor.u32 %v11742, %v11743
  %v11745 = vshll.u32 920167782, %v11730
  %v11746 = vshrl.u32 1326507024, %v11731
  %v11747 = vor.u32 %v11745, %v11746
  %vm11748 = vcmp.lt.s32.totalorder %v11729, 1
  %vm11749 = vcmp.lt.s32.totalorder %v11729, 2
  %vm11750 = vcmp.lt.s32.totalorder %v11729, 3
  %vm11751 = vcmp.lt.s32.totalorder %v11729, 4
  %v11752 = vsel %vm11748, %v11732, %v11735
  %v11753 = vsel %vm11751, %v11741, 2102212464
  %v11754 = vsel %vm11750, %v11738, %v11753
  %v11755 = vsel %vm11749, %v11752, %v11754
  %v11756 = vsel %vm11748, %v11735, %v11738
  %v11757 = vsel %vm11751, %v11744, 920167782
  %v11758 = vsel %vm11750, %v11741, %v11757
  %v11759 = vsel %vm11749, %v11756, %v11758
  %v11760 = vsel %vm11748, %v11738, %v11741
  %v11761 = vsel %vm11751, %v11747, 1326507024
  %v11762 = vsel %vm11750, %v11744, %v11761
  %v11763 = vsel %vm11749, %v11760, %v11762
  %v11764 = vshll.u32 %v11724, 8
  %v11765 = vmul.u32.u64.compose %v11764, %v11763
  %v11766 = vextract.low.u32 %v11765
  %v11767 = vextract.high.u32 %v11765
  %v11768 = vmul.u32.u64.compose %v11764, %v11759
  %v11769 = vextract.low.u32 %v11768
  %v11770 = vextract.high.u32 %v11768
  %v11771 = vmul.u32 %v11764, %v11755
  %v11772 = vadd.s32 %v11767, %v11769
  %vm11773 = vc.u32 %v11767, %v11769
  %v11774 = vadd.s32 %v11770, 1
  %v11775 = vsel %vm11773, %v11774, %v11770
  %v11776 = vadd.s32 %v11771, %v11775
  %v11777 = vadd.s32 %v11776, 536870912
  %v11778 = vshrl.u32 %v11777, 30
  %v11779 = vshll.u32 %v11778, 30
  %v11780 = vsub.s32 %v11776, %v11779
  %vm11781 = vcmp.lt.s32.totalorder %v11780, 0
  %v11782 = vsub.s32 0, %v11780
  %v11783 = vsel %vm11781, %v11782, %v11780
  %v11784 = vclz %v11783
  %v11785 = vsub.s32 %v11784, 2
  %vm11786 = vcmp.gt.s32.totalorder 0, %v11785
  %v11787 = vsel %vm11786, 0, %v11785
  %v11788 = vsub.s32 32, %v11787
  %v11789 = vshll.u32 %v11780, %v11787
  %v11790 = vshrl.u32 %v11772, %v11788
  %v11791 = vor.u32 %v11789, %v11790
  %v11792 = vsub.s32 4294967266, %v11787
  %v11793 = vadd.s32 %v11792, 127
  %v11794 = vshll.u32 %v11793, 23
  %v11795 = vor.u32 4788187, %v11794
  %v11796 = vand.u32 2147483647, %v11795
  %v11798 = vcvt.s32.f32 %v11791
  %v11799 = vmul.f32 %v11798, %v11796
  %v11800 = vxor.u32 %v11799, 2147483648
  %v11801 = vsel %vm11718, %v11800, %v11799
  %v11802 = vsub.s32 4, %v11778
  %v11803 = vsel %vm11718, %v11802, %v11778
  %v11804 = vsel %vm11717, %v10154, %v11801
  %v11805 = vsel %vm11717, 0, %v11803
  %v11806 = vcosq.f32.pop %v11804
  %v11807 = vsinq.f32.pop %v11804
  %vm11808 = vweird.f32 %v10154
  %v11809 = vadd.s32 %v11805, 3
  %v11810 = vand.u32 %v11809, 3
  %vm11811 = vcmp.lt.s32.totalorder %v11810, 2
  %vm11812 = vcmp.eq.s32.totalorder %v11810, 0
  %v11813 = vxor.u32 %v11807, 2147483648
  %v11814 = vsel %vm11812, %v11806, %v11813
  %vm11815 = vcmp.eq.s32.totalorder %v11810, 2
  %v11816 = vxor.u32 %v11806, 2147483648
  %v11817 = vsel %vm11815, %v11816, %v11807
  %v11818 = vsel %vm11811, %v11814, %v11817
  %v11819 = vsel %vm11808, nan, %v11818
  %v11820 = vld [vmem:[%s7] sm:$0xf]
  %v11821 = vld [vmem:[%s8] sm:$0xf]
  %11823 = vset.pattern.permute.xlu0 0
  %11824 = vperm.xlu0 %11823, %v11821
  %v11825 = vpop.permute.xlu0 %11824
  %v11828 = vsel %vm3521, %v11820, 0
  %v11830 = vand.u32 %v10363, 4294901760
  %11831 = vmatprep.subr.mxu0 %v11830
  %v11832 = vand.u32 %v10259, 4294901760
  %11833 = vmatpush1.msra.mxu0 %v11832
  %v11834 = vand.u32 %v10779, 4294901760
  %11835 = vmatprep.subr.mxu0 %v11834
  %v11836 = vand.u32 %v10675, 4294901760
  %11837 = vmatpush1.msra.mxu0 %v11836
  %v11838 = vand.u32 %v11195, 4294901760
  %11839 = vmatprep.subr.mxu0 %v11838
  %v11840 = vand.u32 %v11091, 4294901760
  %11841 = vmatpush1.msra.mxu0 %v11840
  %v11842 = vand.u32 %v11611, 4294901760
  %11843 = vmatprep.subr.mxu0 %v11842
  %v11844 = vand.u32 %v11507, 4294901760
  %11845 = vmatpush1.msra.mxu0 %v11844
  %11846 = vmatprep.subr.mxu0 0.0
  %11847 = vmatpush1.msra.mxu0 0.0
  %11848 = vmatprep.subr.mxu0 0.0
  %11849 = vmatpush1.msra.mxu0 0.0
  %11850 = vmatprep.subr.mxu0 0.0
  %11851 = vmatpush1.msra.mxu0 0.0
  %11852 = vmatprep.subr.mxu0 0.0
  %11853 = vmatpush1.msra.mxu0 0.0
  %11854 = vmatprep.subr.mxu0 0.0
  %11855 = vmatpush1.msra.mxu0 0.0
  %11856 = vmatprep.subr.mxu0 0.0
  %11857 = vmatpush1.msra.mxu0 0.0
  %11858 = vmatprep.subr.mxu0 0.0
  %11859 = vmatpush1.msra.mxu0 0.0
  %11860 = vmatprep.subr.mxu0 0.0
  %11861 = vmatpush1.msra.mxu0 0.0
  %11862 = vmatprep.subr.mxu0 0.0
  %11863 = vmatpush1.msra.mxu0 0.0
  %11864 = vmatprep.subr.mxu0 0.0
  %11865 = vmatpush1.msra.mxu0 0.0
  %11866 = vmatprep.subr.mxu0 0.0
  %11867 = vmatpush1.msra.mxu0 0.0
  %11868 = vmatprep.subr.mxu0 0.0
  %11869 = vmatpush1.msra.mxu0 0.0
  %11870 = vmatprep.subr.mxu0 0.0
  %11871 = vmatpush1.msra.mxu0 0.0
  %11872 = vmatprep.subr.mxu0 0.0
  %11873 = vmatpush1.msra.mxu0 0.0
  %11874 = vmatprep.subr.mxu0 0.0
  %11875 = vmatpush1.msra.mxu0 0.0
  %11876 = vmatprep.subr.mxu0 0.0
  %11877 = vmatpush1.msra.mxu0 0.0
  %11878 = vmatprep.subr.mxu0 0.0
  %11879 = vmatpush1.msra.mxu0 0.0
  %11880 = vmatprep.subr.mxu0 0.0
  %11881 = vmatpush1.msra.mxu0 0.0
  %11882 = vmatprep.subr.mxu0 0.0
  %11883 = vmatpush1.msra.mxu0 0.0
  %11884 = vmatprep.subr.mxu0 0.0
  %11885 = vmatpush1.msra.mxu0 0.0
  %11886 = vmatprep.subr.mxu0 0.0
  %11887 = vmatpush1.msra.mxu0 0.0
  %11888 = vmatprep.subr.mxu0 0.0
  %11889 = vmatpush1.msra.mxu0 0.0
  %11890 = vmatprep.subr.mxu0 0.0
  %11891 = vmatpush1.msra.mxu0 0.0
  %11892 = vmatprep.subr.mxu0 0.0
  %11893 = vmatpush1.msra.mxu0 0.0
  %11894 = vmatprep.subr.mxu0 0.0
  %11895 = vmatpush1.msra.mxu0 0.0
  %11896 = vmatprep.subr.mxu0 0.0
  %11897 = vmatpush1.msra.mxu0 0.0
  %11898 = vmatprep.subr.mxu0 0.0
  %11899 = vmatpush1.msra.mxu0 0.0
  %11900 = vmatprep.subr.mxu0 0.0
  %11901 = vmatpush1.msra.mxu0 0.0
  %11902 = vmatprep.mubr.f32.mxu0 0.0
  %v11903 = vand.u32 %v11828, 4294901760
  %v11904 = vsub.f32 %v11828, %v11903
  %v11905 = vand.u32 %v11904, 4294901760
  %v11906 = vsub.f32 %v11904, %v11905
  %v11907 = vand.u32 %v11906, 4294901760
  %11908 = vmatmul.mubr.f32.gmra.mrb[0].mxu0 %v11907
  %v11909 = vpop.f32.mrb[0].mxu0
  %v11910 = vadd.f32 %v11825, %v11909
  %v11911 = vpop.f32.mrb[0].mxu0
  %v11912 = vadd.f32 %v11825, %v11911
  %11913 = vdwg.mxu0
  %v11914 = vand.u32 %v10363, 4294901760
  %v11915 = vsub.f32 %v10363, %v11914
  %v11916 = vand.u32 %v11915, 4294901760
  %v11917 = vsub.f32 %v11915, %v11916
  %v11918 = vand.u32 %v11917, 4294901760
  %11919 = vmatprep.subr.mxu0 %v11918
  %v11920 = vand.u32 %v10259, 4294901760
  %v11921 = vsub.f32 %v10259, %v11920
  %v11922 = vand.u32 %v11921, 4294901760
  %v11923 = vsub.f32 %v11921, %v11922
  %v11924 = vand.u32 %v11923, 4294901760
  %11925 = vmatpush1.msra.mxu0 %v11924
  %v11926 = vand.u32 %v10779, 4294901760
  %v11927 = vsub.f32 %v10779, %v11926
  %v11928 = vand.u32 %v11927, 4294901760
  %v11929 = vsub.f32 %v11927, %v11928
  %v11930 = vand.u32 %v11929, 4294901760
  %11931 = vmatprep.subr.mxu0 %v11930
  %v11932 = vand.u32 %v10675, 4294901760
  %v11933 = vsub.f32 %v10675, %v11932
  %v11934 = vand.u32 %v11933, 4294901760
  %v11935 = vsub.f32 %v11933, %v11934
  %v11936 = vand.u32 %v11935, 4294901760
  %11937 = vmatpush1.msra.mxu0 %v11936
  %v11938 = vand.u32 %v11195, 4294901760
  %v11939 = vsub.f32 %v11195, %v11938
  %v11940 = vand.u32 %v11939, 4294901760
  %v11941 = vsub.f32 %v11939, %v11940
  %v11942 = vand.u32 %v11941, 4294901760
  %11943 = vmatprep.subr.mxu0 %v11942
  %v11944 = vand.u32 %v11091, 4294901760
  %v11945 = vsub.f32 %v11091, %v11944
  %v11946 = vand.u32 %v11945, 4294901760
  %v11947 = vsub.f32 %v11945, %v11946
  %v11948 = vand.u32 %v11947, 4294901760
  %11949 = vmatpush1.msra.mxu0 %v11948
  %v11950 = vand.u32 %v11611, 4294901760
  %v11951 = vsub.f32 %v11611, %v11950
  %v11952 = vand.u32 %v11951, 4294901760
  %v11953 = vsub.f32 %v11951, %v11952
  %v11954 = vand.u32 %v11953, 4294901760
  %11955 = vmatprep.subr.mxu0 %v11954
  %v11956 = vand.u32 %v11507, 4294901760
  %v11957 = vsub.f32 %v11507, %v11956
  %v11958 = vand.u32 %v11957, 4294901760
  %v11959 = vsub.f32 %v11957, %v11958
  %v11960 = vand.u32 %v11959, 4294901760
  %11961 = vmatpush1.msra.mxu0 %v11960
  %11962 = vmatprep.subr.mxu0 0.0
  %11963 = vmatpush1.msra.mxu0 0.0
  %11964 = vmatprep.subr.mxu0 0.0
  %11965 = vmatpush1.msra.mxu0 0.0
  %11966 = vmatprep.subr.mxu0 0.0
  %11967 = vmatpush1.msra.mxu0 0.0
  %11968 = vmatprep.subr.mxu0 0.0
  %11969 = vmatpush1.msra.mxu0 0.0
  %11970 = vmatprep.subr.mxu0 0.0
  %11971 = vmatpush1.msra.mxu0 0.0
  %11972 = vmatprep.subr.mxu0 0.0
  %11973 = vmatpush1.msra.mxu0 0.0
  %11974 = vmatprep.subr.mxu0 0.0
  %11975 = vmatpush1.msra.mxu0 0.0
  %11976 = vmatprep.subr.mxu0 0.0
  %11977 = vmatpush1.msra.mxu0 0.0
  %11978 = vmatprep.subr.mxu0 0.0
  %11979 = vmatpush1.msra.mxu0 0.0
  %11980 = vmatprep.subr.mxu0 0.0
  %11981 = vmatpush1.msra.mxu0 0.0
  %11982 = vmatprep.subr.mxu0 0.0
  %11983 = vmatpush1.msra.mxu0 0.0
  %11984 = vmatprep.subr.mxu0 0.0
  %11985 = vmatpush1.msra.mxu0 0.0
  %11986 = vmatprep.subr.mxu0 0.0
  %11987 = vmatpush1.msra.mxu0 0.0
  %11988 = vmatprep.subr.mxu0 0.0
  %11989 = vmatpush1.msra.mxu0 0.0
  %11990 = vmatprep.subr.mxu0 0.0
  %11991 = vmatpush1.msra.mxu0 0.0
  %11992 = vmatprep.subr.mxu0 0.0
  %11993 = vmatpush1.msra.mxu0 0.0
  %11994 = vmatprep.subr.mxu0 0.0
  %11995 = vmatpush1.msra.mxu0 0.0
  %11996 = vmatprep.subr.mxu0 0.0
  %11997 = vmatpush1.msra.mxu0 0.0
  %11998 = vmatprep.subr.mxu0 0.0
  %11999 = vmatpush1.msra.mxu0 0.0
  %12000 = vmatprep.subr.mxu0 0.0
  %12001 = vmatpush1.msra.mxu0 0.0
  %12002 = vmatprep.subr.mxu0 0.0
  %12003 = vmatpush1.msra.mxu0 0.0
  %12004 = vmatprep.subr.mxu0 0.0
  %12005 = vmatpush1.msra.mxu0 0.0
  %12006 = vmatprep.subr.mxu0 0.0
  %12007 = vmatpush1.msra.mxu0 0.0
  %12008 = vmatprep.subr.mxu0 0.0
  %12009 = vmatpush1.msra.mxu0 0.0
  %12010 = vmatprep.subr.mxu0 0.0
  %12011 = vmatpush1.msra.mxu0 0.0
  %12012 = vmatprep.subr.mxu0 0.0
  %12013 = vmatpush1.msra.mxu0 0.0
  %12014 = vmatprep.subr.mxu0 0.0
  %12015 = vmatpush1.msra.mxu0 0.0
  %12016 = vmatprep.subr.mxu0 0.0
  %12017 = vmatpush1.msra.mxu0 0.0
  %12018 = vmatprep.mubr.f32.mxu0 0.0
  %v12019 = vand.u32 %v11828, 4294901760
  %12020 = vmatmul.mubr.f32.gmra.mrb[0].mxu0 %v12019
  %v12021 = vpop.f32.mrb[0].mxu0
  %v12022 = vadd.f32 %v11910, %v12021
  %v12023 = vpop.f32.mrb[0].mxu0
  %v12024 = vadd.f32 %v11912, %v12023
  %12025 = vdwg.mxu0
  %v12026 = vand.u32 %v10363, 4294901760
  %v12027 = vsub.f32 %v10363, %v12026
  %12028 = vmatprep.subr.mxu0 %v12027
  %v12029 = vand.u32 %v10259, 4294901760
  %v12030 = vsub.f32 %v10259, %v12029
  %12031 = vmatpush1.msra.mxu0 %v12030
  %v12032 = vand.u32 %v10779, 4294901760
  %v12033 = vsub.f32 %v10779, %v12032
  %12034 = vmatprep.subr.mxu0 %v12033
  %v12035 = vand.u32 %v10675, 4294901760
  %v12036 = vsub.f32 %v10675, %v12035
  %12037 = vmatpush1.msra.mxu0 %v12036
  %v12038 = vand.u32 %v11195, 4294901760
  %v12039 = vsub.f32 %v11195, %v12038
  %12040 = vmatprep.subr.mxu0 %v12039
  %v12041 = vand.u32 %v11091, 4294901760
  %v12042 = vsub.f32 %v11091, %v12041
  %12043 = vmatpush1.msra.mxu0 %v12042
  %v12044 = vand.u32 %v11611, 4294901760
  %v12045 = vsub.f32 %v11611, %v12044
  %12046 = vmatprep.subr.mxu0 %v12045
  %v12047 = vand.u32 %v11507, 4294901760
  %v12048 = vsub.f32 %v11507, %v12047
  %12049 = vmatpush1.msra.mxu0 %v12048
  %12050 = vmatprep.subr.mxu0 0.0
  %12051 = vmatpush1.msra.mxu0 0.0
  %12052 = vmatprep.subr.mxu0 0.0
  %12053 = vmatpush1.msra.mxu0 0.0
  %12054 = vmatprep.subr.mxu0 0.0
  %12055 = vmatpush1.msra.mxu0 0.0
  %12056 = vmatprep.subr.mxu0 0.0
  %12057 = vmatpush1.msra.mxu0 0.0
  %12058 = vmatprep.subr.mxu0 0.0
  %12059 = vmatpush1.msra.mxu0 0.0
  %12060 = vmatprep.subr.mxu0 0.0
  %12061 = vmatpush1.msra.mxu0 0.0
  %12062 = vmatprep.subr.mxu0 0.0
  %12063 = vmatpush1.msra.mxu0 0.0
  %12064 = vmatprep.subr.mxu0 0.0
  %12065 = vmatpush1.msra.mxu0 0.0
  %12066 = vmatprep.subr.mxu0 0.0
  %12067 = vmatpush1.msra.mxu0 0.0
  %12068 = vmatprep.subr.mxu0 0.0
  %12069 = vmatpush1.msra.mxu0 0.0
  %12070 = vmatprep.subr.mxu0 0.0
  %12071 = vmatpush1.msra.mxu0 0.0
  %12072 = vmatprep.subr.mxu0 0.0
  %12073 = vmatpush1.msra.mxu0 0.0
  %12074 = vmatprep.subr.mxu0 0.0
  %12075 = vmatpush1.msra.mxu0 0.0
  %12076 = vmatprep.subr.mxu0 0.0
  %12077 = vmatpush1.msra.mxu0 0.0
  %12078 = vmatprep.subr.mxu0 0.0
  %12079 = vmatpush1.msra.mxu0 0.0
  %12080 = vmatprep.subr.mxu0 0.0
  %12081 = vmatpush1.msra.mxu0 0.0
  %12082 = vmatprep.subr.mxu0 0.0
  %12083 = vmatpush1.msra.mxu0 0.0
  %12084 = vmatprep.subr.mxu0 0.0
  %12085 = vmatpush1.msra.mxu0 0.0
  %12086 = vmatprep.subr.mxu0 0.0
  %12087 = vmatpush1.msra.mxu0 0.0
  %12088 = vmatprep.subr.mxu0 0.0
  %12089 = vmatpush1.msra.mxu0 0.0
  %12090 = vmatprep.subr.mxu0 0.0
  %12091 = vmatpush1.msra.mxu0 0.0
  %12092 = vmatprep.subr.mxu0 0.0
  %12093 = vmatpush1.msra.mxu0 0.0
  %12094 = vmatprep.subr.mxu0 0.0
  %12095 = vmatpush1.msra.mxu0 0.0
  %12096 = vmatprep.subr.mxu0 0.0
  %12097 = vmatpush1.msra.mxu0 0.0
  %12098 = vmatprep.subr.mxu0 0.0
  %12099 = vmatpush1.msra.mxu0 0.0
  %12100 = vmatprep.subr.mxu0 0.0
  %12101 = vmatpush1.msra.mxu0 0.0
  %12102 = vmatprep.subr.mxu0 0.0
  %12103 = vmatpush1.msra.mxu0 0.0
  %12104 = vmatprep.subr.mxu0 0.0
  %12105 = vmatpush1.msra.mxu0 0.0
  %12106 = vmatprep.mubr.f32.mxu0 0.0
  %v12107 = vand.u32 %v11828, 4294901760
  %v12108 = vsub.f32 %v11828, %v12107
  %12109 = vmatmul.mubr.f32.gmra.mrb[0].mxu0 %v12108
  %v12110 = vpop.f32.mrb[0].mxu0
  %v12111 = vadd.f32 %v12022, %v12110
  %v12112 = vpop.f32.mrb[0].mxu0
  %v12113 = vadd.f32 %v12024, %v12112
  %12114 = vdwg.mxu0
  %v12115 = vand.u32 %v10363, 4294901760
  %12116 = vmatprep.subr.mxu0 %v12115
  %v12117 = vand.u32 %v10259, 4294901760
  %12118 = vmatpush1.msra.mxu0 %v12117
  %v12119 = vand.u32 %v10779, 4294901760
  %12120 = vmatprep.subr.mxu0 %v12119
  %v12121 = vand.u32 %v10675, 4294901760
  %12122 = vmatpush1.msra.mxu0 %v12121
  %v12123 = vand.u32 %v11195, 4294901760
  %12124 = vmatprep.subr.mxu0 %v12123
  %v12125 = vand.u32 %v11091, 4294901760
  %12126 = vmatpush1.msra.mxu0 %v12125
  %v12127 = vand.u32 %v11611, 4294901760
  %12128 = vmatprep.subr.mxu0 %v12127
  %v12129 = vand.u32 %v11507, 4294901760
  %12130 = vmatpush1.msra.mxu0 %v12129
  %12131 = vmatprep.subr.mxu0 0.0
  %12132 = vmatpush1.msra.mxu0 0.0
  %12133 = vmatprep.subr.mxu0 0.0
  %12134 = vmatpush1.msra.mxu0 0.0
  %12135 = vmatprep.subr.mxu0 0.0
  %12136 = vmatpush1.msra.mxu0 0.0
  %12137 = vmatprep.subr.mxu0 0.0
  %12138 = vmatpush1.msra.mxu0 0.0
  %12139 = vmatprep.subr.mxu0 0.0
  %12140 = vmatpush1.msra.mxu0 0.0
  %12141 = vmatprep.subr.mxu0 0.0
  %12142 = vmatpush1.msra.mxu0 0.0
  %12143 = vmatprep.subr.mxu0 0.0
  %12144 = vmatpush1.msra.mxu0 0.0
  %12145 = vmatprep.subr.mxu0 0.0
  %12146 = vmatpush1.msra.mxu0 0.0
  %12147 = vmatprep.subr.mxu0 0.0
  %12148 = vmatpush1.msra.mxu0 0.0
  %12149 = vmatprep.subr.mxu0 0.0
  %12150 = vmatpush1.msra.mxu0 0.0
  %12151 = vmatprep.subr.mxu0 0.0
  %12152 = vmatpush1.msra.mxu0 0.0
  %12153 = vmatprep.subr.mxu0 0.0
  %12154 = vmatpush1.msra.mxu0 0.0
  %12155 = vmatprep.subr.mxu0 0.0
  %12156 = vmatpush1.msra.mxu0 0.0
  %12157 = vmatprep.subr.mxu0 0.0
  %12158 = vmatpush1.msra.mxu0 0.0
  %12159 = vmatprep.subr.mxu0 0.0
  %12160 = vmatpush1.msra.mxu0 0.0
  %12161 = vmatprep.subr.mxu0 0.0
  %12162 = vmatpush1.msra.mxu0 0.0
  %12163 = vmatprep.subr.mxu0 0.0
  %12164 = vmatpush1.msra.mxu0 0.0
  %12165 = vmatprep.subr.mxu0 0.0
  %12166 = vmatpush1.msra.mxu0 0.0
  %12167 = vmatprep.subr.mxu0 0.0
  %12168 = vmatpush1.msra.mxu0 0.0
  %12169 = vmatprep.subr.mxu0 0.0
  %12170 = vmatpush1.msra.mxu0 0.0
  %12171 = vmatprep.subr.mxu0 0.0
  %12172 = vmatpush1.msra.mxu0 0.0
  %12173 = vmatprep.subr.mxu0 0.0
  %12174 = vmatpush1.msra.mxu0 0.0
  %12175 = vmatprep.subr.mxu0 0.0
  %12176 = vmatpush1.msra.mxu0 0.0
  %12177 = vmatprep.subr.mxu0 0.0
  %12178 = vmatpush1.msra.mxu0 0.0
  %12179 = vmatprep.subr.mxu0 0.0
  %12180 = vmatpush1.msra.mxu0 0.0
  %12181 = vmatprep.subr.mxu0 0.0
  %12182 = vmatpush1.msra.mxu0 0.0
  %12183 = vmatprep.subr.mxu0 0.0
  %12184 = vmatpush1.msra.mxu0 0.0
  %12185 = vmatprep.subr.mxu0 0.0
  %12186 = vmatpush1.msra.mxu0 0.0
  %12187 = vmatprep.mubr.f32.mxu0 0.0
  %v12188 = vand.u32 %v11828, 4294901760
  %v12189 = vsub.f32 %v11828, %v12188
  %v12190 = vand.u32 %v12189, 4294901760
  %12191 = vmatmul.mubr.f32.gmra.mrb[0].mxu0 %v12190
  %v12192 = vpop.f32.mrb[0].mxu0
  %v12193 = vadd.f32 %v12111, %v12192
  %v12194 = vpop.f32.mrb[0].mxu0
  %v12195 = vadd.f32 %v12113, %v12194
  %12196 = vdwg.mxu0
  %v12197 = vand.u32 %v10363, 4294901760
  %v12198 = vsub.f32 %v10363, %v12197
  %v12199 = vand.u32 %v12198, 4294901760
  %12200 = vmatprep.subr.mxu0 %v12199
  %v12201 = vand.u32 %v10259, 4294901760
  %v12202 = vsub.f32 %v10259, %v12201
  %v12203 = vand.u32 %v12202, 4294901760
  %12204 = vmatpush1.msra.mxu0 %v12203
  %v12205 = vand.u32 %v10779, 4294901760
  %v12206 = vsub.f32 %v10779, %v12205
  %v12207 = vand.u32 %v12206, 4294901760
  %12208 = vmatprep.subr.mxu0 %v12207
  %v12209 = vand.u32 %v10675, 4294901760
  %v12210 = vsub.f32 %v10675, %v12209
  %v12211 = vand.u32 %v12210, 4294901760
  %12212 = vmatpush1.msra.mxu0 %v12211
  %v12213 = vand.u32 %v11195, 4294901760
  %v12214 = vsub.f32 %v11195, %v12213
  %v12215 = vand.u32 %v12214, 4294901760
  %12216 = vmatprep.subr.mxu0 %v12215
  %v12217 = vand.u32 %v11091, 4294901760
  %v12218 = vsub.f32 %v11091, %v12217
  %v12219 = vand.u32 %v12218, 4294901760
  %12220 = vmatpush1.msra.mxu0 %v12219
  %v12221 = vand.u32 %v11611, 4294901760
  %v12222 = vsub.f32 %v11611, %v12221
  %v12223 = vand.u32 %v12222, 4294901760
  %12224 = vmatprep.subr.mxu0 %v12223
  %v12225 = vand.u32 %v11507, 4294901760
  %v12226 = vsub.f32 %v11507, %v12225
  %v12227 = vand.u32 %v12226, 4294901760
  %12228 = vmatpush1.msra.mxu0 %v12227
  %12229 = vmatprep.subr.mxu0 0.0
  %12230 = vmatpush1.msra.mxu0 0.0
  %12231 = vmatprep.subr.mxu0 0.0
  %12232 = vmatpush1.msra.mxu0 0.0
  %12233 = vmatprep.subr.mxu0 0.0
  %12234 = vmatpush1.msra.mxu0 0.0
  %12235 = vmatprep.subr.mxu0 0.0
  %12236 = vmatpush1.msra.mxu0 0.0
  %12237 = vmatprep.subr.mxu0 0.0
  %12238 = vmatpush1.msra.mxu0 0.0
  %12239 = vmatprep.subr.mxu0 0.0
  %12240 = vmatpush1.msra.mxu0 0.0
  %12241 = vmatprep.subr.mxu0 0.0
  %12242 = vmatpush1.msra.mxu0 0.0
  %12243 = vmatprep.subr.mxu0 0.0
  %12244 = vmatpush1.msra.mxu0 0.0
  %12245 = vmatprep.subr.mxu0 0.0
  %12246 = vmatpush1.msra.mxu0 0.0
  %12247 = vmatprep.subr.mxu0 0.0
  %12248 = vmatpush1.msra.mxu0 0.0
  %12249 = vmatprep.subr.mxu0 0.0
  %12250 = vmatpush1.msra.mxu0 0.0
  %12251 = vmatprep.subr.mxu0 0.0
  %12252 = vmatpush1.msra.mxu0 0.0
  %12253 = vmatprep.subr.mxu0 0.0
  %12254 = vmatpush1.msra.mxu0 0.0
  %12255 = vmatprep.subr.mxu0 0.0
  %12256 = vmatpush1.msra.mxu0 0.0
  %12257 = vmatprep.subr.mxu0 0.0
  %12258 = vmatpush1.msra.mxu0 0.0
  %12259 = vmatprep.subr.mxu0 0.0
  %12260 = vmatpush1.msra.mxu0 0.0
  %12261 = vmatprep.subr.mxu0 0.0
  %12262 = vmatpush1.msra.mxu0 0.0
  %12263 = vmatprep.subr.mxu0 0.0
  %12264 = vmatpush1.msra.mxu0 0.0
  %12265 = vmatprep.subr.mxu0 0.0
  %12266 = vmatpush1.msra.mxu0 0.0
  %12267 = vmatprep.subr.mxu0 0.0
  %12268 = vmatpush1.msra.mxu0 0.0
  %12269 = vmatprep.subr.mxu0 0.0
  %12270 = vmatpush1.msra.mxu0 0.0
  %12271 = vmatprep.subr.mxu0 0.0
  %12272 = vmatpush1.msra.mxu0 0.0
  %12273 = vmatprep.subr.mxu0 0.0
  %12274 = vmatpush1.msra.mxu0 0.0
  %12275 = vmatprep.subr.mxu0 0.0
  %12276 = vmatpush1.msra.mxu0 0.0
  %12277 = vmatprep.subr.mxu0 0.0
  %12278 = vmatpush1.msra.mxu0 0.0
  %12279 = vmatprep.subr.mxu0 0.0
  %12280 = vmatpush1.msra.mxu0 0.0
  %12281 = vmatprep.subr.mxu0 0.0
  %12282 = vmatpush1.msra.mxu0 0.0
  %12283 = vmatprep.subr.mxu0 0.0
  %12284 = vmatpush1.msra.mxu0 0.0
  %12285 = vmatprep.mubr.f32.mxu0 0.0
  %v12286 = vand.u32 %v11828, 4294901760
  %12287 = vmatmul.mubr.f32.gmra.mrb[0].mxu0 %v12286
  %v12288 = vpop.f32.mrb[0].mxu0
  %v12289 = vadd.f32 %v12193, %v12288
  %v12290 = vpop.f32.mrb[0].mxu0
  %v12291 = vadd.f32 %v12195, %v12290
  %12292 = vdwg.mxu0
  %v12293 = vand.u32 %v10363, 4294901760
  %12294 = vmatprep.subr.mxu0 %v12293
  %v12295 = vand.u32 %v10259, 4294901760
  %12296 = vmatpush1.msra.mxu0 %v12295
  %v12297 = vand.u32 %v10779, 4294901760
  %12298 = vmatprep.subr.mxu0 %v12297
  %v12299 = vand.u32 %v10675, 4294901760
  %12300 = vmatpush1.msra.mxu0 %v12299
  %v12301 = vand.u32 %v11195, 4294901760
  %12302 = vmatprep.subr.mxu0 %v12301
  %v12303 = vand.u32 %v11091, 4294901760
  %12304 = vmatpush1.msra.mxu0 %v12303
  %v12305 = vand.u32 %v11611, 4294901760
  %12306 = vmatprep.subr.mxu0 %v12305
  %v12307 = vand.u32 %v11507, 4294901760
  %12308 = vmatpush1.msra.mxu0 %v12307
  %12309 = vmatprep.subr.mxu0 0.0
  %12310 = vmatpush1.msra.mxu0 0.0
  %12311 = vmatprep.subr.mxu0 0.0
  %12312 = vmatpush1.msra.mxu0 0.0
  %12313 = vmatprep.subr.mxu0 0.0
  %12314 = vmatpush1.msra.mxu0 0.0
  %12315 = vmatprep.subr.mxu0 0.0
  %12316 = vmatpush1.msra.mxu0 0.0
  %12317 = vmatprep.subr.mxu0 0.0
  %12318 = vmatpush1.msra.mxu0 0.0
  %12319 = vmatprep.subr.mxu0 0.0
  %12320 = vmatpush1.msra.mxu0 0.0
  %12321 = vmatprep.subr.mxu0 0.0
  %12322 = vmatpush1.msra.mxu0 0.0
  %12323 = vmatprep.subr.mxu0 0.0
  %12324 = vmatpush1.msra.mxu0 0.0
  %12325 = vmatprep.subr.mxu0 0.0
  %12326 = vmatpush1.msra.mxu0 0.0
  %12327 = vmatprep.subr.mxu0 0.0
  %12328 = vmatpush1.msra.mxu0 0.0
  %12329 = vmatprep.subr.mxu0 0.0
  %12330 = vmatpush1.msra.mxu0 0.0
  %12331 = vmatprep.subr.mxu0 0.0
  %12332 = vmatpush1.msra.mxu0 0.0
  %12333 = vmatprep.subr.mxu0 0.0
  %12334 = vmatpush1.msra.mxu0 0.0
  %12335 = vmatprep.subr.mxu0 0.0
  %12336 = vmatpush1.msra.mxu0 0.0
  %12337 = vmatprep.subr.mxu0 0.0
  %12338 = vmatpush1.msra.mxu0 0.0
  %12339 = vmatprep.subr.mxu0 0.0
  %12340 = vmatpush1.msra.mxu0 0.0
  %12341 = vmatprep.subr.mxu0 0.0
  %12342 = vmatpush1.msra.mxu0 0.0
  %12343 = vmatprep.subr.mxu0 0.0
  %12344 = vmatpush1.msra.mxu0 0.0
  %12345 = vmatprep.subr.mxu0 0.0
  %12346 = vmatpush1.msra.mxu0 0.0
  %12347 = vmatprep.subr.mxu0 0.0
  %12348 = vmatpush1.msra.mxu0 0.0
  %12349 = vmatprep.subr.mxu0 0.0
  %12350 = vmatpush1.msra.mxu0 0.0
  %12351 = vmatprep.subr.mxu0 0.0
  %12352 = vmatpush1.msra.mxu0 0.0
  %12353 = vmatprep.subr.mxu0 0.0
  %12354 = vmatpush1.msra.mxu0 0.0
  %12355 = vmatprep.subr.mxu0 0.0
  %12356 = vmatpush1.msra.mxu0 0.0
  %12357 = vmatprep.subr.mxu0 0.0
  %12358 = vmatpush1.msra.mxu0 0.0
  %12359 = vmatprep.subr.mxu0 0.0
  %12360 = vmatpush1.msra.mxu0 0.0
  %12361 = vmatprep.subr.mxu0 0.0
  %12362 = vmatpush1.msra.mxu0 0.0
  %12363 = vmatprep.subr.mxu0 0.0
  %12364 = vmatpush1.msra.mxu0 0.0
  %12365 = vmatprep.mubr.f32.mxu0 0.0
  %v12366 = vand.u32 %v11828, 4294901760
  %12367 = vmatmul.mubr.f32.gmra.mrb[0].mxu0 %v12366
  %v12368 = vpop.f32.mrb[0].mxu0
  %v12369 = vadd.f32 %v12289, %v12368
  %v12370 = vpop.f32.mrb[0].mxu0
  %v12371 = vadd.f32 %v12291, %v12370
  %12372 = vdwg.mxu0
  %v12373 = vand.u32 %v10571, 4294901760
  %12374 = vmatprep.subr.mxu0 %v12373
  %v12375 = vand.u32 %v10467, 4294901760
  %12376 = vmatpush1.msra.mxu0 %v12375
  %v12377 = vand.u32 %v10987, 4294901760
  %12378 = vmatprep.subr.mxu0 %v12377
  %v12379 = vand.u32 %v10883, 4294901760
  %12380 = vmatpush1.msra.mxu0 %v12379
  %v12381 = vand.u32 %v11403, 4294901760
  %12382 = vmatprep.subr.mxu0 %v12381
  %v12383 = vand.u32 %v11299, 4294901760
  %12384 = vmatpush1.msra.mxu0 %v12383
  %v12385 = vand.u32 %v11819, 4294901760
  %12386 = vmatprep.subr.mxu0 %v12385
  %v12387 = vand.u32 %v11715, 4294901760
  %12388 = vmatpush1.msra.mxu0 %v12387
  %12389 = vmatprep.subr.mxu0 0.0
  %12390 = vmatpush1.msra.mxu0 0.0
  %12391 = vmatprep.subr.mxu0 0.0
  %12392 = vmatpush1.msra.mxu0 0.0
  %12393 = vmatprep.subr.mxu0 0.0
  %12394 = vmatpush1.msra.mxu0 0.0
  %12395 = vmatprep.subr.mxu0 0.0
  %12396 = vmatpush1.msra.mxu0 0.0
  %12397 = vmatprep.subr.mxu0 0.0
  %12398 = vmatpush1.msra.mxu0 0.0
  %12399 = vmatprep.subr.mxu0 0.0
  %12400 = vmatpush1.msra.mxu0 0.0
  %12401 = vmatprep.subr.mxu0 0.0
  %12402 = vmatpush1.msra.mxu0 0.0
  %12403 = vmatprep.subr.mxu0 0.0
  %12404 = vmatpush1.msra.mxu0 0.0
  %12405 = vmatprep.subr.mxu0 0.0
  %12406 = vmatpush1.msra.mxu0 0.0
  %12407 = vmatprep.subr.mxu0 0.0
  %12408 = vmatpush1.msra.mxu0 0.0
  %12409 = vmatprep.subr.mxu0 0.0
  %12410 = vmatpush1.msra.mxu0 0.0
  %12411 = vmatprep.subr.mxu0 0.0
  %12412 = vmatpush1.msra.mxu0 0.0
  %12413 = vmatprep.subr.mxu0 0.0
  %12414 = vmatpush1.msra.mxu0 0.0
  %12415 = vmatprep.subr.mxu0 0.0
  %12416 = vmatpush1.msra.mxu0 0.0
  %12417 = vmatprep.subr.mxu0 0.0
  %12418 = vmatpush1.msra.mxu0 0.0
  %12419 = vmatprep.subr.mxu0 0.0
  %12420 = vmatpush1.msra.mxu0 0.0
  %12421 = vmatprep.subr.mxu0 0.0
  %12422 = vmatpush1.msra.mxu0 0.0
  %12423 = vmatprep.subr.mxu0 0.0
  %12424 = vmatpush1.msra.mxu0 0.0
  %12425 = vmatprep.subr.mxu0 0.0
  %12426 = vmatpush1.msra.mxu0 0.0
  %12427 = vmatprep.subr.mxu0 0.0
  %12428 = vmatpush1.msra.mxu0 0.0
  %12429 = vmatprep.subr.mxu0 0.0
  %12430 = vmatpush1.msra.mxu0 0.0
  %12431 = vmatprep.subr.mxu0 0.0
  %12432 = vmatpush1.msra.mxu0 0.0
  %12433 = vmatprep.subr.mxu0 0.0
  %12434 = vmatpush1.msra.mxu0 0.0
  %12435 = vmatprep.subr.mxu0 0.0
  %12436 = vmatpush1.msra.mxu0 0.0
  %12437 = vmatprep.subr.mxu0 0.0
  %12438 = vmatpush1.msra.mxu0 0.0
  %12439 = vmatprep.subr.mxu0 0.0
  %12440 = vmatpush1.msra.mxu0 0.0
  %12441 = vmatprep.subr.mxu0 0.0
  %12442 = vmatpush1.msra.mxu0 0.0
  %12443 = vmatprep.subr.mxu0 0.0
  %12444 = vmatpush1.msra.mxu0 0.0
  %12445 = vmatprep.mubr.f32.mxu0 0.0
  %v12446 = vand.u32 %v11828, 4294901760
  %v12447 = vsub.f32 %v11828, %v12446
  %v12448 = vand.u32 %v12447, 4294901760
  %v12449 = vsub.f32 %v12447, %v12448
  %v12450 = vand.u32 %v12449, 4294901760
  %12451 = vmatmul.mubr.f32.gmra.mrb[0].mxu0 %v12450
  %v12452 = vpop.f32.mrb[0].mxu0
  %v12453 = vadd.f32 %v11825, %v12452
  %v12454 = vpop.f32.mrb[0].mxu0
  %v12455 = vadd.f32 %v11825, %v12454
  %12456 = vdwg.mxu0
  %v12457 = vand.u32 %v10571, 4294901760
  %v12458 = vsub.f32 %v10571, %v12457
  %v12459 = vand.u32 %v12458, 4294901760
  %v12460 = vsub.f32 %v12458, %v12459
  %v12461 = vand.u32 %v12460, 4294901760
  %12462 = vmatprep.subr.mxu0 %v12461
  %v12463 = vand.u32 %v10467, 4294901760
  %v12464 = vsub.f32 %v10467, %v12463
  %v12465 = vand.u32 %v12464, 4294901760
  %v12466 = vsub.f32 %v12464, %v12465
  %v12467 = vand.u32 %v12466, 4294901760
  %12468 = vmatpush1.msra.mxu0 %v12467
  %v12469 = vand.u32 %v10987, 4294901760
  %v12470 = vsub.f32 %v10987, %v12469
  %v12471 = vand.u32 %v12470, 4294901760
  %v12472 = vsub.f32 %v12470, %v12471
  %v12473 = vand.u32 %v12472, 4294901760
  %12474 = vmatprep.subr.mxu0 %v12473
  %v12475 = vand.u32 %v10883, 4294901760
  %v12476 = vsub.f32 %v10883, %v12475
  %v12477 = vand.u32 %v12476, 4294901760
  %v12478 = vsub.f32 %v12476, %v12477
  %v12479 = vand.u32 %v12478, 4294901760
  %12480 = vmatpush1.msra.mxu0 %v12479
  %v12481 = vand.u32 %v11403, 4294901760
  %v12482 = vsub.f32 %v11403, %v12481
  %v12483 = vand.u32 %v12482, 4294901760
  %v12484 = vsub.f32 %v12482, %v12483
  %v12485 = vand.u32 %v12484, 4294901760
  %12486 = vmatprep.subr.mxu0 %v12485
  %v12487 = vand.u32 %v11299, 4294901760
  %v12488 = vsub.f32 %v11299, %v12487
  %v12489 = vand.u32 %v12488, 4294901760
  %v12490 = vsub.f32 %v12488, %v12489
  %v12491 = vand.u32 %v12490, 4294901760
  %12492 = vmatpush1.msra.mxu0 %v12491
  %v12493 = vand.u32 %v11819, 4294901760
  %v12494 = vsub.f32 %v11819, %v12493
  %v12495 = vand.u32 %v12494, 4294901760
  %v12496 = vsub.f32 %v12494, %v12495
  %v12497 = vand.u32 %v12496, 4294901760
  %12498 = vmatprep.subr.mxu0 %v12497
  %v12499 = vand.u32 %v11715, 4294901760
  %v12500 = vsub.f32 %v11715, %v12499
  %v12501 = vand.u32 %v12500, 4294901760
  %v12502 = vsub.f32 %v12500, %v12501
  %v12503 = vand.u32 %v12502, 4294901760
  %12504 = vmatpush1.msra.mxu0 %v12503
  %12505 = vmatprep.subr.mxu0 0.0
  %12506 = vmatpush1.msra.mxu0 0.0
  %12507 = vmatprep.subr.mxu0 0.0
  %12508 = vmatpush1.msra.mxu0 0.0
  %12509 = vmatprep.subr.mxu0 0.0
  %12510 = vmatpush1.msra.mxu0 0.0
  %12511 = vmatprep.subr.mxu0 0.0
  %12512 = vmatpush1.msra.mxu0 0.0
  %12513 = vmatprep.subr.mxu0 0.0
  %12514 = vmatpush1.msra.mxu0 0.0
  %12515 = vmatprep.subr.mxu0 0.0
  %12516 = vmatpush1.msra.mxu0 0.0
  %12517 = vmatprep.subr.mxu0 0.0
  %12518 = vmatpush1.msra.mxu0 0.0
  %12519 = vmatprep.subr.mxu0 0.0
  %12520 = vmatpush1.msra.mxu0 0.0
  %12521 = vmatprep.subr.mxu0 0.0
  %12522 = vmatpush1.msra.mxu0 0.0
  %12523 = vmatprep.subr.mxu0 0.0
  %12524 = vmatpush1.msra.mxu0 0.0
  %12525 = vmatprep.subr.mxu0 0.0
  %12526 = vmatpush1.msra.mxu0 0.0
  %12527 = vmatprep.subr.mxu0 0.0
  %12528 = vmatpush1.msra.mxu0 0.0
  %12529 = vmatprep.subr.mxu0 0.0
  %12530 = vmatpush1.msra.mxu0 0.0
  %12531 = vmatprep.subr.mxu0 0.0
  %12532 = vmatpush1.msra.mxu0 0.0
  %12533 = vmatprep.subr.mxu0 0.0
  %12534 = vmatpush1.msra.mxu0 0.0
  %12535 = vmatprep.subr.mxu0 0.0
  %12536 = vmatpush1.msra.mxu0 0.0
  %12537 = vmatprep.subr.mxu0 0.0
  %12538 = vmatpush1.msra.mxu0 0.0
  %12539 = vmatprep.subr.mxu0 0.0
  %12540 = vmatpush1.msra.mxu0 0.0
  %12541 = vmatprep.subr.mxu0 0.0
  %12542 = vmatpush1.msra.mxu0 0.0
  %12543 = vmatprep.subr.mxu0 0.0
  %12544 = vmatpush1.msra.mxu0 0.0
  %12545 = vmatprep.subr.mxu0 0.0
  %12546 = vmatpush1.msra.mxu0 0.0
  %12547 = vmatprep.subr.mxu0 0.0
  %12548 = vmatpush1.msra.mxu0 0.0
  %12549 = vmatprep.subr.mxu0 0.0
  %12550 = vmatpush1.msra.mxu0 0.0
  %12551 = vmatprep.subr.mxu0 0.0
  %12552 = vmatpush1.msra.mxu0 0.0
  %12553 = vmatprep.subr.mxu0 0.0
  %12554 = vmatpush1.msra.mxu0 0.0
  %12555 = vmatprep.subr.mxu0 0.0
  %12556 = vmatpush1.msra.mxu0 0.0
  %12557 = vmatprep.subr.mxu0 0.0
  %12558 = vmatpush1.msra.mxu0 0.0
  %12559 = vmatprep.subr.mxu0 0.0
  %12560 = vmatpush1.msra.mxu0 0.0
  %12561 = vmatprep.mubr.f32.mxu0 0.0
  %v12562 = vand.u32 %v11828, 4294901760
  %12563 = vmatmul.mubr.f32.gmra.mrb[0].mxu0 %v12562
  %v12564 = vpop.f32.mrb[0].mxu0
  %v12565 = vadd.f32 %v12453, %v12564
  %v12566 = vpop.f32.mrb[0].mxu0
  %v12567 = vadd.f32 %v12455, %v12566
  %12568 = vdwg.mxu0
  %v12569 = vand.u32 %v10571, 4294901760
  %v12570 = vsub.f32 %v10571, %v12569
  %12571 = vmatprep.subr.mxu0 %v12570
  %v12572 = vand.u32 %v10467, 4294901760
  %v12573 = vsub.f32 %v10467, %v12572
  %12574 = vmatpush1.msra.mxu0 %v12573
  %v12575 = vand.u32 %v10987, 4294901760
  %v12576 = vsub.f32 %v10987, %v12575
  %12577 = vmatprep.subr.mxu0 %v12576
  %v12578 = vand.u32 %v10883, 4294901760
  %v12579 = vsub.f32 %v10883, %v12578
  %12580 = vmatpush1.msra.mxu0 %v12579
  %v12581 = vand.u32 %v11403, 4294901760
  %v12582 = vsub.f32 %v11403, %v12581
  %12583 = vmatprep.subr.mxu0 %v12582
  %v12584 = vand.u32 %v11299, 4294901760
  %v12585 = vsub.f32 %v11299, %v12584
  %12586 = vmatpush1.msra.mxu0 %v12585
  %v12587 = vand.u32 %v11819, 4294901760
  %v12588 = vsub.f32 %v11819, %v12587
  %12589 = vmatprep.subr.mxu0 %v12588
  %v12590 = vand.u32 %v11715, 4294901760
  %v12591 = vsub.f32 %v11715, %v12590
  %12592 = vmatpush1.msra.mxu0 %v12591
  %12593 = vmatprep.subr.mxu0 0.0
  %12594 = vmatpush1.msra.mxu0 0.0
  %12595 = vmatprep.subr.mxu0 0.0
  %12596 = vmatpush1.msra.mxu0 0.0
  %12597 = vmatprep.subr.mxu0 0.0
  %12598 = vmatpush1.msra.mxu0 0.0
  %12599 = vmatprep.subr.mxu0 0.0
  %12600 = vmatpush1.msra.mxu0 0.0
  %12601 = vmatprep.subr.mxu0 0.0
  %12602 = vmatpush1.msra.mxu0 0.0
  %12603 = vmatprep.subr.mxu0 0.0
  %12604 = vmatpush1.msra.mxu0 0.0
  %12605 = vmatprep.subr.mxu0 0.0
  %12606 = vmatpush1.msra.mxu0 0.0
  %12607 = vmatprep.subr.mxu0 0.0
  %12608 = vmatpush1.msra.mxu0 0.0
  %12609 = vmatprep.subr.mxu0 0.0
  %12610 = vmatpush1.msra.mxu0 0.0
  %12611 = vmatprep.subr.mxu0 0.0
  %12612 = vmatpush1.msra.mxu0 0.0
  %12613 = vmatprep.subr.mxu0 0.0
  %12614 = vmatpush1.msra.mxu0 0.0
  %12615 = vmatprep.subr.mxu0 0.0
  %12616 = vmatpush1.msra.mxu0 0.0
  %12617 = vmatprep.subr.mxu0 0.0
  %12618 = vmatpush1.msra.mxu0 0.0
  %12619 = vmatprep.subr.mxu0 0.0
  %12620 = vmatpush1.msra.mxu0 0.0
  %12621 = vmatprep.subr.mxu0 0.0
  %12622 = vmatpush1.msra.mxu0 0.0
  %12623 = vmatprep.subr.mxu0 0.0
  %12624 = vmatpush1.msra.mxu0 0.0
  %12625 = vmatprep.subr.mxu0 0.0
  %12626 = vmatpush1.msra.mxu0 0.0
  %12627 = vmatprep.subr.mxu0 0.0
  %12628 = vmatpush1.msra.mxu0 0.0
  %12629 = vmatprep.subr.mxu0 0.0
  %12630 = vmatpush1.msra.mxu0 0.0
  %12631 = vmatprep.subr.mxu0 0.0
  %12632 = vmatpush1.msra.mxu0 0.0
  %12633 = vmatprep.subr.mxu0 0.0
  %12634 = vmatpush1.msra.mxu0 0.0
  %12635 = vmatprep.subr.mxu0 0.0
  %12636 = vmatpush1.msra.mxu0 0.0
  %12637 = vmatprep.subr.mxu0 0.0
  %12638 = vmatpush1.msra.mxu0 0.0
  %12639 = vmatprep.subr.mxu0 0.0
  %12640 = vmatpush1.msra.mxu0 0.0
  %12641 = vmatprep.subr.mxu0 0.0
  %12642 = vmatpush1.msra.mxu0 0.0
  %12643 = vmatprep.subr.mxu0 0.0
  %12644 = vmatpush1.msra.mxu0 0.0
  %12645 = vmatprep.subr.mxu0 0.0
  %12646 = vmatpush1.msra.mxu0 0.0
  %12647 = vmatprep.subr.mxu0 0.0
  %12648 = vmatpush1.msra.mxu0 0.0
  %12649 = vmatprep.mubr.f32.mxu0 0.0
  %v12650 = vand.u32 %v11828, 4294901760
  %v12651 = vsub.f32 %v11828, %v12650
  %12652 = vmatmul.mubr.f32.gmra.mrb[0].mxu0 %v12651
  %v12653 = vpop.f32.mrb[0].mxu0
  %v12654 = vadd.f32 %v12565, %v12653
  %v12655 = vpop.f32.mrb[0].mxu0
  %v12656 = vadd.f32 %v12567, %v12655
  %12657 = vdwg.mxu0
  %v12658 = vand.u32 %v10571, 4294901760
  %12659 = vmatprep.subr.mxu0 %v12658
  %v12660 = vand.u32 %v10467, 4294901760
  %12661 = vmatpush1.msra.mxu0 %v12660
  %v12662 = vand.u32 %v10987, 4294901760
  %12663 = vmatprep.subr.mxu0 %v12662
  %v12664 = vand.u32 %v10883, 4294901760
  %12665 = vmatpush1.msra.mxu0 %v12664
  %v12666 = vand.u32 %v11403, 4294901760
  %12667 = vmatprep.subr.mxu0 %v12666
  %v12668 = vand.u32 %v11299, 4294901760
  %12669 = vmatpush1.msra.mxu0 %v12668
  %v12670 = vand.u32 %v11819, 4294901760
  %12671 = vmatprep.subr.mxu0 %v12670
  %v12672 = vand.u32 %v11715, 4294901760
  %12673 = vmatpush1.msra.mxu0 %v12672
  %12674 = vmatprep.subr.mxu0 0.0
  %12675 = vmatpush1.msra.mxu0 0.0
  %12676 = vmatprep.subr.mxu0 0.0
  %12677 = vmatpush1.msra.mxu0 0.0
  %12678 = vmatprep.subr.mxu0 0.0
  %12679 = vmatpush1.msra.mxu0 0.0
  %12680 = vmatprep.subr.mxu0 0.0
  %12681 = vmatpush1.msra.mxu0 0.0
  %12682 = vmatprep.subr.mxu0 0.0
  %12683 = vmatpush1.msra.mxu0 0.0
  %12684 = vmatprep.subr.mxu0 0.0
  %12685 = vmatpush1.msra.mxu0 0.0
  %12686 = vmatprep.subr.mxu0 0.0
  %12687 = vmatpush1.msra.mxu0 0.0
  %12688 = vmatprep.subr.mxu0 0.0
  %12689 = vmatpush1.msra.mxu0 0.0
  %12690 = vmatprep.subr.mxu0 0.0
  %12691 = vmatpush1.msra.mxu0 0.0
  %12692 = vmatprep.subr.mxu0 0.0
  %12693 = vmatpush1.msra.mxu0 0.0
  %12694 = vmatprep.subr.mxu0 0.0
  %12695 = vmatpush1.msra.mxu0 0.0
  %12696 = vmatprep.subr.mxu0 0.0
  %12697 = vmatpush1.msra.mxu0 0.0
  %12698 = vmatprep.subr.mxu0 0.0
  %12699 = vmatpush1.msra.mxu0 0.0
  %12700 = vmatprep.subr.mxu0 0.0
  %12701 = vmatpush1.msra.mxu0 0.0
  %12702 = vmatprep.subr.mxu0 0.0
  %12703 = vmatpush1.msra.mxu0 0.0
  %12704 = vmatprep.subr.mxu0 0.0
  %12705 = vmatpush1.msra.mxu0 0.0
  %12706 = vmatprep.subr.mxu0 0.0
  %12707 = vmatpush1.msra.mxu0 0.0
  %12708 = vmatprep.subr.mxu0 0.0
  %12709 = vmatpush1.msra.mxu0 0.0
  %12710 = vmatprep.subr.mxu0 0.0
  %12711 = vmatpush1.msra.mxu0 0.0
  %12712 = vmatprep.subr.mxu0 0.0
  %12713 = vmatpush1.msra.mxu0 0.0
  %12714 = vmatprep.subr.mxu0 0.0
  %12715 = vmatpush1.msra.mxu0 0.0
  %12716 = vmatprep.subr.mxu0 0.0
  %12717 = vmatpush1.msra.mxu0 0.0
  %12718 = vmatprep.subr.mxu0 0.0
  %12719 = vmatpush1.msra.mxu0 0.0
  %12720 = vmatprep.subr.mxu0 0.0
  %12721 = vmatpush1.msra.mxu0 0.0
  %12722 = vmatprep.subr.mxu0 0.0
  %12723 = vmatpush1.msra.mxu0 0.0
  %12724 = vmatprep.subr.mxu0 0.0
  %12725 = vmatpush1.msra.mxu0 0.0
  %12726 = vmatprep.subr.mxu0 0.0
  %12727 = vmatpush1.msra.mxu0 0.0
  %12728 = vmatprep.subr.mxu0 0.0
  %12729 = vmatpush1.msra.mxu0 0.0
  %12730 = vmatprep.mubr.f32.mxu0 0.0
  %v12731 = vand.u32 %v11828, 4294901760
  %v12732 = vsub.f32 %v11828, %v12731
  %v12733 = vand.u32 %v12732, 4294901760
  %12734 = vmatmul.mubr.f32.gmra.mrb[0].mxu0 %v12733
  %v12735 = vpop.f32.mrb[0].mxu0
  %v12736 = vadd.f32 %v12654, %v12735
  %v12737 = vpop.f32.mrb[0].mxu0
  %v12738 = vadd.f32 %v12656, %v12737
  %12739 = vdwg.mxu0
  %v12740 = vand.u32 %v10571, 4294901760
  %v12741 = vsub.f32 %v10571, %v12740
  %v12742 = vand.u32 %v12741, 4294901760
  %12743 = vmatprep.subr.mxu0 %v12742
  %v12744 = vand.u32 %v10467, 4294901760
  %v12745 = vsub.f32 %v10467, %v12744
  %v12746 = vand.u32 %v12745, 4294901760
  %12747 = vmatpush1.msra.mxu0 %v12746
  %v12748 = vand.u32 %v10987, 4294901760
  %v12749 = vsub.f32 %v10987, %v12748
  %v12750 = vand.u32 %v12749, 4294901760
  %12751 = vmatprep.subr.mxu0 %v12750
  %v12752 = vand.u32 %v10883, 4294901760
  %v12753 = vsub.f32 %v10883, %v12752
  %v12754 = vand.u32 %v12753, 4294901760
  %12755 = vmatpush1.msra.mxu0 %v12754
  %v12756 = vand.u32 %v11403, 4294901760
  %v12757 = vsub.f32 %v11403, %v12756
  %v12758 = vand.u32 %v12757, 4294901760
  %12759 = vmatprep.subr.mxu0 %v12758
  %v12760 = vand.u32 %v11299, 4294901760
  %v12761 = vsub.f32 %v11299, %v12760
  %v12762 = vand.u32 %v12761, 4294901760
  %12763 = vmatpush1.msra.mxu0 %v12762
  %v12764 = vand.u32 %v11819, 4294901760
  %v12765 = vsub.f32 %v11819, %v12764
  %v12766 = vand.u32 %v12765, 4294901760
  %12767 = vmatprep.subr.mxu0 %v12766
  %v12768 = vand.u32 %v11715, 4294901760
  %v12769 = vsub.f32 %v11715, %v12768
  %v12770 = vand.u32 %v12769, 4294901760
  %12771 = vmatpush1.msra.mxu0 %v12770
  %12772 = vmatprep.subr.mxu0 0.0
  %12773 = vmatpush1.msra.mxu0 0.0
  %12774 = vmatprep.subr.mxu0 0.0
  %12775 = vmatpush1.msra.mxu0 0.0
  %12776 = vmatprep.subr.mxu0 0.0
  %12777 = vmatpush1.msra.mxu0 0.0
  %12778 = vmatprep.subr.mxu0 0.0
  %12779 = vmatpush1.msra.mxu0 0.0
  %12780 = vmatprep.subr.mxu0 0.0
  %12781 = vmatpush1.msra.mxu0 0.0
  %12782 = vmatprep.subr.mxu0 0.0
  %12783 = vmatpush1.msra.mxu0 0.0
  %12784 = vmatprep.subr.mxu0 0.0
  %12785 = vmatpush1.msra.mxu0 0.0
  %12786 = vmatprep.subr.mxu0 0.0
  %12787 = vmatpush1.msra.mxu0 0.0
  %12788 = vmatprep.subr.mxu0 0.0
  %12789 = vmatpush1.msra.mxu0 0.0
  %12790 = vmatprep.subr.mxu0 0.0
  %12791 = vmatpush1.msra.mxu0 0.0
  %12792 = vmatprep.subr.mxu0 0.0
  %12793 = vmatpush1.msra.mxu0 0.0
  %12794 = vmatprep.subr.mxu0 0.0
  %12795 = vmatpush1.msra.mxu0 0.0
  %12796 = vmatprep.subr.mxu0 0.0
  %12797 = vmatpush1.msra.mxu0 0.0
  %12798 = vmatprep.subr.mxu0 0.0
  %12799 = vmatpush1.msra.mxu0 0.0
  %12800 = vmatprep.subr.mxu0 0.0
  %12801 = vmatpush1.msra.mxu0 0.0
  %12802 = vmatprep.subr.mxu0 0.0
  %12803 = vmatpush1.msra.mxu0 0.0
  %12804 = vmatprep.subr.mxu0 0.0
  %12805 = vmatpush1.msra.mxu0 0.0
  %12806 = vmatprep.subr.mxu0 0.0
  %12807 = vmatpush1.msra.mxu0 0.0
  %12808 = vmatprep.subr.mxu0 0.0
  %12809 = vmatpush1.msra.mxu0 0.0
  %12810 = vmatprep.subr.mxu0 0.0
  %12811 = vmatpush1.msra.mxu0 0.0
  %12812 = vmatprep.subr.mxu0 0.0
  %12813 = vmatpush1.msra.mxu0 0.0
  %12814 = vmatprep.subr.mxu0 0.0
  %12815 = vmatpush1.msra.mxu0 0.0
  %12816 = vmatprep.subr.mxu0 0.0
  %12817 = vmatpush1.msra.mxu0 0.0
  %12818 = vmatprep.subr.mxu0 0.0
  %12819 = vmatpush1.msra.mxu0 0.0
  %12820 = vmatprep.subr.mxu0 0.0
  %12821 = vmatpush1.msra.mxu0 0.0
  %12822 = vmatprep.subr.mxu0 0.0
  %12823 = vmatpush1.msra.mxu0 0.0
  %12824 = vmatprep.subr.mxu0 0.0
  %12825 = vmatpush1.msra.mxu0 0.0
  %12826 = vmatprep.subr.mxu0 0.0
  %12827 = vmatpush1.msra.mxu0 0.0
  %12828 = vmatprep.mubr.f32.mxu0 0.0
  %v12829 = vand.u32 %v11828, 4294901760
  %12830 = vmatmul.mubr.f32.gmra.mrb[0].mxu0 %v12829
  %v12831 = vpop.f32.mrb[0].mxu0
  %v12832 = vadd.f32 %v12736, %v12831
  %v12833 = vpop.f32.mrb[0].mxu0
  %v12834 = vadd.f32 %v12738, %v12833
  %12835 = vdwg.mxu0
  %v12836 = vand.u32 %v10571, 4294901760
  %12837 = vmatprep.subr.mxu0 %v12836
  %v12838 = vand.u32 %v10467, 4294901760
  %12839 = vmatpush1.msra.mxu0 %v12838
  %v12840 = vand.u32 %v10987, 4294901760
  %12841 = vmatprep.subr.mxu0 %v12840
  %v12842 = vand.u32 %v10883, 4294901760
  %12843 = vmatpush1.msra.mxu0 %v12842
  %v12844 = vand.u32 %v11403, 4294901760
  %12845 = vmatprep.subr.mxu0 %v12844
  %v12846 = vand.u32 %v11299, 4294901760
  %12847 = vmatpush1.msra.mxu0 %v12846
  %v12848 = vand.u32 %v11819, 4294901760
  %12849 = vmatprep.subr.mxu0 %v12848
  %v12850 = vand.u32 %v11715, 4294901760
  %12851 = vmatpush1.msra.mxu0 %v12850
  %12852 = vmatprep.subr.mxu0 0.0
  %12853 = vmatpush1.msra.mxu0 0.0
  %12854 = vmatprep.subr.mxu0 0.0
  %12855 = vmatpush1.msra.mxu0 0.0
  %12856 = vmatprep.subr.mxu0 0.0
  %12857 = vmatpush1.msra.mxu0 0.0
  %12858 = vmatprep.subr.mxu0 0.0
  %12859 = vmatpush1.msra.mxu0 0.0
  %12860 = vmatprep.subr.mxu0 0.0
  %12861 = vmatpush1.msra.mxu0 0.0
  %12862 = vmatprep.subr.mxu0 0.0
  %12863 = vmatpush1.msra.mxu0 0.0
  %12864 = vmatprep.subr.mxu0 0.0
  %12865 = vmatpush1.msra.mxu0 0.0
  %12866 = vmatprep.subr.mxu0 0.0
  %12867 = vmatpush1.msra.mxu0 0.0
  %12868 = vmatprep.subr.mxu0 0.0
  %12869 = vmatpush1.msra.mxu0 0.0
  %12870 = vmatprep.subr.mxu0 0.0
  %12871 = vmatpush1.msra.mxu0 0.0
  %12872 = vmatprep.subr.mxu0 0.0
  %12873 = vmatpush1.msra.mxu0 0.0
  %12874 = vmatprep.subr.mxu0 0.0
  %12875 = vmatpush1.msra.mxu0 0.0
  %12876 = vmatprep.subr.mxu0 0.0
  %12877 = vmatpush1.msra.mxu0 0.0
  %12878 = vmatprep.subr.mxu0 0.0
  %12879 = vmatpush1.msra.mxu0 0.0
  %12880 = vmatprep.subr.mxu0 0.0
  %12881 = vmatpush1.msra.mxu0 0.0
  %12882 = vmatprep.subr.mxu0 0.0
  %12883 = vmatpush1.msra.mxu0 0.0
  %12884 = vmatprep.subr.mxu0 0.0
  %12885 = vmatpush1.msra.mxu0 0.0
  %12886 = vmatprep.subr.mxu0 0.0
  %12887 = vmatpush1.msra.mxu0 0.0
  %12888 = vmatprep.subr.mxu0 0.0
  %12889 = vmatpush1.msra.mxu0 0.0
  %12890 = vmatprep.subr.mxu0 0.0
  %12891 = vmatpush1.msra.mxu0 0.0
  %12892 = vmatprep.subr.mxu0 0.0
  %12893 = vmatpush1.msra.mxu0 0.0
  %12894 = vmatprep.subr.mxu0 0.0
  %12895 = vmatpush1.msra.mxu0 0.0
  %12896 = vmatprep.subr.mxu0 0.0
  %12897 = vmatpush1.msra.mxu0 0.0
  %12898 = vmatprep.subr.mxu0 0.0
  %12899 = vmatpush1.msra.mxu0 0.0
  %12900 = vmatprep.subr.mxu0 0.0
  %12901 = vmatpush1.msra.mxu0 0.0
  %12902 = vmatprep.subr.mxu0 0.0
  %12903 = vmatpush1.msra.mxu0 0.0
  %12904 = vmatprep.subr.mxu0 0.0
  %12905 = vmatpush1.msra.mxu0 0.0
  %12906 = vmatprep.subr.mxu0 0.0
  %12907 = vmatpush1.msra.mxu0 0.0
  %12908 = vmatprep.mubr.f32.mxu0 0.0
  %v12909 = vand.u32 %v11828, 4294901760
  %12910 = vmatmul.mubr.f32.gmra.mrb[0].mxu0 %v12909
  %v12911 = vpop.f32.mrb[0].mxu0
  %v12912 = vadd.f32 %v12832, %v12911
  %v12913 = vpop.f32.mrb[0].mxu0
  %v12914 = vadd.f32 %v12834, %v12913
  %12915 = vdwg.mxu0
  %v12920 = vcombine.low %v12369, %v12371
  %v12921 = vcombine.low %v12912, %v12914
  %12924 = vst [vmem:[%s9] sm:$0xff] %v12920
  %12925 = vst [vmem:[%s9 + $0x8] sm:$0xff] %v12921
  // Predicated region
  $region38: #{hyponet_forward.1} parent=0 // pred_check
    _
  $region39: #{hyponet_forward.1} parent=0 // pred_check_branch
    %12927 = sbr.rel (0) target = $region41
  $region40: #{hyponet_forward.1} parent=0 // pred_region
    _
  $region41: #{hyponet_forward.1} parent=0 // pred_fallthru
    _
  // Predicated region
  $region42: #{hyponet_forward.1} parent=0 // pred_check
    _
  $region43: #{hyponet_forward.1} parent=0 // pred_check_branch
    %12929 = sbr.rel (0) target = $region45
  $region44: #{hyponet_forward.1} parent=0 // pred_region
    _
  $region45: #{hyponet_forward.1} parent=0 // pred_fallthru
    _

</llo_original>
